<compile_context>
chip_gen: v6e
topology: v6e:2x2x1
jax: 0.10.0
libtpu: 0.0.40
codegen_flags: <defaults>
</compile_context>

<pallas_src>
import functools

import jax
import jax.numpy as jnp
from jax.experimental import pallas as pl
from jax.experimental.pallas import tpu as pltpu


# ------------------------------- fused kernel -------------------------------
def _dense_block_kernel(x_ref, mask_ref, *refs, H, W, filters, cr, n_layers,
                        ctot, mm_dtype, eps=1e-5, slope=0.2):
    """One image: reduction conv + n_layers*(conv+IN+LReLU) + final conv.

    Layout: channels on sublanes, flattened padded spatial on lanes.
      x_ref    : (filters, Stot)  zero-padded flat image (+1 guard each end)
      mask_ref : (1, L)           1.0 at valid (non-pad-column) slab positions
      refs     : w_0 .. w_{n_layers+1} each (9, Cout, Cin) with tap t = ky*3+kx,
                 then o_ref (out_channel, L), then feats scratch (ctot, Stot).
    The output "slab" covers padded rows 1..H, all Wp columns (L = H*Wp); the
    2 junk columns per row are masked back to zero so they double as the zero
    padding for the next conv, and are stripped in the wrapper.
    """
    n_w = n_layers + 2
    w_refs = refs[:n_w]
    o_ref = refs[n_w]
    feats_ref = refs[n_w + 1]

    f32 = jnp.float32
    Wp = W + 2
    L = H * Wp
    Stot = (H + 2) * Wp + 2
    slab = Wp + 1                         # buffer offset where the slab starts
    inv_hw = 1.0 / float(H * W)
    mask = mask_ref[...]                  # (1, L)

    # Top/bottom pad rows + guard elements must stay zero; the slab itself is
    # fully overwritten below.  Re-zero the two tiny border strips every step
    # (a couple of vregs) so this stays correct when the parallel grid is
    # sharded across TensorCores (each core has its own scratch instance).
    feats_ref[:, 0:slab] = jnp.zeros((ctot, slab), f32)
    feats_ref[:, slab + L:Stot] = jnp.zeros((ctot, Stot - slab - L), f32)

    def conv3x3(src_ref, cin, w_ref, norm, lrelu, apply_mask):
        """SAME 3x3 conv over channels [0, cin) of a padded flat buffer.

        9 accumulating dots; each tap's shifted plane is a static lane slice
        of the padded buffer (no im2col copies, no lane concat).  Returns a
        lane-dense (Cout, L) f32 accumulator."""
        cout = w_ref.shape[1]
        acc = jnp.zeros((cout, L), f32)
        for ky in range(3):
            for kx in range(3):
                t = ky * 3 + kx
                start = ky * Wp + kx                      # static tap shift
                plane = src_ref[0:cin, start:start + L]   # (cin, L)
                acc = acc + jnp.dot(w_refs_cast(w_ref, t),
                                    plane.astype(mm_dtype),
                                    preferred_element_type=f32)
        if norm:
            # InstanceNorm2d (affine=False, biased var, eps=1e-5) over the H*W
            # valid positions only; junk pad columns forced back to zero.
            mean = jnp.sum(acc * mask, axis=1, keepdims=True) * inv_hw
            d = (acc - mean) * mask
            var = jnp.sum(d * d, axis=1, keepdims=True) * inv_hw
            acc = d * jax.lax.rsqrt(var + eps)
        elif apply_mask:
            acc = acc * mask
        if lrelu:
            acc = jnp.where(acc > 0, acc, slope * acc)
        return acc

    def w_refs_cast(w_ref, t):
        return w_ref[t].astype(mm_dtype)                  # (Cout, Cin)

    # Reduction conv: filters -> cr, written to feature channels [0, cr).
    y = conv3x3(x_ref, filters, w_refs[0], norm=False, lrelu=False,
                apply_mask=True)
    feats_ref[0:cr, slab:slab + L] = y

    # Dense layers: conv -> InstanceNorm -> LeakyReLU; "concat" = direct write
    # into the next cr-channel sublane slice of the feats buffer.
    for i in range(n_layers):
        cin = (i + 1) * cr
        y = conv3x3(feats_ref, cin, w_refs[1 + i], norm=True, lrelu=True,
                    apply_mask=True)
        feats_ref[cin:cin + cr, slab:slab + L] = y

    # Final conv over all ctot channels; junk columns stripped in the wrapper.
    o_ref[...] = conv3x3(feats_ref, ctot, w_refs[n_w - 1], norm=False,
                         lrelu=False, apply_mask=False).astype(o_ref.dtype)


# ------------------------------ weight plumbing ------------------------------
def _prep_w(w_oihw, dtype):
    """PyTorch [Cout, Cin, 3, 3] -> [9, Cout, Cin], tap index t = ky*3 + kx."""
    cout, cin = w_oihw.shape[0], w_oihw.shape[1]
    return jnp.transpose(w_oihw, (2, 3, 0, 1)).reshape(9, cout, cin).astype(dtype)


def init_dense_block_params(key, filters=4, channel_reduction=2,
                            out_channel=None, n_layers=4):
    """Synthetic weights in PyTorch OIHW layout (bias=False, as in the module)."""
    out_channel = filters if out_channel is None else out_channel
    cr = filters // channel_reduction

    def conv_w(k, cout, cin):
        scale = 1.0 / jnp.sqrt(jnp.float32(cin * 9))
        return jax.random.normal(k, (cout, cin, 3, 3), jnp.float32) * scale

    keys = jax.random.split(key, n_layers + 2)
    return {
        "reduction": conv_w(keys[0], cr, filters),
        "blocks": [conv_w(keys[1 + i], cr, (i + 1) * cr) for i in range(n_layers)],
        "conv": conv_w(keys[n_layers + 1], out_channel, (n_layers + 1) * cr),
    }


# --------------------------------- wrapper -----------------------------------
def dense_block_2d(x_nchw, params, *, matmul_dtype=jnp.bfloat16):
    """Forward pass matching DenseBlock2d.forward (defaults, stasm=None).

    x_nchw: [N, filters, H, W]; params: OIHW weights from init_dense_block_params.
    matmul_dtype=bfloat16 (default) feeds bf16 to the MXU; accumulation and
    InstanceNorm statistics stay in f32.  Pass jnp.float32 for exact-f32 math.
    """
    N, filters, H, W = x_nchw.shape
    n_layers = len(params["blocks"])
    cr = params["reduction"].shape[0]
    out_channel = params["conv"].shape[0]
    ctot = (n_layers + 1) * cr
    assert params["reduction"].shape[1] == filters

    Wp, Hp = W + 2, H + 2
    Stot = Hp * Wp + 2          # flat padded spatial + 1 guard element each end
    L = H * Wp                  # output slab length (rows 1..H, all Wp columns)

    # --- layout plumbing on the XLA side (tiny) ---
    xp = jnp.pad(x_nchw, ((0, 0), (0, 0), (1, 1), (1, 1)))          # spatial pad
    xflat = jnp.pad(xp.reshape(N, filters, Hp * Wp), ((0, 0), (0, 0), (1, 1)))

    col = jnp.arange(L, dtype=jnp.int32) % Wp
    mask = ((col >= 1) & (col <= W)).astype(jnp.float32).reshape(1, L)

    w_list = ([_prep_w(params["reduction"], matmul_dtype)]
              + [_prep_w(w, matmul_dtype) for w in params["blocks"]]
              + [_prep_w(params["conv"], matmul_dtype)])

    kernel = functools.partial(
        _dense_block_kernel, H=H, W=W, filters=filters, cr=cr,
        n_layers=n_layers, ctot=ctot, mm_dtype=matmul_dtype)

    in_specs = [pl.BlockSpec((None, filters, Stot), lambda n: (n, 0, 0)),
                pl.BlockSpec((1, L), lambda n: (0, 0))]
    # Constant-index weight blocks: fetched once, resident across grid steps.
    in_specs += [pl.BlockSpec(w.shape, lambda n: (0, 0, 0)) for w in w_list]

    out = pl.pallas_call(
        kernel,
        out_shape=jax.ShapeDtypeStruct((N, out_channel, L), x_nchw.dtype),
        grid=(N,),
        in_specs=in_specs,
        out_specs=pl.BlockSpec((None, out_channel, L), lambda n: (n, 0, 0)),
        scratch_shapes=[pltpu.VMEM((ctot, Stot), jnp.float32)],   # feats buffer
        compiler_params=pltpu.CompilerParams(
            dimension_semantics=("parallel",)),
    )(xflat, mask, *w_list)

    # (N, Cout, H*Wp) -> (N, Cout, H, Wp) -> strip the 2 pad columns per row.
    return out.reshape(N, out_channel, H, Wp)[:, :, :, 1:W + 1]


# ---------------- pure-JAX reference (for the sanity check) ----------------
def _ref_conv3x3(x_nhwc, w_oihw, *, norm=False, lrelu=False):
    w_hwio = jnp.transpose(w_oihw, (2, 3, 1, 0))
    y = jax.lax.conv_general_dilated(
        x_nhwc, w_hwio, window_strides=(1, 1), padding="SAME",
        dimension_numbers=("NHWC", "HWIO", "NHWC"))
    if norm:
        mean = jnp.mean(y, axis=(1, 2), keepdims=True)
        var = jnp.mean((y - mean) ** 2, axis=(1, 2), keepdims=True)
        y = (y - mean) * jax.lax.rsqrt(var + 1e-5)
    if lrelu:
        y = jnp.where(y > 0, y, 0.2 * y)
    return y


def _ref_dense_block_2d(x_nchw, params):
    x = jnp.transpose(x_nchw, (0, 2, 3, 1))
    feats = _ref_conv3x3(x, params["reduction"])
    for w in params["blocks"]:
        out = _ref_conv3x3(feats, w, norm=True, lrelu=True)
        feats = jnp.concatenate([feats, out], axis=-1)
    out = _ref_conv3x3(feats, params["conv"])
    return jnp.transpose(out, (0, 3, 1, 2))


if __name__ == "__main__":
    key = jax.random.PRNGKey(0)
    k_x, k_p = jax.random.split(key)

    N, C, H, W = 2, 4, 16, 16          # filters = 4
    x = jax.random.normal(k_x, (N, C, H, W), jnp.float32)
    params = init_dense_block_params(k_p, filters=C)

    ref = jax.block_until_ready(_ref_dense_block_2d(x, params))

    # Exact-f32 path: tight check against the XLA reference.
    out_f32 = jax.block_until_ready(
        dense_block_2d(x, params, matmul_dtype=jnp.float32))
    assert out_f32.shape == (N, C, H, W), out_f32.shape
    err_f32 = float(jnp.max(jnp.abs(out_f32 - ref)))
    assert jnp.allclose(out_f32, ref, atol=5e-4, rtol=5e-4), err_f32

    # Default bf16-MXU path: looser tolerance (bf16 operands, f32 accumulation).
    out_bf16 = jax.block_until_ready(dense_block_2d(x, params))
    err_bf16 = float(jnp.max(jnp.abs(out_bf16 - ref)))
    assert jnp.allclose(out_bf16, ref, atol=1e-1, rtol=1e-1), err_bf16

    print("KERNEL_OK")
</pallas_src>

<mosaic_0001>
module attributes {stable_mosaic.version = 11 : i64} {
  func.func @_dense_block_kernel(%arg0: i32, %arg1: memref<1x4x326xf32, #tpu.memory_space<vmem>>, %arg2: memref<1x288xf32, #tpu.memory_space<vmem>>, %arg3: memref<9x2x4xf32, #tpu.memory_space<vmem>>, %arg4: memref<9x2x2xf32, #tpu.memory_space<vmem>>, %arg5: memref<9x2x4xf32, #tpu.memory_space<vmem>>, %arg6: memref<9x2x6xf32, #tpu.memory_space<vmem>>, %arg7: memref<9x2x8xf32, #tpu.memory_space<vmem>>, %arg8: memref<9x4x10xf32, #tpu.memory_space<vmem>>, %arg9: memref<1x4x288xf32, #tpu.memory_space<vmem>>, %arg10: memref<10x326xf32, #tpu.memory_space<vmem>>) attributes {dimension_semantics = [#tpu.dimension_semantics<parallel>], iteration_bounds = array<i64: 2>, scalar_prefetch = 0 : i64, scratch_operands = 1 : i64, tpu.core_type = #tpu.core_type<tc>, window_params = [{transform_indices = @transform_0, window_bounds = array<i64: 1, 4, 326>}, {pipeline_mode = #tpu.pipeline_mode<synchronous>, transform_indices = @transform_1, window_bounds = array<i64: 1, 288>}, {pipeline_mode = #tpu.pipeline_mode<synchronous>, transform_indices = @transform_2, window_bounds = array<i64: 9, 2, 4>}, {pipeline_mode = #tpu.pipeline_mode<synchronous>, transform_indices = @transform_3, window_bounds = array<i64: 9, 2, 2>}, {pipeline_mode = #tpu.pipeline_mode<synchronous>, transform_indices = @transform_4, window_bounds = array<i64: 9, 2, 4>}, {pipeline_mode = #tpu.pipeline_mode<synchronous>, transform_indices = @transform_5, window_bounds = array<i64: 9, 2, 6>}, {pipeline_mode = #tpu.pipeline_mode<synchronous>, transform_indices = @transform_6, window_bounds = array<i64: 9, 2, 8>}, {pipeline_mode = #tpu.pipeline_mode<synchronous>, transform_indices = @transform_7, window_bounds = array<i64: 9, 4, 10>}, {transform_indices = @transform_8, window_bounds = array<i64: 1, 4, 288>}]} {
    %c0 = arith.constant 0 : index
    %c0_0 = arith.constant 0 : index
    %0 = vector.load %arg2[%c0, %c0_0] : memref<1x288xf32, #tpu.memory_space<vmem>>, vector<1x288xf32>
    %cst = arith.constant 0.000000e+00 : f32
    %1 = vector.broadcast %cst : f32 to vector<10x19xf32>
    %c0_1 = arith.constant 0 : index
    %c0_2 = arith.constant 0 : index
    %2 = vector.load %arg10[%c0_1, %c0_2] : memref<10x326xf32, #tpu.memory_space<vmem>>, vector<10x19xf32>
    tpu.vector_store %arg10[%c0_1, %c0_2], %1 {strides = array<i32>} : memref<10x326xf32, #tpu.memory_space<vmem>>, vector<10x19xf32>,
    %cst_3 = arith.constant 0.000000e+00 : f32
    %3 = vector.broadcast %cst_3 : f32 to vector<10x19xf32>
    %c0_4 = arith.constant 0 : index
    %c307 = arith.constant 307 : index
    %4 = vector.load %arg10[%c0_4, %c307] : memref<10x326xf32, #tpu.memory_space<vmem>>, vector<10x19xf32>
    tpu.vector_store %arg10[%c0_4, %c307], %3 {strides = array<i32>} : memref<10x326xf32, #tpu.memory_space<vmem>>, vector<10x19xf32>,
    %cst_5 = arith.constant 0.000000e+00 : f32
    %5 = vector.broadcast %cst_5 : f32 to vector<2x288xf32>
    %c0_6 = arith.constant 0 : index
    %c0_7 = arith.constant 0 : index
    %c0_8 = arith.constant 0 : index
    %6 = vector.load %arg1[%c0_6, %c0_7, %c0_8] : memref<1x4x326xf32, #tpu.memory_space<vmem>>, vector<1x4x288xf32>
    %7 = vector.shape_cast %6 : vector<1x4x288xf32> to vector<4x288xf32>
    %c0_9 = arith.constant 0 : index
    %c0_10 = arith.constant 0 : index
    %c0_11 = arith.constant 0 : index
    %8 = vector.load %arg3[%c0_9, %c0_10, %c0_11] : memref<9x2x4xf32, #tpu.memory_space<vmem>>, vector<1x2x4xf32>
    %9 = vector.shape_cast %8 : vector<1x2x4xf32> to vector<2x4xf32>
    %cst_12 = arith.constant dense<0.000000e+00> : vector<2x288xf32>
    %10 = tpu.matmul %9, %7, %cst_12 {dimension_numbers = #tpu.dot_dimension_numbers<[1], [0], [0], [1], [0, 0, 1, 1], [], []>} : vector<2x4xf32>, vector<4x288xf32>, vector<2x288xf32> -> vector<2x288xf32>
    %11 = arith.addf %5, %10 : vector<2x288xf32>
    %c0_13 = arith.constant 0 : index
    %c0_14 = arith.constant 0 : index
    %c1 = arith.constant 1 : index
    %12 = vector.load %arg1[%c0_13, %c0_14, %c1] : memref<1x4x326xf32, #tpu.memory_space<vmem>>, vector<1x4x288xf32>
    %13 = vector.shape_cast %12 : vector<1x4x288xf32> to vector<4x288xf32>
    %c1_15 = arith.constant 1 : index
    %c0_16 = arith.constant 0 : index
    %c0_17 = arith.constant 0 : index
    %14 = vector.load %arg3[%c1_15, %c0_16, %c0_17] : memref<9x2x4xf32, #tpu.memory_space<vmem>>, vector<1x2x4xf32>
    %15 = vector.shape_cast %14 : vector<1x2x4xf32> to vector<2x4xf32>
    %cst_18 = arith.constant dense<0.000000e+00> : vector<2x288xf32>
    %16 = tpu.matmul %15, %13, %cst_18 {dimension_numbers = #tpu.dot_dimension_numbers<[1], [0], [0], [1], [0, 0, 1, 1], [], []>} : vector<2x4xf32>, vector<4x288xf32>, vector<2x288xf32> -> vector<2x288xf32>
    %17 = arith.addf %11, %16 : vector<2x288xf32>
    %c0_19 = arith.constant 0 : index
    %c0_20 = arith.constant 0 : index
    %c2 = arith.constant 2 : index
    %18 = vector.load %arg1[%c0_19, %c0_20, %c2] : memref<1x4x326xf32, #tpu.memory_space<vmem>>, vector<1x4x288xf32>
    %19 = vector.shape_cast %18 : vector<1x4x288xf32> to vector<4x288xf32>
    %c2_21 = arith.constant 2 : index
    %c0_22 = arith.constant 0 : index
    %c0_23 = arith.constant 0 : index
    %20 = vector.load %arg3[%c2_21, %c0_22, %c0_23] : memref<9x2x4xf32, #tpu.memory_space<vmem>>, vector<1x2x4xf32>
    %21 = vector.shape_cast %20 : vector<1x2x4xf32> to vector<2x4xf32>
    %cst_24 = arith.constant dense<0.000000e+00> : vector<2x288xf32>
    %22 = tpu.matmul %21, %19, %cst_24 {dimension_numbers = #tpu.dot_dimension_numbers<[1], [0], [0], [1], [0, 0, 1, 1], [], []>} : vector<2x4xf32>, vector<4x288xf32>, vector<2x288xf32> -> vector<2x288xf32>
    %23 = arith.addf %17, %22 : vector<2x288xf32>
    %c0_25 = arith.constant 0 : index
    %c0_26 = arith.constant 0 : index
    %c18 = arith.constant 18 : index
    %24 = vector.load %arg1[%c0_25, %c0_26, %c18] : memref<1x4x326xf32, #tpu.memory_space<vmem>>, vector<1x4x288xf32>
    %25 = vector.shape_cast %24 : vector<1x4x288xf32> to vector<4x288xf32>
    %c3 = arith.constant 3 : index
    %c0_27 = arith.constant 0 : index
    %c0_28 = arith.constant 0 : index
    %26 = vector.load %arg3[%c3, %c0_27, %c0_28] : memref<9x2x4xf32, #tpu.memory_space<vmem>>, vector<1x2x4xf32>
    %27 = vector.shape_cast %26 : vector<1x2x4xf32> to vector<2x4xf32>
    %cst_29 = arith.constant dense<0.000000e+00> : vector<2x288xf32>
    %28 = tpu.matmul %27, %25, %cst_29 {dimension_numbers = #tpu.dot_dimension_numbers<[1], [0], [0], [1], [0, 0, 1, 1], [], []>} : vector<2x4xf32>, vector<4x288xf32>, vector<2x288xf32> -> vector<2x288xf32>
    %29 = arith.addf %23, %28 : vector<2x288xf32>
    %c0_30 = arith.constant 0 : index
    %c0_31 = arith.constant 0 : index
    %c19 = arith.constant 19 : index
    %30 = vector.load %arg1[%c0_30, %c0_31, %c19] : memref<1x4x326xf32, #tpu.memory_space<vmem>>, vector<1x4x288xf32>
    %31 = vector.shape_cast %30 : vector<1x4x288xf32> to vector<4x288xf32>
    %c4 = arith.constant 4 : index
    %c0_32 = arith.constant 0 : index
    %c0_33 = arith.constant 0 : index
    %32 = vector.load %arg3[%c4, %c0_32, %c0_33] : memref<9x2x4xf32, #tpu.memory_space<vmem>>, vector<1x2x4xf32>
    %33 = vector.shape_cast %32 : vector<1x2x4xf32> to vector<2x4xf32>
    %cst_34 = arith.constant dense<0.000000e+00> : vector<2x288xf32>
    %34 = tpu.matmul %33, %31, %cst_34 {dimension_numbers = #tpu.dot_dimension_numbers<[1], [0], [0], [1], [0, 0, 1, 1], [], []>} : vector<2x4xf32>, vector<4x288xf32>, vector<2x288xf32> -> vector<2x288xf32>
    %35 = arith.addf %29, %34 : vector<2x288xf32>
    %c0_35 = arith.constant 0 : index
    %c0_36 = arith.constant 0 : index
    %c20 = arith.constant 20 : index
    %36 = vector.load %arg1[%c0_35, %c0_36, %c20] : memref<1x4x326xf32, #tpu.memory_space<vmem>>, vector<1x4x288xf32>
    %37 = vector.shape_cast %36 : vector<1x4x288xf32> to vector<4x288xf32>
    %c5 = arith.constant 5 : index
    %c0_37 = arith.constant 0 : index
    %c0_38 = arith.constant 0 : index
    %38 = vector.load %arg3[%c5, %c0_37, %c0_38] : memref<9x2x4xf32, #tpu.memory_space<vmem>>, vector<1x2x4xf32>
    %39 = vector.shape_cast %38 : vector<1x2x4xf32> to vector<2x4xf32>
    %cst_39 = arith.constant dense<0.000000e+00> : vector<2x288xf32>
    %40 = tpu.matmul %39, %37, %cst_39 {dimension_numbers = #tpu.dot_dimension_numbers<[1], [0], [0], [1], [0, 0, 1, 1], [], []>} : vector<2x4xf32>, vector<4x288xf32>, vector<2x288xf32> -> vector<2x288xf32>
    %41 = arith.addf %35, %40 : vector<2x288xf32>
    %c0_40 = arith.constant 0 : index
    %c0_41 = arith.constant 0 : index
    %c36 = arith.constant 36 : index
    %42 = vector.load %arg1[%c0_40, %c0_41, %c36] : memref<1x4x326xf32, #tpu.memory_space<vmem>>, vector<1x4x288xf32>
    %43 = vector.shape_cast %42 : vector<1x4x288xf32> to vector<4x288xf32>
    %c6 = arith.constant 6 : index
    %c0_42 = arith.constant 0 : index
    %c0_43 = arith.constant 0 : index
    %44 = vector.load %arg3[%c6, %c0_42, %c0_43] : memref<9x2x4xf32, #tpu.memory_space<vmem>>, vector<1x2x4xf32>
    %45 = vector.shape_cast %44 : vector<1x2x4xf32> to vector<2x4xf32>
    %cst_44 = arith.constant dense<0.000000e+00> : vector<2x288xf32>
    %46 = tpu.matmul %45, %43, %cst_44 {dimension_numbers = #tpu.dot_dimension_numbers<[1], [0], [0], [1], [0, 0, 1, 1], [], []>} : vector<2x4xf32>, vector<4x288xf32>, vector<2x288xf32> -> vector<2x288xf32>
    %47 = arith.addf %41, %46 : vector<2x288xf32>
    %c0_45 = arith.constant 0 : index
    %c0_46 = arith.constant 0 : index
    %c37 = arith.constant 37 : index
    %48 = vector.load %arg1[%c0_45, %c0_46, %c37] : memref<1x4x326xf32, #tpu.memory_space<vmem>>, vector<1x4x288xf32>
    %49 = vector.shape_cast %48 : vector<1x4x288xf32> to vector<4x288xf32>
    %c7 = arith.constant 7 : index
    %c0_47 = arith.constant 0 : index
    %c0_48 = arith.constant 0 : index
    %50 = vector.load %arg3[%c7, %c0_47, %c0_48] : memref<9x2x4xf32, #tpu.memory_space<vmem>>, vector<1x2x4xf32>
    %51 = vector.shape_cast %50 : vector<1x2x4xf32> to vector<2x4xf32>
    %cst_49 = arith.constant dense<0.000000e+00> : vector<2x288xf32>
    %52 = tpu.matmul %51, %49, %cst_49 {dimension_numbers = #tpu.dot_dimension_numbers<[1], [0], [0], [1], [0, 0, 1, 1], [], []>} : vector<2x4xf32>, vector<4x288xf32>, vector<2x288xf32> -> vector<2x288xf32>
    %53 = arith.addf %47, %52 : vector<2x288xf32>
    %c0_50 = arith.constant 0 : index
    %c0_51 = arith.constant 0 : index
    %c38 = arith.constant 38 : index
    %54 = vector.load %arg1[%c0_50, %c0_51, %c38] : memref<1x4x326xf32, #tpu.memory_space<vmem>>, vector<1x4x288xf32>
    %55 = vector.shape_cast %54 : vector<1x4x288xf32> to vector<4x288xf32>
    %c8 = arith.constant 8 : index
    %c0_52 = arith.constant 0 : index
    %c0_53 = arith.constant 0 : index
    %56 = vector.load %arg3[%c8, %c0_52, %c0_53] : memref<9x2x4xf32, #tpu.memory_space<vmem>>, vector<1x2x4xf32>
    %57 = vector.shape_cast %56 : vector<1x2x4xf32> to vector<2x4xf32>
    %cst_54 = arith.constant dense<0.000000e+00> : vector<2x288xf32>
    %58 = tpu.matmul %57, %55, %cst_54 {dimension_numbers = #tpu.dot_dimension_numbers<[1], [0], [0], [1], [0, 0, 1, 1], [], []>} : vector<2x4xf32>, vector<4x288xf32>, vector<2x288xf32> -> vector<2x288xf32>
    %59 = arith.addf %53, %58 : vector<2x288xf32>
    %60 = vector.broadcast %0 : vector<1x288xf32> to vector<2x288xf32>
    %61 = arith.mulf %59, %60 : vector<2x288xf32>
    %c0_55 = arith.constant 0 : index
    %c19_56 = arith.constant 19 : index
    %62 = vector.load %arg10[%c0_55, %c19_56] : memref<10x326xf32, #tpu.memory_space<vmem>>, vector<2x288xf32>
    tpu.vector_store %arg10[%c0_55, %c19_56], %61 {strides = array<i32>} : memref<10x326xf32, #tpu.memory_space<vmem>>, vector<2x288xf32>,
    %cst_57 = arith.constant 0.000000e+00 : f32
    %63 = vector.broadcast %cst_57 : f32 to vector<2x288xf32>
    %c0_58 = arith.constant 0 : index
    %c0_59 = arith.constant 0 : index
    %64 = vector.load %arg10[%c0_58, %c0_59] : memref<10x326xf32, #tpu.memory_space<vmem>>, vector<2x288xf32>
    %c0_60 = arith.constant 0 : index
    %c0_61 = arith.constant 0 : index
    %c0_62 = arith.constant 0 : index
    %65 = vector.load %arg4[%c0_60, %c0_61, %c0_62] : memref<9x2x2xf32, #tpu.memory_space<vmem>>, vector<1x2x2xf32>
    %66 = vector.shape_cast %65 : vector<1x2x2xf32> to vector<2x2xf32>
    %cst_63 = arith.constant dense<0.000000e+00> : vector<2x288xf32>
    %67 = tpu.matmul %66, %64, %cst_63 {dimension_numbers = #tpu.dot_dimension_numbers<[1], [0], [0], [1], [0, 0, 1, 1], [], []>} : vector<2x2xf32>, vector<2x288xf32>, vector<2x288xf32> -> vector<2x288xf32>
    %68 = arith.addf %63, %67 : vector<2x288xf32>
    %c0_64 = arith.constant 0 : index
    %c1_65 = arith.constant 1 : index
    %69 = vector.load %arg10[%c0_64, %c1_65] : memref<10x326xf32, #tpu.memory_space<vmem>>, vector<2x288xf32>
    %c1_66 = arith.constant 1 : index
    %c0_67 = arith.constant 0 : index
    %c0_68 = arith.constant 0 : index
    %70 = vector.load %arg4[%c1_66, %c0_67, %c0_68] : memref<9x2x2xf32, #tpu.memory_space<vmem>>, vector<1x2x2xf32>
    %71 = vector.shape_cast %70 : vector<1x2x2xf32> to vector<2x2xf32>
    %cst_69 = arith.constant dense<0.000000e+00> : vector<2x288xf32>
    %72 = tpu.matmul %71, %69, %cst_69 {dimension_numbers = #tpu.dot_dimension_numbers<[1], [0], [0], [1], [0, 0, 1, 1], [], []>} : vector<2x2xf32>, vector<2x288xf32>, vector<2x288xf32> -> vector<2x288xf32>
    %73 = arith.addf %68, %72 : vector<2x288xf32>
    %c0_70 = arith.constant 0 : index
    %c2_71 = arith.constant 2 : index
    %74 = vector.load %arg10[%c0_70, %c2_71] : memref<10x326xf32, #tpu.memory_space<vmem>>, vector<2x288xf32>
    %c2_72 = arith.constant 2 : index
    %c0_73 = arith.constant 0 : index
    %c0_74 = arith.constant 0 : index
    %75 = vector.load %arg4[%c2_72, %c0_73, %c0_74] : memref<9x2x2xf32, #tpu.memory_space<vmem>>, vector<1x2x2xf32>
    %76 = vector.shape_cast %75 : vector<1x2x2xf32> to vector<2x2xf32>
    %cst_75 = arith.constant dense<0.000000e+00> : vector<2x288xf32>
    %77 = tpu.matmul %76, %74, %cst_75 {dimension_numbers = #tpu.dot_dimension_numbers<[1], [0], [0], [1], [0, 0, 1, 1], [], []>} : vector<2x2xf32>, vector<2x288xf32>, vector<2x288xf32> -> vector<2x288xf32>
    %78 = arith.addf %73, %77 : vector<2x288xf32>
    %c0_76 = arith.constant 0 : index
    %c18_77 = arith.constant 18 : index
    %79 = vector.load %arg10[%c0_76, %c18_77] : memref<10x326xf32, #tpu.memory_space<vmem>>, vector<2x288xf32>
    %c3_78 = arith.constant 3 : index
    %c0_79 = arith.constant 0 : index
    %c0_80 = arith.constant 0 : index
    %80 = vector.load %arg4[%c3_78, %c0_79, %c0_80] : memref<9x2x2xf32, #tpu.memory_space<vmem>>, vector<1x2x2xf32>
    %81 = vector.shape_cast %80 : vector<1x2x2xf32> to vector<2x2xf32>
    %cst_81 = arith.constant dense<0.000000e+00> : vector<2x288xf32>
    %82 = tpu.matmul %81, %79, %cst_81 {dimension_numbers = #tpu.dot_dimension_numbers<[1], [0], [0], [1], [0, 0, 1, 1], [], []>} : vector<2x2xf32>, vector<2x288xf32>, vector<2x288xf32> -> vector<2x288xf32>
    %83 = arith.addf %78, %82 : vector<2x288xf32>
    %c0_82 = arith.constant 0 : index
    %c19_83 = arith.constant 19 : index
    %84 = vector.load %arg10[%c0_82, %c19_83] : memref<10x326xf32, #tpu.memory_space<vmem>>, vector<2x288xf32>
    %c4_84 = arith.constant 4 : index
    %c0_85 = arith.constant 0 : index
    %c0_86 = arith.constant 0 : index
    %85 = vector.load %arg4[%c4_84, %c0_85, %c0_86] : memref<9x2x2xf32, #tpu.memory_space<vmem>>, vector<1x2x2xf32>
    %86 = vector.shape_cast %85 : vector<1x2x2xf32> to vector<2x2xf32>
    %cst_87 = arith.constant dense<0.000000e+00> : vector<2x288xf32>
    %87 = tpu.matmul %86, %84, %cst_87 {dimension_numbers = #tpu.dot_dimension_numbers<[1], [0], [0], [1], [0, 0, 1, 1], [], []>} : vector<2x2xf32>, vector<2x288xf32>, vector<2x288xf32> -> vector<2x288xf32>
    %88 = arith.addf %83, %87 : vector<2x288xf32>
    %c0_88 = arith.constant 0 : index
    %c20_89 = arith.constant 20 : index
    %89 = vector.load %arg10[%c0_88, %c20_89] : memref<10x326xf32, #tpu.memory_space<vmem>>, vector<2x288xf32>
    %c5_90 = arith.constant 5 : index
    %c0_91 = arith.constant 0 : index
    %c0_92 = arith.constant 0 : index
    %90 = vector.load %arg4[%c5_90, %c0_91, %c0_92] : memref<9x2x2xf32, #tpu.memory_space<vmem>>, vector<1x2x2xf32>
    %91 = vector.shape_cast %90 : vector<1x2x2xf32> to vector<2x2xf32>
    %cst_93 = arith.constant dense<0.000000e+00> : vector<2x288xf32>
    %92 = tpu.matmul %91, %89, %cst_93 {dimension_numbers = #tpu.dot_dimension_numbers<[1], [0], [0], [1], [0, 0, 1, 1], [], []>} : vector<2x2xf32>, vector<2x288xf32>, vector<2x288xf32> -> vector<2x288xf32>
    %93 = arith.addf %88, %92 : vector<2x288xf32>
    %c0_94 = arith.constant 0 : index
    %c36_95 = arith.constant 36 : index
    %94 = vector.load %arg10[%c0_94, %c36_95] : memref<10x326xf32, #tpu.memory_space<vmem>>, vector<2x288xf32>
    %c6_96 = arith.constant 6 : index
    %c0_97 = arith.constant 0 : index
    %c0_98 = arith.constant 0 : index
    %95 = vector.load %arg4[%c6_96, %c0_97, %c0_98] : memref<9x2x2xf32, #tpu.memory_space<vmem>>, vector<1x2x2xf32>
    %96 = vector.shape_cast %95 : vector<1x2x2xf32> to vector<2x2xf32>
    %cst_99 = arith.constant dense<0.000000e+00> : vector<2x288xf32>
    %97 = tpu.matmul %96, %94, %cst_99 {dimension_numbers = #tpu.dot_dimension_numbers<[1], [0], [0], [1], [0, 0, 1, 1], [], []>} : vector<2x2xf32>, vector<2x288xf32>, vector<2x288xf32> -> vector<2x288xf32>
    %98 = arith.addf %93, %97 : vector<2x288xf32>
    %c0_100 = arith.constant 0 : index
    %c37_101 = arith.constant 37 : index
    %99 = vector.load %arg10[%c0_100, %c37_101] : memref<10x326xf32, #tpu.memory_space<vmem>>, vector<2x288xf32>
    %c7_102 = arith.constant 7 : index
    %c0_103 = arith.constant 0 : index
    %c0_104 = arith.constant 0 : index
    %100 = vector.load %arg4[%c7_102, %c0_103, %c0_104] : memref<9x2x2xf32, #tpu.memory_space<vmem>>, vector<1x2x2xf32>
    %101 = vector.shape_cast %100 : vector<1x2x2xf32> to vector<2x2xf32>
    %cst_105 = arith.constant dense<0.000000e+00> : vector<2x288xf32>
    %102 = tpu.matmul %101, %99, %cst_105 {dimension_numbers = #tpu.dot_dimension_numbers<[1], [0], [0], [1], [0, 0, 1, 1], [], []>} : vector<2x2xf32>, vector<2x288xf32>, vector<2x288xf32> -> vector<2x288xf32>
    %103 = arith.addf %98, %102 : vector<2x288xf32>
    %c0_106 = arith.constant 0 : index
    %c38_107 = arith.constant 38 : index
    %104 = vector.load %arg10[%c0_106, %c38_107] : memref<10x326xf32, #tpu.memory_space<vmem>>, vector<2x288xf32>
    %c8_108 = arith.constant 8 : index
    %c0_109 = arith.constant 0 : index
    %c0_110 = arith.constant 0 : index
    %105 = vector.load %arg4[%c8_108, %c0_109, %c0_110] : memref<9x2x2xf32, #tpu.memory_space<vmem>>, vector<1x2x2xf32>
    %106 = vector.shape_cast %105 : vector<1x2x2xf32> to vector<2x2xf32>
    %cst_111 = arith.constant dense<0.000000e+00> : vector<2x288xf32>
    %107 = tpu.matmul %106, %104, %cst_111 {dimension_numbers = #tpu.dot_dimension_numbers<[1], [0], [0], [1], [0, 0, 1, 1], [], []>} : vector<2x2xf32>, vector<2x288xf32>, vector<2x288xf32> -> vector<2x288xf32>
    %108 = arith.addf %103, %107 : vector<2x288xf32>
    %109 = vector.broadcast %0 : vector<1x288xf32> to vector<2x288xf32>
    %110 = arith.mulf %108, %109 : vector<2x288xf32>
    %cst_112 = arith.constant dense<0.000000e+00> : vector<2xf32>
    %111 = vector.multi_reduction <add>, %110, %cst_112 [1] : vector<2x288xf32> to vector<2xf32>
    %112 = vector.shape_cast %111 : vector<2xf32> to vector<2x1xf32>
    %cst_113 = arith.constant 3.906250e-03 : f32
    %113 = vector.broadcast %cst_113 : f32 to vector<2x1xf32>
    %114 = arith.mulf %112, %113 : vector<2x1xf32>
    %115 = vector.broadcast %114 : vector<2x1xf32> to vector<2x288xf32>
    %116 = arith.subf %108, %115 : vector<2x288xf32>
    %117 = vector.broadcast %0 : vector<1x288xf32> to vector<2x288xf32>
    %118 = arith.mulf %116, %117 : vector<2x288xf32>
    %119 = arith.mulf %118, %118 : vector<2x288xf32>
    %cst_114 = arith.constant dense<0.000000e+00> : vector<2xf32>
    %120 = vector.multi_reduction <add>, %119, %cst_114 [1] : vector<2x288xf32> to vector<2xf32>
    %121 = vector.shape_cast %120 : vector<2xf32> to vector<2x1xf32>
    %cst_115 = arith.constant 3.906250e-03 : f32
    %122 = vector.broadcast %cst_115 : f32 to vector<2x1xf32>
    %123 = arith.mulf %121, %122 : vector<2x1xf32>
    %cst_116 = arith.constant 9.99999974E-6 : f32
    %124 = vector.broadcast %cst_116 : f32 to vector<2x1xf32>
    %125 = arith.addf %123, %124 : vector<2x1xf32>
    %126 = math.rsqrt %125 : vector<2x1xf32>
    %127 = vector.broadcast %126 : vector<2x1xf32> to vector<2x288xf32>
    %128 = arith.mulf %118, %127 : vector<2x288xf32>
    %cst_117 = arith.constant 0.000000e+00 : f32
    %129 = vector.broadcast %cst_117 : f32 to vector<2x288xf32>
    %130 = arith.cmpf ogt, %128, %129 : vector<2x288xf32>
    %cst_118 = arith.constant 2.000000e-01 : f32
    %131 = vector.broadcast %cst_118 : f32 to vector<2x288xf32>
    %132 = arith.mulf %131, %128 : vector<2x288xf32>
    %133 = arith.select %130, %128, %132 : vector<2x288xi1>, vector<2x288xf32>
    %c2_119 = arith.constant 2 : index
    %c19_120 = arith.constant 19 : index
    %134 = vector.load %arg10[%c2_119, %c19_120] : memref<10x326xf32, #tpu.memory_space<vmem>>, vector<2x288xf32>
    tpu.vector_store %arg10[%c2_119, %c19_120], %133 {strides = array<i32>} : memref<10x326xf32, #tpu.memory_space<vmem>>, vector<2x288xf32>,
    %cst_121 = arith.constant 0.000000e+00 : f32
    %135 = vector.broadcast %cst_121 : f32 to vector<2x288xf32>
    %c0_122 = arith.constant 0 : index
    %c0_123 = arith.constant 0 : index
    %136 = vector.load %arg10[%c0_122, %c0_123] : memref<10x326xf32, #tpu.memory_space<vmem>>, vector<4x288xf32>
    %c0_124 = arith.constant 0 : index
    %c0_125 = arith.constant 0 : index
    %c0_126 = arith.constant 0 : index
    %137 = vector.load %arg5[%c0_124, %c0_125, %c0_126] : memref<9x2x4xf32, #tpu.memory_space<vmem>>, vector<1x2x4xf32>
    %138 = vector.shape_cast %137 : vector<1x2x4xf32> to vector<2x4xf32>
    %cst_127 = arith.constant dense<0.000000e+00> : vector<2x288xf32>
    %139 = tpu.matmul %138, %136, %cst_127 {dimension_numbers = #tpu.dot_dimension_numbers<[1], [0], [0], [1], [0, 0, 1, 1], [], []>} : vector<2x4xf32>, vector<4x288xf32>, vector<2x288xf32> -> vector<2x288xf32>
    %140 = arith.addf %135, %139 : vector<2x288xf32>
    %c0_128 = arith.constant 0 : index
    %c1_129 = arith.constant 1 : index
    %141 = vector.load %arg10[%c0_128, %c1_129] : memref<10x326xf32, #tpu.memory_space<vmem>>, vector<4x288xf32>
    %c1_130 = arith.constant 1 : index
    %c0_131 = arith.constant 0 : index
    %c0_132 = arith.constant 0 : index
    %142 = vector.load %arg5[%c1_130, %c0_131, %c0_132] : memref<9x2x4xf32, #tpu.memory_space<vmem>>, vector<1x2x4xf32>
    %143 = vector.shape_cast %142 : vector<1x2x4xf32> to vector<2x4xf32>
    %cst_133 = arith.constant dense<0.000000e+00> : vector<2x288xf32>
    %144 = tpu.matmul %143, %141, %cst_133 {dimension_numbers = #tpu.dot_dimension_numbers<[1], [0], [0], [1], [0, 0, 1, 1], [], []>} : vector<2x4xf32>, vector<4x288xf32>, vector<2x288xf32> -> vector<2x288xf32>
    %145 = arith.addf %140, %144 : vector<2x288xf32>
    %c0_134 = arith.constant 0 : index
    %c2_135 = arith.constant 2 : index
    %146 = vector.load %arg10[%c0_134, %c2_135] : memref<10x326xf32, #tpu.memory_space<vmem>>, vector<4x288xf32>
    %c2_136 = arith.constant 2 : index
    %c0_137 = arith.constant 0 : index
    %c0_138 = arith.constant 0 : index
    %147 = vector.load %arg5[%c2_136, %c0_137, %c0_138] : memref<9x2x4xf32, #tpu.memory_space<vmem>>, vector<1x2x4xf32>
    %148 = vector.shape_cast %147 : vector<1x2x4xf32> to vector<2x4xf32>
    %cst_139 = arith.constant dense<0.000000e+00> : vector<2x288xf32>
    %149 = tpu.matmul %148, %146, %cst_139 {dimension_numbers = #tpu.dot_dimension_numbers<[1], [0], [0], [1], [0, 0, 1, 1], [], []>} : vector<2x4xf32>, vector<4x288xf32>, vector<2x288xf32> -> vector<2x288xf32>
    %150 = arith.addf %145, %149 : vector<2x288xf32>
    %c0_140 = arith.constant 0 : index
    %c18_141 = arith.constant 18 : index
    %151 = vector.load %arg10[%c0_140, %c18_141] : memref<10x326xf32, #tpu.memory_space<vmem>>, vector<4x288xf32>
    %c3_142 = arith.constant 3 : index
    %c0_143 = arith.constant 0 : index
    %c0_144 = arith.constant 0 : index
    %152 = vector.load %arg5[%c3_142, %c0_143, %c0_144] : memref<9x2x4xf32, #tpu.memory_space<vmem>>, vector<1x2x4xf32>
    %153 = vector.shape_cast %152 : vector<1x2x4xf32> to vector<2x4xf32>
    %cst_145 = arith.constant dense<0.000000e+00> : vector<2x288xf32>
    %154 = tpu.matmul %153, %151, %cst_145 {dimension_numbers = #tpu.dot_dimension_numbers<[1], [0], [0], [1], [0, 0, 1, 1], [], []>} : vector<2x4xf32>, vector<4x288xf32>, vector<2x288xf32> -> vector<2x288xf32>
    %155 = arith.addf %150, %154 : vector<2x288xf32>
    %c0_146 = arith.constant 0 : index
    %c19_147 = arith.constant 19 : index
    %156 = vector.load %arg10[%c0_146, %c19_147] : memref<10x326xf32, #tpu.memory_space<vmem>>, vector<4x288xf32>
    %c4_148 = arith.constant 4 : index
    %c0_149 = arith.constant 0 : index
    %c0_150 = arith.constant 0 : index
    %157 = vector.load %arg5[%c4_148, %c0_149, %c0_150] : memref<9x2x4xf32, #tpu.memory_space<vmem>>, vector<1x2x4xf32>
    %158 = vector.shape_cast %157 : vector<1x2x4xf32> to vector<2x4xf32>
    %cst_151 = arith.constant dense<0.000000e+00> : vector<2x288xf32>
    %159 = tpu.matmul %158, %156, %cst_151 {dimension_numbers = #tpu.dot_dimension_numbers<[1], [0], [0], [1], [0, 0, 1, 1], [], []>} : vector<2x4xf32>, vector<4x288xf32>, vector<2x288xf32> -> vector<2x288xf32>
    %160 = arith.addf %155, %159 : vector<2x288xf32>
    %c0_152 = arith.constant 0 : index
    %c20_153 = arith.constant 20 : index
    %161 = vector.load %arg10[%c0_152, %c20_153] : memref<10x326xf32, #tpu.memory_space<vmem>>, vector<4x288xf32>
    %c5_154 = arith.constant 5 : index
    %c0_155 = arith.constant 0 : index
    %c0_156 = arith.constant 0 : index
    %162 = vector.load %arg5[%c5_154, %c0_155, %c0_156] : memref<9x2x4xf32, #tpu.memory_space<vmem>>, vector<1x2x4xf32>
    %163 = vector.shape_cast %162 : vector<1x2x4xf32> to vector<2x4xf32>
    %cst_157 = arith.constant dense<0.000000e+00> : vector<2x288xf32>
    %164 = tpu.matmul %163, %161, %cst_157 {dimension_numbers = #tpu.dot_dimension_numbers<[1], [0], [0], [1], [0, 0, 1, 1], [], []>} : vector<2x4xf32>, vector<4x288xf32>, vector<2x288xf32> -> vector<2x288xf32>
    %165 = arith.addf %160, %164 : vector<2x288xf32>
    %c0_158 = arith.constant 0 : index
    %c36_159 = arith.constant 36 : index
    %166 = vector.load %arg10[%c0_158, %c36_159] : memref<10x326xf32, #tpu.memory_space<vmem>>, vector<4x288xf32>
    %c6_160 = arith.constant 6 : index
    %c0_161 = arith.constant 0 : index
    %c0_162 = arith.constant 0 : index
    %167 = vector.load %arg5[%c6_160, %c0_161, %c0_162] : memref<9x2x4xf32, #tpu.memory_space<vmem>>, vector<1x2x4xf32>
    %168 = vector.shape_cast %167 : vector<1x2x4xf32> to vector<2x4xf32>
    %cst_163 = arith.constant dense<0.000000e+00> : vector<2x288xf32>
    %169 = tpu.matmul %168, %166, %cst_163 {dimension_numbers = #tpu.dot_dimension_numbers<[1], [0], [0], [1], [0, 0, 1, 1], [], []>} : vector<2x4xf32>, vector<4x288xf32>, vector<2x288xf32> -> vector<2x288xf32>
    %170 = arith.addf %165, %169 : vector<2x288xf32>
    %c0_164 = arith.constant 0 : index
    %c37_165 = arith.constant 37 : index
    %171 = vector.load %arg10[%c0_164, %c37_165] : memref<10x326xf32, #tpu.memory_space<vmem>>, vector<4x288xf32>
    %c7_166 = arith.constant 7 : index
    %c0_167 = arith.constant 0 : index
    %c0_168 = arith.constant 0 : index
    %172 = vector.load %arg5[%c7_166, %c0_167, %c0_168] : memref<9x2x4xf32, #tpu.memory_space<vmem>>, vector<1x2x4xf32>
    %173 = vector.shape_cast %172 : vector<1x2x4xf32> to vector<2x4xf32>
    %cst_169 = arith.constant dense<0.000000e+00> : vector<2x288xf32>
    %174 = tpu.matmul %173, %171, %cst_169 {dimension_numbers = #tpu.dot_dimension_numbers<[1], [0], [0], [1], [0, 0, 1, 1], [], []>} : vector<2x4xf32>, vector<4x288xf32>, vector<2x288xf32> -> vector<2x288xf32>
    %175 = arith.addf %170, %174 : vector<2x288xf32>
    %c0_170 = arith.constant 0 : index
    %c38_171 = arith.constant 38 : index
    %176 = vector.load %arg10[%c0_170, %c38_171] : memref<10x326xf32, #tpu.memory_space<vmem>>, vector<4x288xf32>
    %c8_172 = arith.constant 8 : index
    %c0_173 = arith.constant 0 : index
    %c0_174 = arith.constant 0 : index
    %177 = vector.load %arg5[%c8_172, %c0_173, %c0_174] : memref<9x2x4xf32, #tpu.memory_space<vmem>>, vector<1x2x4xf32>
    %178 = vector.shape_cast %177 : vector<1x2x4xf32> to vector<2x4xf32>
    %cst_175 = arith.constant dense<0.000000e+00> : vector<2x288xf32>
    %179 = tpu.matmul %178, %176, %cst_175 {dimension_numbers = #tpu.dot_dimension_numbers<[1], [0], [0], [1], [0, 0, 1, 1], [], []>} : vector<2x4xf32>, vector<4x288xf32>, vector<2x288xf32> -> vector<2x288xf32>
    %180 = arith.addf %175, %179 : vector<2x288xf32>
    %181 = vector.broadcast %0 : vector<1x288xf32> to vector<2x288xf32>
    %182 = arith.mulf %180, %181 : vector<2x288xf32>
    %cst_176 = arith.constant dense<0.000000e+00> : vector<2xf32>
    %183 = vector.multi_reduction <add>, %182, %cst_176 [1] : vector<2x288xf32> to vector<2xf32>
    %184 = vector.shape_cast %183 : vector<2xf32> to vector<2x1xf32>
    %cst_177 = arith.constant 3.906250e-03 : f32
    %185 = vector.broadcast %cst_177 : f32 to vector<2x1xf32>
    %186 = arith.mulf %184, %185 : vector<2x1xf32>
    %187 = vector.broadcast %186 : vector<2x1xf32> to vector<2x288xf32>
    %188 = arith.subf %180, %187 : vector<2x288xf32>
    %189 = vector.broadcast %0 : vector<1x288xf32> to vector<2x288xf32>
    %190 = arith.mulf %188, %189 : vector<2x288xf32>
    %191 = arith.mulf %190, %190 : vector<2x288xf32>
    %cst_178 = arith.constant dense<0.000000e+00> : vector<2xf32>
    %192 = vector.multi_reduction <add>, %191, %cst_178 [1] : vector<2x288xf32> to vector<2xf32>
    %193 = vector.shape_cast %192 : vector<2xf32> to vector<2x1xf32>
    %cst_179 = arith.constant 3.906250e-03 : f32
    %194 = vector.broadcast %cst_179 : f32 to vector<2x1xf32>
    %195 = arith.mulf %193, %194 : vector<2x1xf32>
    %cst_180 = arith.constant 9.99999974E-6 : f32
    %196 = vector.broadcast %cst_180 : f32 to vector<2x1xf32>
    %197 = arith.addf %195, %196 : vector<2x1xf32>
    %198 = math.rsqrt %197 : vector<2x1xf32>
    %199 = vector.broadcast %198 : vector<2x1xf32> to vector<2x288xf32>
    %200 = arith.mulf %190, %199 : vector<2x288xf32>
    %cst_181 = arith.constant 0.000000e+00 : f32
    %201 = vector.broadcast %cst_181 : f32 to vector<2x288xf32>
    %202 = arith.cmpf ogt, %200, %201 : vector<2x288xf32>
    %cst_182 = arith.constant 2.000000e-01 : f32
    %203 = vector.broadcast %cst_182 : f32 to vector<2x288xf32>
    %204 = arith.mulf %203, %200 : vector<2x288xf32>
    %205 = arith.select %202, %200, %204 : vector<2x288xi1>, vector<2x288xf32>
    %c4_183 = arith.constant 4 : index
    %c19_184 = arith.constant 19 : index
    %206 = vector.load %arg10[%c4_183, %c19_184] : memref<10x326xf32, #tpu.memory_space<vmem>>, vector<2x288xf32>
    tpu.vector_store %arg10[%c4_183, %c19_184], %205 {strides = array<i32>} : memref<10x326xf32, #tpu.memory_space<vmem>>, vector<2x288xf32>,
    %cst_185 = arith.constant 0.000000e+00 : f32
    %207 = vector.broadcast %cst_185 : f32 to vector<2x288xf32>
    %c0_186 = arith.constant 0 : index
    %c0_187 = arith.constant 0 : index
    %208 = vector.load %arg10[%c0_186, %c0_187] : memref<10x326xf32, #tpu.memory_space<vmem>>, vector<6x288xf32>
    %c0_188 = arith.constant 0 : index
    %c0_189 = arith.constant 0 : index
    %c0_190 = arith.constant 0 : index
    %209 = vector.load %arg6[%c0_188, %c0_189, %c0_190] : memref<9x2x6xf32, #tpu.memory_space<vmem>>, vector<1x2x6xf32>
    %210 = vector.shape_cast %209 : vector<1x2x6xf32> to vector<2x6xf32>
    %cst_191 = arith.constant dense<0.000000e+00> : vector<2x288xf32>
    %211 = tpu.matmul %210, %208, %cst_191 {dimension_numbers = #tpu.dot_dimension_numbers<[1], [0], [0], [1], [0, 0, 1, 1], [], []>} : vector<2x6xf32>, vector<6x288xf32>, vector<2x288xf32> -> vector<2x288xf32>
    %212 = arith.addf %207, %211 : vector<2x288xf32>
    %c0_192 = arith.constant 0 : index
    %c1_193 = arith.constant 1 : index
    %213 = vector.load %arg10[%c0_192, %c1_193] : memref<10x326xf32, #tpu.memory_space<vmem>>, vector<6x288xf32>
    %c1_194 = arith.constant 1 : index
    %c0_195 = arith.constant 0 : index
    %c0_196 = arith.constant 0 : index
    %214 = vector.load %arg6[%c1_194, %c0_195, %c0_196] : memref<9x2x6xf32, #tpu.memory_space<vmem>>, vector<1x2x6xf32>
    %215 = vector.shape_cast %214 : vector<1x2x6xf32> to vector<2x6xf32>
    %cst_197 = arith.constant dense<0.000000e+00> : vector<2x288xf32>
    %216 = tpu.matmul %215, %213, %cst_197 {dimension_numbers = #tpu.dot_dimension_numbers<[1], [0], [0], [1], [0, 0, 1, 1], [], []>} : vector<2x6xf32>, vector<6x288xf32>, vector<2x288xf32> -> vector<2x288xf32>
    %217 = arith.addf %212, %216 : vector<2x288xf32>
    %c0_198 = arith.constant 0 : index
    %c2_199 = arith.constant 2 : index
    %218 = vector.load %arg10[%c0_198, %c2_199] : memref<10x326xf32, #tpu.memory_space<vmem>>, vector<6x288xf32>
    %c2_200 = arith.constant 2 : index
    %c0_201 = arith.constant 0 : index
    %c0_202 = arith.constant 0 : index
    %219 = vector.load %arg6[%c2_200, %c0_201, %c0_202] : memref<9x2x6xf32, #tpu.memory_space<vmem>>, vector<1x2x6xf32>
    %220 = vector.shape_cast %219 : vector<1x2x6xf32> to vector<2x6xf32>
    %cst_203 = arith.constant dense<0.000000e+00> : vector<2x288xf32>
    %221 = tpu.matmul %220, %218, %cst_203 {dimension_numbers = #tpu.dot_dimension_numbers<[1], [0], [0], [1], [0, 0, 1, 1], [], []>} : vector<2x6xf32>, vector<6x288xf32>, vector<2x288xf32> -> vector<2x288xf32>
    %222 = arith.addf %217, %221 : vector<2x288xf32>
    %c0_204 = arith.constant 0 : index
    %c18_205 = arith.constant 18 : index
    %223 = vector.load %arg10[%c0_204, %c18_205] : memref<10x326xf32, #tpu.memory_space<vmem>>, vector<6x288xf32>
    %c3_206 = arith.constant 3 : index
    %c0_207 = arith.constant 0 : index
    %c0_208 = arith.constant 0 : index
    %224 = vector.load %arg6[%c3_206, %c0_207, %c0_208] : memref<9x2x6xf32, #tpu.memory_space<vmem>>, vector<1x2x6xf32>
    %225 = vector.shape_cast %224 : vector<1x2x6xf32> to vector<2x6xf32>
    %cst_209 = arith.constant dense<0.000000e+00> : vector<2x288xf32>
    %226 = tpu.matmul %225, %223, %cst_209 {dimension_numbers = #tpu.dot_dimension_numbers<[1], [0], [0], [1], [0, 0, 1, 1], [], []>} : vector<2x6xf32>, vector<6x288xf32>, vector<2x288xf32> -> vector<2x288xf32>
    %227 = arith.addf %222, %226 : vector<2x288xf32>
    %c0_210 = arith.constant 0 : index
    %c19_211 = arith.constant 19 : index
    %228 = vector.load %arg10[%c0_210, %c19_211] : memref<10x326xf32, #tpu.memory_space<vmem>>, vector<6x288xf32>
    %c4_212 = arith.constant 4 : index
    %c0_213 = arith.constant 0 : index
    %c0_214 = arith.constant 0 : index
    %229 = vector.load %arg6[%c4_212, %c0_213, %c0_214] : memref<9x2x6xf32, #tpu.memory_space<vmem>>, vector<1x2x6xf32>
    %230 = vector.shape_cast %229 : vector<1x2x6xf32> to vector<2x6xf32>
    %cst_215 = arith.constant dense<0.000000e+00> : vector<2x288xf32>
    %231 = tpu.matmul %230, %228, %cst_215 {dimension_numbers = #tpu.dot_dimension_numbers<[1], [0], [0], [1], [0, 0, 1, 1], [], []>} : vector<2x6xf32>, vector<6x288xf32>, vector<2x288xf32> -> vector<2x288xf32>
    %232 = arith.addf %227, %231 : vector<2x288xf32>
    %c0_216 = arith.constant 0 : index
    %c20_217 = arith.constant 20 : index
    %233 = vector.load %arg10[%c0_216, %c20_217] : memref<10x326xf32, #tpu.memory_space<vmem>>, vector<6x288xf32>
    %c5_218 = arith.constant 5 : index
    %c0_219 = arith.constant 0 : index
    %c0_220 = arith.constant 0 : index
    %234 = vector.load %arg6[%c5_218, %c0_219, %c0_220] : memref<9x2x6xf32, #tpu.memory_space<vmem>>, vector<1x2x6xf32>
    %235 = vector.shape_cast %234 : vector<1x2x6xf32> to vector<2x6xf32>
    %cst_221 = arith.constant dense<0.000000e+00> : vector<2x288xf32>
    %236 = tpu.matmul %235, %233, %cst_221 {dimension_numbers = #tpu.dot_dimension_numbers<[1], [0], [0], [1], [0, 0, 1, 1], [], []>} : vector<2x6xf32>, vector<6x288xf32>, vector<2x288xf32> -> vector<2x288xf32>
    %237 = arith.addf %232, %236 : vector<2x288xf32>
    %c0_222 = arith.constant 0 : index
    %c36_223 = arith.constant 36 : index
    %238 = vector.load %arg10[%c0_222, %c36_223] : memref<10x326xf32, #tpu.memory_space<vmem>>, vector<6x288xf32>
    %c6_224 = arith.constant 6 : index
    %c0_225 = arith.constant 0 : index
    %c0_226 = arith.constant 0 : index
    %239 = vector.load %arg6[%c6_224, %c0_225, %c0_226] : memref<9x2x6xf32, #tpu.memory_space<vmem>>, vector<1x2x6xf32>
    %240 = vector.shape_cast %239 : vector<1x2x6xf32> to vector<2x6xf32>
    %cst_227 = arith.constant dense<0.000000e+00> : vector<2x288xf32>
    %241 = tpu.matmul %240, %238, %cst_227 {dimension_numbers = #tpu.dot_dimension_numbers<[1], [0], [0], [1], [0, 0, 1, 1], [], []>} : vector<2x6xf32>, vector<6x288xf32>, vector<2x288xf32> -> vector<2x288xf32>
    %242 = arith.addf %237, %241 : vector<2x288xf32>
    %c0_228 = arith.constant 0 : index
    %c37_229 = arith.constant 37 : index
    %243 = vector.load %arg10[%c0_228, %c37_229] : memref<10x326xf32, #tpu.memory_space<vmem>>, vector<6x288xf32>
    %c7_230 = arith.constant 7 : index
    %c0_231 = arith.constant 0 : index
    %c0_232 = arith.constant 0 : index
    %244 = vector.load %arg6[%c7_230, %c0_231, %c0_232] : memref<9x2x6xf32, #tpu.memory_space<vmem>>, vector<1x2x6xf32>
    %245 = vector.shape_cast %244 : vector<1x2x6xf32> to vector<2x6xf32>
    %cst_233 = arith.constant dense<0.000000e+00> : vector<2x288xf32>
    %246 = tpu.matmul %245, %243, %cst_233 {dimension_numbers = #tpu.dot_dimension_numbers<[1], [0], [0], [1], [0, 0, 1, 1], [], []>} : vector<2x6xf32>, vector<6x288xf32>, vector<2x288xf32> -> vector<2x288xf32>
    %247 = arith.addf %242, %246 : vector<2x288xf32>
    %c0_234 = arith.constant 0 : index
    %c38_235 = arith.constant 38 : index
    %248 = vector.load %arg10[%c0_234, %c38_235] : memref<10x326xf32, #tpu.memory_space<vmem>>, vector<6x288xf32>
    %c8_236 = arith.constant 8 : index
    %c0_237 = arith.constant 0 : index
    %c0_238 = arith.constant 0 : index
    %249 = vector.load %arg6[%c8_236, %c0_237, %c0_238] : memref<9x2x6xf32, #tpu.memory_space<vmem>>, vector<1x2x6xf32>
    %250 = vector.shape_cast %249 : vector<1x2x6xf32> to vector<2x6xf32>
    %cst_239 = arith.constant dense<0.000000e+00> : vector<2x288xf32>
    %251 = tpu.matmul %250, %248, %cst_239 {dimension_numbers = #tpu.dot_dimension_numbers<[1], [0], [0], [1], [0, 0, 1, 1], [], []>} : vector<2x6xf32>, vector<6x288xf32>, vector<2x288xf32> -> vector<2x288xf32>
    %252 = arith.addf %247, %251 : vector<2x288xf32>
    %253 = vector.broadcast %0 : vector<1x288xf32> to vector<2x288xf32>
    %254 = arith.mulf %252, %253 : vector<2x288xf32>
    %cst_240 = arith.constant dense<0.000000e+00> : vector<2xf32>
    %255 = vector.multi_reduction <add>, %254, %cst_240 [1] : vector<2x288xf32> to vector<2xf32>
    %256 = vector.shape_cast %255 : vector<2xf32> to vector<2x1xf32>
    %cst_241 = arith.constant 3.906250e-03 : f32
    %257 = vector.broadcast %cst_241 : f32 to vector<2x1xf32>
    %258 = arith.mulf %256, %257 : vector<2x1xf32>
    %259 = vector.broadcast %258 : vector<2x1xf32> to vector<2x288xf32>
    %260 = arith.subf %252, %259 : vector<2x288xf32>
    %261 = vector.broadcast %0 : vector<1x288xf32> to vector<2x288xf32>
    %262 = arith.mulf %260, %261 : vector<2x288xf32>
    %263 = arith.mulf %262, %262 : vector<2x288xf32>
    %cst_242 = arith.constant dense<0.000000e+00> : vector<2xf32>
    %264 = vector.multi_reduction <add>, %263, %cst_242 [1] : vector<2x288xf32> to vector<2xf32>
    %265 = vector.shape_cast %264 : vector<2xf32> to vector<2x1xf32>
    %cst_243 = arith.constant 3.906250e-03 : f32
    %266 = vector.broadcast %cst_243 : f32 to vector<2x1xf32>
    %267 = arith.mulf %265, %266 : vector<2x1xf32>
    %cst_244 = arith.constant 9.99999974E-6 : f32
    %268 = vector.broadcast %cst_244 : f32 to vector<2x1xf32>
    %269 = arith.addf %267, %268 : vector<2x1xf32>
    %270 = math.rsqrt %269 : vector<2x1xf32>
    %271 = vector.broadcast %270 : vector<2x1xf32> to vector<2x288xf32>
    %272 = arith.mulf %262, %271 : vector<2x288xf32>
    %cst_245 = arith.constant 0.000000e+00 : f32
    %273 = vector.broadcast %cst_245 : f32 to vector<2x288xf32>
    %274 = arith.cmpf ogt, %272, %273 : vector<2x288xf32>
    %cst_246 = arith.constant 2.000000e-01 : f32
    %275 = vector.broadcast %cst_246 : f32 to vector<2x288xf32>
    %276 = arith.mulf %275, %272 : vector<2x288xf32>
    %277 = arith.select %274, %272, %276 : vector<2x288xi1>, vector<2x288xf32>
    %c6_247 = arith.constant 6 : index
    %c19_248 = arith.constant 19 : index
    %278 = vector.load %arg10[%c6_247, %c19_248] : memref<10x326xf32, #tpu.memory_space<vmem>>, vector<2x288xf32>
    tpu.vector_store %arg10[%c6_247, %c19_248], %277 {strides = array<i32>} : memref<10x326xf32, #tpu.memory_space<vmem>>, vector<2x288xf32>,
    %cst_249 = arith.constant 0.000000e+00 : f32
    %279 = vector.broadcast %cst_249 : f32 to vector<2x288xf32>
    %c0_250 = arith.constant 0 : index
    %c0_251 = arith.constant 0 : index
    %280 = vector.load %arg10[%c0_250, %c0_251] : memref<10x326xf32, #tpu.memory_space<vmem>>, vector<8x288xf32>
    %c0_252 = arith.constant 0 : index
    %c0_253 = arith.constant 0 : index
    %c0_254 = arith.constant 0 : index
    %281 = vector.load %arg7[%c0_252, %c0_253, %c0_254] : memref<9x2x8xf32, #tpu.memory_space<vmem>>, vector<1x2x8xf32>
    %282 = vector.shape_cast %281 : vector<1x2x8xf32> to vector<2x8xf32>
    %cst_255 = arith.constant dense<0.000000e+00> : vector<2x288xf32>
    %283 = tpu.matmul %282, %280, %cst_255 {dimension_numbers = #tpu.dot_dimension_numbers<[1], [0], [0], [1], [0, 0, 1, 1], [], []>} : vector<2x8xf32>, vector<8x288xf32>, vector<2x288xf32> -> vector<2x288xf32>
    %284 = arith.addf %279, %283 : vector<2x288xf32>
    %c0_256 = arith.constant 0 : index
    %c1_257 = arith.constant 1 : index
    %285 = vector.load %arg10[%c0_256, %c1_257] : memref<10x326xf32, #tpu.memory_space<vmem>>, vector<8x288xf32>
    %c1_258 = arith.constant 1 : index
    %c0_259 = arith.constant 0 : index
    %c0_260 = arith.constant 0 : index
    %286 = vector.load %arg7[%c1_258, %c0_259, %c0_260] : memref<9x2x8xf32, #tpu.memory_space<vmem>>, vector<1x2x8xf32>
    %287 = vector.shape_cast %286 : vector<1x2x8xf32> to vector<2x8xf32>
    %cst_261 = arith.constant dense<0.000000e+00> : vector<2x288xf32>
    %288 = tpu.matmul %287, %285, %cst_261 {dimension_numbers = #tpu.dot_dimension_numbers<[1], [0], [0], [1], [0, 0, 1, 1], [], []>} : vector<2x8xf32>, vector<8x288xf32>, vector<2x288xf32> -> vector<2x288xf32>
    %289 = arith.addf %284, %288 : vector<2x288xf32>
    %c0_262 = arith.constant 0 : index
    %c2_263 = arith.constant 2 : index
    %290 = vector.load %arg10[%c0_262, %c2_263] : memref<10x326xf32, #tpu.memory_space<vmem>>, vector<8x288xf32>
    %c2_264 = arith.constant 2 : index
    %c0_265 = arith.constant 0 : index
    %c0_266 = arith.constant 0 : index
    %291 = vector.load %arg7[%c2_264, %c0_265, %c0_266] : memref<9x2x8xf32, #tpu.memory_space<vmem>>, vector<1x2x8xf32>
    %292 = vector.shape_cast %291 : vector<1x2x8xf32> to vector<2x8xf32>
    %cst_267 = arith.constant dense<0.000000e+00> : vector<2x288xf32>
    %293 = tpu.matmul %292, %290, %cst_267 {dimension_numbers = #tpu.dot_dimension_numbers<[1], [0], [0], [1], [0, 0, 1, 1], [], []>} : vector<2x8xf32>, vector<8x288xf32>, vector<2x288xf32> -> vector<2x288xf32>
    %294 = arith.addf %289, %293 : vector<2x288xf32>
    %c0_268 = arith.constant 0 : index
    %c18_269 = arith.constant 18 : index
    %295 = vector.load %arg10[%c0_268, %c18_269] : memref<10x326xf32, #tpu.memory_space<vmem>>, vector<8x288xf32>
    %c3_270 = arith.constant 3 : index
    %c0_271 = arith.constant 0 : index
    %c0_272 = arith.constant 0 : index
    %296 = vector.load %arg7[%c3_270, %c0_271, %c0_272] : memref<9x2x8xf32, #tpu.memory_space<vmem>>, vector<1x2x8xf32>
    %297 = vector.shape_cast %296 : vector<1x2x8xf32> to vector<2x8xf32>
    %cst_273 = arith.constant dense<0.000000e+00> : vector<2x288xf32>
    %298 = tpu.matmul %297, %295, %cst_273 {dimension_numbers = #tpu.dot_dimension_numbers<[1], [0], [0], [1], [0, 0, 1, 1], [], []>} : vector<2x8xf32>, vector<8x288xf32>, vector<2x288xf32> -> vector<2x288xf32>
    %299 = arith.addf %294, %298 : vector<2x288xf32>
    %c0_274 = arith.constant 0 : index
    %c19_275 = arith.constant 19 : index
    %300 = vector.load %arg10[%c0_274, %c19_275] : memref<10x326xf32, #tpu.memory_space<vmem>>, vector<8x288xf32>
    %c4_276 = arith.constant 4 : index
    %c0_277 = arith.constant 0 : index
    %c0_278 = arith.constant 0 : index
    %301 = vector.load %arg7[%c4_276, %c0_277, %c0_278] : memref<9x2x8xf32, #tpu.memory_space<vmem>>, vector<1x2x8xf32>
    %302 = vector.shape_cast %301 : vector<1x2x8xf32> to vector<2x8xf32>
    %cst_279 = arith.constant dense<0.000000e+00> : vector<2x288xf32>
    %303 = tpu.matmul %302, %300, %cst_279 {dimension_numbers = #tpu.dot_dimension_numbers<[1], [0], [0], [1], [0, 0, 1, 1], [], []>} : vector<2x8xf32>, vector<8x288xf32>, vector<2x288xf32> -> vector<2x288xf32>
    %304 = arith.addf %299, %303 : vector<2x288xf32>
    %c0_280 = arith.constant 0 : index
    %c20_281 = arith.constant 20 : index
    %305 = vector.load %arg10[%c0_280, %c20_281] : memref<10x326xf32, #tpu.memory_space<vmem>>, vector<8x288xf32>
    %c5_282 = arith.constant 5 : index
    %c0_283 = arith.constant 0 : index
    %c0_284 = arith.constant 0 : index
    %306 = vector.load %arg7[%c5_282, %c0_283, %c0_284] : memref<9x2x8xf32, #tpu.memory_space<vmem>>, vector<1x2x8xf32>
    %307 = vector.shape_cast %306 : vector<1x2x8xf32> to vector<2x8xf32>
    %cst_285 = arith.constant dense<0.000000e+00> : vector<2x288xf32>
    %308 = tpu.matmul %307, %305, %cst_285 {dimension_numbers = #tpu.dot_dimension_numbers<[1], [0], [0], [1], [0, 0, 1, 1], [], []>} : vector<2x8xf32>, vector<8x288xf32>, vector<2x288xf32> -> vector<2x288xf32>
    %309 = arith.addf %304, %308 : vector<2x288xf32>
    %c0_286 = arith.constant 0 : index
    %c36_287 = arith.constant 36 : index
    %310 = vector.load %arg10[%c0_286, %c36_287] : memref<10x326xf32, #tpu.memory_space<vmem>>, vector<8x288xf32>
    %c6_288 = arith.constant 6 : index
    %c0_289 = arith.constant 0 : index
    %c0_290 = arith.constant 0 : index
    %311 = vector.load %arg7[%c6_288, %c0_289, %c0_290] : memref<9x2x8xf32, #tpu.memory_space<vmem>>, vector<1x2x8xf32>
    %312 = vector.shape_cast %311 : vector<1x2x8xf32> to vector<2x8xf32>
    %cst_291 = arith.constant dense<0.000000e+00> : vector<2x288xf32>
    %313 = tpu.matmul %312, %310, %cst_291 {dimension_numbers = #tpu.dot_dimension_numbers<[1], [0], [0], [1], [0, 0, 1, 1], [], []>} : vector<2x8xf32>, vector<8x288xf32>, vector<2x288xf32> -> vector<2x288xf32>
    %314 = arith.addf %309, %313 : vector<2x288xf32>
    %c0_292 = arith.constant 0 : index
    %c37_293 = arith.constant 37 : index
    %315 = vector.load %arg10[%c0_292, %c37_293] : memref<10x326xf32, #tpu.memory_space<vmem>>, vector<8x288xf32>
    %c7_294 = arith.constant 7 : index
    %c0_295 = arith.constant 0 : index
    %c0_296 = arith.constant 0 : index
    %316 = vector.load %arg7[%c7_294, %c0_295, %c0_296] : memref<9x2x8xf32, #tpu.memory_space<vmem>>, vector<1x2x8xf32>
    %317 = vector.shape_cast %316 : vector<1x2x8xf32> to vector<2x8xf32>
    %cst_297 = arith.constant dense<0.000000e+00> : vector<2x288xf32>
    %318 = tpu.matmul %317, %315, %cst_297 {dimension_numbers = #tpu.dot_dimension_numbers<[1], [0], [0], [1], [0, 0, 1, 1], [], []>} : vector<2x8xf32>, vector<8x288xf32>, vector<2x288xf32> -> vector<2x288xf32>
    %319 = arith.addf %314, %318 : vector<2x288xf32>
    %c0_298 = arith.constant 0 : index
    %c38_299 = arith.constant 38 : index
    %320 = vector.load %arg10[%c0_298, %c38_299] : memref<10x326xf32, #tpu.memory_space<vmem>>, vector<8x288xf32>
    %c8_300 = arith.constant 8 : index
    %c0_301 = arith.constant 0 : index
    %c0_302 = arith.constant 0 : index
    %321 = vector.load %arg7[%c8_300, %c0_301, %c0_302] : memref<9x2x8xf32, #tpu.memory_space<vmem>>, vector<1x2x8xf32>
    %322 = vector.shape_cast %321 : vector<1x2x8xf32> to vector<2x8xf32>
    %cst_303 = arith.constant dense<0.000000e+00> : vector<2x288xf32>
    %323 = tpu.matmul %322, %320, %cst_303 {dimension_numbers = #tpu.dot_dimension_numbers<[1], [0], [0], [1], [0, 0, 1, 1], [], []>} : vector<2x8xf32>, vector<8x288xf32>, vector<2x288xf32> -> vector<2x288xf32>
    %324 = arith.addf %319, %323 : vector<2x288xf32>
    %325 = vector.broadcast %0 : vector<1x288xf32> to vector<2x288xf32>
    %326 = arith.mulf %324, %325 : vector<2x288xf32>
    %cst_304 = arith.constant dense<0.000000e+00> : vector<2xf32>
    %327 = vector.multi_reduction <add>, %326, %cst_304 [1] : vector<2x288xf32> to vector<2xf32>
    %328 = vector.shape_cast %327 : vector<2xf32> to vector<2x1xf32>
    %cst_305 = arith.constant 3.906250e-03 : f32
    %329 = vector.broadcast %cst_305 : f32 to vector<2x1xf32>
    %330 = arith.mulf %328, %329 : vector<2x1xf32>
    %331 = vector.broadcast %330 : vector<2x1xf32> to vector<2x288xf32>
    %332 = arith.subf %324, %331 : vector<2x288xf32>
    %333 = vector.broadcast %0 : vector<1x288xf32> to vector<2x288xf32>
    %334 = arith.mulf %332, %333 : vector<2x288xf32>
    %335 = arith.mulf %334, %334 : vector<2x288xf32>
    %cst_306 = arith.constant dense<0.000000e+00> : vector<2xf32>
    %336 = vector.multi_reduction <add>, %335, %cst_306 [1] : vector<2x288xf32> to vector<2xf32>
    %337 = vector.shape_cast %336 : vector<2xf32> to vector<2x1xf32>
    %cst_307 = arith.constant 3.906250e-03 : f32
    %338 = vector.broadcast %cst_307 : f32 to vector<2x1xf32>
    %339 = arith.mulf %337, %338 : vector<2x1xf32>
    %cst_308 = arith.constant 9.99999974E-6 : f32
    %340 = vector.broadcast %cst_308 : f32 to vector<2x1xf32>
    %341 = arith.addf %339, %340 : vector<2x1xf32>
    %342 = math.rsqrt %341 : vector<2x1xf32>
    %343 = vector.broadcast %342 : vector<2x1xf32> to vector<2x288xf32>
    %344 = arith.mulf %334, %343 : vector<2x288xf32>
    %cst_309 = arith.constant 0.000000e+00 : f32
    %345 = vector.broadcast %cst_309 : f32 to vector<2x288xf32>
    %346 = arith.cmpf ogt, %344, %345 : vector<2x288xf32>
    %cst_310 = arith.constant 2.000000e-01 : f32
    %347 = vector.broadcast %cst_310 : f32 to vector<2x288xf32>
    %348 = arith.mulf %347, %344 : vector<2x288xf32>
    %349 = arith.select %346, %344, %348 : vector<2x288xi1>, vector<2x288xf32>
    %c8_311 = arith.constant 8 : index
    %c19_312 = arith.constant 19 : index
    %350 = vector.load %arg10[%c8_311, %c19_312] : memref<10x326xf32, #tpu.memory_space<vmem>>, vector<2x288xf32>
    tpu.vector_store %arg10[%c8_311, %c19_312], %349 {strides = array<i32>} : memref<10x326xf32, #tpu.memory_space<vmem>>, vector<2x288xf32>,
    %cst_313 = arith.constant 0.000000e+00 : f32
    %351 = vector.broadcast %cst_313 : f32 to vector<4x288xf32>
    %c0_314 = arith.constant 0 : index
    %c0_315 = arith.constant 0 : index
    %352 = vector.load %arg10[%c0_314, %c0_315] : memref<10x326xf32, #tpu.memory_space<vmem>>, vector<10x288xf32>
    %c0_316 = arith.constant 0 : index
    %c0_317 = arith.constant 0 : index
    %c0_318 = arith.constant 0 : index
    %353 = vector.load %arg8[%c0_316, %c0_317, %c0_318] : memref<9x4x10xf32, #tpu.memory_space<vmem>>, vector<1x4x10xf32>
    %354 = vector.shape_cast %353 : vector<1x4x10xf32> to vector<4x10xf32>
    %cst_319 = arith.constant dense<0.000000e+00> : vector<4x288xf32>
    %355 = tpu.matmul %354, %352, %cst_319 {dimension_numbers = #tpu.dot_dimension_numbers<[1], [0], [0], [1], [0, 0, 1, 1], [], []>} : vector<4x10xf32>, vector<10x288xf32>, vector<4x288xf32> -> vector<4x288xf32>
    %356 = arith.addf %351, %355 : vector<4x288xf32>
    %c0_320 = arith.constant 0 : index
    %c1_321 = arith.constant 1 : index
    %357 = vector.load %arg10[%c0_320, %c1_321] : memref<10x326xf32, #tpu.memory_space<vmem>>, vector<10x288xf32>
    %c1_322 = arith.constant 1 : index
    %c0_323 = arith.constant 0 : index
    %c0_324 = arith.constant 0 : index
    %358 = vector.load %arg8[%c1_322, %c0_323, %c0_324] : memref<9x4x10xf32, #tpu.memory_space<vmem>>, vector<1x4x10xf32>
    %359 = vector.shape_cast %358 : vector<1x4x10xf32> to vector<4x10xf32>
    %cst_325 = arith.constant dense<0.000000e+00> : vector<4x288xf32>
    %360 = tpu.matmul %359, %357, %cst_325 {dimension_numbers = #tpu.dot_dimension_numbers<[1], [0], [0], [1], [0, 0, 1, 1], [], []>} : vector<4x10xf32>, vector<10x288xf32>, vector<4x288xf32> -> vector<4x288xf32>
    %361 = arith.addf %356, %360 : vector<4x288xf32>
    %c0_326 = arith.constant 0 : index
    %c2_327 = arith.constant 2 : index
    %362 = vector.load %arg10[%c0_326, %c2_327] : memref<10x326xf32, #tpu.memory_space<vmem>>, vector<10x288xf32>
    %c2_328 = arith.constant 2 : index
    %c0_329 = arith.constant 0 : index
    %c0_330 = arith.constant 0 : index
    %363 = vector.load %arg8[%c2_328, %c0_329, %c0_330] : memref<9x4x10xf32, #tpu.memory_space<vmem>>, vector<1x4x10xf32>
    %364 = vector.shape_cast %363 : vector<1x4x10xf32> to vector<4x10xf32>
    %cst_331 = arith.constant dense<0.000000e+00> : vector<4x288xf32>
    %365 = tpu.matmul %364, %362, %cst_331 {dimension_numbers = #tpu.dot_dimension_numbers<[1], [0], [0], [1], [0, 0, 1, 1], [], []>} : vector<4x10xf32>, vector<10x288xf32>, vector<4x288xf32> -> vector<4x288xf32>
    %366 = arith.addf %361, %365 : vector<4x288xf32>
    %c0_332 = arith.constant 0 : index
    %c18_333 = arith.constant 18 : index
    %367 = vector.load %arg10[%c0_332, %c18_333] : memref<10x326xf32, #tpu.memory_space<vmem>>, vector<10x288xf32>
    %c3_334 = arith.constant 3 : index
    %c0_335 = arith.constant 0 : index
    %c0_336 = arith.constant 0 : index
    %368 = vector.load %arg8[%c3_334, %c0_335, %c0_336] : memref<9x4x10xf32, #tpu.memory_space<vmem>>, vector<1x4x10xf32>
    %369 = vector.shape_cast %368 : vector<1x4x10xf32> to vector<4x10xf32>
    %cst_337 = arith.constant dense<0.000000e+00> : vector<4x288xf32>
    %370 = tpu.matmul %369, %367, %cst_337 {dimension_numbers = #tpu.dot_dimension_numbers<[1], [0], [0], [1], [0, 0, 1, 1], [], []>} : vector<4x10xf32>, vector<10x288xf32>, vector<4x288xf32> -> vector<4x288xf32>
    %371 = arith.addf %366, %370 : vector<4x288xf32>
    %c0_338 = arith.constant 0 : index
    %c19_339 = arith.constant 19 : index
    %372 = vector.load %arg10[%c0_338, %c19_339] : memref<10x326xf32, #tpu.memory_space<vmem>>, vector<10x288xf32>
    %c4_340 = arith.constant 4 : index
    %c0_341 = arith.constant 0 : index
    %c0_342 = arith.constant 0 : index
    %373 = vector.load %arg8[%c4_340, %c0_341, %c0_342] : memref<9x4x10xf32, #tpu.memory_space<vmem>>, vector<1x4x10xf32>
    %374 = vector.shape_cast %373 : vector<1x4x10xf32> to vector<4x10xf32>
    %cst_343 = arith.constant dense<0.000000e+00> : vector<4x288xf32>
    %375 = tpu.matmul %374, %372, %cst_343 {dimension_numbers = #tpu.dot_dimension_numbers<[1], [0], [0], [1], [0, 0, 1, 1], [], []>} : vector<4x10xf32>, vector<10x288xf32>, vector<4x288xf32> -> vector<4x288xf32>
    %376 = arith.addf %371, %375 : vector<4x288xf32>
    %c0_344 = arith.constant 0 : index
    %c20_345 = arith.constant 20 : index
    %377 = vector.load %arg10[%c0_344, %c20_345] : memref<10x326xf32, #tpu.memory_space<vmem>>, vector<10x288xf32>
    %c5_346 = arith.constant 5 : index
    %c0_347 = arith.constant 0 : index
    %c0_348 = arith.constant 0 : index
    %378 = vector.load %arg8[%c5_346, %c0_347, %c0_348] : memref<9x4x10xf32, #tpu.memory_space<vmem>>, vector<1x4x10xf32>
    %379 = vector.shape_cast %378 : vector<1x4x10xf32> to vector<4x10xf32>
    %cst_349 = arith.constant dense<0.000000e+00> : vector<4x288xf32>
    %380 = tpu.matmul %379, %377, %cst_349 {dimension_numbers = #tpu.dot_dimension_numbers<[1], [0], [0], [1], [0, 0, 1, 1], [], []>} : vector<4x10xf32>, vector<10x288xf32>, vector<4x288xf32> -> vector<4x288xf32>
    %381 = arith.addf %376, %380 : vector<4x288xf32>
    %c0_350 = arith.constant 0 : index
    %c36_351 = arith.constant 36 : index
    %382 = vector.load %arg10[%c0_350, %c36_351] : memref<10x326xf32, #tpu.memory_space<vmem>>, vector<10x288xf32>
    %c6_352 = arith.constant 6 : index
    %c0_353 = arith.constant 0 : index
    %c0_354 = arith.constant 0 : index
    %383 = vector.load %arg8[%c6_352, %c0_353, %c0_354] : memref<9x4x10xf32, #tpu.memory_space<vmem>>, vector<1x4x10xf32>
    %384 = vector.shape_cast %383 : vector<1x4x10xf32> to vector<4x10xf32>
    %cst_355 = arith.constant dense<0.000000e+00> : vector<4x288xf32>
    %385 = tpu.matmul %384, %382, %cst_355 {dimension_numbers = #tpu.dot_dimension_numbers<[1], [0], [0], [1], [0, 0, 1, 1], [], []>} : vector<4x10xf32>, vector<10x288xf32>, vector<4x288xf32> -> vector<4x288xf32>
    %386 = arith.addf %381, %385 : vector<4x288xf32>
    %c0_356 = arith.constant 0 : index
    %c37_357 = arith.constant 37 : index
    %387 = vector.load %arg10[%c0_356, %c37_357] : memref<10x326xf32, #tpu.memory_space<vmem>>, vector<10x288xf32>
    %c7_358 = arith.constant 7 : index
    %c0_359 = arith.constant 0 : index
    %c0_360 = arith.constant 0 : index
    %388 = vector.load %arg8[%c7_358, %c0_359, %c0_360] : memref<9x4x10xf32, #tpu.memory_space<vmem>>, vector<1x4x10xf32>
    %389 = vector.shape_cast %388 : vector<1x4x10xf32> to vector<4x10xf32>
    %cst_361 = arith.constant dense<0.000000e+00> : vector<4x288xf32>
    %390 = tpu.matmul %389, %387, %cst_361 {dimension_numbers = #tpu.dot_dimension_numbers<[1], [0], [0], [1], [0, 0, 1, 1], [], []>} : vector<4x10xf32>, vector<10x288xf32>, vector<4x288xf32> -> vector<4x288xf32>
    %391 = arith.addf %386, %390 : vector<4x288xf32>
    %c0_362 = arith.constant 0 : index
    %c38_363 = arith.constant 38 : index
    %392 = vector.load %arg10[%c0_362, %c38_363] : memref<10x326xf32, #tpu.memory_space<vmem>>, vector<10x288xf32>
    %c8_364 = arith.constant 8 : index
    %c0_365 = arith.constant 0 : index
    %c0_366 = arith.constant 0 : index
    %393 = vector.load %arg8[%c8_364, %c0_365, %c0_366] : memref<9x4x10xf32, #tpu.memory_space<vmem>>, vector<1x4x10xf32>
    %394 = vector.shape_cast %393 : vector<1x4x10xf32> to vector<4x10xf32>
    %cst_367 = arith.constant dense<0.000000e+00> : vector<4x288xf32>
    %395 = tpu.matmul %394, %392, %cst_367 {dimension_numbers = #tpu.dot_dimension_numbers<[1], [0], [0], [1], [0, 0, 1, 1], [], []>} : vector<4x10xf32>, vector<10x288xf32>, vector<4x288xf32> -> vector<4x288xf32>
    %396 = arith.addf %391, %395 : vector<4x288xf32>
    %c0_368 = arith.constant 0 : index
    %c0_369 = arith.constant 0 : index
    %c0_370 = arith.constant 0 : index
    %397 = vector.load %arg9[%c0_368, %c0_369, %c0_370] : memref<1x4x288xf32, #tpu.memory_space<vmem>>, vector<1x4x288xf32>
    %398 = vector.shape_cast %397 : vector<1x4x288xf32> to vector<4x288xf32>
    %399 = vector.shape_cast %396 : vector<4x288xf32> to vector<1x4x288xf32>
    tpu.vector_store %arg9[%c0_368, %c0_369, %c0_370], %399 {strides = array<i32>} : memref<1x4x288xf32, #tpu.memory_space<vmem>>, vector<1x4x288xf32>,
    return
  }
  func.func @transform_0(%arg0: i32) -> (i32, i32, i32) {
    %c0_i32 = arith.constant 0 : i32
    %c0_i32_0 = arith.constant 0 : i32
    %c0_i32_1 = arith.constant 0 : i32
    return %arg0, %c0_i32, %c0_i32_0 : i32, i32, i32
  }
  func.func @transform_1(%arg0: i32) -> (i32, i32) {
    %c0_i32 = arith.constant 0 : i32
    %c0_i32_0 = arith.constant 0 : i32
    %c0_i32_1 = arith.constant 0 : i32
    return %c0_i32, %c0_i32_0 : i32, i32
  }
  func.func @transform_2(%arg0: i32) -> (i32, i32, i32) {
    %c0_i32 = arith.constant 0 : i32
    %c0_i32_0 = arith.constant 0 : i32
    %c0_i32_1 = arith.constant 0 : i32
    %c0_i32_2 = arith.constant 0 : i32
    return %c0_i32, %c0_i32_0, %c0_i32_1 : i32, i32, i32
  }
  func.func @transform_3(%arg0: i32) -> (i32, i32, i32) {
    %c0_i32 = arith.constant 0 : i32
    %c0_i32_0 = arith.constant 0 : i32
    %c0_i32_1 = arith.constant 0 : i32
    %c0_i32_2 = arith.constant 0 : i32
    return %c0_i32, %c0_i32_0, %c0_i32_1 : i32, i32, i32
  }
  func.func @transform_4(%arg0: i32) -> (i32, i32, i32) {
    %c0_i32 = arith.constant 0 : i32
    %c0_i32_0 = arith.constant 0 : i32
    %c0_i32_1 = arith.constant 0 : i32
    %c0_i32_2 = arith.constant 0 : i32
    return %c0_i32, %c0_i32_0, %c0_i32_1 : i32, i32, i32
  }
  func.func @transform_5(%arg0: i32) -> (i32, i32, i32) {
    %c0_i32 = arith.constant 0 : i32
    %c0_i32_0 = arith.constant 0 : i32
    %c0_i32_1 = arith.constant 0 : i32
    %c0_i32_2 = arith.constant 0 : i32
    return %c0_i32, %c0_i32_0, %c0_i32_1 : i32, i32, i32
  }
  func.func @transform_6(%arg0: i32) -> (i32, i32, i32) {
    %c0_i32 = arith.constant 0 : i32
    %c0_i32_0 = arith.constant 0 : i32
    %c0_i32_1 = arith.constant 0 : i32
    %c0_i32_2 = arith.constant 0 : i32
    return %c0_i32, %c0_i32_0, %c0_i32_1 : i32, i32, i32
  }
  func.func @transform_7(%arg0: i32) -> (i32, i32, i32) {
    %c0_i32 = arith.constant 0 : i32
    %c0_i32_0 = arith.constant 0 : i32
    %c0_i32_1 = arith.constant 0 : i32
    %c0_i32_2 = arith.constant 0 : i32
    return %c0_i32, %c0_i32_0, %c0_i32_1 : i32, i32, i32
  }
  func.func @transform_8(%arg0: i32) -> (i32, i32, i32) {
    %c0_i32 = arith.constant 0 : i32
    %c0_i32_0 = arith.constant 0 : i32
    %c0_i32_1 = arith.constant 0 : i32
    return %arg0, %c0_i32, %c0_i32_0 : i32, i32, i32
  }
}

</mosaic_0001>

<llo_original>
// kernel: tpu_custom_call.1
$region0: #{tpu_custom_call.1}
  #allocation0 [shape = 'u32[]', space=smem, size = 0x4, offset = 0x4, fixed_abs, tag = 'smem constant byte address 0x4 - core index']
  #allocation1 [shape = 'u32[144,128]{1,0:T(1,128)}', space=vmem, size = 0x12000, scoped, tag = 'internal scratch']
  #allocation2 [shape = 'f32[10,326]{1,0:T(8,128)}', space=vmem, size = 0x6000, scoped, tag = 'scratch operand']
  %s0 = inlined_call_operand.vmem [shape: f32[2,4,326], index: 0, kind: input, shape index: {}]
  %s1 = inlined_call_operand.vmem [shape: f32[1,288], index: 1, kind: input, shape index: {}]
  %s2 = inlined_call_operand.vmem [shape: f32[9,2,4], index: 2, kind: input, shape index: {}]
  %s3 = inlined_call_operand.vmem [shape: f32[9,2,2], index: 3, kind: input, shape index: {}]
  %s4 = inlined_call_operand.vmem [shape: f32[9,2,4], index: 4, kind: input, shape index: {}]
  %s5 = inlined_call_operand.vmem [shape: f32[9,2,6], index: 5, kind: input, shape index: {}]
  %s6 = inlined_call_operand.vmem [shape: f32[9,2,8], index: 6, kind: input, shape index: {}]
  %s7 = inlined_call_operand.vmem [shape: f32[9,4,10], index: 7, kind: input, shape index: {}]
  %s8 = inlined_call_operand.hbm [shape: f32[2,4,288], index: 8, kind: output, shape index: {}]
  %s9 = sld [smem:[#allocation0]]
  $region65: #{tpu_custom_call.1} parent=0
    _
  %s11 = ssub.s32 1, %s9
  %s12 = scalar_select 0, %s11, %s9
  $region1: #{tpu_custom_call.1} parent=0
    #allocation3 [shape = 'u8[12288]{0}', space=vmem, size = 0x3000, scoped, tag = 'output window, operand 0']
    #allocation4 [shape = 's32[2]{0}', space=sflag, size = 0x8, scoped, tag = 'scoped memory for tpu_custom_call.1']
    %13 = vsyncpa [#allocation4], 0
    %s14 = scalar_lea.sflag [#allocation4], 1
    %15 = vsyncpa %s14, 0
    loop: start=0, step=1, limit=4
    $region2: #{tpu_custom_call.1} parent=1 // loop_pre_header
      _
    $region3: #{tpu_custom_call.1} parent=1 // loop_header
      %s17 = sphi 0, %s21
      %p18 = scmp.ge.s32.totalorder %s17, 4
      %s27 = sphi 0, %s29
      %s30 = sphi 0, %s27
      %s31 = sphi 0, %s30
      %s47 = sphi 0, %s31
      %s51 = sphi 0, %s51
      %s53 = sphi 0, %s51
      %s54 = sphi 0, %s53
      %s68 = sphi 0, %s54
      %s72 = sphi 0, %s72
      %s74 = sphi 0, %s72
      %s75 = sphi 0, %s74
      %s89 = sphi 0, %s75
      %s93 = sphi 0, %s93
      %s95 = sphi 0, %s93
      %s96 = sphi 0, %s95
      %s110 = sphi 0, %s96
      %s114 = sphi 0, %s114
      %s116 = sphi 0, %s114
      %s117 = sphi 0, %s116
      %s131 = sphi 0, %s117
      %s135 = sphi 0, %s135
      %s137 = sphi 0, %s135
      %s138 = sphi 0, %s137
      %s152 = sphi 0, %s138
      %s156 = sphi 0, %s156
      %s158 = sphi 0, %s156
      %s159 = sphi 0, %s158
      %s173 = sphi 0, %s159
      %s177 = sphi 0, %s177
      %s179 = sphi 0, %s177
      %s180 = sphi 0, %s179
      %s194 = sphi 0, %s180
      %s200 = sphi 0, %s202
      %s203 = sphi 0, %s200
      %s204 = sphi 0, %s203
      %s220 = sphi 0, %s204
    $region4: #{tpu_custom_call.1} parent=1 // loop_header_branch
      %20 = sbr.rel (%p18) target = $region8
    $region5: #{tpu_custom_call.1} parent=1 // loop_body
      %s22 = ssub.s32 %s17, 1
      %s23 = ssub.s32 %s17, 2
      %s24 = sadd.s32 %s17, 1
      %s25 = ssub.s32 %s17, %s24
      %p26 = scmp.eq.s32.totalorder %s25, 0
      %s28 = sadd.s32 %s27, 1
      %s29 = scalar_select %p26, %s27, %s28
      %p32 = pneg %p26
      %p33 = scmp.eq.s32.totalorder %s17, 1
      %p34 = por %p32, %p33
      %p35 = scmp.ne.s32.totalorder %s27, %s30
      %p36 = scmp.eq.s32.totalorder %s17, 0
      %p37 = por %p35, %p36
      %p38 = scmp.ne.s32.totalorder %s27, %s30
      %p39 = scmp.eq.s32.totalorder %s22, 1
      %p40 = por %p38, %p39
      %p41 = scmp.ne.s32.totalorder %s30, %s31
      %p42 = scmp.eq.s32.totalorder %s22, 0
      %p43 = por %p41, %p42
      %p44 = scmp.ne.s32.totalorder %s30, %s31
      %p45 = scmp.eq.s32.totalorder %s23, 1
      %p46 = por %p44, %p45
      %p48 = scmp.ne.s32.totalorder %s31, %s47
      %p49 = scmp.eq.s32.totalorder %s23, 0
      %p50 = por %p48, %p49
      %s52 = sadd.s32 %s51, 1
      %p55 = scmp.eq.s32.totalorder %s17, 1
      %p56 = scmp.ne.s32.totalorder %s51, %s53
      %p57 = scmp.eq.s32.totalorder %s17, 0
      %p58 = por %p56, %p57
      %p59 = scmp.ne.s32.totalorder %s51, %s53
      %p60 = scmp.eq.s32.totalorder %s22, 1
      %p61 = por %p59, %p60
      %p62 = scmp.ne.s32.totalorder %s53, %s54
      %p63 = scmp.eq.s32.totalorder %s22, 0
      %p64 = por %p62, %p63
      %p65 = scmp.ne.s32.totalorder %s53, %s54
      %p66 = scmp.eq.s32.totalorder %s23, 1
      %p67 = por %p65, %p66
      %p69 = scmp.ne.s32.totalorder %s54, %s68
      %p70 = scmp.eq.s32.totalorder %s23, 0
      %p71 = por %p69, %p70
      %s73 = sadd.s32 %s72, 1
      %p76 = scmp.eq.s32.totalorder %s17, 1
      %p77 = scmp.ne.s32.totalorder %s72, %s74
      %p78 = scmp.eq.s32.totalorder %s17, 0
      %p79 = por %p77, %p78
      %p80 = scmp.ne.s32.totalorder %s72, %s74
      %p81 = scmp.eq.s32.totalorder %s22, 1
      %p82 = por %p80, %p81
      %p83 = scmp.ne.s32.totalorder %s74, %s75
      %p84 = scmp.eq.s32.totalorder %s22, 0
      %p85 = por %p83, %p84
      %p86 = scmp.ne.s32.totalorder %s74, %s75
      %p87 = scmp.eq.s32.totalorder %s23, 1
      %p88 = por %p86, %p87
      %p90 = scmp.ne.s32.totalorder %s75, %s89
      %p91 = scmp.eq.s32.totalorder %s23, 0
      %p92 = por %p90, %p91
      %s94 = sadd.s32 %s93, 1
      %p97 = scmp.eq.s32.totalorder %s17, 1
      %p98 = scmp.ne.s32.totalorder %s93, %s95
      %p99 = scmp.eq.s32.totalorder %s17, 0
      %p100 = por %p98, %p99
      %p101 = scmp.ne.s32.totalorder %s93, %s95
      %p102 = scmp.eq.s32.totalorder %s22, 1
      %p103 = por %p101, %p102
      %p104 = scmp.ne.s32.totalorder %s95, %s96
      %p105 = scmp.eq.s32.totalorder %s22, 0
      %p106 = por %p104, %p105
      %p107 = scmp.ne.s32.totalorder %s95, %s96
      %p108 = scmp.eq.s32.totalorder %s23, 1
      %p109 = por %p107, %p108
      %p111 = scmp.ne.s32.totalorder %s96, %s110
      %p112 = scmp.eq.s32.totalorder %s23, 0
      %p113 = por %p111, %p112
      %s115 = sadd.s32 %s114, 1
      %p118 = scmp.eq.s32.totalorder %s17, 1
      %p119 = scmp.ne.s32.totalorder %s114, %s116
      %p120 = scmp.eq.s32.totalorder %s17, 0
      %p121 = por %p119, %p120
      %p122 = scmp.ne.s32.totalorder %s114, %s116
      %p123 = scmp.eq.s32.totalorder %s22, 1
      %p124 = por %p122, %p123
      %p125 = scmp.ne.s32.totalorder %s116, %s117
      %p126 = scmp.eq.s32.totalorder %s22, 0
      %p127 = por %p125, %p126
      %p128 = scmp.ne.s32.totalorder %s116, %s117
      %p129 = scmp.eq.s32.totalorder %s23, 1
      %p130 = por %p128, %p129
      %p132 = scmp.ne.s32.totalorder %s117, %s131
      %p133 = scmp.eq.s32.totalorder %s23, 0
      %p134 = por %p132, %p133
      %s136 = sadd.s32 %s135, 1
      %p139 = scmp.eq.s32.totalorder %s17, 1
      %p140 = scmp.ne.s32.totalorder %s135, %s137
      %p141 = scmp.eq.s32.totalorder %s17, 0
      %p142 = por %p140, %p141
      %p143 = scmp.ne.s32.totalorder %s135, %s137
      %p144 = scmp.eq.s32.totalorder %s22, 1
      %p145 = por %p143, %p144
      %p146 = scmp.ne.s32.totalorder %s137, %s138
      %p147 = scmp.eq.s32.totalorder %s22, 0
      %p148 = por %p146, %p147
      %p149 = scmp.ne.s32.totalorder %s137, %s138
      %p150 = scmp.eq.s32.totalorder %s23, 1
      %p151 = por %p149, %p150
      %p153 = scmp.ne.s32.totalorder %s138, %s152
      %p154 = scmp.eq.s32.totalorder %s23, 0
      %p155 = por %p153, %p154
      %s157 = sadd.s32 %s156, 1
      %p160 = scmp.eq.s32.totalorder %s17, 1
      %p161 = scmp.ne.s32.totalorder %s156, %s158
      %p162 = scmp.eq.s32.totalorder %s17, 0
      %p163 = por %p161, %p162
      %p164 = scmp.ne.s32.totalorder %s156, %s158
      %p165 = scmp.eq.s32.totalorder %s22, 1
      %p166 = por %p164, %p165
      %p167 = scmp.ne.s32.totalorder %s158, %s159
      %p168 = scmp.eq.s32.totalorder %s22, 0
      %p169 = por %p167, %p168
      %p170 = scmp.ne.s32.totalorder %s158, %s159
      %p171 = scmp.eq.s32.totalorder %s23, 1
      %p172 = por %p170, %p171
      %p174 = scmp.ne.s32.totalorder %s159, %s173
      %p175 = scmp.eq.s32.totalorder %s23, 0
      %p176 = por %p174, %p175
      %s178 = sadd.s32 %s177, 1
      %p181 = scmp.eq.s32.totalorder %s17, 1
      %p182 = scmp.ne.s32.totalorder %s177, %s179
      %p183 = scmp.eq.s32.totalorder %s17, 0
      %p184 = por %p182, %p183
      %p185 = scmp.ne.s32.totalorder %s177, %s179
      %p186 = scmp.eq.s32.totalorder %s22, 1
      %p187 = por %p185, %p186
      %p188 = scmp.ne.s32.totalorder %s179, %s180
      %p189 = scmp.eq.s32.totalorder %s22, 0
      %p190 = por %p188, %p189
      %p191 = scmp.ne.s32.totalorder %s179, %s180
      %p192 = scmp.eq.s32.totalorder %s23, 1
      %p193 = por %p191, %p192
      %p195 = scmp.ne.s32.totalorder %s180, %s194
      %p196 = scmp.eq.s32.totalorder %s23, 0
      %p197 = por %p195, %p196
      %s198 = ssub.s32 %s17, %s24
      %p199 = scmp.eq.s32.totalorder %s198, 0
      %s201 = sadd.s32 %s200, 1
      %s202 = scalar_select %p199, %s200, %s201
      %p205 = pneg %p199
      %p206 = scmp.eq.s32.totalorder %s17, 1
      %p207 = por %p205, %p206
      %p208 = scmp.ne.s32.totalorder %s200, %s203
      %p209 = scmp.eq.s32.totalorder %s17, 0
      %p210 = por %p208, %p209
      %p211 = scmp.ne.s32.totalorder %s200, %s203
      %p212 = scmp.eq.s32.totalorder %s22, 1
      %p213 = por %p211, %p212
      %p214 = scmp.ne.s32.totalorder %s203, %s204
      %p215 = scmp.eq.s32.totalorder %s22, 0
      %p216 = por %p214, %p215
      %p217 = scmp.ne.s32.totalorder %s203, %s204
      %p218 = scmp.eq.s32.totalorder %s23, 1
      %p219 = por %p217, %p218
      %p221 = scmp.ne.s32.totalorder %s204, %s220
      %p222 = scmp.eq.s32.totalorder %s23, 0
      %p223 = por %p221, %p222
      %p224 = scmp.le.s32.totalorder 1, %s17
      %p225 = scmp.lt.s32.totalorder %s17, 3
      %p226 = pnand %p224, %p225
      %p227 = pneg %p226
      // Predicated region
      $region9: #{tpu_custom_call.1} parent=5 // pred_check
        _
      $region10: #{tpu_custom_call.1} parent=5 // pred_check_branch
        %229 = sbr.rel (%p226) target = $region12
      $region11: #{tpu_custom_call.1} parent=5 // pred_region
        %s230 = ssub.s32 %s17, 1
        // Predicated region
        $region13: #{tpu_custom_call.1} parent=11 // pred_check
          %p231 = pneg %p64
        $region14: #{tpu_custom_call.1} parent=11 // pred_check_branch
          %233 = sbr.rel (%p231) target = $region16
        $region15: #{tpu_custom_call.1} parent=11 // pred_region
          _
        $region16: #{tpu_custom_call.1} parent=11 // pred_fallthru
          _
        // Predicated region
        $region17: #{tpu_custom_call.1} parent=11 // pred_check
          %p234 = pneg %p85
        $region18: #{tpu_custom_call.1} parent=11 // pred_check_branch
          %236 = sbr.rel (%p234) target = $region20
        $region19: #{tpu_custom_call.1} parent=11 // pred_region
          _
        $region20: #{tpu_custom_call.1} parent=11 // pred_fallthru
          _
        // Predicated region
        $region21: #{tpu_custom_call.1} parent=11 // pred_check
          %p237 = pneg %p106
        $region22: #{tpu_custom_call.1} parent=11 // pred_check_branch
          %239 = sbr.rel (%p237) target = $region24
        $region23: #{tpu_custom_call.1} parent=11 // pred_region
          _
        $region24: #{tpu_custom_call.1} parent=11 // pred_fallthru
          _
        // Predicated region
        $region25: #{tpu_custom_call.1} parent=11 // pred_check
          %p240 = pneg %p127
        $region26: #{tpu_custom_call.1} parent=11 // pred_check_branch
          %242 = sbr.rel (%p240) target = $region28
        $region27: #{tpu_custom_call.1} parent=11 // pred_region
          _
        $region28: #{tpu_custom_call.1} parent=11 // pred_fallthru
          _
        // Predicated region
        $region29: #{tpu_custom_call.1} parent=11 // pred_check
          %p243 = pneg %p148
        $region30: #{tpu_custom_call.1} parent=11 // pred_check_branch
          %245 = sbr.rel (%p243) target = $region32
        $region31: #{tpu_custom_call.1} parent=11 // pred_region
          _
        $region32: #{tpu_custom_call.1} parent=11 // pred_fallthru
          _
        // Predicated region
        $region33: #{tpu_custom_call.1} parent=11 // pred_check
          %p246 = pneg %p169
        $region34: #{tpu_custom_call.1} parent=11 // pred_check_branch
          %248 = sbr.rel (%p246) target = $region36
        $region35: #{tpu_custom_call.1} parent=11 // pred_region
          _
        $region36: #{tpu_custom_call.1} parent=11 // pred_fallthru
          _
        // Predicated region
        $region37: #{tpu_custom_call.1} parent=11 // pred_check
          %p249 = pneg %p190
        $region38: #{tpu_custom_call.1} parent=11 // pred_check_branch
          %251 = sbr.rel (%p249) target = $region40
        $region39: #{tpu_custom_call.1} parent=11 // pred_region
          _
        $region40: #{tpu_custom_call.1} parent=11 // pred_fallthru
          _
      $region12: #{tpu_custom_call.1} parent=5 // pred_fallthru
        _
      %p252 = scmp.lt.s32.totalorder %s17, 2
      // Predicated region
      $region41: #{tpu_custom_call.1} parent=5 // pred_check
        %p253 = pneg %p252
      $region42: #{tpu_custom_call.1} parent=5 // pred_check_branch
        %255 = sbr.rel (%p253) target = $region44
      $region43: #{tpu_custom_call.1} parent=5 // pred_region
        // Predicated region
        $region45: #{tpu_custom_call.1} parent=43 // pred_check
          %p256 = pneg %p37
        $region46: #{tpu_custom_call.1} parent=43 // pred_check_branch
          %258 = sbr.rel (%p256) target = $region48
        $region47: #{tpu_custom_call.1} parent=43 // pred_region
          %p259 = scmp.lt.s32.totalorder %s17, 1
          %s260 = scalar_select %p259, %s17, 1
          %s261 = smul.addr %s260, 3
          %s262 = smul.addr %s261, 4
          %s263 = scalar_lea.vmem %s0, %s262
        $region48: #{tpu_custom_call.1} parent=43 // pred_fallthru
          _
      $region44: #{tpu_custom_call.1} parent=5 // pred_fallthru
        _
      %p264 = scmp.le.s32.totalorder 1, %s17
      %p265 = scmp.lt.s32.totalorder %s17, 3
      %p266 = pnand %p264, %p265
      %p267 = pneg %p266
      // Predicated region
      $region49: #{tpu_custom_call.1} parent=5 // pred_check
        _
      $region50: #{tpu_custom_call.1} parent=5 // pred_check_branch
        %269 = sbr.rel (%p266) target = $region52
      $region51: #{tpu_custom_call.1} parent=5 // pred_region
        %s270 = ssub.s32 %s17, 1
        %p271 = scmp.lt.s32.totalorder %s22, 1
        %s272 = scalar_select %p271, %s22, 1
        %s273 = smul.addr %s272, 3
        %s274 = smul.addr %s273, 4
        %s275 = scalar_lea.vmem %s0, %s274
        %p276 = pneg %p43
        %p277 = pneg %p40
        %p278 = pneg %p64
        %p279 = pneg %p61
        %p280 = pneg %p85
        %p281 = pneg %p82
        %p282 = pneg %p106
        %p283 = pneg %p103
        %p284 = pneg %p127
        %p285 = pneg %p124
        %p286 = pneg %p148
        %p287 = pneg %p145
        %p288 = pneg %p169
        %p289 = pneg %p166
        %p290 = pneg %p190
        %p291 = pneg %p187
        %p292 = pneg %p216
        %p293 = pneg %p213
        %s294 = sand.u32 %s203, 1
        %s295 = scalar_lea.sflag [#allocation4], %s294
        %s296 = sand.u32 %s203, 1
        %s297 = smul.addr %s296, 12
        %s298 = scalar_lea.vmem [#allocation3], %s297
        %p299 = scmp.lt.s32.totalorder %s22, 1
        %s300 = scalar_select %p299, %s22, 1
        %s301 = smul.addr %s300, 3
        %s302 = smul.addr %s301, 4
        %s303 = scalar_lea.vmem %s0, %s302
        %v304 = vld [vmem:[%s1] sm:$0x7]
        %vm305 = vcmask 154624
        %306 = vst.msk [vmem:[#allocation2] sm:$0xff] %vm305, 0.0
        %vm307 = vcmask 148480
        %308 = vst.msk [vmem:[#allocation2 + $0x18] sm:$0x3] %vm307, 0.0
        %vm309 = vcmask 572824
        %310 = vst.msk [vmem:[#allocation2 + $0x10] sm:$0xff] %vm309, 0.0
        %vm311 = vcmask 566680
        %312 = vst.msk [vmem:[#allocation2 + $0x28] sm:$0x3] %vm311, 0.0
        %v313 = vld [vmem:[%s303] sm:$0xff]
        %v314 = vld [vmem:[%s303 + $0x8] sm:$0xf]
        %v315 = vld [vmem:[%s2] sm:$0x3]
        %s316 = scalar_lea.vmem %s2, 2
        %v317 = vld [vmem:[%s316] sm:$0x3]
        %v320 = vcombine.high %v313, %v313
        %321 = vrot.lane.b32.xlu0 %v313, 127
        %v322 = vpop.permute.xlu0 %321
        %323 = vrot.lane.b32.xlu0 %v320, 127
        %v324 = vpop.permute.xlu0 %323
        %325 = vrot.lane.b32.xlu0 %v314, 127
        %v326 = vpop.permute.xlu0 %325
        %vm327 = vcmask 1039360
        %v328 = vsel %vm327, %v322, %v324
        %v329 = vsel %vm327, %v324, %v326
        %vm330 = vcmask 31744
        %v332 = vsel %vm330, %v317, 0
        %vm334 = vcmask 1043456
        %v335 = vsel %vm334, %v328, 0
        %v337 = vsel %vm334, %v329, 0
        %v339 = vsel %vm334, %v326, 0
        %341 = vmatprep.subr.mxu0 0.0
        %342 = vmatpush1.msra.mxu0 0.0
        %343 = vmatprep.subr.mxu0 0.0
        %344 = vmatpush1.msra.mxu0 0.0
        %345 = vmatprep.subr.mxu0 0.0
        %346 = vmatpush1.msra.mxu0 0.0
        %347 = vmatprep.subr.mxu0 0.0
        %348 = vmatpush1.msra.mxu0 0.0
        %349 = vmatprep.subr.mxu0 0.0
        %350 = vmatpush1.msra.mxu0 0.0
        %351 = vmatprep.subr.mxu0 0.0
        %352 = vmatpush1.msra.mxu0 0.0
        %353 = vmatprep.subr.mxu0 0.0
        %354 = vmatpush1.msra.mxu0 0.0
        %355 = vmatprep.subr.mxu0 0.0
        %356 = vmatpush1.msra.mxu0 0.0
        %357 = vmatprep.subr.mxu0 0.0
        %358 = vmatpush1.msra.mxu0 0.0
        %359 = vmatprep.subr.mxu0 0.0
        %360 = vmatpush1.msra.mxu0 0.0
        %361 = vmatprep.subr.mxu0 0.0
        %362 = vmatpush1.msra.mxu0 0.0
        %363 = vmatprep.subr.mxu0 0.0
        %364 = vmatpush1.msra.mxu0 0.0
        %365 = vmatprep.subr.mxu0 0.0
        %366 = vmatpush1.msra.mxu0 0.0
        %367 = vmatprep.subr.mxu0 0.0
        %368 = vmatpush1.msra.mxu0 0.0
        %369 = vmatprep.subr.mxu0 0.0
        %370 = vmatpush1.msra.mxu0 0.0
        %371 = vmatprep.subr.mxu0 %v337
        %372 = vmatpush1.msra.mxu0 %v335
        %373 = vmatprep.subr.mxu0 0.0
        %374 = vmatpush2.msra.mxu0 0.0
        %375 = vmatprep.subr.mxu0 0.0
        %376 = vmatpush2.msra.mxu0 0.0
        %377 = vmatprep.subr.mxu0 0.0
        %378 = vmatpush2.msra.mxu0 0.0
        %379 = vmatprep.subr.mxu0 0.0
        %380 = vmatpush2.msra.mxu0 0.0
        %381 = vmatprep.subr.mxu0 0.0
        %382 = vmatpush2.msra.mxu0 0.0
        %383 = vmatprep.subr.mxu0 0.0
        %384 = vmatpush2.msra.mxu0 0.0
        %385 = vmatprep.subr.mxu0 0.0
        %386 = vmatpush2.msra.mxu0 0.0
        %387 = vmatprep.subr.mxu0 0.0
        %388 = vmatpush2.msra.mxu0 0.0
        %389 = vmatprep.subr.mxu0 0.0
        %390 = vmatpush2.msra.mxu0 0.0
        %391 = vmatprep.subr.mxu0 0.0
        %392 = vmatpush2.msra.mxu0 0.0
        %393 = vmatprep.subr.mxu0 0.0
        %394 = vmatpush2.msra.mxu0 0.0
        %395 = vmatprep.subr.mxu0 0.0
        %396 = vmatpush2.msra.mxu0 0.0
        %397 = vmatprep.subr.mxu0 0.0
        %398 = vmatpush2.msra.mxu0 0.0
        %399 = vmatprep.subr.mxu0 0.0
        %400 = vmatpush2.msra.mxu0 0.0
        %401 = vmatprep.subr.mxu0 0.0
        %402 = vmatpush2.msra.mxu0 0.0
        %403 = vmatprep.subr.mxu0 0.0
        %404 = vmatpush2.msra.mxu0 0.0
        %405 = vmatprep.mubr.f32.mxu0 0.0
        %406 = vmatmul.mubr.f32.gmra.mxu0 %v332
        %v407 = vpop.f32.mrf.mxu0
        %v408 = vadd.f32 0.0, %v407
        %v409 = vpop.f32.mrf.mxu0
        %v410 = vadd.f32 0.0, %v409
        %411 = vdwg.mxu0
        %412 = vmatprep.subr.mxu0 0.0
        %413 = vmatpush1.msra.mxu0 0.0
        %414 = vmatprep.subr.mxu0 0.0
        %415 = vmatpush1.msra.mxu0 0.0
        %416 = vmatprep.subr.mxu0 0.0
        %417 = vmatpush1.msra.mxu0 0.0
        %418 = vmatprep.subr.mxu0 0.0
        %419 = vmatpush1.msra.mxu0 0.0
        %420 = vmatprep.subr.mxu0 0.0
        %421 = vmatpush1.msra.mxu0 0.0
        %422 = vmatprep.subr.mxu0 0.0
        %423 = vmatpush1.msra.mxu0 0.0
        %424 = vmatprep.subr.mxu0 0.0
        %425 = vmatpush1.msra.mxu0 0.0
        %426 = vmatprep.subr.mxu0 0.0
        %427 = vmatpush1.msra.mxu0 0.0
        %428 = vmatprep.subr.mxu0 0.0
        %429 = vmatpush1.msra.mxu0 0.0
        %430 = vmatprep.subr.mxu0 0.0
        %431 = vmatpush1.msra.mxu0 0.0
        %432 = vmatprep.subr.mxu0 0.0
        %433 = vmatpush1.msra.mxu0 0.0
        %434 = vmatprep.subr.mxu0 0.0
        %435 = vmatpush1.msra.mxu0 0.0
        %436 = vmatprep.subr.mxu0 0.0
        %437 = vmatpush1.msra.mxu0 0.0
        %438 = vmatprep.subr.mxu0 0.0
        %439 = vmatpush1.msra.mxu0 0.0
        %440 = vmatprep.subr.mxu0 0.0
        %441 = vmatpush1.msra.mxu0 0.0
        %442 = vmatprep.subr.mxu0 0.0
        %443 = vmatpush1.msra.mxu0 %v339
        %444 = vmatprep.subr.mxu0 0.0
        %445 = vmatpush2.msra.mxu0 0.0
        %446 = vmatprep.subr.mxu0 0.0
        %447 = vmatpush2.msra.mxu0 0.0
        %448 = vmatprep.subr.mxu0 0.0
        %449 = vmatpush2.msra.mxu0 0.0
        %450 = vmatprep.subr.mxu0 0.0
        %451 = vmatpush2.msra.mxu0 0.0
        %452 = vmatprep.subr.mxu0 0.0
        %453 = vmatpush2.msra.mxu0 0.0
        %454 = vmatprep.subr.mxu0 0.0
        %455 = vmatpush2.msra.mxu0 0.0
        %456 = vmatprep.subr.mxu0 0.0
        %457 = vmatpush2.msra.mxu0 0.0
        %458 = vmatprep.subr.mxu0 0.0
        %459 = vmatpush2.msra.mxu0 0.0
        %460 = vmatprep.subr.mxu0 0.0
        %461 = vmatpush2.msra.mxu0 0.0
        %462 = vmatprep.subr.mxu0 0.0
        %463 = vmatpush2.msra.mxu0 0.0
        %464 = vmatprep.subr.mxu0 0.0
        %465 = vmatpush2.msra.mxu0 0.0
        %466 = vmatprep.subr.mxu0 0.0
        %467 = vmatpush2.msra.mxu0 0.0
        %468 = vmatprep.subr.mxu0 0.0
        %469 = vmatpush2.msra.mxu0 0.0
        %470 = vmatprep.subr.mxu0 0.0
        %471 = vmatpush2.msra.mxu0 0.0
        %472 = vmatprep.subr.mxu0 0.0
        %473 = vmatpush2.msra.mxu0 0.0
        %474 = vmatprep.subr.mxu0 0.0
        %475 = vmatpush2.msra.mxu0 0.0
        %476 = vmatprep.mubr.f32.mxu0 0.0
        %477 = vmatmul.mubr.f32.gmra.mxu0 %v332
        %v478 = vpop.f32.mrf.mxu0
        %v479 = vadd.f32 0.0, %v478
        %v480 = vpop.f32.mrf.mxu0
        %481 = vdwg.mxu0
        %v483 = vsel %vm330, %v315, 0
        %v485 = vsel %vm334, %v313, 0
        %v487 = vsel %vm334, %v320, 0
        %v489 = vsel %vm334, %v314, 0
        %491 = vmatprep.subr.mxu0 0.0
        %492 = vmatpush1.msra.mxu0 0.0
        %493 = vmatprep.subr.mxu0 0.0
        %494 = vmatpush1.msra.mxu0 0.0
        %495 = vmatprep.subr.mxu0 0.0
        %496 = vmatpush1.msra.mxu0 0.0
        %497 = vmatprep.subr.mxu0 0.0
        %498 = vmatpush1.msra.mxu0 0.0
        %499 = vmatprep.subr.mxu0 0.0
        %500 = vmatpush1.msra.mxu0 0.0
        %501 = vmatprep.subr.mxu0 0.0
        %502 = vmatpush1.msra.mxu0 0.0
        %503 = vmatprep.subr.mxu0 0.0
        %504 = vmatpush1.msra.mxu0 0.0
        %505 = vmatprep.subr.mxu0 0.0
        %506 = vmatpush1.msra.mxu0 0.0
        %507 = vmatprep.subr.mxu0 0.0
        %508 = vmatpush1.msra.mxu0 0.0
        %509 = vmatprep.subr.mxu0 0.0
        %510 = vmatpush1.msra.mxu0 0.0
        %511 = vmatprep.subr.mxu0 0.0
        %512 = vmatpush1.msra.mxu0 0.0
        %513 = vmatprep.subr.mxu0 0.0
        %514 = vmatpush1.msra.mxu0 0.0
        %515 = vmatprep.subr.mxu0 0.0
        %516 = vmatpush1.msra.mxu0 0.0
        %517 = vmatprep.subr.mxu0 0.0
        %518 = vmatpush1.msra.mxu0 0.0
        %519 = vmatprep.subr.mxu0 0.0
        %520 = vmatpush1.msra.mxu0 0.0
        %521 = vmatprep.subr.mxu0 %v487
        %522 = vmatpush1.msra.mxu0 %v485
        %523 = vmatprep.subr.mxu0 0.0
        %524 = vmatpush2.msra.mxu0 0.0
        %525 = vmatprep.subr.mxu0 0.0
        %526 = vmatpush2.msra.mxu0 0.0
        %527 = vmatprep.subr.mxu0 0.0
        %528 = vmatpush2.msra.mxu0 0.0
        %529 = vmatprep.subr.mxu0 0.0
        %530 = vmatpush2.msra.mxu0 0.0
        %531 = vmatprep.subr.mxu0 0.0
        %532 = vmatpush2.msra.mxu0 0.0
        %533 = vmatprep.subr.mxu0 0.0
        %534 = vmatpush2.msra.mxu0 0.0
        %535 = vmatprep.subr.mxu0 0.0
        %536 = vmatpush2.msra.mxu0 0.0
        %537 = vmatprep.subr.mxu0 0.0
        %538 = vmatpush2.msra.mxu0 0.0
        %539 = vmatprep.subr.mxu0 0.0
        %540 = vmatpush2.msra.mxu0 0.0
        %541 = vmatprep.subr.mxu0 0.0
        %542 = vmatpush2.msra.mxu0 0.0
        %543 = vmatprep.subr.mxu0 0.0
        %544 = vmatpush2.msra.mxu0 0.0
        %545 = vmatprep.subr.mxu0 0.0
        %546 = vmatpush2.msra.mxu0 0.0
        %547 = vmatprep.subr.mxu0 0.0
        %548 = vmatpush2.msra.mxu0 0.0
        %549 = vmatprep.subr.mxu0 0.0
        %550 = vmatpush2.msra.mxu0 0.0
        %551 = vmatprep.subr.mxu0 0.0
        %552 = vmatpush2.msra.mxu0 0.0
        %553 = vmatprep.subr.mxu0 0.0
        %554 = vmatpush2.msra.mxu0 0.0
        %555 = vmatprep.mubr.f32.mxu0 0.0
        %556 = vmatmul.mubr.f32.gmra.mxu0 %v483
        %v557 = vpop.f32.mrf.mxu0
        %v558 = vadd.f32 %v408, %v557
        %v559 = vpop.f32.mrf.mxu0
        %v560 = vadd.f32 %v410, %v559
        %561 = vdwg.mxu0
        %562 = vmatprep.subr.mxu0 0.0
        %563 = vmatpush1.msra.mxu0 0.0
        %564 = vmatprep.subr.mxu0 0.0
        %565 = vmatpush1.msra.mxu0 0.0
        %566 = vmatprep.subr.mxu0 0.0
        %567 = vmatpush1.msra.mxu0 0.0
        %568 = vmatprep.subr.mxu0 0.0
        %569 = vmatpush1.msra.mxu0 0.0
        %570 = vmatprep.subr.mxu0 0.0
        %571 = vmatpush1.msra.mxu0 0.0
        %572 = vmatprep.subr.mxu0 0.0
        %573 = vmatpush1.msra.mxu0 0.0
        %574 = vmatprep.subr.mxu0 0.0
        %575 = vmatpush1.msra.mxu0 0.0
        %576 = vmatprep.subr.mxu0 0.0
        %577 = vmatpush1.msra.mxu0 0.0
        %578 = vmatprep.subr.mxu0 0.0
        %579 = vmatpush1.msra.mxu0 0.0
        %580 = vmatprep.subr.mxu0 0.0
        %581 = vmatpush1.msra.mxu0 0.0
        %582 = vmatprep.subr.mxu0 0.0
        %583 = vmatpush1.msra.mxu0 0.0
        %584 = vmatprep.subr.mxu0 0.0
        %585 = vmatpush1.msra.mxu0 0.0
        %586 = vmatprep.subr.mxu0 0.0
        %587 = vmatpush1.msra.mxu0 0.0
        %588 = vmatprep.subr.mxu0 0.0
        %589 = vmatpush1.msra.mxu0 0.0
        %590 = vmatprep.subr.mxu0 0.0
        %591 = vmatpush1.msra.mxu0 0.0
        %592 = vmatprep.subr.mxu0 0.0
        %593 = vmatpush1.msra.mxu0 %v489
        %594 = vmatprep.subr.mxu0 0.0
        %595 = vmatpush2.msra.mxu0 0.0
        %596 = vmatprep.subr.mxu0 0.0
        %597 = vmatpush2.msra.mxu0 0.0
        %598 = vmatprep.subr.mxu0 0.0
        %599 = vmatpush2.msra.mxu0 0.0
        %600 = vmatprep.subr.mxu0 0.0
        %601 = vmatpush2.msra.mxu0 0.0
        %602 = vmatprep.subr.mxu0 0.0
        %603 = vmatpush2.msra.mxu0 0.0
        %604 = vmatprep.subr.mxu0 0.0
        %605 = vmatpush2.msra.mxu0 0.0
        %606 = vmatprep.subr.mxu0 0.0
        %607 = vmatpush2.msra.mxu0 0.0
        %608 = vmatprep.subr.mxu0 0.0
        %609 = vmatpush2.msra.mxu0 0.0
        %610 = vmatprep.subr.mxu0 0.0
        %611 = vmatpush2.msra.mxu0 0.0
        %612 = vmatprep.subr.mxu0 0.0
        %613 = vmatpush2.msra.mxu0 0.0
        %614 = vmatprep.subr.mxu0 0.0
        %615 = vmatpush2.msra.mxu0 0.0
        %616 = vmatprep.subr.mxu0 0.0
        %617 = vmatpush2.msra.mxu0 0.0
        %618 = vmatprep.subr.mxu0 0.0
        %619 = vmatpush2.msra.mxu0 0.0
        %620 = vmatprep.subr.mxu0 0.0
        %621 = vmatpush2.msra.mxu0 0.0
        %622 = vmatprep.subr.mxu0 0.0
        %623 = vmatpush2.msra.mxu0 0.0
        %624 = vmatprep.subr.mxu0 0.0
        %625 = vmatpush2.msra.mxu0 0.0
        %626 = vmatprep.mubr.f32.mxu0 0.0
        %627 = vmatmul.mubr.f32.gmra.mxu0 %v483
        %v628 = vpop.f32.mrf.mxu0
        %v629 = vadd.f32 %v479, %v628
        %v630 = vpop.f32.mrf.mxu0
        %631 = vdwg.mxu0
        %v632 = vld [vmem:[%s303] sm:$0xff]
        %v633 = vld [vmem:[%s303 + $0x8] sm:$0xf]
        %s634 = scalar_lea.vmem %s2, 4
        %v635 = vld [vmem:[%s634] sm:$0x3]
        %v638 = vcombine.high %v632, %v632
        %639 = vrot.lane.b32.xlu0 %v632, 126
        %v640 = vpop.permute.xlu0 %639
        %641 = vrot.lane.b32.xlu0 %v638, 126
        %v642 = vpop.permute.xlu0 %641
        %643 = vrot.lane.b32.xlu0 %v633, 126
        %v644 = vpop.permute.xlu0 %643
        %vm645 = vcmask 1031168
        %v646 = vsel %vm645, %v640, %v642
        %v647 = vsel %vm645, %v642, %v644
        %v649 = vsel %vm330, %v635, 0
        %v651 = vsel %vm334, %v646, 0
        %v653 = vsel %vm334, %v647, 0
        %v655 = vsel %vm334, %v644, 0
        %657 = vmatprep.subr.mxu0 0.0
        %658 = vmatpush1.msra.mxu0 0.0
        %659 = vmatprep.subr.mxu0 0.0
        %660 = vmatpush1.msra.mxu0 0.0
        %661 = vmatprep.subr.mxu0 0.0
        %662 = vmatpush1.msra.mxu0 0.0
        %663 = vmatprep.subr.mxu0 0.0
        %664 = vmatpush1.msra.mxu0 0.0
        %665 = vmatprep.subr.mxu0 0.0
        %666 = vmatpush1.msra.mxu0 0.0
        %667 = vmatprep.subr.mxu0 0.0
        %668 = vmatpush1.msra.mxu0 0.0
        %669 = vmatprep.subr.mxu0 0.0
        %670 = vmatpush1.msra.mxu0 0.0
        %671 = vmatprep.subr.mxu0 0.0
        %672 = vmatpush1.msra.mxu0 0.0
        %673 = vmatprep.subr.mxu0 0.0
        %674 = vmatpush1.msra.mxu0 0.0
        %675 = vmatprep.subr.mxu0 0.0
        %676 = vmatpush1.msra.mxu0 0.0
        %677 = vmatprep.subr.mxu0 0.0
        %678 = vmatpush1.msra.mxu0 0.0
        %679 = vmatprep.subr.mxu0 0.0
        %680 = vmatpush1.msra.mxu0 0.0
        %681 = vmatprep.subr.mxu0 0.0
        %682 = vmatpush1.msra.mxu0 0.0
        %683 = vmatprep.subr.mxu0 0.0
        %684 = vmatpush1.msra.mxu0 0.0
        %685 = vmatprep.subr.mxu0 0.0
        %686 = vmatpush1.msra.mxu0 0.0
        %687 = vmatprep.subr.mxu0 %v653
        %688 = vmatpush1.msra.mxu0 %v651
        %689 = vmatprep.subr.mxu0 0.0
        %690 = vmatpush2.msra.mxu0 0.0
        %691 = vmatprep.subr.mxu0 0.0
        %692 = vmatpush2.msra.mxu0 0.0
        %693 = vmatprep.subr.mxu0 0.0
        %694 = vmatpush2.msra.mxu0 0.0
        %695 = vmatprep.subr.mxu0 0.0
        %696 = vmatpush2.msra.mxu0 0.0
        %697 = vmatprep.subr.mxu0 0.0
        %698 = vmatpush2.msra.mxu0 0.0
        %699 = vmatprep.subr.mxu0 0.0
        %700 = vmatpush2.msra.mxu0 0.0
        %701 = vmatprep.subr.mxu0 0.0
        %702 = vmatpush2.msra.mxu0 0.0
        %703 = vmatprep.subr.mxu0 0.0
        %704 = vmatpush2.msra.mxu0 0.0
        %705 = vmatprep.subr.mxu0 0.0
        %706 = vmatpush2.msra.mxu0 0.0
        %707 = vmatprep.subr.mxu0 0.0
        %708 = vmatpush2.msra.mxu0 0.0
        %709 = vmatprep.subr.mxu0 0.0
        %710 = vmatpush2.msra.mxu0 0.0
        %711 = vmatprep.subr.mxu0 0.0
        %712 = vmatpush2.msra.mxu0 0.0
        %713 = vmatprep.subr.mxu0 0.0
        %714 = vmatpush2.msra.mxu0 0.0
        %715 = vmatprep.subr.mxu0 0.0
        %716 = vmatpush2.msra.mxu0 0.0
        %717 = vmatprep.subr.mxu0 0.0
        %718 = vmatpush2.msra.mxu0 0.0
        %719 = vmatprep.subr.mxu0 0.0
        %720 = vmatpush2.msra.mxu0 0.0
        %721 = vmatprep.mubr.f32.mxu0 0.0
        %722 = vmatmul.mubr.f32.gmra.mxu0 %v649
        %v723 = vpop.f32.mrf.mxu0
        %v724 = vadd.f32 0.0, %v723
        %v725 = vpop.f32.mrf.mxu0
        %v726 = vadd.f32 0.0, %v725
        %727 = vdwg.mxu0
        %728 = vmatprep.subr.mxu0 0.0
        %729 = vmatpush1.msra.mxu0 0.0
        %730 = vmatprep.subr.mxu0 0.0
        %731 = vmatpush1.msra.mxu0 0.0
        %732 = vmatprep.subr.mxu0 0.0
        %733 = vmatpush1.msra.mxu0 0.0
        %734 = vmatprep.subr.mxu0 0.0
        %735 = vmatpush1.msra.mxu0 0.0
        %736 = vmatprep.subr.mxu0 0.0
        %737 = vmatpush1.msra.mxu0 0.0
        %738 = vmatprep.subr.mxu0 0.0
        %739 = vmatpush1.msra.mxu0 0.0
        %740 = vmatprep.subr.mxu0 0.0
        %741 = vmatpush1.msra.mxu0 0.0
        %742 = vmatprep.subr.mxu0 0.0
        %743 = vmatpush1.msra.mxu0 0.0
        %744 = vmatprep.subr.mxu0 0.0
        %745 = vmatpush1.msra.mxu0 0.0
        %746 = vmatprep.subr.mxu0 0.0
        %747 = vmatpush1.msra.mxu0 0.0
        %748 = vmatprep.subr.mxu0 0.0
        %749 = vmatpush1.msra.mxu0 0.0
        %750 = vmatprep.subr.mxu0 0.0
        %751 = vmatpush1.msra.mxu0 0.0
        %752 = vmatprep.subr.mxu0 0.0
        %753 = vmatpush1.msra.mxu0 0.0
        %754 = vmatprep.subr.mxu0 0.0
        %755 = vmatpush1.msra.mxu0 0.0
        %756 = vmatprep.subr.mxu0 0.0
        %757 = vmatpush1.msra.mxu0 0.0
        %758 = vmatprep.subr.mxu0 0.0
        %759 = vmatpush1.msra.mxu0 %v655
        %760 = vmatprep.subr.mxu0 0.0
        %761 = vmatpush2.msra.mxu0 0.0
        %762 = vmatprep.subr.mxu0 0.0
        %763 = vmatpush2.msra.mxu0 0.0
        %764 = vmatprep.subr.mxu0 0.0
        %765 = vmatpush2.msra.mxu0 0.0
        %766 = vmatprep.subr.mxu0 0.0
        %767 = vmatpush2.msra.mxu0 0.0
        %768 = vmatprep.subr.mxu0 0.0
        %769 = vmatpush2.msra.mxu0 0.0
        %770 = vmatprep.subr.mxu0 0.0
        %771 = vmatpush2.msra.mxu0 0.0
        %772 = vmatprep.subr.mxu0 0.0
        %773 = vmatpush2.msra.mxu0 0.0
        %774 = vmatprep.subr.mxu0 0.0
        %775 = vmatpush2.msra.mxu0 0.0
        %776 = vmatprep.subr.mxu0 0.0
        %777 = vmatpush2.msra.mxu0 0.0
        %778 = vmatprep.subr.mxu0 0.0
        %779 = vmatpush2.msra.mxu0 0.0
        %780 = vmatprep.subr.mxu0 0.0
        %781 = vmatpush2.msra.mxu0 0.0
        %782 = vmatprep.subr.mxu0 0.0
        %783 = vmatpush2.msra.mxu0 0.0
        %784 = vmatprep.subr.mxu0 0.0
        %785 = vmatpush2.msra.mxu0 0.0
        %786 = vmatprep.subr.mxu0 0.0
        %787 = vmatpush2.msra.mxu0 0.0
        %788 = vmatprep.subr.mxu0 0.0
        %789 = vmatpush2.msra.mxu0 0.0
        %790 = vmatprep.subr.mxu0 0.0
        %791 = vmatpush2.msra.mxu0 0.0
        %792 = vmatprep.mubr.f32.mxu0 0.0
        %793 = vmatmul.mubr.f32.gmra.mxu0 %v649
        %v794 = vpop.f32.mrf.mxu0
        %v795 = vadd.f32 0.0, %v794
        %v796 = vpop.f32.mrf.mxu0
        %797 = vdwg.mxu0
        %v798 = vadd.f32 %v558, %v724
        %v799 = vadd.f32 %v560, %v726
        %v800 = vadd.f32 %v629, %v795
        %v801 = vld [vmem:[%s303] sm:$0xff]
        %v802 = vld [vmem:[%s303 + $0x8] sm:$0xf]
        %s803 = scalar_lea.vmem %s2, 6
        %v804 = vld [vmem:[%s803] sm:$0x3]
        %v807 = vcombine.high %v801, %v801
        %808 = vrot.lane.b32.xlu0 %v801, 110
        %v809 = vpop.permute.xlu0 %808
        %810 = vrot.lane.b32.xlu0 %v807, 110
        %v811 = vpop.permute.xlu0 %810
        %812 = vrot.lane.b32.xlu0 %v802, 110
        %v813 = vpop.permute.xlu0 %812
        %vm814 = vcmask 900096
        %v815 = vsel %vm814, %v809, %v811
        %v816 = vsel %vm814, %v811, %v813
        %v818 = vsel %vm330, %v804, 0
        %v820 = vsel %vm334, %v815, 0
        %v822 = vsel %vm334, %v816, 0
        %v824 = vsel %vm334, %v813, 0
        %826 = vmatprep.subr.mxu0 0.0
        %827 = vmatpush1.msra.mxu0 0.0
        %828 = vmatprep.subr.mxu0 0.0
        %829 = vmatpush1.msra.mxu0 0.0
        %830 = vmatprep.subr.mxu0 0.0
        %831 = vmatpush1.msra.mxu0 0.0
        %832 = vmatprep.subr.mxu0 0.0
        %833 = vmatpush1.msra.mxu0 0.0
        %834 = vmatprep.subr.mxu0 0.0
        %835 = vmatpush1.msra.mxu0 0.0
        %836 = vmatprep.subr.mxu0 0.0
        %837 = vmatpush1.msra.mxu0 0.0
        %838 = vmatprep.subr.mxu0 0.0
        %839 = vmatpush1.msra.mxu0 0.0
        %840 = vmatprep.subr.mxu0 0.0
        %841 = vmatpush1.msra.mxu0 0.0
        %842 = vmatprep.subr.mxu0 0.0
        %843 = vmatpush1.msra.mxu0 0.0
        %844 = vmatprep.subr.mxu0 0.0
        %845 = vmatpush1.msra.mxu0 0.0
        %846 = vmatprep.subr.mxu0 0.0
        %847 = vmatpush1.msra.mxu0 0.0
        %848 = vmatprep.subr.mxu0 0.0
        %849 = vmatpush1.msra.mxu0 0.0
        %850 = vmatprep.subr.mxu0 0.0
        %851 = vmatpush1.msra.mxu0 0.0
        %852 = vmatprep.subr.mxu0 0.0
        %853 = vmatpush1.msra.mxu0 0.0
        %854 = vmatprep.subr.mxu0 0.0
        %855 = vmatpush1.msra.mxu0 0.0
        %856 = vmatprep.subr.mxu0 %v822
        %857 = vmatpush1.msra.mxu0 %v820
        %858 = vmatprep.subr.mxu0 0.0
        %859 = vmatpush2.msra.mxu0 0.0
        %860 = vmatprep.subr.mxu0 0.0
        %861 = vmatpush2.msra.mxu0 0.0
        %862 = vmatprep.subr.mxu0 0.0
        %863 = vmatpush2.msra.mxu0 0.0
        %864 = vmatprep.subr.mxu0 0.0
        %865 = vmatpush2.msra.mxu0 0.0
        %866 = vmatprep.subr.mxu0 0.0
        %867 = vmatpush2.msra.mxu0 0.0
        %868 = vmatprep.subr.mxu0 0.0
        %869 = vmatpush2.msra.mxu0 0.0
        %870 = vmatprep.subr.mxu0 0.0
        %871 = vmatpush2.msra.mxu0 0.0
        %872 = vmatprep.subr.mxu0 0.0
        %873 = vmatpush2.msra.mxu0 0.0
        %874 = vmatprep.subr.mxu0 0.0
        %875 = vmatpush2.msra.mxu0 0.0
        %876 = vmatprep.subr.mxu0 0.0
        %877 = vmatpush2.msra.mxu0 0.0
        %878 = vmatprep.subr.mxu0 0.0
        %879 = vmatpush2.msra.mxu0 0.0
        %880 = vmatprep.subr.mxu0 0.0
        %881 = vmatpush2.msra.mxu0 0.0
        %882 = vmatprep.subr.mxu0 0.0
        %883 = vmatpush2.msra.mxu0 0.0
        %884 = vmatprep.subr.mxu0 0.0
        %885 = vmatpush2.msra.mxu0 0.0
        %886 = vmatprep.subr.mxu0 0.0
        %887 = vmatpush2.msra.mxu0 0.0
        %888 = vmatprep.subr.mxu0 0.0
        %889 = vmatpush2.msra.mxu0 0.0
        %890 = vmatprep.mubr.f32.mxu0 0.0
        %891 = vmatmul.mubr.f32.gmra.mxu0 %v818
        %v892 = vpop.f32.mrf.mxu0
        %v893 = vadd.f32 0.0, %v892
        %v894 = vpop.f32.mrf.mxu0
        %v895 = vadd.f32 0.0, %v894
        %896 = vdwg.mxu0
        %897 = vmatprep.subr.mxu0 0.0
        %898 = vmatpush1.msra.mxu0 0.0
        %899 = vmatprep.subr.mxu0 0.0
        %900 = vmatpush1.msra.mxu0 0.0
        %901 = vmatprep.subr.mxu0 0.0
        %902 = vmatpush1.msra.mxu0 0.0
        %903 = vmatprep.subr.mxu0 0.0
        %904 = vmatpush1.msra.mxu0 0.0
        %905 = vmatprep.subr.mxu0 0.0
        %906 = vmatpush1.msra.mxu0 0.0
        %907 = vmatprep.subr.mxu0 0.0
        %908 = vmatpush1.msra.mxu0 0.0
        %909 = vmatprep.subr.mxu0 0.0
        %910 = vmatpush1.msra.mxu0 0.0
        %911 = vmatprep.subr.mxu0 0.0
        %912 = vmatpush1.msra.mxu0 0.0
        %913 = vmatprep.subr.mxu0 0.0
        %914 = vmatpush1.msra.mxu0 0.0
        %915 = vmatprep.subr.mxu0 0.0
        %916 = vmatpush1.msra.mxu0 0.0
        %917 = vmatprep.subr.mxu0 0.0
        %918 = vmatpush1.msra.mxu0 0.0
        %919 = vmatprep.subr.mxu0 0.0
        %920 = vmatpush1.msra.mxu0 0.0
        %921 = vmatprep.subr.mxu0 0.0
        %922 = vmatpush1.msra.mxu0 0.0
        %923 = vmatprep.subr.mxu0 0.0
        %924 = vmatpush1.msra.mxu0 0.0
        %925 = vmatprep.subr.mxu0 0.0
        %926 = vmatpush1.msra.mxu0 0.0
        %927 = vmatprep.subr.mxu0 0.0
        %928 = vmatpush1.msra.mxu0 %v824
        %929 = vmatprep.subr.mxu0 0.0
        %930 = vmatpush2.msra.mxu0 0.0
        %931 = vmatprep.subr.mxu0 0.0
        %932 = vmatpush2.msra.mxu0 0.0
        %933 = vmatprep.subr.mxu0 0.0
        %934 = vmatpush2.msra.mxu0 0.0
        %935 = vmatprep.subr.mxu0 0.0
        %936 = vmatpush2.msra.mxu0 0.0
        %937 = vmatprep.subr.mxu0 0.0
        %938 = vmatpush2.msra.mxu0 0.0
        %939 = vmatprep.subr.mxu0 0.0
        %940 = vmatpush2.msra.mxu0 0.0
        %941 = vmatprep.subr.mxu0 0.0
        %942 = vmatpush2.msra.mxu0 0.0
        %943 = vmatprep.subr.mxu0 0.0
        %944 = vmatpush2.msra.mxu0 0.0
        %945 = vmatprep.subr.mxu0 0.0
        %946 = vmatpush2.msra.mxu0 0.0
        %947 = vmatprep.subr.mxu0 0.0
        %948 = vmatpush2.msra.mxu0 0.0
        %949 = vmatprep.subr.mxu0 0.0
        %950 = vmatpush2.msra.mxu0 0.0
        %951 = vmatprep.subr.mxu0 0.0
        %952 = vmatpush2.msra.mxu0 0.0
        %953 = vmatprep.subr.mxu0 0.0
        %954 = vmatpush2.msra.mxu0 0.0
        %955 = vmatprep.subr.mxu0 0.0
        %956 = vmatpush2.msra.mxu0 0.0
        %957 = vmatprep.subr.mxu0 0.0
        %958 = vmatpush2.msra.mxu0 0.0
        %959 = vmatprep.subr.mxu0 0.0
        %960 = vmatpush2.msra.mxu0 0.0
        %961 = vmatprep.mubr.f32.mxu0 0.0
        %962 = vmatmul.mubr.f32.gmra.mxu0 %v818
        %v963 = vpop.f32.mrf.mxu0
        %v964 = vadd.f32 0.0, %v963
        %v965 = vpop.f32.mrf.mxu0
        %966 = vdwg.mxu0
        %v967 = vadd.f32 %v798, %v893
        %v968 = vadd.f32 %v799, %v895
        %v969 = vadd.f32 %v800, %v964
        %v970 = vld [vmem:[%s303] sm:$0xff]
        %v971 = vld [vmem:[%s303 + $0x8] sm:$0xf]
        %s972 = scalar_lea.vmem %s2, 8
        %v973 = vld [vmem:[%s972] sm:$0x3]
        %v976 = vcombine.high %v970, %v970
        %977 = vrot.lane.b32.xlu0 %v970, 109
        %v978 = vpop.permute.xlu0 %977
        %979 = vrot.lane.b32.xlu0 %v976, 109
        %v980 = vpop.permute.xlu0 %979
        %981 = vrot.lane.b32.xlu0 %v971, 109
        %v982 = vpop.permute.xlu0 %981
        %vm983 = vcmask 891904
        %v984 = vsel %vm983, %v978, %v980
        %v985 = vsel %vm983, %v980, %v982
        %v987 = vsel %vm330, %v973, 0
        %v989 = vsel %vm334, %v984, 0
        %v991 = vsel %vm334, %v985, 0
        %v993 = vsel %vm334, %v982, 0
        %995 = vmatprep.subr.mxu0 0.0
        %996 = vmatpush1.msra.mxu0 0.0
        %997 = vmatprep.subr.mxu0 0.0
        %998 = vmatpush1.msra.mxu0 0.0
        %999 = vmatprep.subr.mxu0 0.0
        %1000 = vmatpush1.msra.mxu0 0.0
        %1001 = vmatprep.subr.mxu0 0.0
        %1002 = vmatpush1.msra.mxu0 0.0
        %1003 = vmatprep.subr.mxu0 0.0
        %1004 = vmatpush1.msra.mxu0 0.0
        %1005 = vmatprep.subr.mxu0 0.0
        %1006 = vmatpush1.msra.mxu0 0.0
        %1007 = vmatprep.subr.mxu0 0.0
        %1008 = vmatpush1.msra.mxu0 0.0
        %1009 = vmatprep.subr.mxu0 0.0
        %1010 = vmatpush1.msra.mxu0 0.0
        %1011 = vmatprep.subr.mxu0 0.0
        %1012 = vmatpush1.msra.mxu0 0.0
        %1013 = vmatprep.subr.mxu0 0.0
        %1014 = vmatpush1.msra.mxu0 0.0
        %1015 = vmatprep.subr.mxu0 0.0
        %1016 = vmatpush1.msra.mxu0 0.0
        %1017 = vmatprep.subr.mxu0 0.0
        %1018 = vmatpush1.msra.mxu0 0.0
        %1019 = vmatprep.subr.mxu0 0.0
        %1020 = vmatpush1.msra.mxu0 0.0
        %1021 = vmatprep.subr.mxu0 0.0
        %1022 = vmatpush1.msra.mxu0 0.0
        %1023 = vmatprep.subr.mxu0 0.0
        %1024 = vmatpush1.msra.mxu0 0.0
        %1025 = vmatprep.subr.mxu0 %v991
        %1026 = vmatpush1.msra.mxu0 %v989
        %1027 = vmatprep.subr.mxu0 0.0
        %1028 = vmatpush2.msra.mxu0 0.0
        %1029 = vmatprep.subr.mxu0 0.0
        %1030 = vmatpush2.msra.mxu0 0.0
        %1031 = vmatprep.subr.mxu0 0.0
        %1032 = vmatpush2.msra.mxu0 0.0
        %1033 = vmatprep.subr.mxu0 0.0
        %1034 = vmatpush2.msra.mxu0 0.0
        %1035 = vmatprep.subr.mxu0 0.0
        %1036 = vmatpush2.msra.mxu0 0.0
        %1037 = vmatprep.subr.mxu0 0.0
        %1038 = vmatpush2.msra.mxu0 0.0
        %1039 = vmatprep.subr.mxu0 0.0
        %1040 = vmatpush2.msra.mxu0 0.0
        %1041 = vmatprep.subr.mxu0 0.0
        %1042 = vmatpush2.msra.mxu0 0.0
        %1043 = vmatprep.subr.mxu0 0.0
        %1044 = vmatpush2.msra.mxu0 0.0
        %1045 = vmatprep.subr.mxu0 0.0
        %1046 = vmatpush2.msra.mxu0 0.0
        %1047 = vmatprep.subr.mxu0 0.0
        %1048 = vmatpush2.msra.mxu0 0.0
        %1049 = vmatprep.subr.mxu0 0.0
        %1050 = vmatpush2.msra.mxu0 0.0
        %1051 = vmatprep.subr.mxu0 0.0
        %1052 = vmatpush2.msra.mxu0 0.0
        %1053 = vmatprep.subr.mxu0 0.0
        %1054 = vmatpush2.msra.mxu0 0.0
        %1055 = vmatprep.subr.mxu0 0.0
        %1056 = vmatpush2.msra.mxu0 0.0
        %1057 = vmatprep.subr.mxu0 0.0
        %1058 = vmatpush2.msra.mxu0 0.0
        %1059 = vmatprep.mubr.f32.mxu0 0.0
        %1060 = vmatmul.mubr.f32.gmra.mxu0 %v987
        %v1061 = vpop.f32.mrf.mxu0
        %v1062 = vadd.f32 0.0, %v1061
        %v1063 = vpop.f32.mrf.mxu0
        %v1064 = vadd.f32 0.0, %v1063
        %1065 = vdwg.mxu0
        %1066 = vmatprep.subr.mxu0 0.0
        %1067 = vmatpush1.msra.mxu0 0.0
        %1068 = vmatprep.subr.mxu0 0.0
        %1069 = vmatpush1.msra.mxu0 0.0
        %1070 = vmatprep.subr.mxu0 0.0
        %1071 = vmatpush1.msra.mxu0 0.0
        %1072 = vmatprep.subr.mxu0 0.0
        %1073 = vmatpush1.msra.mxu0 0.0
        %1074 = vmatprep.subr.mxu0 0.0
        %1075 = vmatpush1.msra.mxu0 0.0
        %1076 = vmatprep.subr.mxu0 0.0
        %1077 = vmatpush1.msra.mxu0 0.0
        %1078 = vmatprep.subr.mxu0 0.0
        %1079 = vmatpush1.msra.mxu0 0.0
        %1080 = vmatprep.subr.mxu0 0.0
        %1081 = vmatpush1.msra.mxu0 0.0
        %1082 = vmatprep.subr.mxu0 0.0
        %1083 = vmatpush1.msra.mxu0 0.0
        %1084 = vmatprep.subr.mxu0 0.0
        %1085 = vmatpush1.msra.mxu0 0.0
        %1086 = vmatprep.subr.mxu0 0.0
        %1087 = vmatpush1.msra.mxu0 0.0
        %1088 = vmatprep.subr.mxu0 0.0
        %1089 = vmatpush1.msra.mxu0 0.0
        %1090 = vmatprep.subr.mxu0 0.0
        %1091 = vmatpush1.msra.mxu0 0.0
        %1092 = vmatprep.subr.mxu0 0.0
        %1093 = vmatpush1.msra.mxu0 0.0
        %1094 = vmatprep.subr.mxu0 0.0
        %1095 = vmatpush1.msra.mxu0 0.0
        %1096 = vmatprep.subr.mxu0 0.0
        %1097 = vmatpush1.msra.mxu0 %v993
        %1098 = vmatprep.subr.mxu0 0.0
        %1099 = vmatpush2.msra.mxu0 0.0
        %1100 = vmatprep.subr.mxu0 0.0
        %1101 = vmatpush2.msra.mxu0 0.0
        %1102 = vmatprep.subr.mxu0 0.0
        %1103 = vmatpush2.msra.mxu0 0.0
        %1104 = vmatprep.subr.mxu0 0.0
        %1105 = vmatpush2.msra.mxu0 0.0
        %1106 = vmatprep.subr.mxu0 0.0
        %1107 = vmatpush2.msra.mxu0 0.0
        %1108 = vmatprep.subr.mxu0 0.0
        %1109 = vmatpush2.msra.mxu0 0.0
        %1110 = vmatprep.subr.mxu0 0.0
        %1111 = vmatpush2.msra.mxu0 0.0
        %1112 = vmatprep.subr.mxu0 0.0
        %1113 = vmatpush2.msra.mxu0 0.0
        %1114 = vmatprep.subr.mxu0 0.0
        %1115 = vmatpush2.msra.mxu0 0.0
        %1116 = vmatprep.subr.mxu0 0.0
        %1117 = vmatpush2.msra.mxu0 0.0
        %1118 = vmatprep.subr.mxu0 0.0
        %1119 = vmatpush2.msra.mxu0 0.0
        %1120 = vmatprep.subr.mxu0 0.0
        %1121 = vmatpush2.msra.mxu0 0.0
        %1122 = vmatprep.subr.mxu0 0.0
        %1123 = vmatpush2.msra.mxu0 0.0
        %1124 = vmatprep.subr.mxu0 0.0
        %1125 = vmatpush2.msra.mxu0 0.0
        %1126 = vmatprep.subr.mxu0 0.0
        %1127 = vmatpush2.msra.mxu0 0.0
        %1128 = vmatprep.subr.mxu0 0.0
        %1129 = vmatpush2.msra.mxu0 0.0
        %1130 = vmatprep.mubr.f32.mxu0 0.0
        %1131 = vmatmul.mubr.f32.gmra.mxu0 %v987
        %v1132 = vpop.f32.mrf.mxu0
        %v1133 = vadd.f32 0.0, %v1132
        %v1134 = vpop.f32.mrf.mxu0
        %1135 = vdwg.mxu0
        %v1136 = vadd.f32 %v967, %v1062
        %v1137 = vadd.f32 %v968, %v1064
        %v1138 = vadd.f32 %v969, %v1133
        %v1139 = vld [vmem:[%s303] sm:$0xff]
        %v1140 = vld [vmem:[%s303 + $0x8] sm:$0xf]
        %s1141 = scalar_lea.vmem %s2, 10
        %v1142 = vld [vmem:[%s1141] sm:$0x3]
        %v1145 = vcombine.high %v1139, %v1139
        %1146 = vrot.lane.b32.xlu0 %v1139, 108
        %v1147 = vpop.permute.xlu0 %1146
        %1148 = vrot.lane.b32.xlu0 %v1145, 108
        %v1149 = vpop.permute.xlu0 %1148
        %1150 = vrot.lane.b32.xlu0 %v1140, 108
        %v1151 = vpop.permute.xlu0 %1150
        %vm1152 = vcmask 883712
        %v1153 = vsel %vm1152, %v1147, %v1149
        %v1154 = vsel %vm1152, %v1149, %v1151
        %v1156 = vsel %vm330, %v1142, 0
        %v1158 = vsel %vm334, %v1153, 0
        %v1160 = vsel %vm334, %v1154, 0
        %v1162 = vsel %vm334, %v1151, 0
        %1164 = vmatprep.subr.mxu0 0.0
        %1165 = vmatpush1.msra.mxu0 0.0
        %1166 = vmatprep.subr.mxu0 0.0
        %1167 = vmatpush1.msra.mxu0 0.0
        %1168 = vmatprep.subr.mxu0 0.0
        %1169 = vmatpush1.msra.mxu0 0.0
        %1170 = vmatprep.subr.mxu0 0.0
        %1171 = vmatpush1.msra.mxu0 0.0
        %1172 = vmatprep.subr.mxu0 0.0
        %1173 = vmatpush1.msra.mxu0 0.0
        %1174 = vmatprep.subr.mxu0 0.0
        %1175 = vmatpush1.msra.mxu0 0.0
        %1176 = vmatprep.subr.mxu0 0.0
        %1177 = vmatpush1.msra.mxu0 0.0
        %1178 = vmatprep.subr.mxu0 0.0
        %1179 = vmatpush1.msra.mxu0 0.0
        %1180 = vmatprep.subr.mxu0 0.0
        %1181 = vmatpush1.msra.mxu0 0.0
        %1182 = vmatprep.subr.mxu0 0.0
        %1183 = vmatpush1.msra.mxu0 0.0
        %1184 = vmatprep.subr.mxu0 0.0
        %1185 = vmatpush1.msra.mxu0 0.0
        %1186 = vmatprep.subr.mxu0 0.0
        %1187 = vmatpush1.msra.mxu0 0.0
        %1188 = vmatprep.subr.mxu0 0.0
        %1189 = vmatpush1.msra.mxu0 0.0
        %1190 = vmatprep.subr.mxu0 0.0
        %1191 = vmatpush1.msra.mxu0 0.0
        %1192 = vmatprep.subr.mxu0 0.0
        %1193 = vmatpush1.msra.mxu0 0.0
        %1194 = vmatprep.subr.mxu0 %v1160
        %1195 = vmatpush1.msra.mxu0 %v1158
        %1196 = vmatprep.subr.mxu0 0.0
        %1197 = vmatpush2.msra.mxu0 0.0
        %1198 = vmatprep.subr.mxu0 0.0
        %1199 = vmatpush2.msra.mxu0 0.0
        %1200 = vmatprep.subr.mxu0 0.0
        %1201 = vmatpush2.msra.mxu0 0.0
        %1202 = vmatprep.subr.mxu0 0.0
        %1203 = vmatpush2.msra.mxu0 0.0
        %1204 = vmatprep.subr.mxu0 0.0
        %1205 = vmatpush2.msra.mxu0 0.0
        %1206 = vmatprep.subr.mxu0 0.0
        %1207 = vmatpush2.msra.mxu0 0.0
        %1208 = vmatprep.subr.mxu0 0.0
        %1209 = vmatpush2.msra.mxu0 0.0
        %1210 = vmatprep.subr.mxu0 0.0
        %1211 = vmatpush2.msra.mxu0 0.0
        %1212 = vmatprep.subr.mxu0 0.0
        %1213 = vmatpush2.msra.mxu0 0.0
        %1214 = vmatprep.subr.mxu0 0.0
        %1215 = vmatpush2.msra.mxu0 0.0
        %1216 = vmatprep.subr.mxu0 0.0
        %1217 = vmatpush2.msra.mxu0 0.0
        %1218 = vmatprep.subr.mxu0 0.0
        %1219 = vmatpush2.msra.mxu0 0.0
        %1220 = vmatprep.subr.mxu0 0.0
        %1221 = vmatpush2.msra.mxu0 0.0
        %1222 = vmatprep.subr.mxu0 0.0
        %1223 = vmatpush2.msra.mxu0 0.0
        %1224 = vmatprep.subr.mxu0 0.0
        %1225 = vmatpush2.msra.mxu0 0.0
        %1226 = vmatprep.subr.mxu0 0.0
        %1227 = vmatpush2.msra.mxu0 0.0
        %1228 = vmatprep.mubr.f32.mxu0 0.0
        %1229 = vmatmul.mubr.f32.gmra.mxu0 %v1156
        %v1230 = vpop.f32.mrf.mxu0
        %v1231 = vadd.f32 0.0, %v1230
        %v1232 = vpop.f32.mrf.mxu0
        %v1233 = vadd.f32 0.0, %v1232
        %1234 = vdwg.mxu0
        %1235 = vmatprep.subr.mxu0 0.0
        %1236 = vmatpush1.msra.mxu0 0.0
        %1237 = vmatprep.subr.mxu0 0.0
        %1238 = vmatpush1.msra.mxu0 0.0
        %1239 = vmatprep.subr.mxu0 0.0
        %1240 = vmatpush1.msra.mxu0 0.0
        %1241 = vmatprep.subr.mxu0 0.0
        %1242 = vmatpush1.msra.mxu0 0.0
        %1243 = vmatprep.subr.mxu0 0.0
        %1244 = vmatpush1.msra.mxu0 0.0
        %1245 = vmatprep.subr.mxu0 0.0
        %1246 = vmatpush1.msra.mxu0 0.0
        %1247 = vmatprep.subr.mxu0 0.0
        %1248 = vmatpush1.msra.mxu0 0.0
        %1249 = vmatprep.subr.mxu0 0.0
        %1250 = vmatpush1.msra.mxu0 0.0
        %1251 = vmatprep.subr.mxu0 0.0
        %1252 = vmatpush1.msra.mxu0 0.0
        %1253 = vmatprep.subr.mxu0 0.0
        %1254 = vmatpush1.msra.mxu0 0.0
        %1255 = vmatprep.subr.mxu0 0.0
        %1256 = vmatpush1.msra.mxu0 0.0
        %1257 = vmatprep.subr.mxu0 0.0
        %1258 = vmatpush1.msra.mxu0 0.0
        %1259 = vmatprep.subr.mxu0 0.0
        %1260 = vmatpush1.msra.mxu0 0.0
        %1261 = vmatprep.subr.mxu0 0.0
        %1262 = vmatpush1.msra.mxu0 0.0
        %1263 = vmatprep.subr.mxu0 0.0
        %1264 = vmatpush1.msra.mxu0 0.0
        %1265 = vmatprep.subr.mxu0 0.0
        %1266 = vmatpush1.msra.mxu0 %v1162
        %1267 = vmatprep.subr.mxu0 0.0
        %1268 = vmatpush2.msra.mxu0 0.0
        %1269 = vmatprep.subr.mxu0 0.0
        %1270 = vmatpush2.msra.mxu0 0.0
        %1271 = vmatprep.subr.mxu0 0.0
        %1272 = vmatpush2.msra.mxu0 0.0
        %1273 = vmatprep.subr.mxu0 0.0
        %1274 = vmatpush2.msra.mxu0 0.0
        %1275 = vmatprep.subr.mxu0 0.0
        %1276 = vmatpush2.msra.mxu0 0.0
        %1277 = vmatprep.subr.mxu0 0.0
        %1278 = vmatpush2.msra.mxu0 0.0
        %1279 = vmatprep.subr.mxu0 0.0
        %1280 = vmatpush2.msra.mxu0 0.0
        %1281 = vmatprep.subr.mxu0 0.0
        %1282 = vmatpush2.msra.mxu0 0.0
        %1283 = vmatprep.subr.mxu0 0.0
        %1284 = vmatpush2.msra.mxu0 0.0
        %1285 = vmatprep.subr.mxu0 0.0
        %1286 = vmatpush2.msra.mxu0 0.0
        %1287 = vmatprep.subr.mxu0 0.0
        %1288 = vmatpush2.msra.mxu0 0.0
        %1289 = vmatprep.subr.mxu0 0.0
        %1290 = vmatpush2.msra.mxu0 0.0
        %1291 = vmatprep.subr.mxu0 0.0
        %1292 = vmatpush2.msra.mxu0 0.0
        %1293 = vmatprep.subr.mxu0 0.0
        %1294 = vmatpush2.msra.mxu0 0.0
        %1295 = vmatprep.subr.mxu0 0.0
        %1296 = vmatpush2.msra.mxu0 0.0
        %1297 = vmatprep.subr.mxu0 0.0
        %1298 = vmatpush2.msra.mxu0 0.0
        %1299 = vmatprep.mubr.f32.mxu0 0.0
        %1300 = vmatmul.mubr.f32.gmra.mxu0 %v1156
        %v1301 = vpop.f32.mrf.mxu0
        %v1302 = vadd.f32 0.0, %v1301
        %v1303 = vpop.f32.mrf.mxu0
        %1304 = vdwg.mxu0
        %v1305 = vadd.f32 %v1136, %v1231
        %v1306 = vadd.f32 %v1137, %v1233
        %v1307 = vadd.f32 %v1138, %v1302
        %v1308 = vld [vmem:[%s303] sm:$0xff]
        %v1309 = vld [vmem:[%s303 + $0x8] sm:$0xf]
        %s1310 = scalar_lea.vmem %s2, 12
        %v1311 = vld [vmem:[%s1310] sm:$0x3]
        %v1314 = vcombine.high %v1308, %v1308
        %1315 = vrot.lane.b32.xlu0 %v1308, 92
        %v1316 = vpop.permute.xlu0 %1315
        %1317 = vrot.lane.b32.xlu0 %v1314, 92
        %v1318 = vpop.permute.xlu0 %1317
        %1319 = vrot.lane.b32.xlu0 %v1309, 92
        %v1320 = vpop.permute.xlu0 %1319
        %vm1321 = vcmask 752640
        %v1322 = vsel %vm1321, %v1316, %v1318
        %v1323 = vsel %vm1321, %v1318, %v1320
        %v1325 = vsel %vm330, %v1311, 0
        %v1327 = vsel %vm334, %v1322, 0
        %v1329 = vsel %vm334, %v1323, 0
        %v1331 = vsel %vm334, %v1320, 0
        %1333 = vmatprep.subr.mxu0 0.0
        %1334 = vmatpush1.msra.mxu0 0.0
        %1335 = vmatprep.subr.mxu0 0.0
        %1336 = vmatpush1.msra.mxu0 0.0
        %1337 = vmatprep.subr.mxu0 0.0
        %1338 = vmatpush1.msra.mxu0 0.0
        %1339 = vmatprep.subr.mxu0 0.0
        %1340 = vmatpush1.msra.mxu0 0.0
        %1341 = vmatprep.subr.mxu0 0.0
        %1342 = vmatpush1.msra.mxu0 0.0
        %1343 = vmatprep.subr.mxu0 0.0
        %1344 = vmatpush1.msra.mxu0 0.0
        %1345 = vmatprep.subr.mxu0 0.0
        %1346 = vmatpush1.msra.mxu0 0.0
        %1347 = vmatprep.subr.mxu0 0.0
        %1348 = vmatpush1.msra.mxu0 0.0
        %1349 = vmatprep.subr.mxu0 0.0
        %1350 = vmatpush1.msra.mxu0 0.0
        %1351 = vmatprep.subr.mxu0 0.0
        %1352 = vmatpush1.msra.mxu0 0.0
        %1353 = vmatprep.subr.mxu0 0.0
        %1354 = vmatpush1.msra.mxu0 0.0
        %1355 = vmatprep.subr.mxu0 0.0
        %1356 = vmatpush1.msra.mxu0 0.0
        %1357 = vmatprep.subr.mxu0 0.0
        %1358 = vmatpush1.msra.mxu0 0.0
        %1359 = vmatprep.subr.mxu0 0.0
        %1360 = vmatpush1.msra.mxu0 0.0
        %1361 = vmatprep.subr.mxu0 0.0
        %1362 = vmatpush1.msra.mxu0 0.0
        %1363 = vmatprep.subr.mxu0 %v1329
        %1364 = vmatpush1.msra.mxu0 %v1327
        %1365 = vmatprep.subr.mxu0 0.0
        %1366 = vmatpush2.msra.mxu0 0.0
        %1367 = vmatprep.subr.mxu0 0.0
        %1368 = vmatpush2.msra.mxu0 0.0
        %1369 = vmatprep.subr.mxu0 0.0
        %1370 = vmatpush2.msra.mxu0 0.0
        %1371 = vmatprep.subr.mxu0 0.0
        %1372 = vmatpush2.msra.mxu0 0.0
        %1373 = vmatprep.subr.mxu0 0.0
        %1374 = vmatpush2.msra.mxu0 0.0
        %1375 = vmatprep.subr.mxu0 0.0
        %1376 = vmatpush2.msra.mxu0 0.0
        %1377 = vmatprep.subr.mxu0 0.0
        %1378 = vmatpush2.msra.mxu0 0.0
        %1379 = vmatprep.subr.mxu0 0.0
        %1380 = vmatpush2.msra.mxu0 0.0
        %1381 = vmatprep.subr.mxu0 0.0
        %1382 = vmatpush2.msra.mxu0 0.0
        %1383 = vmatprep.subr.mxu0 0.0
        %1384 = vmatpush2.msra.mxu0 0.0
        %1385 = vmatprep.subr.mxu0 0.0
        %1386 = vmatpush2.msra.mxu0 0.0
        %1387 = vmatprep.subr.mxu0 0.0
        %1388 = vmatpush2.msra.mxu0 0.0
        %1389 = vmatprep.subr.mxu0 0.0
        %1390 = vmatpush2.msra.mxu0 0.0
        %1391 = vmatprep.subr.mxu0 0.0
        %1392 = vmatpush2.msra.mxu0 0.0
        %1393 = vmatprep.subr.mxu0 0.0
        %1394 = vmatpush2.msra.mxu0 0.0
        %1395 = vmatprep.subr.mxu0 0.0
        %1396 = vmatpush2.msra.mxu0 0.0
        %1397 = vmatprep.mubr.f32.mxu0 0.0
        %1398 = vmatmul.mubr.f32.gmra.mxu0 %v1325
        %v1399 = vpop.f32.mrf.mxu0
        %v1400 = vadd.f32 0.0, %v1399
        %v1401 = vpop.f32.mrf.mxu0
        %v1402 = vadd.f32 0.0, %v1401
        %1403 = vdwg.mxu0
        %1404 = vmatprep.subr.mxu0 0.0
        %1405 = vmatpush1.msra.mxu0 0.0
        %1406 = vmatprep.subr.mxu0 0.0
        %1407 = vmatpush1.msra.mxu0 0.0
        %1408 = vmatprep.subr.mxu0 0.0
        %1409 = vmatpush1.msra.mxu0 0.0
        %1410 = vmatprep.subr.mxu0 0.0
        %1411 = vmatpush1.msra.mxu0 0.0
        %1412 = vmatprep.subr.mxu0 0.0
        %1413 = vmatpush1.msra.mxu0 0.0
        %1414 = vmatprep.subr.mxu0 0.0
        %1415 = vmatpush1.msra.mxu0 0.0
        %1416 = vmatprep.subr.mxu0 0.0
        %1417 = vmatpush1.msra.mxu0 0.0
        %1418 = vmatprep.subr.mxu0 0.0
        %1419 = vmatpush1.msra.mxu0 0.0
        %1420 = vmatprep.subr.mxu0 0.0
        %1421 = vmatpush1.msra.mxu0 0.0
        %1422 = vmatprep.subr.mxu0 0.0
        %1423 = vmatpush1.msra.mxu0 0.0
        %1424 = vmatprep.subr.mxu0 0.0
        %1425 = vmatpush1.msra.mxu0 0.0
        %1426 = vmatprep.subr.mxu0 0.0
        %1427 = vmatpush1.msra.mxu0 0.0
        %1428 = vmatprep.subr.mxu0 0.0
        %1429 = vmatpush1.msra.mxu0 0.0
        %1430 = vmatprep.subr.mxu0 0.0
        %1431 = vmatpush1.msra.mxu0 0.0
        %1432 = vmatprep.subr.mxu0 0.0
        %1433 = vmatpush1.msra.mxu0 0.0
        %1434 = vmatprep.subr.mxu0 0.0
        %1435 = vmatpush1.msra.mxu0 %v1331
        %1436 = vmatprep.subr.mxu0 0.0
        %1437 = vmatpush2.msra.mxu0 0.0
        %1438 = vmatprep.subr.mxu0 0.0
        %1439 = vmatpush2.msra.mxu0 0.0
        %1440 = vmatprep.subr.mxu0 0.0
        %1441 = vmatpush2.msra.mxu0 0.0
        %1442 = vmatprep.subr.mxu0 0.0
        %1443 = vmatpush2.msra.mxu0 0.0
        %1444 = vmatprep.subr.mxu0 0.0
        %1445 = vmatpush2.msra.mxu0 0.0
        %1446 = vmatprep.subr.mxu0 0.0
        %1447 = vmatpush2.msra.mxu0 0.0
        %1448 = vmatprep.subr.mxu0 0.0
        %1449 = vmatpush2.msra.mxu0 0.0
        %1450 = vmatprep.subr.mxu0 0.0
        %1451 = vmatpush2.msra.mxu0 0.0
        %1452 = vmatprep.subr.mxu0 0.0
        %1453 = vmatpush2.msra.mxu0 0.0
        %1454 = vmatprep.subr.mxu0 0.0
        %1455 = vmatpush2.msra.mxu0 0.0
        %1456 = vmatprep.subr.mxu0 0.0
        %1457 = vmatpush2.msra.mxu0 0.0
        %1458 = vmatprep.subr.mxu0 0.0
        %1459 = vmatpush2.msra.mxu0 0.0
        %1460 = vmatprep.subr.mxu0 0.0
        %1461 = vmatpush2.msra.mxu0 0.0
        %1462 = vmatprep.subr.mxu0 0.0
        %1463 = vmatpush2.msra.mxu0 0.0
        %1464 = vmatprep.subr.mxu0 0.0
        %1465 = vmatpush2.msra.mxu0 0.0
        %1466 = vmatprep.subr.mxu0 0.0
        %1467 = vmatpush2.msra.mxu0 0.0
        %1468 = vmatprep.mubr.f32.mxu0 0.0
        %1469 = vmatmul.mubr.f32.gmra.mxu0 %v1325
        %v1470 = vpop.f32.mrf.mxu0
        %v1471 = vadd.f32 0.0, %v1470
        %v1472 = vpop.f32.mrf.mxu0
        %1473 = vdwg.mxu0
        %v1474 = vadd.f32 %v1305, %v1400
        %v1475 = vadd.f32 %v1306, %v1402
        %v1476 = vadd.f32 %v1307, %v1471
        %v1477 = vld [vmem:[%s303] sm:$0xff]
        %v1478 = vld [vmem:[%s303 + $0x8] sm:$0xf]
        %s1479 = scalar_lea.vmem %s2, 14
        %v1480 = vld [vmem:[%s1479] sm:$0x3]
        %v1483 = vcombine.high %v1477, %v1477
        %1484 = vrot.lane.b32.xlu0 %v1477, 91
        %v1485 = vpop.permute.xlu0 %1484
        %1486 = vrot.lane.b32.xlu0 %v1483, 91
        %v1487 = vpop.permute.xlu0 %1486
        %1488 = vrot.lane.b32.xlu0 %v1478, 91
        %v1489 = vpop.permute.xlu0 %1488
        %vm1490 = vcmask 744448
        %v1491 = vsel %vm1490, %v1485, %v1487
        %v1492 = vsel %vm1490, %v1487, %v1489
        %v1494 = vsel %vm330, %v1480, 0
        %v1496 = vsel %vm334, %v1491, 0
        %v1498 = vsel %vm334, %v1492, 0
        %v1500 = vsel %vm334, %v1489, 0
        %1502 = vmatprep.subr.mxu0 0.0
        %1503 = vmatpush1.msra.mxu0 0.0
        %1504 = vmatprep.subr.mxu0 0.0
        %1505 = vmatpush1.msra.mxu0 0.0
        %1506 = vmatprep.subr.mxu0 0.0
        %1507 = vmatpush1.msra.mxu0 0.0
        %1508 = vmatprep.subr.mxu0 0.0
        %1509 = vmatpush1.msra.mxu0 0.0
        %1510 = vmatprep.subr.mxu0 0.0
        %1511 = vmatpush1.msra.mxu0 0.0
        %1512 = vmatprep.subr.mxu0 0.0
        %1513 = vmatpush1.msra.mxu0 0.0
        %1514 = vmatprep.subr.mxu0 0.0
        %1515 = vmatpush1.msra.mxu0 0.0
        %1516 = vmatprep.subr.mxu0 0.0
        %1517 = vmatpush1.msra.mxu0 0.0
        %1518 = vmatprep.subr.mxu0 0.0
        %1519 = vmatpush1.msra.mxu0 0.0
        %1520 = vmatprep.subr.mxu0 0.0
        %1521 = vmatpush1.msra.mxu0 0.0
        %1522 = vmatprep.subr.mxu0 0.0
        %1523 = vmatpush1.msra.mxu0 0.0
        %1524 = vmatprep.subr.mxu0 0.0
        %1525 = vmatpush1.msra.mxu0 0.0
        %1526 = vmatprep.subr.mxu0 0.0
        %1527 = vmatpush1.msra.mxu0 0.0
        %1528 = vmatprep.subr.mxu0 0.0
        %1529 = vmatpush1.msra.mxu0 0.0
        %1530 = vmatprep.subr.mxu0 0.0
        %1531 = vmatpush1.msra.mxu0 0.0
        %1532 = vmatprep.subr.mxu0 %v1498
        %1533 = vmatpush1.msra.mxu0 %v1496
        %1534 = vmatprep.subr.mxu0 0.0
        %1535 = vmatpush2.msra.mxu0 0.0
        %1536 = vmatprep.subr.mxu0 0.0
        %1537 = vmatpush2.msra.mxu0 0.0
        %1538 = vmatprep.subr.mxu0 0.0
        %1539 = vmatpush2.msra.mxu0 0.0
        %1540 = vmatprep.subr.mxu0 0.0
        %1541 = vmatpush2.msra.mxu0 0.0
        %1542 = vmatprep.subr.mxu0 0.0
        %1543 = vmatpush2.msra.mxu0 0.0
        %1544 = vmatprep.subr.mxu0 0.0
        %1545 = vmatpush2.msra.mxu0 0.0
        %1546 = vmatprep.subr.mxu0 0.0
        %1547 = vmatpush2.msra.mxu0 0.0
        %1548 = vmatprep.subr.mxu0 0.0
        %1549 = vmatpush2.msra.mxu0 0.0
        %1550 = vmatprep.subr.mxu0 0.0
        %1551 = vmatpush2.msra.mxu0 0.0
        %1552 = vmatprep.subr.mxu0 0.0
        %1553 = vmatpush2.msra.mxu0 0.0
        %1554 = vmatprep.subr.mxu0 0.0
        %1555 = vmatpush2.msra.mxu0 0.0
        %1556 = vmatprep.subr.mxu0 0.0
        %1557 = vmatpush2.msra.mxu0 0.0
        %1558 = vmatprep.subr.mxu0 0.0
        %1559 = vmatpush2.msra.mxu0 0.0
        %1560 = vmatprep.subr.mxu0 0.0
        %1561 = vmatpush2.msra.mxu0 0.0
        %1562 = vmatprep.subr.mxu0 0.0
        %1563 = vmatpush2.msra.mxu0 0.0
        %1564 = vmatprep.subr.mxu0 0.0
        %1565 = vmatpush2.msra.mxu0 0.0
        %1566 = vmatprep.mubr.f32.mxu0 0.0
        %1567 = vmatmul.mubr.f32.gmra.mxu0 %v1494
        %v1568 = vpop.f32.mrf.mxu0
        %v1569 = vadd.f32 0.0, %v1568
        %v1570 = vpop.f32.mrf.mxu0
        %v1571 = vadd.f32 0.0, %v1570
        %1572 = vdwg.mxu0
        %1573 = vmatprep.subr.mxu0 0.0
        %1574 = vmatpush1.msra.mxu0 0.0
        %1575 = vmatprep.subr.mxu0 0.0
        %1576 = vmatpush1.msra.mxu0 0.0
        %1577 = vmatprep.subr.mxu0 0.0
        %1578 = vmatpush1.msra.mxu0 0.0
        %1579 = vmatprep.subr.mxu0 0.0
        %1580 = vmatpush1.msra.mxu0 0.0
        %1581 = vmatprep.subr.mxu0 0.0
        %1582 = vmatpush1.msra.mxu0 0.0
        %1583 = vmatprep.subr.mxu0 0.0
        %1584 = vmatpush1.msra.mxu0 0.0
        %1585 = vmatprep.subr.mxu0 0.0
        %1586 = vmatpush1.msra.mxu0 0.0
        %1587 = vmatprep.subr.mxu0 0.0
        %1588 = vmatpush1.msra.mxu0 0.0
        %1589 = vmatprep.subr.mxu0 0.0
        %1590 = vmatpush1.msra.mxu0 0.0
        %1591 = vmatprep.subr.mxu0 0.0
        %1592 = vmatpush1.msra.mxu0 0.0
        %1593 = vmatprep.subr.mxu0 0.0
        %1594 = vmatpush1.msra.mxu0 0.0
        %1595 = vmatprep.subr.mxu0 0.0
        %1596 = vmatpush1.msra.mxu0 0.0
        %1597 = vmatprep.subr.mxu0 0.0
        %1598 = vmatpush1.msra.mxu0 0.0
        %1599 = vmatprep.subr.mxu0 0.0
        %1600 = vmatpush1.msra.mxu0 0.0
        %1601 = vmatprep.subr.mxu0 0.0
        %1602 = vmatpush1.msra.mxu0 0.0
        %1603 = vmatprep.subr.mxu0 0.0
        %1604 = vmatpush1.msra.mxu0 %v1500
        %1605 = vmatprep.subr.mxu0 0.0
        %1606 = vmatpush2.msra.mxu0 0.0
        %1607 = vmatprep.subr.mxu0 0.0
        %1608 = vmatpush2.msra.mxu0 0.0
        %1609 = vmatprep.subr.mxu0 0.0
        %1610 = vmatpush2.msra.mxu0 0.0
        %1611 = vmatprep.subr.mxu0 0.0
        %1612 = vmatpush2.msra.mxu0 0.0
        %1613 = vmatprep.subr.mxu0 0.0
        %1614 = vmatpush2.msra.mxu0 0.0
        %1615 = vmatprep.subr.mxu0 0.0
        %1616 = vmatpush2.msra.mxu0 0.0
        %1617 = vmatprep.subr.mxu0 0.0
        %1618 = vmatpush2.msra.mxu0 0.0
        %1619 = vmatprep.subr.mxu0 0.0
        %1620 = vmatpush2.msra.mxu0 0.0
        %1621 = vmatprep.subr.mxu0 0.0
        %1622 = vmatpush2.msra.mxu0 0.0
        %1623 = vmatprep.subr.mxu0 0.0
        %1624 = vmatpush2.msra.mxu0 0.0
        %1625 = vmatprep.subr.mxu0 0.0
        %1626 = vmatpush2.msra.mxu0 0.0
        %1627 = vmatprep.subr.mxu0 0.0
        %1628 = vmatpush2.msra.mxu0 0.0
        %1629 = vmatprep.subr.mxu0 0.0
        %1630 = vmatpush2.msra.mxu0 0.0
        %1631 = vmatprep.subr.mxu0 0.0
        %1632 = vmatpush2.msra.mxu0 0.0
        %1633 = vmatprep.subr.mxu0 0.0
        %1634 = vmatpush2.msra.mxu0 0.0
        %1635 = vmatprep.subr.mxu0 0.0
        %1636 = vmatpush2.msra.mxu0 0.0
        %1637 = vmatprep.mubr.f32.mxu0 0.0
        %1638 = vmatmul.mubr.f32.gmra.mxu0 %v1494
        %v1639 = vpop.f32.mrf.mxu0
        %v1640 = vadd.f32 0.0, %v1639
        %v1641 = vpop.f32.mrf.mxu0
        %1642 = vdwg.mxu0
        %v1643 = vadd.f32 %v1474, %v1569
        %v1644 = vadd.f32 %v1475, %v1571
        %v1645 = vadd.f32 %v1476, %v1640
        %v1646 = vld [vmem:[%s303] sm:$0xff]
        %v1647 = vld [vmem:[%s303 + $0x8] sm:$0xf]
        %s1648 = scalar_lea.vmem %s2, 16
        %v1649 = vld [vmem:[%s1648] sm:$0x3]
        %v1652 = vcombine.high %v1646, %v1646
        %1653 = vrot.lane.b32.xlu0 %v1646, 90
        %v1654 = vpop.permute.xlu0 %1653
        %1655 = vrot.lane.b32.xlu0 %v1652, 90
        %v1656 = vpop.permute.xlu0 %1655
        %1657 = vrot.lane.b32.xlu0 %v1647, 90
        %v1658 = vpop.permute.xlu0 %1657
        %vm1659 = vcmask 736256
        %v1660 = vsel %vm1659, %v1654, %v1656
        %v1661 = vsel %vm1659, %v1656, %v1658
        %v1663 = vsel %vm330, %v1649, 0
        %v1665 = vsel %vm334, %v1660, 0
        %v1667 = vsel %vm334, %v1661, 0
        %v1669 = vsel %vm334, %v1658, 0
        %1671 = vmatprep.subr.mxu0 0.0
        %1672 = vmatpush1.msra.mxu0 0.0
        %1673 = vmatprep.subr.mxu0 0.0
        %1674 = vmatpush1.msra.mxu0 0.0
        %1675 = vmatprep.subr.mxu0 0.0
        %1676 = vmatpush1.msra.mxu0 0.0
        %1677 = vmatprep.subr.mxu0 0.0
        %1678 = vmatpush1.msra.mxu0 0.0
        %1679 = vmatprep.subr.mxu0 0.0
        %1680 = vmatpush1.msra.mxu0 0.0
        %1681 = vmatprep.subr.mxu0 0.0
        %1682 = vmatpush1.msra.mxu0 0.0
        %1683 = vmatprep.subr.mxu0 0.0
        %1684 = vmatpush1.msra.mxu0 0.0
        %1685 = vmatprep.subr.mxu0 0.0
        %1686 = vmatpush1.msra.mxu0 0.0
        %1687 = vmatprep.subr.mxu0 0.0
        %1688 = vmatpush1.msra.mxu0 0.0
        %1689 = vmatprep.subr.mxu0 0.0
        %1690 = vmatpush1.msra.mxu0 0.0
        %1691 = vmatprep.subr.mxu0 0.0
        %1692 = vmatpush1.msra.mxu0 0.0
        %1693 = vmatprep.subr.mxu0 0.0
        %1694 = vmatpush1.msra.mxu0 0.0
        %1695 = vmatprep.subr.mxu0 0.0
        %1696 = vmatpush1.msra.mxu0 0.0
        %1697 = vmatprep.subr.mxu0 0.0
        %1698 = vmatpush1.msra.mxu0 0.0
        %1699 = vmatprep.subr.mxu0 0.0
        %1700 = vmatpush1.msra.mxu0 0.0
        %1701 = vmatprep.subr.mxu0 %v1667
        %1702 = vmatpush1.msra.mxu0 %v1665
        %1703 = vmatprep.subr.mxu0 0.0
        %1704 = vmatpush2.msra.mxu0 0.0
        %1705 = vmatprep.subr.mxu0 0.0
        %1706 = vmatpush2.msra.mxu0 0.0
        %1707 = vmatprep.subr.mxu0 0.0
        %1708 = vmatpush2.msra.mxu0 0.0
        %1709 = vmatprep.subr.mxu0 0.0
        %1710 = vmatpush2.msra.mxu0 0.0
        %1711 = vmatprep.subr.mxu0 0.0
        %1712 = vmatpush2.msra.mxu0 0.0
        %1713 = vmatprep.subr.mxu0 0.0
        %1714 = vmatpush2.msra.mxu0 0.0
        %1715 = vmatprep.subr.mxu0 0.0
        %1716 = vmatpush2.msra.mxu0 0.0
        %1717 = vmatprep.subr.mxu0 0.0
        %1718 = vmatpush2.msra.mxu0 0.0
        %1719 = vmatprep.subr.mxu0 0.0
        %1720 = vmatpush2.msra.mxu0 0.0
        %1721 = vmatprep.subr.mxu0 0.0
        %1722 = vmatpush2.msra.mxu0 0.0
        %1723 = vmatprep.subr.mxu0 0.0
        %1724 = vmatpush2.msra.mxu0 0.0
        %1725 = vmatprep.subr.mxu0 0.0
        %1726 = vmatpush2.msra.mxu0 0.0
        %1727 = vmatprep.subr.mxu0 0.0
        %1728 = vmatpush2.msra.mxu0 0.0
        %1729 = vmatprep.subr.mxu0 0.0
        %1730 = vmatpush2.msra.mxu0 0.0
        %1731 = vmatprep.subr.mxu0 0.0
        %1732 = vmatpush2.msra.mxu0 0.0
        %1733 = vmatprep.subr.mxu0 0.0
        %1734 = vmatpush2.msra.mxu0 0.0
        %1735 = vmatprep.mubr.f32.mxu0 0.0
        %1736 = vmatmul.mubr.f32.gmra.mxu0 %v1663
        %v1737 = vpop.f32.mrf.mxu0
        %v1738 = vadd.f32 0.0, %v1737
        %v1739 = vpop.f32.mrf.mxu0
        %v1740 = vadd.f32 0.0, %v1739
        %1741 = vdwg.mxu0
        %1742 = vmatprep.subr.mxu0 0.0
        %1743 = vmatpush1.msra.mxu0 0.0
        %1744 = vmatprep.subr.mxu0 0.0
        %1745 = vmatpush1.msra.mxu0 0.0
        %1746 = vmatprep.subr.mxu0 0.0
        %1747 = vmatpush1.msra.mxu0 0.0
        %1748 = vmatprep.subr.mxu0 0.0
        %1749 = vmatpush1.msra.mxu0 0.0
        %1750 = vmatprep.subr.mxu0 0.0
        %1751 = vmatpush1.msra.mxu0 0.0
        %1752 = vmatprep.subr.mxu0 0.0
        %1753 = vmatpush1.msra.mxu0 0.0
        %1754 = vmatprep.subr.mxu0 0.0
        %1755 = vmatpush1.msra.mxu0 0.0
        %1756 = vmatprep.subr.mxu0 0.0
        %1757 = vmatpush1.msra.mxu0 0.0
        %1758 = vmatprep.subr.mxu0 0.0
        %1759 = vmatpush1.msra.mxu0 0.0
        %1760 = vmatprep.subr.mxu0 0.0
        %1761 = vmatpush1.msra.mxu0 0.0
        %1762 = vmatprep.subr.mxu0 0.0
        %1763 = vmatpush1.msra.mxu0 0.0
        %1764 = vmatprep.subr.mxu0 0.0
        %1765 = vmatpush1.msra.mxu0 0.0
        %1766 = vmatprep.subr.mxu0 0.0
        %1767 = vmatpush1.msra.mxu0 0.0
        %1768 = vmatprep.subr.mxu0 0.0
        %1769 = vmatpush1.msra.mxu0 0.0
        %1770 = vmatprep.subr.mxu0 0.0
        %1771 = vmatpush1.msra.mxu0 0.0
        %1772 = vmatprep.subr.mxu0 0.0
        %1773 = vmatpush1.msra.mxu0 %v1669
        %1774 = vmatprep.subr.mxu0 0.0
        %1775 = vmatpush2.msra.mxu0 0.0
        %1776 = vmatprep.subr.mxu0 0.0
        %1777 = vmatpush2.msra.mxu0 0.0
        %1778 = vmatprep.subr.mxu0 0.0
        %1779 = vmatpush2.msra.mxu0 0.0
        %1780 = vmatprep.subr.mxu0 0.0
        %1781 = vmatpush2.msra.mxu0 0.0
        %1782 = vmatprep.subr.mxu0 0.0
        %1783 = vmatpush2.msra.mxu0 0.0
        %1784 = vmatprep.subr.mxu0 0.0
        %1785 = vmatpush2.msra.mxu0 0.0
        %1786 = vmatprep.subr.mxu0 0.0
        %1787 = vmatpush2.msra.mxu0 0.0
        %1788 = vmatprep.subr.mxu0 0.0
        %1789 = vmatpush2.msra.mxu0 0.0
        %1790 = vmatprep.subr.mxu0 0.0
        %1791 = vmatpush2.msra.mxu0 0.0
        %1792 = vmatprep.subr.mxu0 0.0
        %1793 = vmatpush2.msra.mxu0 0.0
        %1794 = vmatprep.subr.mxu0 0.0
        %1795 = vmatpush2.msra.mxu0 0.0
        %1796 = vmatprep.subr.mxu0 0.0
        %1797 = vmatpush2.msra.mxu0 0.0
        %1798 = vmatprep.subr.mxu0 0.0
        %1799 = vmatpush2.msra.mxu0 0.0
        %1800 = vmatprep.subr.mxu0 0.0
        %1801 = vmatpush2.msra.mxu0 0.0
        %1802 = vmatprep.subr.mxu0 0.0
        %1803 = vmatpush2.msra.mxu0 0.0
        %1804 = vmatprep.subr.mxu0 0.0
        %1805 = vmatpush2.msra.mxu0 0.0
        %1806 = vmatprep.mubr.f32.mxu0 0.0
        %1807 = vmatmul.mubr.f32.gmra.mxu0 %v1663
        %v1808 = vpop.f32.mrf.mxu0
        %v1809 = vadd.f32 0.0, %v1808
        %v1810 = vpop.f32.mrf.mxu0
        %1811 = vdwg.mxu0
        %v1812 = vadd.f32 %v1643, %v1738
        %v1813 = vadd.f32 %v1644, %v1740
        %v1814 = vadd.f32 %v1645, %v1809
        %v1816 = vlaneseq
        %v1817 = vshrl.u32 %v1816, 7
        %v1818 = vsub.s32 0, %v1817
        %v1819 = vrot.slane %v304, %v1818
        %v1820 = vlaneseq
        %v1821 = vshrl.u32 %v1820, 7
        %v1822 = vsub.s32 1, %v1821
        %v1823 = vrot.slane %v304, %v1822
        %v1824 = vlaneseq
        %v1825 = vshrl.u32 %v1824, 7
        %v1826 = vsub.s32 2, %v1825
        %v1827 = vrot.slane %v304, %v1826
        %v1831 = vmul.f32 %v1812, %v1819
        %v1832 = vmul.f32 %v1813, %v1823
        %v1833 = vmul.f32 %v1814, %v1827
        %1837 = vrot.lane.b32.xlu0 %v1831, 19
        %v1838 = vpop.permute.xlu0 %1837
        %1839 = vrot.lane.b32.xlu0 %v1832, 19
        %v1840 = vpop.permute.xlu0 %1839
        %1841 = vrot.lane.b32.xlu0 %v1833, 19
        %v1842 = vpop.permute.xlu0 %1841
        %v1843 = vsel %vm305, %v1838, %v1840
        %v1844 = vsel %vm305, %v1840, %v1842
        %vm1848 = vcmask 1041560
        %1849 = vst.msk [vmem:[#allocation2] sm:$0x3] %vm1848, %v1838
        %1850 = vst [vmem:[#allocation2 + $0x8] sm:$0x3] %v1843
        %vm1851 = vcmask 410624
        %1852 = vst.msk [vmem:[#allocation2 + $0x10] sm:$0x3] %vm1851, %v1844
        %v1853 = vld [vmem:[#allocation2] sm:$0x3]
        %v1854 = vld [vmem:[#allocation2 + $0x8] sm:$0x3]
        %v1855 = vld [vmem:[#allocation2 + $0x10] sm:$0x3]
        %v1856 = vld [vmem:[%s3] sm:$0x3]
        %s1857 = scalar_lea.vmem %s3, 2
        %v1858 = vld [vmem:[%s1857] sm:$0x3]
        %1862 = vrot.lane.b32.xlu0 %v1853, 127
        %v1863 = vpop.permute.xlu0 %1862
        %1864 = vrot.lane.b32.xlu0 %v1854, 127
        %v1865 = vpop.permute.xlu0 %1864
        %1866 = vrot.lane.b32.xlu0 %v1855, 127
        %v1867 = vpop.permute.xlu0 %1866
        %v1868 = vsel %vm327, %v1863, %v1865
        %v1869 = vsel %vm327, %v1865, %v1867
        %vm1870 = vcmask 15360
        %v1872 = vsel %vm1870, %v1858, 0
        %vm1874 = vcmask 1041408
        %v1875 = vsel %vm1874, %v1868, 0
        %v1877 = vsel %vm1874, %v1869, 0
        %v1879 = vsel %vm1874, %v1867, 0
        %1881 = vmatprep.subr.mxu0 0.0
        %1882 = vmatpush1.msra.mxu0 0.0
        %1883 = vmatprep.subr.mxu0 0.0
        %1884 = vmatpush1.msra.mxu0 0.0
        %1885 = vmatprep.subr.mxu0 0.0
        %1886 = vmatpush1.msra.mxu0 0.0
        %1887 = vmatprep.subr.mxu0 0.0
        %1888 = vmatpush1.msra.mxu0 0.0
        %1889 = vmatprep.subr.mxu0 0.0
        %1890 = vmatpush1.msra.mxu0 0.0
        %1891 = vmatprep.subr.mxu0 0.0
        %1892 = vmatpush1.msra.mxu0 0.0
        %1893 = vmatprep.subr.mxu0 0.0
        %1894 = vmatpush1.msra.mxu0 0.0
        %1895 = vmatprep.subr.mxu0 0.0
        %1896 = vmatpush1.msra.mxu0 0.0
        %1897 = vmatprep.subr.mxu0 0.0
        %1898 = vmatpush1.msra.mxu0 0.0
        %1899 = vmatprep.subr.mxu0 0.0
        %1900 = vmatpush1.msra.mxu0 0.0
        %1901 = vmatprep.subr.mxu0 0.0
        %1902 = vmatpush1.msra.mxu0 0.0
        %1903 = vmatprep.subr.mxu0 0.0
        %1904 = vmatpush1.msra.mxu0 0.0
        %1905 = vmatprep.subr.mxu0 0.0
        %1906 = vmatpush1.msra.mxu0 0.0
        %1907 = vmatprep.subr.mxu0 0.0
        %1908 = vmatpush1.msra.mxu0 0.0
        %1909 = vmatprep.subr.mxu0 0.0
        %1910 = vmatpush1.msra.mxu0 0.0
        %1911 = vmatprep.subr.mxu0 %v1877
        %1912 = vmatpush1.msra.mxu0 %v1875
        %1913 = vmatprep.subr.mxu0 0.0
        %1914 = vmatpush2.msra.mxu0 0.0
        %1915 = vmatprep.subr.mxu0 0.0
        %1916 = vmatpush2.msra.mxu0 0.0
        %1917 = vmatprep.subr.mxu0 0.0
        %1918 = vmatpush2.msra.mxu0 0.0
        %1919 = vmatprep.subr.mxu0 0.0
        %1920 = vmatpush2.msra.mxu0 0.0
        %1921 = vmatprep.subr.mxu0 0.0
        %1922 = vmatpush2.msra.mxu0 0.0
        %1923 = vmatprep.subr.mxu0 0.0
        %1924 = vmatpush2.msra.mxu0 0.0
        %1925 = vmatprep.subr.mxu0 0.0
        %1926 = vmatpush2.msra.mxu0 0.0
        %1927 = vmatprep.subr.mxu0 0.0
        %1928 = vmatpush2.msra.mxu0 0.0
        %1929 = vmatprep.subr.mxu0 0.0
        %1930 = vmatpush2.msra.mxu0 0.0
        %1931 = vmatprep.subr.mxu0 0.0
        %1932 = vmatpush2.msra.mxu0 0.0
        %1933 = vmatprep.subr.mxu0 0.0
        %1934 = vmatpush2.msra.mxu0 0.0
        %1935 = vmatprep.subr.mxu0 0.0
        %1936 = vmatpush2.msra.mxu0 0.0
        %1937 = vmatprep.subr.mxu0 0.0
        %1938 = vmatpush2.msra.mxu0 0.0
        %1939 = vmatprep.subr.mxu0 0.0
        %1940 = vmatpush2.msra.mxu0 0.0
        %1941 = vmatprep.subr.mxu0 0.0
        %1942 = vmatpush2.msra.mxu0 0.0
        %1943 = vmatprep.subr.mxu0 0.0
        %1944 = vmatpush2.msra.mxu0 0.0
        %1945 = vmatprep.mubr.f32.mxu0 0.0
        %1946 = vmatmul.mubr.f32.gmra.mxu0 %v1872
        %v1947 = vpop.f32.mrf.mxu0
        %v1948 = vadd.f32 0.0, %v1947
        %v1949 = vpop.f32.mrf.mxu0
        %v1950 = vadd.f32 0.0, %v1949
        %1951 = vdwg.mxu0
        %1952 = vmatprep.subr.mxu0 0.0
        %1953 = vmatpush1.msra.mxu0 0.0
        %1954 = vmatprep.subr.mxu0 0.0
        %1955 = vmatpush1.msra.mxu0 0.0
        %1956 = vmatprep.subr.mxu0 0.0
        %1957 = vmatpush1.msra.mxu0 0.0
        %1958 = vmatprep.subr.mxu0 0.0
        %1959 = vmatpush1.msra.mxu0 0.0
        %1960 = vmatprep.subr.mxu0 0.0
        %1961 = vmatpush1.msra.mxu0 0.0
        %1962 = vmatprep.subr.mxu0 0.0
        %1963 = vmatpush1.msra.mxu0 0.0
        %1964 = vmatprep.subr.mxu0 0.0
        %1965 = vmatpush1.msra.mxu0 0.0
        %1966 = vmatprep.subr.mxu0 0.0
        %1967 = vmatpush1.msra.mxu0 0.0
        %1968 = vmatprep.subr.mxu0 0.0
        %1969 = vmatpush1.msra.mxu0 0.0
        %1970 = vmatprep.subr.mxu0 0.0
        %1971 = vmatpush1.msra.mxu0 0.0
        %1972 = vmatprep.subr.mxu0 0.0
        %1973 = vmatpush1.msra.mxu0 0.0
        %1974 = vmatprep.subr.mxu0 0.0
        %1975 = vmatpush1.msra.mxu0 0.0
        %1976 = vmatprep.subr.mxu0 0.0
        %1977 = vmatpush1.msra.mxu0 0.0
        %1978 = vmatprep.subr.mxu0 0.0
        %1979 = vmatpush1.msra.mxu0 0.0
        %1980 = vmatprep.subr.mxu0 0.0
        %1981 = vmatpush1.msra.mxu0 0.0
        %1982 = vmatprep.subr.mxu0 0.0
        %1983 = vmatpush1.msra.mxu0 %v1879
        %1984 = vmatprep.subr.mxu0 0.0
        %1985 = vmatpush2.msra.mxu0 0.0
        %1986 = vmatprep.subr.mxu0 0.0
        %1987 = vmatpush2.msra.mxu0 0.0
        %1988 = vmatprep.subr.mxu0 0.0
        %1989 = vmatpush2.msra.mxu0 0.0
        %1990 = vmatprep.subr.mxu0 0.0
        %1991 = vmatpush2.msra.mxu0 0.0
        %1992 = vmatprep.subr.mxu0 0.0
        %1993 = vmatpush2.msra.mxu0 0.0
        %1994 = vmatprep.subr.mxu0 0.0
        %1995 = vmatpush2.msra.mxu0 0.0
        %1996 = vmatprep.subr.mxu0 0.0
        %1997 = vmatpush2.msra.mxu0 0.0
        %1998 = vmatprep.subr.mxu0 0.0
        %1999 = vmatpush2.msra.mxu0 0.0
        %2000 = vmatprep.subr.mxu0 0.0
        %2001 = vmatpush2.msra.mxu0 0.0
        %2002 = vmatprep.subr.mxu0 0.0
        %2003 = vmatpush2.msra.mxu0 0.0
        %2004 = vmatprep.subr.mxu0 0.0
        %2005 = vmatpush2.msra.mxu0 0.0
        %2006 = vmatprep.subr.mxu0 0.0
        %2007 = vmatpush2.msra.mxu0 0.0
        %2008 = vmatprep.subr.mxu0 0.0
        %2009 = vmatpush2.msra.mxu0 0.0
        %2010 = vmatprep.subr.mxu0 0.0
        %2011 = vmatpush2.msra.mxu0 0.0
        %2012 = vmatprep.subr.mxu0 0.0
        %2013 = vmatpush2.msra.mxu0 0.0
        %2014 = vmatprep.subr.mxu0 0.0
        %2015 = vmatpush2.msra.mxu0 0.0
        %2016 = vmatprep.mubr.f32.mxu0 0.0
        %2017 = vmatmul.mubr.f32.gmra.mxu0 %v1872
        %v2018 = vpop.f32.mrf.mxu0
        %v2019 = vadd.f32 0.0, %v2018
        %v2020 = vpop.f32.mrf.mxu0
        %2021 = vdwg.mxu0
        %v2023 = vsel %vm1870, %v1856, 0
        %v2025 = vsel %vm1874, %v1853, 0
        %v2027 = vsel %vm1874, %v1854, 0
        %v2029 = vsel %vm1874, %v1855, 0
        %2031 = vmatprep.subr.mxu0 0.0
        %2032 = vmatpush1.msra.mxu0 0.0
        %2033 = vmatprep.subr.mxu0 0.0
        %2034 = vmatpush1.msra.mxu0 0.0
        %2035 = vmatprep.subr.mxu0 0.0
        %2036 = vmatpush1.msra.mxu0 0.0
        %2037 = vmatprep.subr.mxu0 0.0
        %2038 = vmatpush1.msra.mxu0 0.0
        %2039 = vmatprep.subr.mxu0 0.0
        %2040 = vmatpush1.msra.mxu0 0.0
        %2041 = vmatprep.subr.mxu0 0.0
        %2042 = vmatpush1.msra.mxu0 0.0
        %2043 = vmatprep.subr.mxu0 0.0
        %2044 = vmatpush1.msra.mxu0 0.0
        %2045 = vmatprep.subr.mxu0 0.0
        %2046 = vmatpush1.msra.mxu0 0.0
        %2047 = vmatprep.subr.mxu0 0.0
        %2048 = vmatpush1.msra.mxu0 0.0
        %2049 = vmatprep.subr.mxu0 0.0
        %2050 = vmatpush1.msra.mxu0 0.0
        %2051 = vmatprep.subr.mxu0 0.0
        %2052 = vmatpush1.msra.mxu0 0.0
        %2053 = vmatprep.subr.mxu0 0.0
        %2054 = vmatpush1.msra.mxu0 0.0
        %2055 = vmatprep.subr.mxu0 0.0
        %2056 = vmatpush1.msra.mxu0 0.0
        %2057 = vmatprep.subr.mxu0 0.0
        %2058 = vmatpush1.msra.mxu0 0.0
        %2059 = vmatprep.subr.mxu0 0.0
        %2060 = vmatpush1.msra.mxu0 0.0
        %2061 = vmatprep.subr.mxu0 %v2027
        %2062 = vmatpush1.msra.mxu0 %v2025
        %2063 = vmatprep.subr.mxu0 0.0
        %2064 = vmatpush2.msra.mxu0 0.0
        %2065 = vmatprep.subr.mxu0 0.0
        %2066 = vmatpush2.msra.mxu0 0.0
        %2067 = vmatprep.subr.mxu0 0.0
        %2068 = vmatpush2.msra.mxu0 0.0
        %2069 = vmatprep.subr.mxu0 0.0
        %2070 = vmatpush2.msra.mxu0 0.0
        %2071 = vmatprep.subr.mxu0 0.0
        %2072 = vmatpush2.msra.mxu0 0.0
        %2073 = vmatprep.subr.mxu0 0.0
        %2074 = vmatpush2.msra.mxu0 0.0
        %2075 = vmatprep.subr.mxu0 0.0
        %2076 = vmatpush2.msra.mxu0 0.0
        %2077 = vmatprep.subr.mxu0 0.0
        %2078 = vmatpush2.msra.mxu0 0.0
        %2079 = vmatprep.subr.mxu0 0.0
        %2080 = vmatpush2.msra.mxu0 0.0
        %2081 = vmatprep.subr.mxu0 0.0
        %2082 = vmatpush2.msra.mxu0 0.0
        %2083 = vmatprep.subr.mxu0 0.0
        %2084 = vmatpush2.msra.mxu0 0.0
        %2085 = vmatprep.subr.mxu0 0.0
        %2086 = vmatpush2.msra.mxu0 0.0
        %2087 = vmatprep.subr.mxu0 0.0
        %2088 = vmatpush2.msra.mxu0 0.0
        %2089 = vmatprep.subr.mxu0 0.0
        %2090 = vmatpush2.msra.mxu0 0.0
        %2091 = vmatprep.subr.mxu0 0.0
        %2092 = vmatpush2.msra.mxu0 0.0
        %2093 = vmatprep.subr.mxu0 0.0
        %2094 = vmatpush2.msra.mxu0 0.0
        %2095 = vmatprep.mubr.f32.mxu0 0.0
        %2096 = vmatmul.mubr.f32.gmra.mxu0 %v2023
        %v2097 = vpop.f32.mrf.mxu0
        %v2098 = vadd.f32 %v1948, %v2097
        %v2099 = vpop.f32.mrf.mxu0
        %v2100 = vadd.f32 %v1950, %v2099
        %2101 = vdwg.mxu0
        %2102 = vmatprep.subr.mxu0 0.0
        %2103 = vmatpush1.msra.mxu0 0.0
        %2104 = vmatprep.subr.mxu0 0.0
        %2105 = vmatpush1.msra.mxu0 0.0
        %2106 = vmatprep.subr.mxu0 0.0
        %2107 = vmatpush1.msra.mxu0 0.0
        %2108 = vmatprep.subr.mxu0 0.0
        %2109 = vmatpush1.msra.mxu0 0.0
        %2110 = vmatprep.subr.mxu0 0.0
        %2111 = vmatpush1.msra.mxu0 0.0
        %2112 = vmatprep.subr.mxu0 0.0
        %2113 = vmatpush1.msra.mxu0 0.0
        %2114 = vmatprep.subr.mxu0 0.0
        %2115 = vmatpush1.msra.mxu0 0.0
        %2116 = vmatprep.subr.mxu0 0.0
        %2117 = vmatpush1.msra.mxu0 0.0
        %2118 = vmatprep.subr.mxu0 0.0
        %2119 = vmatpush1.msra.mxu0 0.0
        %2120 = vmatprep.subr.mxu0 0.0
        %2121 = vmatpush1.msra.mxu0 0.0
        %2122 = vmatprep.subr.mxu0 0.0
        %2123 = vmatpush1.msra.mxu0 0.0
        %2124 = vmatprep.subr.mxu0 0.0
        %2125 = vmatpush1.msra.mxu0 0.0
        %2126 = vmatprep.subr.mxu0 0.0
        %2127 = vmatpush1.msra.mxu0 0.0
        %2128 = vmatprep.subr.mxu0 0.0
        %2129 = vmatpush1.msra.mxu0 0.0
        %2130 = vmatprep.subr.mxu0 0.0
        %2131 = vmatpush1.msra.mxu0 0.0
        %2132 = vmatprep.subr.mxu0 0.0
        %2133 = vmatpush1.msra.mxu0 %v2029
        %2134 = vmatprep.subr.mxu0 0.0
        %2135 = vmatpush2.msra.mxu0 0.0
        %2136 = vmatprep.subr.mxu0 0.0
        %2137 = vmatpush2.msra.mxu0 0.0
        %2138 = vmatprep.subr.mxu0 0.0
        %2139 = vmatpush2.msra.mxu0 0.0
        %2140 = vmatprep.subr.mxu0 0.0
        %2141 = vmatpush2.msra.mxu0 0.0
        %2142 = vmatprep.subr.mxu0 0.0
        %2143 = vmatpush2.msra.mxu0 0.0
        %2144 = vmatprep.subr.mxu0 0.0
        %2145 = vmatpush2.msra.mxu0 0.0
        %2146 = vmatprep.subr.mxu0 0.0
        %2147 = vmatpush2.msra.mxu0 0.0
        %2148 = vmatprep.subr.mxu0 0.0
        %2149 = vmatpush2.msra.mxu0 0.0
        %2150 = vmatprep.subr.mxu0 0.0
        %2151 = vmatpush2.msra.mxu0 0.0
        %2152 = vmatprep.subr.mxu0 0.0
        %2153 = vmatpush2.msra.mxu0 0.0
        %2154 = vmatprep.subr.mxu0 0.0
        %2155 = vmatpush2.msra.mxu0 0.0
        %2156 = vmatprep.subr.mxu0 0.0
        %2157 = vmatpush2.msra.mxu0 0.0
        %2158 = vmatprep.subr.mxu0 0.0
        %2159 = vmatpush2.msra.mxu0 0.0
        %2160 = vmatprep.subr.mxu0 0.0
        %2161 = vmatpush2.msra.mxu0 0.0
        %2162 = vmatprep.subr.mxu0 0.0
        %2163 = vmatpush2.msra.mxu0 0.0
        %2164 = vmatprep.subr.mxu0 0.0
        %2165 = vmatpush2.msra.mxu0 0.0
        %2166 = vmatprep.mubr.f32.mxu0 0.0
        %2167 = vmatmul.mubr.f32.gmra.mxu0 %v2023
        %v2168 = vpop.f32.mrf.mxu0
        %v2169 = vadd.f32 %v2019, %v2168
        %v2170 = vpop.f32.mrf.mxu0
        %2171 = vdwg.mxu0
        %s2172 = scalar_lea.vmem %s3, 4
        %v2173 = vld [vmem:[%s2172] sm:$0x3]
        %2174 = vrot.lane.b32.xlu0 %v1853, 126
        %v2175 = vpop.permute.xlu0 %2174
        %2176 = vrot.lane.b32.xlu0 %v1854, 126
        %v2177 = vpop.permute.xlu0 %2176
        %2178 = vrot.lane.b32.xlu0 %v1855, 126
        %v2179 = vpop.permute.xlu0 %2178
        %v2180 = vsel %vm645, %v2175, %v2177
        %v2181 = vsel %vm645, %v2177, %v2179
        %v2183 = vsel %vm1870, %v2173, 0
        %v2185 = vsel %vm1874, %v2180, 0
        %v2187 = vsel %vm1874, %v2181, 0
        %v2189 = vsel %vm1874, %v2179, 0
        %2191 = vmatprep.subr.mxu0 0.0
        %2192 = vmatpush1.msra.mxu0 0.0
        %2193 = vmatprep.subr.mxu0 0.0
        %2194 = vmatpush1.msra.mxu0 0.0
        %2195 = vmatprep.subr.mxu0 0.0
        %2196 = vmatpush1.msra.mxu0 0.0
        %2197 = vmatprep.subr.mxu0 0.0
        %2198 = vmatpush1.msra.mxu0 0.0
        %2199 = vmatprep.subr.mxu0 0.0
        %2200 = vmatpush1.msra.mxu0 0.0
        %2201 = vmatprep.subr.mxu0 0.0
        %2202 = vmatpush1.msra.mxu0 0.0
        %2203 = vmatprep.subr.mxu0 0.0
        %2204 = vmatpush1.msra.mxu0 0.0
        %2205 = vmatprep.subr.mxu0 0.0
        %2206 = vmatpush1.msra.mxu0 0.0
        %2207 = vmatprep.subr.mxu0 0.0
        %2208 = vmatpush1.msra.mxu0 0.0
        %2209 = vmatprep.subr.mxu0 0.0
        %2210 = vmatpush1.msra.mxu0 0.0
        %2211 = vmatprep.subr.mxu0 0.0
        %2212 = vmatpush1.msra.mxu0 0.0
        %2213 = vmatprep.subr.mxu0 0.0
        %2214 = vmatpush1.msra.mxu0 0.0
        %2215 = vmatprep.subr.mxu0 0.0
        %2216 = vmatpush1.msra.mxu0 0.0
        %2217 = vmatprep.subr.mxu0 0.0
        %2218 = vmatpush1.msra.mxu0 0.0
        %2219 = vmatprep.subr.mxu0 0.0
        %2220 = vmatpush1.msra.mxu0 0.0
        %2221 = vmatprep.subr.mxu0 %v2187
        %2222 = vmatpush1.msra.mxu0 %v2185
        %2223 = vmatprep.subr.mxu0 0.0
        %2224 = vmatpush2.msra.mxu0 0.0
        %2225 = vmatprep.subr.mxu0 0.0
        %2226 = vmatpush2.msra.mxu0 0.0
        %2227 = vmatprep.subr.mxu0 0.0
        %2228 = vmatpush2.msra.mxu0 0.0
        %2229 = vmatprep.subr.mxu0 0.0
        %2230 = vmatpush2.msra.mxu0 0.0
        %2231 = vmatprep.subr.mxu0 0.0
        %2232 = vmatpush2.msra.mxu0 0.0
        %2233 = vmatprep.subr.mxu0 0.0
        %2234 = vmatpush2.msra.mxu0 0.0
        %2235 = vmatprep.subr.mxu0 0.0
        %2236 = vmatpush2.msra.mxu0 0.0
        %2237 = vmatprep.subr.mxu0 0.0
        %2238 = vmatpush2.msra.mxu0 0.0
        %2239 = vmatprep.subr.mxu0 0.0
        %2240 = vmatpush2.msra.mxu0 0.0
        %2241 = vmatprep.subr.mxu0 0.0
        %2242 = vmatpush2.msra.mxu0 0.0
        %2243 = vmatprep.subr.mxu0 0.0
        %2244 = vmatpush2.msra.mxu0 0.0
        %2245 = vmatprep.subr.mxu0 0.0
        %2246 = vmatpush2.msra.mxu0 0.0
        %2247 = vmatprep.subr.mxu0 0.0
        %2248 = vmatpush2.msra.mxu0 0.0
        %2249 = vmatprep.subr.mxu0 0.0
        %2250 = vmatpush2.msra.mxu0 0.0
        %2251 = vmatprep.subr.mxu0 0.0
        %2252 = vmatpush2.msra.mxu0 0.0
        %2253 = vmatprep.subr.mxu0 0.0
        %2254 = vmatpush2.msra.mxu0 0.0
        %2255 = vmatprep.mubr.f32.mxu0 0.0
        %2256 = vmatmul.mubr.f32.gmra.mxu0 %v2183
        %v2257 = vpop.f32.mrf.mxu0
        %v2258 = vadd.f32 0.0, %v2257
        %v2259 = vpop.f32.mrf.mxu0
        %v2260 = vadd.f32 0.0, %v2259
        %2261 = vdwg.mxu0
        %2262 = vmatprep.subr.mxu0 0.0
        %2263 = vmatpush1.msra.mxu0 0.0
        %2264 = vmatprep.subr.mxu0 0.0
        %2265 = vmatpush1.msra.mxu0 0.0
        %2266 = vmatprep.subr.mxu0 0.0
        %2267 = vmatpush1.msra.mxu0 0.0
        %2268 = vmatprep.subr.mxu0 0.0
        %2269 = vmatpush1.msra.mxu0 0.0
        %2270 = vmatprep.subr.mxu0 0.0
        %2271 = vmatpush1.msra.mxu0 0.0
        %2272 = vmatprep.subr.mxu0 0.0
        %2273 = vmatpush1.msra.mxu0 0.0
        %2274 = vmatprep.subr.mxu0 0.0
        %2275 = vmatpush1.msra.mxu0 0.0
        %2276 = vmatprep.subr.mxu0 0.0
        %2277 = vmatpush1.msra.mxu0 0.0
        %2278 = vmatprep.subr.mxu0 0.0
        %2279 = vmatpush1.msra.mxu0 0.0
        %2280 = vmatprep.subr.mxu0 0.0
        %2281 = vmatpush1.msra.mxu0 0.0
        %2282 = vmatprep.subr.mxu0 0.0
        %2283 = vmatpush1.msra.mxu0 0.0
        %2284 = vmatprep.subr.mxu0 0.0
        %2285 = vmatpush1.msra.mxu0 0.0
        %2286 = vmatprep.subr.mxu0 0.0
        %2287 = vmatpush1.msra.mxu0 0.0
        %2288 = vmatprep.subr.mxu0 0.0
        %2289 = vmatpush1.msra.mxu0 0.0
        %2290 = vmatprep.subr.mxu0 0.0
        %2291 = vmatpush1.msra.mxu0 0.0
        %2292 = vmatprep.subr.mxu0 0.0
        %2293 = vmatpush1.msra.mxu0 %v2189
        %2294 = vmatprep.subr.mxu0 0.0
        %2295 = vmatpush2.msra.mxu0 0.0
        %2296 = vmatprep.subr.mxu0 0.0
        %2297 = vmatpush2.msra.mxu0 0.0
        %2298 = vmatprep.subr.mxu0 0.0
        %2299 = vmatpush2.msra.mxu0 0.0
        %2300 = vmatprep.subr.mxu0 0.0
        %2301 = vmatpush2.msra.mxu0 0.0
        %2302 = vmatprep.subr.mxu0 0.0
        %2303 = vmatpush2.msra.mxu0 0.0
        %2304 = vmatprep.subr.mxu0 0.0
        %2305 = vmatpush2.msra.mxu0 0.0
        %2306 = vmatprep.subr.mxu0 0.0
        %2307 = vmatpush2.msra.mxu0 0.0
        %2308 = vmatprep.subr.mxu0 0.0
        %2309 = vmatpush2.msra.mxu0 0.0
        %2310 = vmatprep.subr.mxu0 0.0
        %2311 = vmatpush2.msra.mxu0 0.0
        %2312 = vmatprep.subr.mxu0 0.0
        %2313 = vmatpush2.msra.mxu0 0.0
        %2314 = vmatprep.subr.mxu0 0.0
        %2315 = vmatpush2.msra.mxu0 0.0
        %2316 = vmatprep.subr.mxu0 0.0
        %2317 = vmatpush2.msra.mxu0 0.0
        %2318 = vmatprep.subr.mxu0 0.0
        %2319 = vmatpush2.msra.mxu0 0.0
        %2320 = vmatprep.subr.mxu0 0.0
        %2321 = vmatpush2.msra.mxu0 0.0
        %2322 = vmatprep.subr.mxu0 0.0
        %2323 = vmatpush2.msra.mxu0 0.0
        %2324 = vmatprep.subr.mxu0 0.0
        %2325 = vmatpush2.msra.mxu0 0.0
        %2326 = vmatprep.mubr.f32.mxu0 0.0
        %2327 = vmatmul.mubr.f32.gmra.mxu0 %v2183
        %v2328 = vpop.f32.mrf.mxu0
        %v2329 = vadd.f32 0.0, %v2328
        %v2330 = vpop.f32.mrf.mxu0
        %2331 = vdwg.mxu0
        %v2332 = vadd.f32 %v2098, %v2258
        %v2333 = vadd.f32 %v2100, %v2260
        %v2334 = vadd.f32 %v2169, %v2329
        %s2335 = scalar_lea.vmem %s3, 6
        %v2336 = vld [vmem:[%s2335] sm:$0x3]
        %2337 = vrot.lane.b32.xlu0 %v1853, 110
        %v2338 = vpop.permute.xlu0 %2337
        %2339 = vrot.lane.b32.xlu0 %v1854, 110
        %v2340 = vpop.permute.xlu0 %2339
        %2341 = vrot.lane.b32.xlu0 %v1855, 110
        %v2342 = vpop.permute.xlu0 %2341
        %v2343 = vsel %vm814, %v2338, %v2340
        %v2344 = vsel %vm814, %v2340, %v2342
        %v2346 = vsel %vm1870, %v2336, 0
        %v2348 = vsel %vm1874, %v2343, 0
        %v2350 = vsel %vm1874, %v2344, 0
        %v2352 = vsel %vm1874, %v2342, 0
        %2354 = vmatprep.subr.mxu0 0.0
        %2355 = vmatpush1.msra.mxu0 0.0
        %2356 = vmatprep.subr.mxu0 0.0
        %2357 = vmatpush1.msra.mxu0 0.0
        %2358 = vmatprep.subr.mxu0 0.0
        %2359 = vmatpush1.msra.mxu0 0.0
        %2360 = vmatprep.subr.mxu0 0.0
        %2361 = vmatpush1.msra.mxu0 0.0
        %2362 = vmatprep.subr.mxu0 0.0
        %2363 = vmatpush1.msra.mxu0 0.0
        %2364 = vmatprep.subr.mxu0 0.0
        %2365 = vmatpush1.msra.mxu0 0.0
        %2366 = vmatprep.subr.mxu0 0.0
        %2367 = vmatpush1.msra.mxu0 0.0
        %2368 = vmatprep.subr.mxu0 0.0
        %2369 = vmatpush1.msra.mxu0 0.0
        %2370 = vmatprep.subr.mxu0 0.0
        %2371 = vmatpush1.msra.mxu0 0.0
        %2372 = vmatprep.subr.mxu0 0.0
        %2373 = vmatpush1.msra.mxu0 0.0
        %2374 = vmatprep.subr.mxu0 0.0
        %2375 = vmatpush1.msra.mxu0 0.0
        %2376 = vmatprep.subr.mxu0 0.0
        %2377 = vmatpush1.msra.mxu0 0.0
        %2378 = vmatprep.subr.mxu0 0.0
        %2379 = vmatpush1.msra.mxu0 0.0
        %2380 = vmatprep.subr.mxu0 0.0
        %2381 = vmatpush1.msra.mxu0 0.0
        %2382 = vmatprep.subr.mxu0 0.0
        %2383 = vmatpush1.msra.mxu0 0.0
        %2384 = vmatprep.subr.mxu0 %v2350
        %2385 = vmatpush1.msra.mxu0 %v2348
        %2386 = vmatprep.subr.mxu0 0.0
        %2387 = vmatpush2.msra.mxu0 0.0
        %2388 = vmatprep.subr.mxu0 0.0
        %2389 = vmatpush2.msra.mxu0 0.0
        %2390 = vmatprep.subr.mxu0 0.0
        %2391 = vmatpush2.msra.mxu0 0.0
        %2392 = vmatprep.subr.mxu0 0.0
        %2393 = vmatpush2.msra.mxu0 0.0
        %2394 = vmatprep.subr.mxu0 0.0
        %2395 = vmatpush2.msra.mxu0 0.0
        %2396 = vmatprep.subr.mxu0 0.0
        %2397 = vmatpush2.msra.mxu0 0.0
        %2398 = vmatprep.subr.mxu0 0.0
        %2399 = vmatpush2.msra.mxu0 0.0
        %2400 = vmatprep.subr.mxu0 0.0
        %2401 = vmatpush2.msra.mxu0 0.0
        %2402 = vmatprep.subr.mxu0 0.0
        %2403 = vmatpush2.msra.mxu0 0.0
        %2404 = vmatprep.subr.mxu0 0.0
        %2405 = vmatpush2.msra.mxu0 0.0
        %2406 = vmatprep.subr.mxu0 0.0
        %2407 = vmatpush2.msra.mxu0 0.0
        %2408 = vmatprep.subr.mxu0 0.0
        %2409 = vmatpush2.msra.mxu0 0.0
        %2410 = vmatprep.subr.mxu0 0.0
        %2411 = vmatpush2.msra.mxu0 0.0
        %2412 = vmatprep.subr.mxu0 0.0
        %2413 = vmatpush2.msra.mxu0 0.0
        %2414 = vmatprep.subr.mxu0 0.0
        %2415 = vmatpush2.msra.mxu0 0.0
        %2416 = vmatprep.subr.mxu0 0.0
        %2417 = vmatpush2.msra.mxu0 0.0
        %2418 = vmatprep.mubr.f32.mxu0 0.0
        %2419 = vmatmul.mubr.f32.gmra.mxu0 %v2346
        %v2420 = vpop.f32.mrf.mxu0
        %v2421 = vadd.f32 0.0, %v2420
        %v2422 = vpop.f32.mrf.mxu0
        %v2423 = vadd.f32 0.0, %v2422
        %2424 = vdwg.mxu0
        %2425 = vmatprep.subr.mxu0 0.0
        %2426 = vmatpush1.msra.mxu0 0.0
        %2427 = vmatprep.subr.mxu0 0.0
        %2428 = vmatpush1.msra.mxu0 0.0
        %2429 = vmatprep.subr.mxu0 0.0
        %2430 = vmatpush1.msra.mxu0 0.0
        %2431 = vmatprep.subr.mxu0 0.0
        %2432 = vmatpush1.msra.mxu0 0.0
        %2433 = vmatprep.subr.mxu0 0.0
        %2434 = vmatpush1.msra.mxu0 0.0
        %2435 = vmatprep.subr.mxu0 0.0
        %2436 = vmatpush1.msra.mxu0 0.0
        %2437 = vmatprep.subr.mxu0 0.0
        %2438 = vmatpush1.msra.mxu0 0.0
        %2439 = vmatprep.subr.mxu0 0.0
        %2440 = vmatpush1.msra.mxu0 0.0
        %2441 = vmatprep.subr.mxu0 0.0
        %2442 = vmatpush1.msra.mxu0 0.0
        %2443 = vmatprep.subr.mxu0 0.0
        %2444 = vmatpush1.msra.mxu0 0.0
        %2445 = vmatprep.subr.mxu0 0.0
        %2446 = vmatpush1.msra.mxu0 0.0
        %2447 = vmatprep.subr.mxu0 0.0
        %2448 = vmatpush1.msra.mxu0 0.0
        %2449 = vmatprep.subr.mxu0 0.0
        %2450 = vmatpush1.msra.mxu0 0.0
        %2451 = vmatprep.subr.mxu0 0.0
        %2452 = vmatpush1.msra.mxu0 0.0
        %2453 = vmatprep.subr.mxu0 0.0
        %2454 = vmatpush1.msra.mxu0 0.0
        %2455 = vmatprep.subr.mxu0 0.0
        %2456 = vmatpush1.msra.mxu0 %v2352
        %2457 = vmatprep.subr.mxu0 0.0
        %2458 = vmatpush2.msra.mxu0 0.0
        %2459 = vmatprep.subr.mxu0 0.0
        %2460 = vmatpush2.msra.mxu0 0.0
        %2461 = vmatprep.subr.mxu0 0.0
        %2462 = vmatpush2.msra.mxu0 0.0
        %2463 = vmatprep.subr.mxu0 0.0
        %2464 = vmatpush2.msra.mxu0 0.0
        %2465 = vmatprep.subr.mxu0 0.0
        %2466 = vmatpush2.msra.mxu0 0.0
        %2467 = vmatprep.subr.mxu0 0.0
        %2468 = vmatpush2.msra.mxu0 0.0
        %2469 = vmatprep.subr.mxu0 0.0
        %2470 = vmatpush2.msra.mxu0 0.0
        %2471 = vmatprep.subr.mxu0 0.0
        %2472 = vmatpush2.msra.mxu0 0.0
        %2473 = vmatprep.subr.mxu0 0.0
        %2474 = vmatpush2.msra.mxu0 0.0
        %2475 = vmatprep.subr.mxu0 0.0
        %2476 = vmatpush2.msra.mxu0 0.0
        %2477 = vmatprep.subr.mxu0 0.0
        %2478 = vmatpush2.msra.mxu0 0.0
        %2479 = vmatprep.subr.mxu0 0.0
        %2480 = vmatpush2.msra.mxu0 0.0
        %2481 = vmatprep.subr.mxu0 0.0
        %2482 = vmatpush2.msra.mxu0 0.0
        %2483 = vmatprep.subr.mxu0 0.0
        %2484 = vmatpush2.msra.mxu0 0.0
        %2485 = vmatprep.subr.mxu0 0.0
        %2486 = vmatpush2.msra.mxu0 0.0
        %2487 = vmatprep.subr.mxu0 0.0
        %2488 = vmatpush2.msra.mxu0 0.0
        %2489 = vmatprep.mubr.f32.mxu0 0.0
        %2490 = vmatmul.mubr.f32.gmra.mxu0 %v2346
        %v2491 = vpop.f32.mrf.mxu0
        %v2492 = vadd.f32 0.0, %v2491
        %v2493 = vpop.f32.mrf.mxu0
        %2494 = vdwg.mxu0
        %v2495 = vadd.f32 %v2332, %v2421
        %v2496 = vadd.f32 %v2333, %v2423
        %v2497 = vadd.f32 %v2334, %v2492
        %s2498 = scalar_lea.vmem %s3, 8
        %v2499 = vld [vmem:[%s2498] sm:$0x3]
        %2500 = vrot.lane.b32.xlu0 %v1853, 109
        %v2501 = vpop.permute.xlu0 %2500
        %2502 = vrot.lane.b32.xlu0 %v1854, 109
        %v2503 = vpop.permute.xlu0 %2502
        %2504 = vrot.lane.b32.xlu0 %v1855, 109
        %v2505 = vpop.permute.xlu0 %2504
        %v2506 = vsel %vm983, %v2501, %v2503
        %v2507 = vsel %vm983, %v2503, %v2505
        %v2509 = vsel %vm1870, %v2499, 0
        %v2511 = vsel %vm1874, %v2506, 0
        %v2513 = vsel %vm1874, %v2507, 0
        %v2515 = vsel %vm1874, %v2505, 0
        %2517 = vmatprep.subr.mxu0 0.0
        %2518 = vmatpush1.msra.mxu0 0.0
        %2519 = vmatprep.subr.mxu0 0.0
        %2520 = vmatpush1.msra.mxu0 0.0
        %2521 = vmatprep.subr.mxu0 0.0
        %2522 = vmatpush1.msra.mxu0 0.0
        %2523 = vmatprep.subr.mxu0 0.0
        %2524 = vmatpush1.msra.mxu0 0.0
        %2525 = vmatprep.subr.mxu0 0.0
        %2526 = vmatpush1.msra.mxu0 0.0
        %2527 = vmatprep.subr.mxu0 0.0
        %2528 = vmatpush1.msra.mxu0 0.0
        %2529 = vmatprep.subr.mxu0 0.0
        %2530 = vmatpush1.msra.mxu0 0.0
        %2531 = vmatprep.subr.mxu0 0.0
        %2532 = vmatpush1.msra.mxu0 0.0
        %2533 = vmatprep.subr.mxu0 0.0
        %2534 = vmatpush1.msra.mxu0 0.0
        %2535 = vmatprep.subr.mxu0 0.0
        %2536 = vmatpush1.msra.mxu0 0.0
        %2537 = vmatprep.subr.mxu0 0.0
        %2538 = vmatpush1.msra.mxu0 0.0
        %2539 = vmatprep.subr.mxu0 0.0
        %2540 = vmatpush1.msra.mxu0 0.0
        %2541 = vmatprep.subr.mxu0 0.0
        %2542 = vmatpush1.msra.mxu0 0.0
        %2543 = vmatprep.subr.mxu0 0.0
        %2544 = vmatpush1.msra.mxu0 0.0
        %2545 = vmatprep.subr.mxu0 0.0
        %2546 = vmatpush1.msra.mxu0 0.0
        %2547 = vmatprep.subr.mxu0 %v2513
        %2548 = vmatpush1.msra.mxu0 %v2511
        %2549 = vmatprep.subr.mxu0 0.0
        %2550 = vmatpush2.msra.mxu0 0.0
        %2551 = vmatprep.subr.mxu0 0.0
        %2552 = vmatpush2.msra.mxu0 0.0
        %2553 = vmatprep.subr.mxu0 0.0
        %2554 = vmatpush2.msra.mxu0 0.0
        %2555 = vmatprep.subr.mxu0 0.0
        %2556 = vmatpush2.msra.mxu0 0.0
        %2557 = vmatprep.subr.mxu0 0.0
        %2558 = vmatpush2.msra.mxu0 0.0
        %2559 = vmatprep.subr.mxu0 0.0
        %2560 = vmatpush2.msra.mxu0 0.0
        %2561 = vmatprep.subr.mxu0 0.0
        %2562 = vmatpush2.msra.mxu0 0.0
        %2563 = vmatprep.subr.mxu0 0.0
        %2564 = vmatpush2.msra.mxu0 0.0
        %2565 = vmatprep.subr.mxu0 0.0
        %2566 = vmatpush2.msra.mxu0 0.0
        %2567 = vmatprep.subr.mxu0 0.0
        %2568 = vmatpush2.msra.mxu0 0.0
        %2569 = vmatprep.subr.mxu0 0.0
        %2570 = vmatpush2.msra.mxu0 0.0
        %2571 = vmatprep.subr.mxu0 0.0
        %2572 = vmatpush2.msra.mxu0 0.0
        %2573 = vmatprep.subr.mxu0 0.0
        %2574 = vmatpush2.msra.mxu0 0.0
        %2575 = vmatprep.subr.mxu0 0.0
        %2576 = vmatpush2.msra.mxu0 0.0
        %2577 = vmatprep.subr.mxu0 0.0
        %2578 = vmatpush2.msra.mxu0 0.0
        %2579 = vmatprep.subr.mxu0 0.0
        %2580 = vmatpush2.msra.mxu0 0.0
        %2581 = vmatprep.mubr.f32.mxu0 0.0
        %2582 = vmatmul.mubr.f32.gmra.mxu0 %v2509
        %v2583 = vpop.f32.mrf.mxu0
        %v2584 = vadd.f32 0.0, %v2583
        %v2585 = vpop.f32.mrf.mxu0
        %v2586 = vadd.f32 0.0, %v2585
        %2587 = vdwg.mxu0
        %2588 = vmatprep.subr.mxu0 0.0
        %2589 = vmatpush1.msra.mxu0 0.0
        %2590 = vmatprep.subr.mxu0 0.0
        %2591 = vmatpush1.msra.mxu0 0.0
        %2592 = vmatprep.subr.mxu0 0.0
        %2593 = vmatpush1.msra.mxu0 0.0
        %2594 = vmatprep.subr.mxu0 0.0
        %2595 = vmatpush1.msra.mxu0 0.0
        %2596 = vmatprep.subr.mxu0 0.0
        %2597 = vmatpush1.msra.mxu0 0.0
        %2598 = vmatprep.subr.mxu0 0.0
        %2599 = vmatpush1.msra.mxu0 0.0
        %2600 = vmatprep.subr.mxu0 0.0
        %2601 = vmatpush1.msra.mxu0 0.0
        %2602 = vmatprep.subr.mxu0 0.0
        %2603 = vmatpush1.msra.mxu0 0.0
        %2604 = vmatprep.subr.mxu0 0.0
        %2605 = vmatpush1.msra.mxu0 0.0
        %2606 = vmatprep.subr.mxu0 0.0
        %2607 = vmatpush1.msra.mxu0 0.0
        %2608 = vmatprep.subr.mxu0 0.0
        %2609 = vmatpush1.msra.mxu0 0.0
        %2610 = vmatprep.subr.mxu0 0.0
        %2611 = vmatpush1.msra.mxu0 0.0
        %2612 = vmatprep.subr.mxu0 0.0
        %2613 = vmatpush1.msra.mxu0 0.0
        %2614 = vmatprep.subr.mxu0 0.0
        %2615 = vmatpush1.msra.mxu0 0.0
        %2616 = vmatprep.subr.mxu0 0.0
        %2617 = vmatpush1.msra.mxu0 0.0
        %2618 = vmatprep.subr.mxu0 0.0
        %2619 = vmatpush1.msra.mxu0 %v2515
        %2620 = vmatprep.subr.mxu0 0.0
        %2621 = vmatpush2.msra.mxu0 0.0
        %2622 = vmatprep.subr.mxu0 0.0
        %2623 = vmatpush2.msra.mxu0 0.0
        %2624 = vmatprep.subr.mxu0 0.0
        %2625 = vmatpush2.msra.mxu0 0.0
        %2626 = vmatprep.subr.mxu0 0.0
        %2627 = vmatpush2.msra.mxu0 0.0
        %2628 = vmatprep.subr.mxu0 0.0
        %2629 = vmatpush2.msra.mxu0 0.0
        %2630 = vmatprep.subr.mxu0 0.0
        %2631 = vmatpush2.msra.mxu0 0.0
        %2632 = vmatprep.subr.mxu0 0.0
        %2633 = vmatpush2.msra.mxu0 0.0
        %2634 = vmatprep.subr.mxu0 0.0
        %2635 = vmatpush2.msra.mxu0 0.0
        %2636 = vmatprep.subr.mxu0 0.0
        %2637 = vmatpush2.msra.mxu0 0.0
        %2638 = vmatprep.subr.mxu0 0.0
        %2639 = vmatpush2.msra.mxu0 0.0
        %2640 = vmatprep.subr.mxu0 0.0
        %2641 = vmatpush2.msra.mxu0 0.0
        %2642 = vmatprep.subr.mxu0 0.0
        %2643 = vmatpush2.msra.mxu0 0.0
        %2644 = vmatprep.subr.mxu0 0.0
        %2645 = vmatpush2.msra.mxu0 0.0
        %2646 = vmatprep.subr.mxu0 0.0
        %2647 = vmatpush2.msra.mxu0 0.0
        %2648 = vmatprep.subr.mxu0 0.0
        %2649 = vmatpush2.msra.mxu0 0.0
        %2650 = vmatprep.subr.mxu0 0.0
        %2651 = vmatpush2.msra.mxu0 0.0
        %2652 = vmatprep.mubr.f32.mxu0 0.0
        %2653 = vmatmul.mubr.f32.gmra.mxu0 %v2509
        %v2654 = vpop.f32.mrf.mxu0
        %v2655 = vadd.f32 0.0, %v2654
        %v2656 = vpop.f32.mrf.mxu0
        %2657 = vdwg.mxu0
        %v2658 = vadd.f32 %v2495, %v2584
        %v2659 = vadd.f32 %v2496, %v2586
        %v2660 = vadd.f32 %v2497, %v2655
        %s2661 = scalar_lea.vmem %s3, 10
        %v2662 = vld [vmem:[%s2661] sm:$0x3]
        %2663 = vrot.lane.b32.xlu0 %v1853, 108
        %v2664 = vpop.permute.xlu0 %2663
        %2665 = vrot.lane.b32.xlu0 %v1854, 108
        %v2666 = vpop.permute.xlu0 %2665
        %2667 = vrot.lane.b32.xlu0 %v1855, 108
        %v2668 = vpop.permute.xlu0 %2667
        %v2669 = vsel %vm1152, %v2664, %v2666
        %v2670 = vsel %vm1152, %v2666, %v2668
        %v2672 = vsel %vm1870, %v2662, 0
        %v2674 = vsel %vm1874, %v2669, 0
        %v2676 = vsel %vm1874, %v2670, 0
        %v2678 = vsel %vm1874, %v2668, 0
        %2680 = vmatprep.subr.mxu0 0.0
        %2681 = vmatpush1.msra.mxu0 0.0
        %2682 = vmatprep.subr.mxu0 0.0
        %2683 = vmatpush1.msra.mxu0 0.0
        %2684 = vmatprep.subr.mxu0 0.0
        %2685 = vmatpush1.msra.mxu0 0.0
        %2686 = vmatprep.subr.mxu0 0.0
        %2687 = vmatpush1.msra.mxu0 0.0
        %2688 = vmatprep.subr.mxu0 0.0
        %2689 = vmatpush1.msra.mxu0 0.0
        %2690 = vmatprep.subr.mxu0 0.0
        %2691 = vmatpush1.msra.mxu0 0.0
        %2692 = vmatprep.subr.mxu0 0.0
        %2693 = vmatpush1.msra.mxu0 0.0
        %2694 = vmatprep.subr.mxu0 0.0
        %2695 = vmatpush1.msra.mxu0 0.0
        %2696 = vmatprep.subr.mxu0 0.0
        %2697 = vmatpush1.msra.mxu0 0.0
        %2698 = vmatprep.subr.mxu0 0.0
        %2699 = vmatpush1.msra.mxu0 0.0
        %2700 = vmatprep.subr.mxu0 0.0
        %2701 = vmatpush1.msra.mxu0 0.0
        %2702 = vmatprep.subr.mxu0 0.0
        %2703 = vmatpush1.msra.mxu0 0.0
        %2704 = vmatprep.subr.mxu0 0.0
        %2705 = vmatpush1.msra.mxu0 0.0
        %2706 = vmatprep.subr.mxu0 0.0
        %2707 = vmatpush1.msra.mxu0 0.0
        %2708 = vmatprep.subr.mxu0 0.0
        %2709 = vmatpush1.msra.mxu0 0.0
        %2710 = vmatprep.subr.mxu0 %v2676
        %2711 = vmatpush1.msra.mxu0 %v2674
        %2712 = vmatprep.subr.mxu0 0.0
        %2713 = vmatpush2.msra.mxu0 0.0
        %2714 = vmatprep.subr.mxu0 0.0
        %2715 = vmatpush2.msra.mxu0 0.0
        %2716 = vmatprep.subr.mxu0 0.0
        %2717 = vmatpush2.msra.mxu0 0.0
        %2718 = vmatprep.subr.mxu0 0.0
        %2719 = vmatpush2.msra.mxu0 0.0
        %2720 = vmatprep.subr.mxu0 0.0
        %2721 = vmatpush2.msra.mxu0 0.0
        %2722 = vmatprep.subr.mxu0 0.0
        %2723 = vmatpush2.msra.mxu0 0.0
        %2724 = vmatprep.subr.mxu0 0.0
        %2725 = vmatpush2.msra.mxu0 0.0
        %2726 = vmatprep.subr.mxu0 0.0
        %2727 = vmatpush2.msra.mxu0 0.0
        %2728 = vmatprep.subr.mxu0 0.0
        %2729 = vmatpush2.msra.mxu0 0.0
        %2730 = vmatprep.subr.mxu0 0.0
        %2731 = vmatpush2.msra.mxu0 0.0
        %2732 = vmatprep.subr.mxu0 0.0
        %2733 = vmatpush2.msra.mxu0 0.0
        %2734 = vmatprep.subr.mxu0 0.0
        %2735 = vmatpush2.msra.mxu0 0.0
        %2736 = vmatprep.subr.mxu0 0.0
        %2737 = vmatpush2.msra.mxu0 0.0
        %2738 = vmatprep.subr.mxu0 0.0
        %2739 = vmatpush2.msra.mxu0 0.0
        %2740 = vmatprep.subr.mxu0 0.0
        %2741 = vmatpush2.msra.mxu0 0.0
        %2742 = vmatprep.subr.mxu0 0.0
        %2743 = vmatpush2.msra.mxu0 0.0
        %2744 = vmatprep.mubr.f32.mxu0 0.0
        %2745 = vmatmul.mubr.f32.gmra.mxu0 %v2672
        %v2746 = vpop.f32.mrf.mxu0
        %v2747 = vadd.f32 0.0, %v2746
        %v2748 = vpop.f32.mrf.mxu0
        %v2749 = vadd.f32 0.0, %v2748
        %2750 = vdwg.mxu0
        %2751 = vmatprep.subr.mxu0 0.0
        %2752 = vmatpush1.msra.mxu0 0.0
        %2753 = vmatprep.subr.mxu0 0.0
        %2754 = vmatpush1.msra.mxu0 0.0
        %2755 = vmatprep.subr.mxu0 0.0
        %2756 = vmatpush1.msra.mxu0 0.0
        %2757 = vmatprep.subr.mxu0 0.0
        %2758 = vmatpush1.msra.mxu0 0.0
        %2759 = vmatprep.subr.mxu0 0.0
        %2760 = vmatpush1.msra.mxu0 0.0
        %2761 = vmatprep.subr.mxu0 0.0
        %2762 = vmatpush1.msra.mxu0 0.0
        %2763 = vmatprep.subr.mxu0 0.0
        %2764 = vmatpush1.msra.mxu0 0.0
        %2765 = vmatprep.subr.mxu0 0.0
        %2766 = vmatpush1.msra.mxu0 0.0
        %2767 = vmatprep.subr.mxu0 0.0
        %2768 = vmatpush1.msra.mxu0 0.0
        %2769 = vmatprep.subr.mxu0 0.0
        %2770 = vmatpush1.msra.mxu0 0.0
        %2771 = vmatprep.subr.mxu0 0.0
        %2772 = vmatpush1.msra.mxu0 0.0
        %2773 = vmatprep.subr.mxu0 0.0
        %2774 = vmatpush1.msra.mxu0 0.0
        %2775 = vmatprep.subr.mxu0 0.0
        %2776 = vmatpush1.msra.mxu0 0.0
        %2777 = vmatprep.subr.mxu0 0.0
        %2778 = vmatpush1.msra.mxu0 0.0
        %2779 = vmatprep.subr.mxu0 0.0
        %2780 = vmatpush1.msra.mxu0 0.0
        %2781 = vmatprep.subr.mxu0 0.0
        %2782 = vmatpush1.msra.mxu0 %v2678
        %2783 = vmatprep.subr.mxu0 0.0
        %2784 = vmatpush2.msra.mxu0 0.0
        %2785 = vmatprep.subr.mxu0 0.0
        %2786 = vmatpush2.msra.mxu0 0.0
        %2787 = vmatprep.subr.mxu0 0.0
        %2788 = vmatpush2.msra.mxu0 0.0
        %2789 = vmatprep.subr.mxu0 0.0
        %2790 = vmatpush2.msra.mxu0 0.0
        %2791 = vmatprep.subr.mxu0 0.0
        %2792 = vmatpush2.msra.mxu0 0.0
        %2793 = vmatprep.subr.mxu0 0.0
        %2794 = vmatpush2.msra.mxu0 0.0
        %2795 = vmatprep.subr.mxu0 0.0
        %2796 = vmatpush2.msra.mxu0 0.0
        %2797 = vmatprep.subr.mxu0 0.0
        %2798 = vmatpush2.msra.mxu0 0.0
        %2799 = vmatprep.subr.mxu0 0.0
        %2800 = vmatpush2.msra.mxu0 0.0
        %2801 = vmatprep.subr.mxu0 0.0
        %2802 = vmatpush2.msra.mxu0 0.0
        %2803 = vmatprep.subr.mxu0 0.0
        %2804 = vmatpush2.msra.mxu0 0.0
        %2805 = vmatprep.subr.mxu0 0.0
        %2806 = vmatpush2.msra.mxu0 0.0
        %2807 = vmatprep.subr.mxu0 0.0
        %2808 = vmatpush2.msra.mxu0 0.0
        %2809 = vmatprep.subr.mxu0 0.0
        %2810 = vmatpush2.msra.mxu0 0.0
        %2811 = vmatprep.subr.mxu0 0.0
        %2812 = vmatpush2.msra.mxu0 0.0
        %2813 = vmatprep.subr.mxu0 0.0
        %2814 = vmatpush2.msra.mxu0 0.0
        %2815 = vmatprep.mubr.f32.mxu0 0.0
        %2816 = vmatmul.mubr.f32.gmra.mxu0 %v2672
        %v2817 = vpop.f32.mrf.mxu0
        %v2818 = vadd.f32 0.0, %v2817
        %v2819 = vpop.f32.mrf.mxu0
        %2820 = vdwg.mxu0
        %v2821 = vadd.f32 %v2658, %v2747
        %v2822 = vadd.f32 %v2659, %v2749
        %v2823 = vadd.f32 %v2660, %v2818
        %s2824 = scalar_lea.vmem %s3, 12
        %v2825 = vld [vmem:[%s2824] sm:$0x3]
        %2826 = vrot.lane.b32.xlu0 %v1853, 92
        %v2827 = vpop.permute.xlu0 %2826
        %2828 = vrot.lane.b32.xlu0 %v1854, 92
        %v2829 = vpop.permute.xlu0 %2828
        %2830 = vrot.lane.b32.xlu0 %v1855, 92
        %v2831 = vpop.permute.xlu0 %2830
        %v2832 = vsel %vm1321, %v2827, %v2829
        %v2833 = vsel %vm1321, %v2829, %v2831
        %v2835 = vsel %vm1870, %v2825, 0
        %v2837 = vsel %vm1874, %v2832, 0
        %v2839 = vsel %vm1874, %v2833, 0
        %v2841 = vsel %vm1874, %v2831, 0
        %2843 = vmatprep.subr.mxu0 0.0
        %2844 = vmatpush1.msra.mxu0 0.0
        %2845 = vmatprep.subr.mxu0 0.0
        %2846 = vmatpush1.msra.mxu0 0.0
        %2847 = vmatprep.subr.mxu0 0.0
        %2848 = vmatpush1.msra.mxu0 0.0
        %2849 = vmatprep.subr.mxu0 0.0
        %2850 = vmatpush1.msra.mxu0 0.0
        %2851 = vmatprep.subr.mxu0 0.0
        %2852 = vmatpush1.msra.mxu0 0.0
        %2853 = vmatprep.subr.mxu0 0.0
        %2854 = vmatpush1.msra.mxu0 0.0
        %2855 = vmatprep.subr.mxu0 0.0
        %2856 = vmatpush1.msra.mxu0 0.0
        %2857 = vmatprep.subr.mxu0 0.0
        %2858 = vmatpush1.msra.mxu0 0.0
        %2859 = vmatprep.subr.mxu0 0.0
        %2860 = vmatpush1.msra.mxu0 0.0
        %2861 = vmatprep.subr.mxu0 0.0
        %2862 = vmatpush1.msra.mxu0 0.0
        %2863 = vmatprep.subr.mxu0 0.0
        %2864 = vmatpush1.msra.mxu0 0.0
        %2865 = vmatprep.subr.mxu0 0.0
        %2866 = vmatpush1.msra.mxu0 0.0
        %2867 = vmatprep.subr.mxu0 0.0
        %2868 = vmatpush1.msra.mxu0 0.0
        %2869 = vmatprep.subr.mxu0 0.0
        %2870 = vmatpush1.msra.mxu0 0.0
        %2871 = vmatprep.subr.mxu0 0.0
        %2872 = vmatpush1.msra.mxu0 0.0
        %2873 = vmatprep.subr.mxu0 %v2839
        %2874 = vmatpush1.msra.mxu0 %v2837
        %2875 = vmatprep.subr.mxu0 0.0
        %2876 = vmatpush2.msra.mxu0 0.0
        %2877 = vmatprep.subr.mxu0 0.0
        %2878 = vmatpush2.msra.mxu0 0.0
        %2879 = vmatprep.subr.mxu0 0.0
        %2880 = vmatpush2.msra.mxu0 0.0
        %2881 = vmatprep.subr.mxu0 0.0
        %2882 = vmatpush2.msra.mxu0 0.0
        %2883 = vmatprep.subr.mxu0 0.0
        %2884 = vmatpush2.msra.mxu0 0.0
        %2885 = vmatprep.subr.mxu0 0.0
        %2886 = vmatpush2.msra.mxu0 0.0
        %2887 = vmatprep.subr.mxu0 0.0
        %2888 = vmatpush2.msra.mxu0 0.0
        %2889 = vmatprep.subr.mxu0 0.0
        %2890 = vmatpush2.msra.mxu0 0.0
        %2891 = vmatprep.subr.mxu0 0.0
        %2892 = vmatpush2.msra.mxu0 0.0
        %2893 = vmatprep.subr.mxu0 0.0
        %2894 = vmatpush2.msra.mxu0 0.0
        %2895 = vmatprep.subr.mxu0 0.0
        %2896 = vmatpush2.msra.mxu0 0.0
        %2897 = vmatprep.subr.mxu0 0.0
        %2898 = vmatpush2.msra.mxu0 0.0
        %2899 = vmatprep.subr.mxu0 0.0
        %2900 = vmatpush2.msra.mxu0 0.0
        %2901 = vmatprep.subr.mxu0 0.0
        %2902 = vmatpush2.msra.mxu0 0.0
        %2903 = vmatprep.subr.mxu0 0.0
        %2904 = vmatpush2.msra.mxu0 0.0
        %2905 = vmatprep.subr.mxu0 0.0
        %2906 = vmatpush2.msra.mxu0 0.0
        %2907 = vmatprep.mubr.f32.mxu0 0.0
        %2908 = vmatmul.mubr.f32.gmra.mxu0 %v2835
        %v2909 = vpop.f32.mrf.mxu0
        %v2910 = vadd.f32 0.0, %v2909
        %v2911 = vpop.f32.mrf.mxu0
        %v2912 = vadd.f32 0.0, %v2911
        %2913 = vdwg.mxu0
        %2914 = vmatprep.subr.mxu0 0.0
        %2915 = vmatpush1.msra.mxu0 0.0
        %2916 = vmatprep.subr.mxu0 0.0
        %2917 = vmatpush1.msra.mxu0 0.0
        %2918 = vmatprep.subr.mxu0 0.0
        %2919 = vmatpush1.msra.mxu0 0.0
        %2920 = vmatprep.subr.mxu0 0.0
        %2921 = vmatpush1.msra.mxu0 0.0
        %2922 = vmatprep.subr.mxu0 0.0
        %2923 = vmatpush1.msra.mxu0 0.0
        %2924 = vmatprep.subr.mxu0 0.0
        %2925 = vmatpush1.msra.mxu0 0.0
        %2926 = vmatprep.subr.mxu0 0.0
        %2927 = vmatpush1.msra.mxu0 0.0
        %2928 = vmatprep.subr.mxu0 0.0
        %2929 = vmatpush1.msra.mxu0 0.0
        %2930 = vmatprep.subr.mxu0 0.0
        %2931 = vmatpush1.msra.mxu0 0.0
        %2932 = vmatprep.subr.mxu0 0.0
        %2933 = vmatpush1.msra.mxu0 0.0
        %2934 = vmatprep.subr.mxu0 0.0
        %2935 = vmatpush1.msra.mxu0 0.0
        %2936 = vmatprep.subr.mxu0 0.0
        %2937 = vmatpush1.msra.mxu0 0.0
        %2938 = vmatprep.subr.mxu0 0.0
        %2939 = vmatpush1.msra.mxu0 0.0
        %2940 = vmatprep.subr.mxu0 0.0
        %2941 = vmatpush1.msra.mxu0 0.0
        %2942 = vmatprep.subr.mxu0 0.0
        %2943 = vmatpush1.msra.mxu0 0.0
        %2944 = vmatprep.subr.mxu0 0.0
        %2945 = vmatpush1.msra.mxu0 %v2841
        %2946 = vmatprep.subr.mxu0 0.0
        %2947 = vmatpush2.msra.mxu0 0.0
        %2948 = vmatprep.subr.mxu0 0.0
        %2949 = vmatpush2.msra.mxu0 0.0
        %2950 = vmatprep.subr.mxu0 0.0
        %2951 = vmatpush2.msra.mxu0 0.0
        %2952 = vmatprep.subr.mxu0 0.0
        %2953 = vmatpush2.msra.mxu0 0.0
        %2954 = vmatprep.subr.mxu0 0.0
        %2955 = vmatpush2.msra.mxu0 0.0
        %2956 = vmatprep.subr.mxu0 0.0
        %2957 = vmatpush2.msra.mxu0 0.0
        %2958 = vmatprep.subr.mxu0 0.0
        %2959 = vmatpush2.msra.mxu0 0.0
        %2960 = vmatprep.subr.mxu0 0.0
        %2961 = vmatpush2.msra.mxu0 0.0
        %2962 = vmatprep.subr.mxu0 0.0
        %2963 = vmatpush2.msra.mxu0 0.0
        %2964 = vmatprep.subr.mxu0 0.0
        %2965 = vmatpush2.msra.mxu0 0.0
        %2966 = vmatprep.subr.mxu0 0.0
        %2967 = vmatpush2.msra.mxu0 0.0
        %2968 = vmatprep.subr.mxu0 0.0
        %2969 = vmatpush2.msra.mxu0 0.0
        %2970 = vmatprep.subr.mxu0 0.0
        %2971 = vmatpush2.msra.mxu0 0.0
        %2972 = vmatprep.subr.mxu0 0.0
        %2973 = vmatpush2.msra.mxu0 0.0
        %2974 = vmatprep.subr.mxu0 0.0
        %2975 = vmatpush2.msra.mxu0 0.0
        %2976 = vmatprep.subr.mxu0 0.0
        %2977 = vmatpush2.msra.mxu0 0.0
        %2978 = vmatprep.mubr.f32.mxu0 0.0
        %2979 = vmatmul.mubr.f32.gmra.mxu0 %v2835
        %v2980 = vpop.f32.mrf.mxu0
        %v2981 = vadd.f32 0.0, %v2980
        %v2982 = vpop.f32.mrf.mxu0
        %2983 = vdwg.mxu0
        %v2984 = vadd.f32 %v2821, %v2910
        %v2985 = vadd.f32 %v2822, %v2912
        %v2986 = vadd.f32 %v2823, %v2981
        %s2987 = scalar_lea.vmem %s3, 14
        %v2988 = vld [vmem:[%s2987] sm:$0x3]
        %2989 = vrot.lane.b32.xlu0 %v1853, 91
        %v2990 = vpop.permute.xlu0 %2989
        %2991 = vrot.lane.b32.xlu0 %v1854, 91
        %v2992 = vpop.permute.xlu0 %2991
        %2993 = vrot.lane.b32.xlu0 %v1855, 91
        %v2994 = vpop.permute.xlu0 %2993
        %v2995 = vsel %vm1490, %v2990, %v2992
        %v2996 = vsel %vm1490, %v2992, %v2994
        %v2998 = vsel %vm1870, %v2988, 0
        %v3000 = vsel %vm1874, %v2995, 0
        %v3002 = vsel %vm1874, %v2996, 0
        %v3004 = vsel %vm1874, %v2994, 0
        %3006 = vmatprep.subr.mxu0 0.0
        %3007 = vmatpush1.msra.mxu0 0.0
        %3008 = vmatprep.subr.mxu0 0.0
        %3009 = vmatpush1.msra.mxu0 0.0
        %3010 = vmatprep.subr.mxu0 0.0
        %3011 = vmatpush1.msra.mxu0 0.0
        %3012 = vmatprep.subr.mxu0 0.0
        %3013 = vmatpush1.msra.mxu0 0.0
        %3014 = vmatprep.subr.mxu0 0.0
        %3015 = vmatpush1.msra.mxu0 0.0
        %3016 = vmatprep.subr.mxu0 0.0
        %3017 = vmatpush1.msra.mxu0 0.0
        %3018 = vmatprep.subr.mxu0 0.0
        %3019 = vmatpush1.msra.mxu0 0.0
        %3020 = vmatprep.subr.mxu0 0.0
        %3021 = vmatpush1.msra.mxu0 0.0
        %3022 = vmatprep.subr.mxu0 0.0
        %3023 = vmatpush1.msra.mxu0 0.0
        %3024 = vmatprep.subr.mxu0 0.0
        %3025 = vmatpush1.msra.mxu0 0.0
        %3026 = vmatprep.subr.mxu0 0.0
        %3027 = vmatpush1.msra.mxu0 0.0
        %3028 = vmatprep.subr.mxu0 0.0
        %3029 = vmatpush1.msra.mxu0 0.0
        %3030 = vmatprep.subr.mxu0 0.0
        %3031 = vmatpush1.msra.mxu0 0.0
        %3032 = vmatprep.subr.mxu0 0.0
        %3033 = vmatpush1.msra.mxu0 0.0
        %3034 = vmatprep.subr.mxu0 0.0
        %3035 = vmatpush1.msra.mxu0 0.0
        %3036 = vmatprep.subr.mxu0 %v3002
        %3037 = vmatpush1.msra.mxu0 %v3000
        %3038 = vmatprep.subr.mxu0 0.0
        %3039 = vmatpush2.msra.mxu0 0.0
        %3040 = vmatprep.subr.mxu0 0.0
        %3041 = vmatpush2.msra.mxu0 0.0
        %3042 = vmatprep.subr.mxu0 0.0
        %3043 = vmatpush2.msra.mxu0 0.0
        %3044 = vmatprep.subr.mxu0 0.0
        %3045 = vmatpush2.msra.mxu0 0.0
        %3046 = vmatprep.subr.mxu0 0.0
        %3047 = vmatpush2.msra.mxu0 0.0
        %3048 = vmatprep.subr.mxu0 0.0
        %3049 = vmatpush2.msra.mxu0 0.0
        %3050 = vmatprep.subr.mxu0 0.0
        %3051 = vmatpush2.msra.mxu0 0.0
        %3052 = vmatprep.subr.mxu0 0.0
        %3053 = vmatpush2.msra.mxu0 0.0
        %3054 = vmatprep.subr.mxu0 0.0
        %3055 = vmatpush2.msra.mxu0 0.0
        %3056 = vmatprep.subr.mxu0 0.0
        %3057 = vmatpush2.msra.mxu0 0.0
        %3058 = vmatprep.subr.mxu0 0.0
        %3059 = vmatpush2.msra.mxu0 0.0
        %3060 = vmatprep.subr.mxu0 0.0
        %3061 = vmatpush2.msra.mxu0 0.0
        %3062 = vmatprep.subr.mxu0 0.0
        %3063 = vmatpush2.msra.mxu0 0.0
        %3064 = vmatprep.subr.mxu0 0.0
        %3065 = vmatpush2.msra.mxu0 0.0
        %3066 = vmatprep.subr.mxu0 0.0
        %3067 = vmatpush2.msra.mxu0 0.0
        %3068 = vmatprep.subr.mxu0 0.0
        %3069 = vmatpush2.msra.mxu0 0.0
        %3070 = vmatprep.mubr.f32.mxu0 0.0
        %3071 = vmatmul.mubr.f32.gmra.mxu0 %v2998
        %v3072 = vpop.f32.mrf.mxu0
        %v3073 = vadd.f32 0.0, %v3072
        %v3074 = vpop.f32.mrf.mxu0
        %v3075 = vadd.f32 0.0, %v3074
        %3076 = vdwg.mxu0
        %3077 = vmatprep.subr.mxu0 0.0
        %3078 = vmatpush1.msra.mxu0 0.0
        %3079 = vmatprep.subr.mxu0 0.0
        %3080 = vmatpush1.msra.mxu0 0.0
        %3081 = vmatprep.subr.mxu0 0.0
        %3082 = vmatpush1.msra.mxu0 0.0
        %3083 = vmatprep.subr.mxu0 0.0
        %3084 = vmatpush1.msra.mxu0 0.0
        %3085 = vmatprep.subr.mxu0 0.0
        %3086 = vmatpush1.msra.mxu0 0.0
        %3087 = vmatprep.subr.mxu0 0.0
        %3088 = vmatpush1.msra.mxu0 0.0
        %3089 = vmatprep.subr.mxu0 0.0
        %3090 = vmatpush1.msra.mxu0 0.0
        %3091 = vmatprep.subr.mxu0 0.0
        %3092 = vmatpush1.msra.mxu0 0.0
        %3093 = vmatprep.subr.mxu0 0.0
        %3094 = vmatpush1.msra.mxu0 0.0
        %3095 = vmatprep.subr.mxu0 0.0
        %3096 = vmatpush1.msra.mxu0 0.0
        %3097 = vmatprep.subr.mxu0 0.0
        %3098 = vmatpush1.msra.mxu0 0.0
        %3099 = vmatprep.subr.mxu0 0.0
        %3100 = vmatpush1.msra.mxu0 0.0
        %3101 = vmatprep.subr.mxu0 0.0
        %3102 = vmatpush1.msra.mxu0 0.0
        %3103 = vmatprep.subr.mxu0 0.0
        %3104 = vmatpush1.msra.mxu0 0.0
        %3105 = vmatprep.subr.mxu0 0.0
        %3106 = vmatpush1.msra.mxu0 0.0
        %3107 = vmatprep.subr.mxu0 0.0
        %3108 = vmatpush1.msra.mxu0 %v3004
        %3109 = vmatprep.subr.mxu0 0.0
        %3110 = vmatpush2.msra.mxu0 0.0
        %3111 = vmatprep.subr.mxu0 0.0
        %3112 = vmatpush2.msra.mxu0 0.0
        %3113 = vmatprep.subr.mxu0 0.0
        %3114 = vmatpush2.msra.mxu0 0.0
        %3115 = vmatprep.subr.mxu0 0.0
        %3116 = vmatpush2.msra.mxu0 0.0
        %3117 = vmatprep.subr.mxu0 0.0
        %3118 = vmatpush2.msra.mxu0 0.0
        %3119 = vmatprep.subr.mxu0 0.0
        %3120 = vmatpush2.msra.mxu0 0.0
        %3121 = vmatprep.subr.mxu0 0.0
        %3122 = vmatpush2.msra.mxu0 0.0
        %3123 = vmatprep.subr.mxu0 0.0
        %3124 = vmatpush2.msra.mxu0 0.0
        %3125 = vmatprep.subr.mxu0 0.0
        %3126 = vmatpush2.msra.mxu0 0.0
        %3127 = vmatprep.subr.mxu0 0.0
        %3128 = vmatpush2.msra.mxu0 0.0
        %3129 = vmatprep.subr.mxu0 0.0
        %3130 = vmatpush2.msra.mxu0 0.0
        %3131 = vmatprep.subr.mxu0 0.0
        %3132 = vmatpush2.msra.mxu0 0.0
        %3133 = vmatprep.subr.mxu0 0.0
        %3134 = vmatpush2.msra.mxu0 0.0
        %3135 = vmatprep.subr.mxu0 0.0
        %3136 = vmatpush2.msra.mxu0 0.0
        %3137 = vmatprep.subr.mxu0 0.0
        %3138 = vmatpush2.msra.mxu0 0.0
        %3139 = vmatprep.subr.mxu0 0.0
        %3140 = vmatpush2.msra.mxu0 0.0
        %3141 = vmatprep.mubr.f32.mxu0 0.0
        %3142 = vmatmul.mubr.f32.gmra.mxu0 %v2998
        %v3143 = vpop.f32.mrf.mxu0
        %v3144 = vadd.f32 0.0, %v3143
        %v3145 = vpop.f32.mrf.mxu0
        %3146 = vdwg.mxu0
        %v3147 = vadd.f32 %v2984, %v3073
        %v3148 = vadd.f32 %v2985, %v3075
        %v3149 = vadd.f32 %v2986, %v3144
        %s3150 = scalar_lea.vmem %s3, 16
        %v3151 = vld [vmem:[%s3150] sm:$0x3]
        %3152 = vrot.lane.b32.xlu0 %v1853, 90
        %v3153 = vpop.permute.xlu0 %3152
        %3154 = vrot.lane.b32.xlu0 %v1854, 90
        %v3155 = vpop.permute.xlu0 %3154
        %3156 = vrot.lane.b32.xlu0 %v1855, 90
        %v3157 = vpop.permute.xlu0 %3156
        %v3158 = vsel %vm1659, %v3153, %v3155
        %v3159 = vsel %vm1659, %v3155, %v3157
        %v3161 = vsel %vm1870, %v3151, 0
        %v3163 = vsel %vm1874, %v3158, 0
        %v3165 = vsel %vm1874, %v3159, 0
        %v3167 = vsel %vm1874, %v3157, 0
        %3169 = vmatprep.subr.mxu0 0.0
        %3170 = vmatpush1.msra.mxu0 0.0
        %3171 = vmatprep.subr.mxu0 0.0
        %3172 = vmatpush1.msra.mxu0 0.0
        %3173 = vmatprep.subr.mxu0 0.0
        %3174 = vmatpush1.msra.mxu0 0.0
        %3175 = vmatprep.subr.mxu0 0.0
        %3176 = vmatpush1.msra.mxu0 0.0
        %3177 = vmatprep.subr.mxu0 0.0
        %3178 = vmatpush1.msra.mxu0 0.0
        %3179 = vmatprep.subr.mxu0 0.0
        %3180 = vmatpush1.msra.mxu0 0.0
        %3181 = vmatprep.subr.mxu0 0.0
        %3182 = vmatpush1.msra.mxu0 0.0
        %3183 = vmatprep.subr.mxu0 0.0
        %3184 = vmatpush1.msra.mxu0 0.0
        %3185 = vmatprep.subr.mxu0 0.0
        %3186 = vmatpush1.msra.mxu0 0.0
        %3187 = vmatprep.subr.mxu0 0.0
        %3188 = vmatpush1.msra.mxu0 0.0
        %3189 = vmatprep.subr.mxu0 0.0
        %3190 = vmatpush1.msra.mxu0 0.0
        %3191 = vmatprep.subr.mxu0 0.0
        %3192 = vmatpush1.msra.mxu0 0.0
        %3193 = vmatprep.subr.mxu0 0.0
        %3194 = vmatpush1.msra.mxu0 0.0
        %3195 = vmatprep.subr.mxu0 0.0
        %3196 = vmatpush1.msra.mxu0 0.0
        %3197 = vmatprep.subr.mxu0 0.0
        %3198 = vmatpush1.msra.mxu0 0.0
        %3199 = vmatprep.subr.mxu0 %v3165
        %3200 = vmatpush1.msra.mxu0 %v3163
        %3201 = vmatprep.subr.mxu0 0.0
        %3202 = vmatpush2.msra.mxu0 0.0
        %3203 = vmatprep.subr.mxu0 0.0
        %3204 = vmatpush2.msra.mxu0 0.0
        %3205 = vmatprep.subr.mxu0 0.0
        %3206 = vmatpush2.msra.mxu0 0.0
        %3207 = vmatprep.subr.mxu0 0.0
        %3208 = vmatpush2.msra.mxu0 0.0
        %3209 = vmatprep.subr.mxu0 0.0
        %3210 = vmatpush2.msra.mxu0 0.0
        %3211 = vmatprep.subr.mxu0 0.0
        %3212 = vmatpush2.msra.mxu0 0.0
        %3213 = vmatprep.subr.mxu0 0.0
        %3214 = vmatpush2.msra.mxu0 0.0
        %3215 = vmatprep.subr.mxu0 0.0
        %3216 = vmatpush2.msra.mxu0 0.0
        %3217 = vmatprep.subr.mxu0 0.0
        %3218 = vmatpush2.msra.mxu0 0.0
        %3219 = vmatprep.subr.mxu0 0.0
        %3220 = vmatpush2.msra.mxu0 0.0
        %3221 = vmatprep.subr.mxu0 0.0
        %3222 = vmatpush2.msra.mxu0 0.0
        %3223 = vmatprep.subr.mxu0 0.0
        %3224 = vmatpush2.msra.mxu0 0.0
        %3225 = vmatprep.subr.mxu0 0.0
        %3226 = vmatpush2.msra.mxu0 0.0
        %3227 = vmatprep.subr.mxu0 0.0
        %3228 = vmatpush2.msra.mxu0 0.0
        %3229 = vmatprep.subr.mxu0 0.0
        %3230 = vmatpush2.msra.mxu0 0.0
        %3231 = vmatprep.subr.mxu0 0.0
        %3232 = vmatpush2.msra.mxu0 0.0
        %3233 = vmatprep.mubr.f32.mxu0 0.0
        %3234 = vmatmul.mubr.f32.gmra.mxu0 %v3161
        %v3235 = vpop.f32.mrf.mxu0
        %v3236 = vadd.f32 0.0, %v3235
        %v3237 = vpop.f32.mrf.mxu0
        %v3238 = vadd.f32 0.0, %v3237
        %3239 = vdwg.mxu0
        %3240 = vmatprep.subr.mxu0 0.0
        %3241 = vmatpush1.msra.mxu0 0.0
        %3242 = vmatprep.subr.mxu0 0.0
        %3243 = vmatpush1.msra.mxu0 0.0
        %3244 = vmatprep.subr.mxu0 0.0
        %3245 = vmatpush1.msra.mxu0 0.0
        %3246 = vmatprep.subr.mxu0 0.0
        %3247 = vmatpush1.msra.mxu0 0.0
        %3248 = vmatprep.subr.mxu0 0.0
        %3249 = vmatpush1.msra.mxu0 0.0
        %3250 = vmatprep.subr.mxu0 0.0
        %3251 = vmatpush1.msra.mxu0 0.0
        %3252 = vmatprep.subr.mxu0 0.0
        %3253 = vmatpush1.msra.mxu0 0.0
        %3254 = vmatprep.subr.mxu0 0.0
        %3255 = vmatpush1.msra.mxu0 0.0
        %3256 = vmatprep.subr.mxu0 0.0
        %3257 = vmatpush1.msra.mxu0 0.0
        %3258 = vmatprep.subr.mxu0 0.0
        %3259 = vmatpush1.msra.mxu0 0.0
        %3260 = vmatprep.subr.mxu0 0.0
        %3261 = vmatpush1.msra.mxu0 0.0
        %3262 = vmatprep.subr.mxu0 0.0
        %3263 = vmatpush1.msra.mxu0 0.0
        %3264 = vmatprep.subr.mxu0 0.0
        %3265 = vmatpush1.msra.mxu0 0.0
        %3266 = vmatprep.subr.mxu0 0.0
        %3267 = vmatpush1.msra.mxu0 0.0
        %3268 = vmatprep.subr.mxu0 0.0
        %3269 = vmatpush1.msra.mxu0 0.0
        %3270 = vmatprep.subr.mxu0 0.0
        %3271 = vmatpush1.msra.mxu0 %v3167
        %3272 = vmatprep.subr.mxu0 0.0
        %3273 = vmatpush2.msra.mxu0 0.0
        %3274 = vmatprep.subr.mxu0 0.0
        %3275 = vmatpush2.msra.mxu0 0.0
        %3276 = vmatprep.subr.mxu0 0.0
        %3277 = vmatpush2.msra.mxu0 0.0
        %3278 = vmatprep.subr.mxu0 0.0
        %3279 = vmatpush2.msra.mxu0 0.0
        %3280 = vmatprep.subr.mxu0 0.0
        %3281 = vmatpush2.msra.mxu0 0.0
        %3282 = vmatprep.subr.mxu0 0.0
        %3283 = vmatpush2.msra.mxu0 0.0
        %3284 = vmatprep.subr.mxu0 0.0
        %3285 = vmatpush2.msra.mxu0 0.0
        %3286 = vmatprep.subr.mxu0 0.0
        %3287 = vmatpush2.msra.mxu0 0.0
        %3288 = vmatprep.subr.mxu0 0.0
        %3289 = vmatpush2.msra.mxu0 0.0
        %3290 = vmatprep.subr.mxu0 0.0
        %3291 = vmatpush2.msra.mxu0 0.0
        %3292 = vmatprep.subr.mxu0 0.0
        %3293 = vmatpush2.msra.mxu0 0.0
        %3294 = vmatprep.subr.mxu0 0.0
        %3295 = vmatpush2.msra.mxu0 0.0
        %3296 = vmatprep.subr.mxu0 0.0
        %3297 = vmatpush2.msra.mxu0 0.0
        %3298 = vmatprep.subr.mxu0 0.0
        %3299 = vmatpush2.msra.mxu0 0.0
        %3300 = vmatprep.subr.mxu0 0.0
        %3301 = vmatpush2.msra.mxu0 0.0
        %3302 = vmatprep.subr.mxu0 0.0
        %3303 = vmatpush2.msra.mxu0 0.0
        %3304 = vmatprep.mubr.f32.mxu0 0.0
        %3305 = vmatmul.mubr.f32.gmra.mxu0 %v3161
        %v3306 = vpop.f32.mrf.mxu0
        %v3307 = vadd.f32 0.0, %v3306
        %v3308 = vpop.f32.mrf.mxu0
        %3309 = vdwg.mxu0
        %v3310 = vadd.f32 %v3147, %v3236
        %v3311 = vadd.f32 %v3148, %v3238
        %v3312 = vadd.f32 %v3149, %v3307
        %v3313 = vmul.f32 %v3310, %v1819
        %v3314 = vmul.f32 %v3311, %v1823
        %v3315 = vmul.f32 %v3312, %v1827
        %v3316 = vsel %vm1874, %v3313, 0.0
        %v3317 = vsel %vm1874, %v3314, 0.0
        %v3318 = vadd.f32 %v3316, %v3317
        %vm3319 = vcmask 254976
        %v3320 = vsel %vm3319, %v3315, 0.0
        %v3321 = vadd.f32 %v3318, %v3320
        %3322 = vadd.xlane.f32.xlu0 %v3321
        %v3323 = vpop.xlane.xlu0 %3322
        %v3324 = vmul.f32 %v3323, 0.00390625
        %v3325 = vsub.f32 %v3310, %v3324
        %v3326 = vsub.f32 %v3311, %v3324
        %v3327 = vsub.f32 %v3312, %v3324
        %v3328 = vmul.f32 %v3325, %v1819
        %v3329 = vmul.f32 %v3326, %v1823
        %v3330 = vmul.f32 %v3327, %v1827
        %v3331 = vmul.f32 %v3328, %v3328
        %v3332 = vmul.f32 %v3329, %v3329
        %v3333 = vmul.f32 %v3330, %v3330
        %v3334 = vsel %vm1874, %v3331, 0.0
        %v3335 = vsel %vm1874, %v3332, 0.0
        %v3336 = vadd.f32 %v3334, %v3335
        %v3337 = vsel %vm3319, %v3333, 0.0
        %v3338 = vadd.f32 %v3336, %v3337
        %3339 = vadd.xlane.f32.xlu0 %v3338
        %v3340 = vpop.xlane.xlu0 %3339
        %v3341 = vmul.f32 %v3340, 0.00390625
        %v3342 = vadd.f32 %v3341, 1e-05
        %v3343 = vrsqrt.pop %v3342
        %v3344 = vmul.f32 %v3328, %v3343
        %v3345 = vmul.f32 %v3329, %v3343
        %v3346 = vmul.f32 %v3330, %v3343
        %vm3347 = vcmp.gt.f32.partialorder %v3344, 0.0
        %vm3348 = vcmp.gt.f32.partialorder %v3345, 0.0
        %vm3349 = vcmp.gt.f32.partialorder %v3346, 0.0
        %v3350 = vmul.f32 %v3344, 0.2
        %v3351 = vmul.f32 %v3345, 0.2
        %v3352 = vmul.f32 %v3346, 0.2
        %v3353 = vsel %vm3347, %v3344, %v3350
        %v3354 = vsel %vm3348, %v3345, %v3351
        %v3355 = vsel %vm3349, %v3346, %v3352
        %v3359 = vrot.slane %v3353, 6
        %v3360 = vrot.slane %v3354, 6
        %v3361 = vrot.slane %v3355, 6
        %3362 = vrot.lane.b32.xlu0 %v3359, 19
        %v3363 = vpop.permute.xlu0 %3362
        %3364 = vrot.lane.b32.xlu0 %v3360, 19
        %v3365 = vpop.permute.xlu0 %3364
        %3366 = vrot.lane.b32.xlu0 %v3361, 19
        %v3367 = vpop.permute.xlu0 %3366
        %v3368 = vsel %vm305, %v3363, %v3365
        %v3369 = vsel %vm305, %v3365, %v3367
        %vm3373 = vcmask 1043610
        %3374 = vst.msk [vmem:[#allocation2] sm:$0xc] %vm3373, %v3363
        %3375 = vst [vmem:[#allocation2 + $0x8] sm:$0xc] %v3368
        %vm3376 = vcmask 412674
        %3377 = vst.msk [vmem:[#allocation2 + $0x10] sm:$0xc] %vm3376, %v3369
        %v3378 = vld [vmem:[#allocation2] sm:$0xf]
        %v3379 = vld [vmem:[#allocation2 + $0x8] sm:$0xf]
        %v3380 = vld [vmem:[#allocation2 + $0x10] sm:$0xf]
        %v3381 = vld [vmem:[%s4] sm:$0x3]
        %s3382 = scalar_lea.vmem %s4, 2
        %v3383 = vld [vmem:[%s3382] sm:$0x3]
        %3387 = vrot.lane.b32.xlu0 %v3378, 127
        %v3388 = vpop.permute.xlu0 %3387
        %3389 = vrot.lane.b32.xlu0 %v3379, 127
        %v3390 = vpop.permute.xlu0 %3389
        %3391 = vrot.lane.b32.xlu0 %v3380, 127
        %v3392 = vpop.permute.xlu0 %3391
        %v3393 = vsel %vm327, %v3388, %v3390
        %v3394 = vsel %vm327, %v3390, %v3392
        %v3396 = vsel %vm330, %v3383, 0
        %v3398 = vsel %vm334, %v3393, 0
        %v3400 = vsel %vm334, %v3394, 0
        %v3402 = vsel %vm334, %v3392, 0
        %3404 = vmatprep.subr.mxu0 0.0
        %3405 = vmatpush1.msra.mxu0 0.0
        %3406 = vmatprep.subr.mxu0 0.0
        %3407 = vmatpush1.msra.mxu0 0.0
        %3408 = vmatprep.subr.mxu0 0.0
        %3409 = vmatpush1.msra.mxu0 0.0
        %3410 = vmatprep.subr.mxu0 0.0
        %3411 = vmatpush1.msra.mxu0 0.0
        %3412 = vmatprep.subr.mxu0 0.0
        %3413 = vmatpush1.msra.mxu0 0.0
        %3414 = vmatprep.subr.mxu0 0.0
        %3415 = vmatpush1.msra.mxu0 0.0
        %3416 = vmatprep.subr.mxu0 0.0
        %3417 = vmatpush1.msra.mxu0 0.0
        %3418 = vmatprep.subr.mxu0 0.0
        %3419 = vmatpush1.msra.mxu0 0.0
        %3420 = vmatprep.subr.mxu0 0.0
        %3421 = vmatpush1.msra.mxu0 0.0
        %3422 = vmatprep.subr.mxu0 0.0
        %3423 = vmatpush1.msra.mxu0 0.0
        %3424 = vmatprep.subr.mxu0 0.0
        %3425 = vmatpush1.msra.mxu0 0.0
        %3426 = vmatprep.subr.mxu0 0.0
        %3427 = vmatpush1.msra.mxu0 0.0
        %3428 = vmatprep.subr.mxu0 0.0
        %3429 = vmatpush1.msra.mxu0 0.0
        %3430 = vmatprep.subr.mxu0 0.0
        %3431 = vmatpush1.msra.mxu0 0.0
        %3432 = vmatprep.subr.mxu0 0.0
        %3433 = vmatpush1.msra.mxu0 0.0
        %3434 = vmatprep.subr.mxu0 %v3400
        %3435 = vmatpush1.msra.mxu0 %v3398
        %3436 = vmatprep.subr.mxu0 0.0
        %3437 = vmatpush2.msra.mxu0 0.0
        %3438 = vmatprep.subr.mxu0 0.0
        %3439 = vmatpush2.msra.mxu0 0.0
        %3440 = vmatprep.subr.mxu0 0.0
        %3441 = vmatpush2.msra.mxu0 0.0
        %3442 = vmatprep.subr.mxu0 0.0
        %3443 = vmatpush2.msra.mxu0 0.0
        %3444 = vmatprep.subr.mxu0 0.0
        %3445 = vmatpush2.msra.mxu0 0.0
        %3446 = vmatprep.subr.mxu0 0.0
        %3447 = vmatpush2.msra.mxu0 0.0
        %3448 = vmatprep.subr.mxu0 0.0
        %3449 = vmatpush2.msra.mxu0 0.0
        %3450 = vmatprep.subr.mxu0 0.0
        %3451 = vmatpush2.msra.mxu0 0.0
        %3452 = vmatprep.subr.mxu0 0.0
        %3453 = vmatpush2.msra.mxu0 0.0
        %3454 = vmatprep.subr.mxu0 0.0
        %3455 = vmatpush2.msra.mxu0 0.0
        %3456 = vmatprep.subr.mxu0 0.0
        %3457 = vmatpush2.msra.mxu0 0.0
        %3458 = vmatprep.subr.mxu0 0.0
        %3459 = vmatpush2.msra.mxu0 0.0
        %3460 = vmatprep.subr.mxu0 0.0
        %3461 = vmatpush2.msra.mxu0 0.0
        %3462 = vmatprep.subr.mxu0 0.0
        %3463 = vmatpush2.msra.mxu0 0.0
        %3464 = vmatprep.subr.mxu0 0.0
        %3465 = vmatpush2.msra.mxu0 0.0
        %3466 = vmatprep.subr.mxu0 0.0
        %3467 = vmatpush2.msra.mxu0 0.0
        %3468 = vmatprep.mubr.f32.mxu0 0.0
        %3469 = vmatmul.mubr.f32.gmra.mxu0 %v3396
        %v3470 = vpop.f32.mrf.mxu0
        %v3471 = vadd.f32 0.0, %v3470
        %v3472 = vpop.f32.mrf.mxu0
        %v3473 = vadd.f32 0.0, %v3472
        %3474 = vdwg.mxu0
        %3475 = vmatprep.subr.mxu0 0.0
        %3476 = vmatpush1.msra.mxu0 0.0
        %3477 = vmatprep.subr.mxu0 0.0
        %3478 = vmatpush1.msra.mxu0 0.0
        %3479 = vmatprep.subr.mxu0 0.0
        %3480 = vmatpush1.msra.mxu0 0.0
        %3481 = vmatprep.subr.mxu0 0.0
        %3482 = vmatpush1.msra.mxu0 0.0
        %3483 = vmatprep.subr.mxu0 0.0
        %3484 = vmatpush1.msra.mxu0 0.0
        %3485 = vmatprep.subr.mxu0 0.0
        %3486 = vmatpush1.msra.mxu0 0.0
        %3487 = vmatprep.subr.mxu0 0.0
        %3488 = vmatpush1.msra.mxu0 0.0
        %3489 = vmatprep.subr.mxu0 0.0
        %3490 = vmatpush1.msra.mxu0 0.0
        %3491 = vmatprep.subr.mxu0 0.0
        %3492 = vmatpush1.msra.mxu0 0.0
        %3493 = vmatprep.subr.mxu0 0.0
        %3494 = vmatpush1.msra.mxu0 0.0
        %3495 = vmatprep.subr.mxu0 0.0
        %3496 = vmatpush1.msra.mxu0 0.0
        %3497 = vmatprep.subr.mxu0 0.0
        %3498 = vmatpush1.msra.mxu0 0.0
        %3499 = vmatprep.subr.mxu0 0.0
        %3500 = vmatpush1.msra.mxu0 0.0
        %3501 = vmatprep.subr.mxu0 0.0
        %3502 = vmatpush1.msra.mxu0 0.0
        %3503 = vmatprep.subr.mxu0 0.0
        %3504 = vmatpush1.msra.mxu0 0.0
        %3505 = vmatprep.subr.mxu0 0.0
        %3506 = vmatpush1.msra.mxu0 %v3402
        %3507 = vmatprep.subr.mxu0 0.0
        %3508 = vmatpush2.msra.mxu0 0.0
        %3509 = vmatprep.subr.mxu0 0.0
        %3510 = vmatpush2.msra.mxu0 0.0
        %3511 = vmatprep.subr.mxu0 0.0
        %3512 = vmatpush2.msra.mxu0 0.0
        %3513 = vmatprep.subr.mxu0 0.0
        %3514 = vmatpush2.msra.mxu0 0.0
        %3515 = vmatprep.subr.mxu0 0.0
        %3516 = vmatpush2.msra.mxu0 0.0
        %3517 = vmatprep.subr.mxu0 0.0
        %3518 = vmatpush2.msra.mxu0 0.0
        %3519 = vmatprep.subr.mxu0 0.0
        %3520 = vmatpush2.msra.mxu0 0.0
        %3521 = vmatprep.subr.mxu0 0.0
        %3522 = vmatpush2.msra.mxu0 0.0
        %3523 = vmatprep.subr.mxu0 0.0
        %3524 = vmatpush2.msra.mxu0 0.0
        %3525 = vmatprep.subr.mxu0 0.0
        %3526 = vmatpush2.msra.mxu0 0.0
        %3527 = vmatprep.subr.mxu0 0.0
        %3528 = vmatpush2.msra.mxu0 0.0
        %3529 = vmatprep.subr.mxu0 0.0
        %3530 = vmatpush2.msra.mxu0 0.0
        %3531 = vmatprep.subr.mxu0 0.0
        %3532 = vmatpush2.msra.mxu0 0.0
        %3533 = vmatprep.subr.mxu0 0.0
        %3534 = vmatpush2.msra.mxu0 0.0
        %3535 = vmatprep.subr.mxu0 0.0
        %3536 = vmatpush2.msra.mxu0 0.0
        %3537 = vmatprep.subr.mxu0 0.0
        %3538 = vmatpush2.msra.mxu0 0.0
        %3539 = vmatprep.mubr.f32.mxu0 0.0
        %3540 = vmatmul.mubr.f32.gmra.mxu0 %v3396
        %v3541 = vpop.f32.mrf.mxu0
        %v3542 = vadd.f32 0.0, %v3541
        %v3543 = vpop.f32.mrf.mxu0
        %3544 = vdwg.mxu0
        %v3546 = vsel %vm330, %v3381, 0
        %v3548 = vsel %vm334, %v3378, 0
        %v3550 = vsel %vm334, %v3379, 0
        %v3552 = vsel %vm334, %v3380, 0
        %3554 = vmatprep.subr.mxu0 0.0
        %3555 = vmatpush1.msra.mxu0 0.0
        %3556 = vmatprep.subr.mxu0 0.0
        %3557 = vmatpush1.msra.mxu0 0.0
        %3558 = vmatprep.subr.mxu0 0.0
        %3559 = vmatpush1.msra.mxu0 0.0
        %3560 = vmatprep.subr.mxu0 0.0
        %3561 = vmatpush1.msra.mxu0 0.0
        %3562 = vmatprep.subr.mxu0 0.0
        %3563 = vmatpush1.msra.mxu0 0.0
        %3564 = vmatprep.subr.mxu0 0.0
        %3565 = vmatpush1.msra.mxu0 0.0
        %3566 = vmatprep.subr.mxu0 0.0
        %3567 = vmatpush1.msra.mxu0 0.0
        %3568 = vmatprep.subr.mxu0 0.0
        %3569 = vmatpush1.msra.mxu0 0.0
        %3570 = vmatprep.subr.mxu0 0.0
        %3571 = vmatpush1.msra.mxu0 0.0
        %3572 = vmatprep.subr.mxu0 0.0
        %3573 = vmatpush1.msra.mxu0 0.0
        %3574 = vmatprep.subr.mxu0 0.0
        %3575 = vmatpush1.msra.mxu0 0.0
        %3576 = vmatprep.subr.mxu0 0.0
        %3577 = vmatpush1.msra.mxu0 0.0
        %3578 = vmatprep.subr.mxu0 0.0
        %3579 = vmatpush1.msra.mxu0 0.0
        %3580 = vmatprep.subr.mxu0 0.0
        %3581 = vmatpush1.msra.mxu0 0.0
        %3582 = vmatprep.subr.mxu0 0.0
        %3583 = vmatpush1.msra.mxu0 0.0
        %3584 = vmatprep.subr.mxu0 %v3550
        %3585 = vmatpush1.msra.mxu0 %v3548
        %3586 = vmatprep.subr.mxu0 0.0
        %3587 = vmatpush2.msra.mxu0 0.0
        %3588 = vmatprep.subr.mxu0 0.0
        %3589 = vmatpush2.msra.mxu0 0.0
        %3590 = vmatprep.subr.mxu0 0.0
        %3591 = vmatpush2.msra.mxu0 0.0
        %3592 = vmatprep.subr.mxu0 0.0
        %3593 = vmatpush2.msra.mxu0 0.0
        %3594 = vmatprep.subr.mxu0 0.0
        %3595 = vmatpush2.msra.mxu0 0.0
        %3596 = vmatprep.subr.mxu0 0.0
        %3597 = vmatpush2.msra.mxu0 0.0
        %3598 = vmatprep.subr.mxu0 0.0
        %3599 = vmatpush2.msra.mxu0 0.0
        %3600 = vmatprep.subr.mxu0 0.0
        %3601 = vmatpush2.msra.mxu0 0.0
        %3602 = vmatprep.subr.mxu0 0.0
        %3603 = vmatpush2.msra.mxu0 0.0
        %3604 = vmatprep.subr.mxu0 0.0
        %3605 = vmatpush2.msra.mxu0 0.0
        %3606 = vmatprep.subr.mxu0 0.0
        %3607 = vmatpush2.msra.mxu0 0.0
        %3608 = vmatprep.subr.mxu0 0.0
        %3609 = vmatpush2.msra.mxu0 0.0
        %3610 = vmatprep.subr.mxu0 0.0
        %3611 = vmatpush2.msra.mxu0 0.0
        %3612 = vmatprep.subr.mxu0 0.0
        %3613 = vmatpush2.msra.mxu0 0.0
        %3614 = vmatprep.subr.mxu0 0.0
        %3615 = vmatpush2.msra.mxu0 0.0
        %3616 = vmatprep.subr.mxu0 0.0
        %3617 = vmatpush2.msra.mxu0 0.0
        %3618 = vmatprep.mubr.f32.mxu0 0.0
        %3619 = vmatmul.mubr.f32.gmra.mxu0 %v3546
        %v3620 = vpop.f32.mrf.mxu0
        %v3621 = vadd.f32 %v3471, %v3620
        %v3622 = vpop.f32.mrf.mxu0
        %v3623 = vadd.f32 %v3473, %v3622
        %3624 = vdwg.mxu0
        %3625 = vmatprep.subr.mxu0 0.0
        %3626 = vmatpush1.msra.mxu0 0.0
        %3627 = vmatprep.subr.mxu0 0.0
        %3628 = vmatpush1.msra.mxu0 0.0
        %3629 = vmatprep.subr.mxu0 0.0
        %3630 = vmatpush1.msra.mxu0 0.0
        %3631 = vmatprep.subr.mxu0 0.0
        %3632 = vmatpush1.msra.mxu0 0.0
        %3633 = vmatprep.subr.mxu0 0.0
        %3634 = vmatpush1.msra.mxu0 0.0
        %3635 = vmatprep.subr.mxu0 0.0
        %3636 = vmatpush1.msra.mxu0 0.0
        %3637 = vmatprep.subr.mxu0 0.0
        %3638 = vmatpush1.msra.mxu0 0.0
        %3639 = vmatprep.subr.mxu0 0.0
        %3640 = vmatpush1.msra.mxu0 0.0
        %3641 = vmatprep.subr.mxu0 0.0
        %3642 = vmatpush1.msra.mxu0 0.0
        %3643 = vmatprep.subr.mxu0 0.0
        %3644 = vmatpush1.msra.mxu0 0.0
        %3645 = vmatprep.subr.mxu0 0.0
        %3646 = vmatpush1.msra.mxu0 0.0
        %3647 = vmatprep.subr.mxu0 0.0
        %3648 = vmatpush1.msra.mxu0 0.0
        %3649 = vmatprep.subr.mxu0 0.0
        %3650 = vmatpush1.msra.mxu0 0.0
        %3651 = vmatprep.subr.mxu0 0.0
        %3652 = vmatpush1.msra.mxu0 0.0
        %3653 = vmatprep.subr.mxu0 0.0
        %3654 = vmatpush1.msra.mxu0 0.0
        %3655 = vmatprep.subr.mxu0 0.0
        %3656 = vmatpush1.msra.mxu0 %v3552
        %3657 = vmatprep.subr.mxu0 0.0
        %3658 = vmatpush2.msra.mxu0 0.0
        %3659 = vmatprep.subr.mxu0 0.0
        %3660 = vmatpush2.msra.mxu0 0.0
        %3661 = vmatprep.subr.mxu0 0.0
        %3662 = vmatpush2.msra.mxu0 0.0
        %3663 = vmatprep.subr.mxu0 0.0
        %3664 = vmatpush2.msra.mxu0 0.0
        %3665 = vmatprep.subr.mxu0 0.0
        %3666 = vmatpush2.msra.mxu0 0.0
        %3667 = vmatprep.subr.mxu0 0.0
        %3668 = vmatpush2.msra.mxu0 0.0
        %3669 = vmatprep.subr.mxu0 0.0
        %3670 = vmatpush2.msra.mxu0 0.0
        %3671 = vmatprep.subr.mxu0 0.0
        %3672 = vmatpush2.msra.mxu0 0.0
        %3673 = vmatprep.subr.mxu0 0.0
        %3674 = vmatpush2.msra.mxu0 0.0
        %3675 = vmatprep.subr.mxu0 0.0
        %3676 = vmatpush2.msra.mxu0 0.0
        %3677 = vmatprep.subr.mxu0 0.0
        %3678 = vmatpush2.msra.mxu0 0.0
        %3679 = vmatprep.subr.mxu0 0.0
        %3680 = vmatpush2.msra.mxu0 0.0
        %3681 = vmatprep.subr.mxu0 0.0
        %3682 = vmatpush2.msra.mxu0 0.0
        %3683 = vmatprep.subr.mxu0 0.0
        %3684 = vmatpush2.msra.mxu0 0.0
        %3685 = vmatprep.subr.mxu0 0.0
        %3686 = vmatpush2.msra.mxu0 0.0
        %3687 = vmatprep.subr.mxu0 0.0
        %3688 = vmatpush2.msra.mxu0 0.0
        %3689 = vmatprep.mubr.f32.mxu0 0.0
        %3690 = vmatmul.mubr.f32.gmra.mxu0 %v3546
        %v3691 = vpop.f32.mrf.mxu0
        %v3692 = vadd.f32 %v3542, %v3691
        %v3693 = vpop.f32.mrf.mxu0
        %3694 = vdwg.mxu0
        %s3695 = scalar_lea.vmem %s4, 4
        %v3696 = vld [vmem:[%s3695] sm:$0x3]
        %3697 = vrot.lane.b32.xlu0 %v3378, 126
        %v3698 = vpop.permute.xlu0 %3697
        %3699 = vrot.lane.b32.xlu0 %v3379, 126
        %v3700 = vpop.permute.xlu0 %3699
        %3701 = vrot.lane.b32.xlu0 %v3380, 126
        %v3702 = vpop.permute.xlu0 %3701
        %v3703 = vsel %vm645, %v3698, %v3700
        %v3704 = vsel %vm645, %v3700, %v3702
        %v3706 = vsel %vm330, %v3696, 0
        %v3708 = vsel %vm334, %v3703, 0
        %v3710 = vsel %vm334, %v3704, 0
        %v3712 = vsel %vm334, %v3702, 0
        %3714 = vmatprep.subr.mxu0 0.0
        %3715 = vmatpush1.msra.mxu0 0.0
        %3716 = vmatprep.subr.mxu0 0.0
        %3717 = vmatpush1.msra.mxu0 0.0
        %3718 = vmatprep.subr.mxu0 0.0
        %3719 = vmatpush1.msra.mxu0 0.0
        %3720 = vmatprep.subr.mxu0 0.0
        %3721 = vmatpush1.msra.mxu0 0.0
        %3722 = vmatprep.subr.mxu0 0.0
        %3723 = vmatpush1.msra.mxu0 0.0
        %3724 = vmatprep.subr.mxu0 0.0
        %3725 = vmatpush1.msra.mxu0 0.0
        %3726 = vmatprep.subr.mxu0 0.0
        %3727 = vmatpush1.msra.mxu0 0.0
        %3728 = vmatprep.subr.mxu0 0.0
        %3729 = vmatpush1.msra.mxu0 0.0
        %3730 = vmatprep.subr.mxu0 0.0
        %3731 = vmatpush1.msra.mxu0 0.0
        %3732 = vmatprep.subr.mxu0 0.0
        %3733 = vmatpush1.msra.mxu0 0.0
        %3734 = vmatprep.subr.mxu0 0.0
        %3735 = vmatpush1.msra.mxu0 0.0
        %3736 = vmatprep.subr.mxu0 0.0
        %3737 = vmatpush1.msra.mxu0 0.0
        %3738 = vmatprep.subr.mxu0 0.0
        %3739 = vmatpush1.msra.mxu0 0.0
        %3740 = vmatprep.subr.mxu0 0.0
        %3741 = vmatpush1.msra.mxu0 0.0
        %3742 = vmatprep.subr.mxu0 0.0
        %3743 = vmatpush1.msra.mxu0 0.0
        %3744 = vmatprep.subr.mxu0 %v3710
        %3745 = vmatpush1.msra.mxu0 %v3708
        %3746 = vmatprep.subr.mxu0 0.0
        %3747 = vmatpush2.msra.mxu0 0.0
        %3748 = vmatprep.subr.mxu0 0.0
        %3749 = vmatpush2.msra.mxu0 0.0
        %3750 = vmatprep.subr.mxu0 0.0
        %3751 = vmatpush2.msra.mxu0 0.0
        %3752 = vmatprep.subr.mxu0 0.0
        %3753 = vmatpush2.msra.mxu0 0.0
        %3754 = vmatprep.subr.mxu0 0.0
        %3755 = vmatpush2.msra.mxu0 0.0
        %3756 = vmatprep.subr.mxu0 0.0
        %3757 = vmatpush2.msra.mxu0 0.0
        %3758 = vmatprep.subr.mxu0 0.0
        %3759 = vmatpush2.msra.mxu0 0.0
        %3760 = vmatprep.subr.mxu0 0.0
        %3761 = vmatpush2.msra.mxu0 0.0
        %3762 = vmatprep.subr.mxu0 0.0
        %3763 = vmatpush2.msra.mxu0 0.0
        %3764 = vmatprep.subr.mxu0 0.0
        %3765 = vmatpush2.msra.mxu0 0.0
        %3766 = vmatprep.subr.mxu0 0.0
        %3767 = vmatpush2.msra.mxu0 0.0
        %3768 = vmatprep.subr.mxu0 0.0
        %3769 = vmatpush2.msra.mxu0 0.0
        %3770 = vmatprep.subr.mxu0 0.0
        %3771 = vmatpush2.msra.mxu0 0.0
        %3772 = vmatprep.subr.mxu0 0.0
        %3773 = vmatpush2.msra.mxu0 0.0
        %3774 = vmatprep.subr.mxu0 0.0
        %3775 = vmatpush2.msra.mxu0 0.0
        %3776 = vmatprep.subr.mxu0 0.0
        %3777 = vmatpush2.msra.mxu0 0.0
        %3778 = vmatprep.mubr.f32.mxu0 0.0
        %3779 = vmatmul.mubr.f32.gmra.mxu0 %v3706
        %v3780 = vpop.f32.mrf.mxu0
        %v3781 = vadd.f32 0.0, %v3780
        %v3782 = vpop.f32.mrf.mxu0
        %v3783 = vadd.f32 0.0, %v3782
        %3784 = vdwg.mxu0
        %3785 = vmatprep.subr.mxu0 0.0
        %3786 = vmatpush1.msra.mxu0 0.0
        %3787 = vmatprep.subr.mxu0 0.0
        %3788 = vmatpush1.msra.mxu0 0.0
        %3789 = vmatprep.subr.mxu0 0.0
        %3790 = vmatpush1.msra.mxu0 0.0
        %3791 = vmatprep.subr.mxu0 0.0
        %3792 = vmatpush1.msra.mxu0 0.0
        %3793 = vmatprep.subr.mxu0 0.0
        %3794 = vmatpush1.msra.mxu0 0.0
        %3795 = vmatprep.subr.mxu0 0.0
        %3796 = vmatpush1.msra.mxu0 0.0
        %3797 = vmatprep.subr.mxu0 0.0
        %3798 = vmatpush1.msra.mxu0 0.0
        %3799 = vmatprep.subr.mxu0 0.0
        %3800 = vmatpush1.msra.mxu0 0.0
        %3801 = vmatprep.subr.mxu0 0.0
        %3802 = vmatpush1.msra.mxu0 0.0
        %3803 = vmatprep.subr.mxu0 0.0
        %3804 = vmatpush1.msra.mxu0 0.0
        %3805 = vmatprep.subr.mxu0 0.0
        %3806 = vmatpush1.msra.mxu0 0.0
        %3807 = vmatprep.subr.mxu0 0.0
        %3808 = vmatpush1.msra.mxu0 0.0
        %3809 = vmatprep.subr.mxu0 0.0
        %3810 = vmatpush1.msra.mxu0 0.0
        %3811 = vmatprep.subr.mxu0 0.0
        %3812 = vmatpush1.msra.mxu0 0.0
        %3813 = vmatprep.subr.mxu0 0.0
        %3814 = vmatpush1.msra.mxu0 0.0
        %3815 = vmatprep.subr.mxu0 0.0
        %3816 = vmatpush1.msra.mxu0 %v3712
        %3817 = vmatprep.subr.mxu0 0.0
        %3818 = vmatpush2.msra.mxu0 0.0
        %3819 = vmatprep.subr.mxu0 0.0
        %3820 = vmatpush2.msra.mxu0 0.0
        %3821 = vmatprep.subr.mxu0 0.0
        %3822 = vmatpush2.msra.mxu0 0.0
        %3823 = vmatprep.subr.mxu0 0.0
        %3824 = vmatpush2.msra.mxu0 0.0
        %3825 = vmatprep.subr.mxu0 0.0
        %3826 = vmatpush2.msra.mxu0 0.0
        %3827 = vmatprep.subr.mxu0 0.0
        %3828 = vmatpush2.msra.mxu0 0.0
        %3829 = vmatprep.subr.mxu0 0.0
        %3830 = vmatpush2.msra.mxu0 0.0
        %3831 = vmatprep.subr.mxu0 0.0
        %3832 = vmatpush2.msra.mxu0 0.0
        %3833 = vmatprep.subr.mxu0 0.0
        %3834 = vmatpush2.msra.mxu0 0.0
        %3835 = vmatprep.subr.mxu0 0.0
        %3836 = vmatpush2.msra.mxu0 0.0
        %3837 = vmatprep.subr.mxu0 0.0
        %3838 = vmatpush2.msra.mxu0 0.0
        %3839 = vmatprep.subr.mxu0 0.0
        %3840 = vmatpush2.msra.mxu0 0.0
        %3841 = vmatprep.subr.mxu0 0.0
        %3842 = vmatpush2.msra.mxu0 0.0
        %3843 = vmatprep.subr.mxu0 0.0
        %3844 = vmatpush2.msra.mxu0 0.0
        %3845 = vmatprep.subr.mxu0 0.0
        %3846 = vmatpush2.msra.mxu0 0.0
        %3847 = vmatprep.subr.mxu0 0.0
        %3848 = vmatpush2.msra.mxu0 0.0
        %3849 = vmatprep.mubr.f32.mxu0 0.0
        %3850 = vmatmul.mubr.f32.gmra.mxu0 %v3706
        %v3851 = vpop.f32.mrf.mxu0
        %v3852 = vadd.f32 0.0, %v3851
        %v3853 = vpop.f32.mrf.mxu0
        %3854 = vdwg.mxu0
        %v3855 = vadd.f32 %v3621, %v3781
        %v3856 = vadd.f32 %v3623, %v3783
        %v3857 = vadd.f32 %v3692, %v3852
        %s3858 = scalar_lea.vmem %s4, 6
        %v3859 = vld [vmem:[%s3858] sm:$0x3]
        %3860 = vrot.lane.b32.xlu0 %v3378, 110
        %v3861 = vpop.permute.xlu0 %3860
        %3862 = vrot.lane.b32.xlu0 %v3379, 110
        %v3863 = vpop.permute.xlu0 %3862
        %3864 = vrot.lane.b32.xlu0 %v3380, 110
        %v3865 = vpop.permute.xlu0 %3864
        %v3866 = vsel %vm814, %v3861, %v3863
        %v3867 = vsel %vm814, %v3863, %v3865
        %v3869 = vsel %vm330, %v3859, 0
        %v3871 = vsel %vm334, %v3866, 0
        %v3873 = vsel %vm334, %v3867, 0
        %v3875 = vsel %vm334, %v3865, 0
        %3877 = vmatprep.subr.mxu0 0.0
        %3878 = vmatpush1.msra.mxu0 0.0
        %3879 = vmatprep.subr.mxu0 0.0
        %3880 = vmatpush1.msra.mxu0 0.0
        %3881 = vmatprep.subr.mxu0 0.0
        %3882 = vmatpush1.msra.mxu0 0.0
        %3883 = vmatprep.subr.mxu0 0.0
        %3884 = vmatpush1.msra.mxu0 0.0
        %3885 = vmatprep.subr.mxu0 0.0
        %3886 = vmatpush1.msra.mxu0 0.0
        %3887 = vmatprep.subr.mxu0 0.0
        %3888 = vmatpush1.msra.mxu0 0.0
        %3889 = vmatprep.subr.mxu0 0.0
        %3890 = vmatpush1.msra.mxu0 0.0
        %3891 = vmatprep.subr.mxu0 0.0
        %3892 = vmatpush1.msra.mxu0 0.0
        %3893 = vmatprep.subr.mxu0 0.0
        %3894 = vmatpush1.msra.mxu0 0.0
        %3895 = vmatprep.subr.mxu0 0.0
        %3896 = vmatpush1.msra.mxu0 0.0
        %3897 = vmatprep.subr.mxu0 0.0
        %3898 = vmatpush1.msra.mxu0 0.0
        %3899 = vmatprep.subr.mxu0 0.0
        %3900 = vmatpush1.msra.mxu0 0.0
        %3901 = vmatprep.subr.mxu0 0.0
        %3902 = vmatpush1.msra.mxu0 0.0
        %3903 = vmatprep.subr.mxu0 0.0
        %3904 = vmatpush1.msra.mxu0 0.0
        %3905 = vmatprep.subr.mxu0 0.0
        %3906 = vmatpush1.msra.mxu0 0.0
        %3907 = vmatprep.subr.mxu0 %v3873
        %3908 = vmatpush1.msra.mxu0 %v3871
        %3909 = vmatprep.subr.mxu0 0.0
        %3910 = vmatpush2.msra.mxu0 0.0
        %3911 = vmatprep.subr.mxu0 0.0
        %3912 = vmatpush2.msra.mxu0 0.0
        %3913 = vmatprep.subr.mxu0 0.0
        %3914 = vmatpush2.msra.mxu0 0.0
        %3915 = vmatprep.subr.mxu0 0.0
        %3916 = vmatpush2.msra.mxu0 0.0
        %3917 = vmatprep.subr.mxu0 0.0
        %3918 = vmatpush2.msra.mxu0 0.0
        %3919 = vmatprep.subr.mxu0 0.0
        %3920 = vmatpush2.msra.mxu0 0.0
        %3921 = vmatprep.subr.mxu0 0.0
        %3922 = vmatpush2.msra.mxu0 0.0
        %3923 = vmatprep.subr.mxu0 0.0
        %3924 = vmatpush2.msra.mxu0 0.0
        %3925 = vmatprep.subr.mxu0 0.0
        %3926 = vmatpush2.msra.mxu0 0.0
        %3927 = vmatprep.subr.mxu0 0.0
        %3928 = vmatpush2.msra.mxu0 0.0
        %3929 = vmatprep.subr.mxu0 0.0
        %3930 = vmatpush2.msra.mxu0 0.0
        %3931 = vmatprep.subr.mxu0 0.0
        %3932 = vmatpush2.msra.mxu0 0.0
        %3933 = vmatprep.subr.mxu0 0.0
        %3934 = vmatpush2.msra.mxu0 0.0
        %3935 = vmatprep.subr.mxu0 0.0
        %3936 = vmatpush2.msra.mxu0 0.0
        %3937 = vmatprep.subr.mxu0 0.0
        %3938 = vmatpush2.msra.mxu0 0.0
        %3939 = vmatprep.subr.mxu0 0.0
        %3940 = vmatpush2.msra.mxu0 0.0
        %3941 = vmatprep.mubr.f32.mxu0 0.0
        %3942 = vmatmul.mubr.f32.gmra.mxu0 %v3869
        %v3943 = vpop.f32.mrf.mxu0
        %v3944 = vadd.f32 0.0, %v3943
        %v3945 = vpop.f32.mrf.mxu0
        %v3946 = vadd.f32 0.0, %v3945
        %3947 = vdwg.mxu0
        %3948 = vmatprep.subr.mxu0 0.0
        %3949 = vmatpush1.msra.mxu0 0.0
        %3950 = vmatprep.subr.mxu0 0.0
        %3951 = vmatpush1.msra.mxu0 0.0
        %3952 = vmatprep.subr.mxu0 0.0
        %3953 = vmatpush1.msra.mxu0 0.0
        %3954 = vmatprep.subr.mxu0 0.0
        %3955 = vmatpush1.msra.mxu0 0.0
        %3956 = vmatprep.subr.mxu0 0.0
        %3957 = vmatpush1.msra.mxu0 0.0
        %3958 = vmatprep.subr.mxu0 0.0
        %3959 = vmatpush1.msra.mxu0 0.0
        %3960 = vmatprep.subr.mxu0 0.0
        %3961 = vmatpush1.msra.mxu0 0.0
        %3962 = vmatprep.subr.mxu0 0.0
        %3963 = vmatpush1.msra.mxu0 0.0
        %3964 = vmatprep.subr.mxu0 0.0
        %3965 = vmatpush1.msra.mxu0 0.0
        %3966 = vmatprep.subr.mxu0 0.0
        %3967 = vmatpush1.msra.mxu0 0.0
        %3968 = vmatprep.subr.mxu0 0.0
        %3969 = vmatpush1.msra.mxu0 0.0
        %3970 = vmatprep.subr.mxu0 0.0
        %3971 = vmatpush1.msra.mxu0 0.0
        %3972 = vmatprep.subr.mxu0 0.0
        %3973 = vmatpush1.msra.mxu0 0.0
        %3974 = vmatprep.subr.mxu0 0.0
        %3975 = vmatpush1.msra.mxu0 0.0
        %3976 = vmatprep.subr.mxu0 0.0
        %3977 = vmatpush1.msra.mxu0 0.0
        %3978 = vmatprep.subr.mxu0 0.0
        %3979 = vmatpush1.msra.mxu0 %v3875
        %3980 = vmatprep.subr.mxu0 0.0
        %3981 = vmatpush2.msra.mxu0 0.0
        %3982 = vmatprep.subr.mxu0 0.0
        %3983 = vmatpush2.msra.mxu0 0.0
        %3984 = vmatprep.subr.mxu0 0.0
        %3985 = vmatpush2.msra.mxu0 0.0
        %3986 = vmatprep.subr.mxu0 0.0
        %3987 = vmatpush2.msra.mxu0 0.0
        %3988 = vmatprep.subr.mxu0 0.0
        %3989 = vmatpush2.msra.mxu0 0.0
        %3990 = vmatprep.subr.mxu0 0.0
        %3991 = vmatpush2.msra.mxu0 0.0
        %3992 = vmatprep.subr.mxu0 0.0
        %3993 = vmatpush2.msra.mxu0 0.0
        %3994 = vmatprep.subr.mxu0 0.0
        %3995 = vmatpush2.msra.mxu0 0.0
        %3996 = vmatprep.subr.mxu0 0.0
        %3997 = vmatpush2.msra.mxu0 0.0
        %3998 = vmatprep.subr.mxu0 0.0
        %3999 = vmatpush2.msra.mxu0 0.0
        %4000 = vmatprep.subr.mxu0 0.0
        %4001 = vmatpush2.msra.mxu0 0.0
        %4002 = vmatprep.subr.mxu0 0.0
        %4003 = vmatpush2.msra.mxu0 0.0
        %4004 = vmatprep.subr.mxu0 0.0
        %4005 = vmatpush2.msra.mxu0 0.0
        %4006 = vmatprep.subr.mxu0 0.0
        %4007 = vmatpush2.msra.mxu0 0.0
        %4008 = vmatprep.subr.mxu0 0.0
        %4009 = vmatpush2.msra.mxu0 0.0
        %4010 = vmatprep.subr.mxu0 0.0
        %4011 = vmatpush2.msra.mxu0 0.0
        %4012 = vmatprep.mubr.f32.mxu0 0.0
        %4013 = vmatmul.mubr.f32.gmra.mxu0 %v3869
        %v4014 = vpop.f32.mrf.mxu0
        %v4015 = vadd.f32 0.0, %v4014
        %v4016 = vpop.f32.mrf.mxu0
        %4017 = vdwg.mxu0
        %v4018 = vadd.f32 %v3855, %v3944
        %v4019 = vadd.f32 %v3856, %v3946
        %v4020 = vadd.f32 %v3857, %v4015
        %s4021 = scalar_lea.vmem %s4, 8
        %v4022 = vld [vmem:[%s4021] sm:$0x3]
        %4023 = vrot.lane.b32.xlu0 %v3378, 109
        %v4024 = vpop.permute.xlu0 %4023
        %4025 = vrot.lane.b32.xlu0 %v3379, 109
        %v4026 = vpop.permute.xlu0 %4025
        %4027 = vrot.lane.b32.xlu0 %v3380, 109
        %v4028 = vpop.permute.xlu0 %4027
        %v4029 = vsel %vm983, %v4024, %v4026
        %v4030 = vsel %vm983, %v4026, %v4028
        %v4032 = vsel %vm330, %v4022, 0
        %v4034 = vsel %vm334, %v4029, 0
        %v4036 = vsel %vm334, %v4030, 0
        %v4038 = vsel %vm334, %v4028, 0
        %4040 = vmatprep.subr.mxu0 0.0
        %4041 = vmatpush1.msra.mxu0 0.0
        %4042 = vmatprep.subr.mxu0 0.0
        %4043 = vmatpush1.msra.mxu0 0.0
        %4044 = vmatprep.subr.mxu0 0.0
        %4045 = vmatpush1.msra.mxu0 0.0
        %4046 = vmatprep.subr.mxu0 0.0
        %4047 = vmatpush1.msra.mxu0 0.0
        %4048 = vmatprep.subr.mxu0 0.0
        %4049 = vmatpush1.msra.mxu0 0.0
        %4050 = vmatprep.subr.mxu0 0.0
        %4051 = vmatpush1.msra.mxu0 0.0
        %4052 = vmatprep.subr.mxu0 0.0
        %4053 = vmatpush1.msra.mxu0 0.0
        %4054 = vmatprep.subr.mxu0 0.0
        %4055 = vmatpush1.msra.mxu0 0.0
        %4056 = vmatprep.subr.mxu0 0.0
        %4057 = vmatpush1.msra.mxu0 0.0
        %4058 = vmatprep.subr.mxu0 0.0
        %4059 = vmatpush1.msra.mxu0 0.0
        %4060 = vmatprep.subr.mxu0 0.0
        %4061 = vmatpush1.msra.mxu0 0.0
        %4062 = vmatprep.subr.mxu0 0.0
        %4063 = vmatpush1.msra.mxu0 0.0
        %4064 = vmatprep.subr.mxu0 0.0
        %4065 = vmatpush1.msra.mxu0 0.0
        %4066 = vmatprep.subr.mxu0 0.0
        %4067 = vmatpush1.msra.mxu0 0.0
        %4068 = vmatprep.subr.mxu0 0.0
        %4069 = vmatpush1.msra.mxu0 0.0
        %4070 = vmatprep.subr.mxu0 %v4036
        %4071 = vmatpush1.msra.mxu0 %v4034
        %4072 = vmatprep.subr.mxu0 0.0
        %4073 = vmatpush2.msra.mxu0 0.0
        %4074 = vmatprep.subr.mxu0 0.0
        %4075 = vmatpush2.msra.mxu0 0.0
        %4076 = vmatprep.subr.mxu0 0.0
        %4077 = vmatpush2.msra.mxu0 0.0
        %4078 = vmatprep.subr.mxu0 0.0
        %4079 = vmatpush2.msra.mxu0 0.0
        %4080 = vmatprep.subr.mxu0 0.0
        %4081 = vmatpush2.msra.mxu0 0.0
        %4082 = vmatprep.subr.mxu0 0.0
        %4083 = vmatpush2.msra.mxu0 0.0
        %4084 = vmatprep.subr.mxu0 0.0
        %4085 = vmatpush2.msra.mxu0 0.0
        %4086 = vmatprep.subr.mxu0 0.0
        %4087 = vmatpush2.msra.mxu0 0.0
        %4088 = vmatprep.subr.mxu0 0.0
        %4089 = vmatpush2.msra.mxu0 0.0
        %4090 = vmatprep.subr.mxu0 0.0
        %4091 = vmatpush2.msra.mxu0 0.0
        %4092 = vmatprep.subr.mxu0 0.0
        %4093 = vmatpush2.msra.mxu0 0.0
        %4094 = vmatprep.subr.mxu0 0.0
        %4095 = vmatpush2.msra.mxu0 0.0
        %4096 = vmatprep.subr.mxu0 0.0
        %4097 = vmatpush2.msra.mxu0 0.0
        %4098 = vmatprep.subr.mxu0 0.0
        %4099 = vmatpush2.msra.mxu0 0.0
        %4100 = vmatprep.subr.mxu0 0.0
        %4101 = vmatpush2.msra.mxu0 0.0
        %4102 = vmatprep.subr.mxu0 0.0
        %4103 = vmatpush2.msra.mxu0 0.0
        %4104 = vmatprep.mubr.f32.mxu0 0.0
        %4105 = vmatmul.mubr.f32.gmra.mxu0 %v4032
        %v4106 = vpop.f32.mrf.mxu0
        %v4107 = vadd.f32 0.0, %v4106
        %v4108 = vpop.f32.mrf.mxu0
        %v4109 = vadd.f32 0.0, %v4108
        %4110 = vdwg.mxu0
        %4111 = vmatprep.subr.mxu0 0.0
        %4112 = vmatpush1.msra.mxu0 0.0
        %4113 = vmatprep.subr.mxu0 0.0
        %4114 = vmatpush1.msra.mxu0 0.0
        %4115 = vmatprep.subr.mxu0 0.0
        %4116 = vmatpush1.msra.mxu0 0.0
        %4117 = vmatprep.subr.mxu0 0.0
        %4118 = vmatpush1.msra.mxu0 0.0
        %4119 = vmatprep.subr.mxu0 0.0
        %4120 = vmatpush1.msra.mxu0 0.0
        %4121 = vmatprep.subr.mxu0 0.0
        %4122 = vmatpush1.msra.mxu0 0.0
        %4123 = vmatprep.subr.mxu0 0.0
        %4124 = vmatpush1.msra.mxu0 0.0
        %4125 = vmatprep.subr.mxu0 0.0
        %4126 = vmatpush1.msra.mxu0 0.0
        %4127 = vmatprep.subr.mxu0 0.0
        %4128 = vmatpush1.msra.mxu0 0.0
        %4129 = vmatprep.subr.mxu0 0.0
        %4130 = vmatpush1.msra.mxu0 0.0
        %4131 = vmatprep.subr.mxu0 0.0
        %4132 = vmatpush1.msra.mxu0 0.0
        %4133 = vmatprep.subr.mxu0 0.0
        %4134 = vmatpush1.msra.mxu0 0.0
        %4135 = vmatprep.subr.mxu0 0.0
        %4136 = vmatpush1.msra.mxu0 0.0
        %4137 = vmatprep.subr.mxu0 0.0
        %4138 = vmatpush1.msra.mxu0 0.0
        %4139 = vmatprep.subr.mxu0 0.0
        %4140 = vmatpush1.msra.mxu0 0.0
        %4141 = vmatprep.subr.mxu0 0.0
        %4142 = vmatpush1.msra.mxu0 %v4038
        %4143 = vmatprep.subr.mxu0 0.0
        %4144 = vmatpush2.msra.mxu0 0.0
        %4145 = vmatprep.subr.mxu0 0.0
        %4146 = vmatpush2.msra.mxu0 0.0
        %4147 = vmatprep.subr.mxu0 0.0
        %4148 = vmatpush2.msra.mxu0 0.0
        %4149 = vmatprep.subr.mxu0 0.0
        %4150 = vmatpush2.msra.mxu0 0.0
        %4151 = vmatprep.subr.mxu0 0.0
        %4152 = vmatpush2.msra.mxu0 0.0
        %4153 = vmatprep.subr.mxu0 0.0
        %4154 = vmatpush2.msra.mxu0 0.0
        %4155 = vmatprep.subr.mxu0 0.0
        %4156 = vmatpush2.msra.mxu0 0.0
        %4157 = vmatprep.subr.mxu0 0.0
        %4158 = vmatpush2.msra.mxu0 0.0
        %4159 = vmatprep.subr.mxu0 0.0
        %4160 = vmatpush2.msra.mxu0 0.0
        %4161 = vmatprep.subr.mxu0 0.0
        %4162 = vmatpush2.msra.mxu0 0.0
        %4163 = vmatprep.subr.mxu0 0.0
        %4164 = vmatpush2.msra.mxu0 0.0
        %4165 = vmatprep.subr.mxu0 0.0
        %4166 = vmatpush2.msra.mxu0 0.0
        %4167 = vmatprep.subr.mxu0 0.0
        %4168 = vmatpush2.msra.mxu0 0.0
        %4169 = vmatprep.subr.mxu0 0.0
        %4170 = vmatpush2.msra.mxu0 0.0
        %4171 = vmatprep.subr.mxu0 0.0
        %4172 = vmatpush2.msra.mxu0 0.0
        %4173 = vmatprep.subr.mxu0 0.0
        %4174 = vmatpush2.msra.mxu0 0.0
        %4175 = vmatprep.mubr.f32.mxu0 0.0
        %4176 = vmatmul.mubr.f32.gmra.mxu0 %v4032
        %v4177 = vpop.f32.mrf.mxu0
        %v4178 = vadd.f32 0.0, %v4177
        %v4179 = vpop.f32.mrf.mxu0
        %4180 = vdwg.mxu0
        %v4181 = vadd.f32 %v4018, %v4107
        %v4182 = vadd.f32 %v4019, %v4109
        %v4183 = vadd.f32 %v4020, %v4178
        %s4184 = scalar_lea.vmem %s4, 10
        %v4185 = vld [vmem:[%s4184] sm:$0x3]
        %4186 = vrot.lane.b32.xlu0 %v3378, 108
        %v4187 = vpop.permute.xlu0 %4186
        %4188 = vrot.lane.b32.xlu0 %v3379, 108
        %v4189 = vpop.permute.xlu0 %4188
        %4190 = vrot.lane.b32.xlu0 %v3380, 108
        %v4191 = vpop.permute.xlu0 %4190
        %v4192 = vsel %vm1152, %v4187, %v4189
        %v4193 = vsel %vm1152, %v4189, %v4191
        %v4195 = vsel %vm330, %v4185, 0
        %v4197 = vsel %vm334, %v4192, 0
        %v4199 = vsel %vm334, %v4193, 0
        %v4201 = vsel %vm334, %v4191, 0
        %4203 = vmatprep.subr.mxu0 0.0
        %4204 = vmatpush1.msra.mxu0 0.0
        %4205 = vmatprep.subr.mxu0 0.0
        %4206 = vmatpush1.msra.mxu0 0.0
        %4207 = vmatprep.subr.mxu0 0.0
        %4208 = vmatpush1.msra.mxu0 0.0
        %4209 = vmatprep.subr.mxu0 0.0
        %4210 = vmatpush1.msra.mxu0 0.0
        %4211 = vmatprep.subr.mxu0 0.0
        %4212 = vmatpush1.msra.mxu0 0.0
        %4213 = vmatprep.subr.mxu0 0.0
        %4214 = vmatpush1.msra.mxu0 0.0
        %4215 = vmatprep.subr.mxu0 0.0
        %4216 = vmatpush1.msra.mxu0 0.0
        %4217 = vmatprep.subr.mxu0 0.0
        %4218 = vmatpush1.msra.mxu0 0.0
        %4219 = vmatprep.subr.mxu0 0.0
        %4220 = vmatpush1.msra.mxu0 0.0
        %4221 = vmatprep.subr.mxu0 0.0
        %4222 = vmatpush1.msra.mxu0 0.0
        %4223 = vmatprep.subr.mxu0 0.0
        %4224 = vmatpush1.msra.mxu0 0.0
        %4225 = vmatprep.subr.mxu0 0.0
        %4226 = vmatpush1.msra.mxu0 0.0
        %4227 = vmatprep.subr.mxu0 0.0
        %4228 = vmatpush1.msra.mxu0 0.0
        %4229 = vmatprep.subr.mxu0 0.0
        %4230 = vmatpush1.msra.mxu0 0.0
        %4231 = vmatprep.subr.mxu0 0.0
        %4232 = vmatpush1.msra.mxu0 0.0
        %4233 = vmatprep.subr.mxu0 %v4199
        %4234 = vmatpush1.msra.mxu0 %v4197
        %4235 = vmatprep.subr.mxu0 0.0
        %4236 = vmatpush2.msra.mxu0 0.0
        %4237 = vmatprep.subr.mxu0 0.0
        %4238 = vmatpush2.msra.mxu0 0.0
        %4239 = vmatprep.subr.mxu0 0.0
        %4240 = vmatpush2.msra.mxu0 0.0
        %4241 = vmatprep.subr.mxu0 0.0
        %4242 = vmatpush2.msra.mxu0 0.0
        %4243 = vmatprep.subr.mxu0 0.0
        %4244 = vmatpush2.msra.mxu0 0.0
        %4245 = vmatprep.subr.mxu0 0.0
        %4246 = vmatpush2.msra.mxu0 0.0
        %4247 = vmatprep.subr.mxu0 0.0
        %4248 = vmatpush2.msra.mxu0 0.0
        %4249 = vmatprep.subr.mxu0 0.0
        %4250 = vmatpush2.msra.mxu0 0.0
        %4251 = vmatprep.subr.mxu0 0.0
        %4252 = vmatpush2.msra.mxu0 0.0
        %4253 = vmatprep.subr.mxu0 0.0
        %4254 = vmatpush2.msra.mxu0 0.0
        %4255 = vmatprep.subr.mxu0 0.0
        %4256 = vmatpush2.msra.mxu0 0.0
        %4257 = vmatprep.subr.mxu0 0.0
        %4258 = vmatpush2.msra.mxu0 0.0
        %4259 = vmatprep.subr.mxu0 0.0
        %4260 = vmatpush2.msra.mxu0 0.0
        %4261 = vmatprep.subr.mxu0 0.0
        %4262 = vmatpush2.msra.mxu0 0.0
        %4263 = vmatprep.subr.mxu0 0.0
        %4264 = vmatpush2.msra.mxu0 0.0
        %4265 = vmatprep.subr.mxu0 0.0
        %4266 = vmatpush2.msra.mxu0 0.0
        %4267 = vmatprep.mubr.f32.mxu0 0.0
        %4268 = vmatmul.mubr.f32.gmra.mxu0 %v4195
        %v4269 = vpop.f32.mrf.mxu0
        %v4270 = vadd.f32 0.0, %v4269
        %v4271 = vpop.f32.mrf.mxu0
        %v4272 = vadd.f32 0.0, %v4271
        %4273 = vdwg.mxu0
        %4274 = vmatprep.subr.mxu0 0.0
        %4275 = vmatpush1.msra.mxu0 0.0
        %4276 = vmatprep.subr.mxu0 0.0
        %4277 = vmatpush1.msra.mxu0 0.0
        %4278 = vmatprep.subr.mxu0 0.0
        %4279 = vmatpush1.msra.mxu0 0.0
        %4280 = vmatprep.subr.mxu0 0.0
        %4281 = vmatpush1.msra.mxu0 0.0
        %4282 = vmatprep.subr.mxu0 0.0
        %4283 = vmatpush1.msra.mxu0 0.0
        %4284 = vmatprep.subr.mxu0 0.0
        %4285 = vmatpush1.msra.mxu0 0.0
        %4286 = vmatprep.subr.mxu0 0.0
        %4287 = vmatpush1.msra.mxu0 0.0
        %4288 = vmatprep.subr.mxu0 0.0
        %4289 = vmatpush1.msra.mxu0 0.0
        %4290 = vmatprep.subr.mxu0 0.0
        %4291 = vmatpush1.msra.mxu0 0.0
        %4292 = vmatprep.subr.mxu0 0.0
        %4293 = vmatpush1.msra.mxu0 0.0
        %4294 = vmatprep.subr.mxu0 0.0
        %4295 = vmatpush1.msra.mxu0 0.0
        %4296 = vmatprep.subr.mxu0 0.0
        %4297 = vmatpush1.msra.mxu0 0.0
        %4298 = vmatprep.subr.mxu0 0.0
        %4299 = vmatpush1.msra.mxu0 0.0
        %4300 = vmatprep.subr.mxu0 0.0
        %4301 = vmatpush1.msra.mxu0 0.0
        %4302 = vmatprep.subr.mxu0 0.0
        %4303 = vmatpush1.msra.mxu0 0.0
        %4304 = vmatprep.subr.mxu0 0.0
        %4305 = vmatpush1.msra.mxu0 %v4201
        %4306 = vmatprep.subr.mxu0 0.0
        %4307 = vmatpush2.msra.mxu0 0.0
        %4308 = vmatprep.subr.mxu0 0.0
        %4309 = vmatpush2.msra.mxu0 0.0
        %4310 = vmatprep.subr.mxu0 0.0
        %4311 = vmatpush2.msra.mxu0 0.0
        %4312 = vmatprep.subr.mxu0 0.0
        %4313 = vmatpush2.msra.mxu0 0.0
        %4314 = vmatprep.subr.mxu0 0.0
        %4315 = vmatpush2.msra.mxu0 0.0
        %4316 = vmatprep.subr.mxu0 0.0
        %4317 = vmatpush2.msra.mxu0 0.0
        %4318 = vmatprep.subr.mxu0 0.0
        %4319 = vmatpush2.msra.mxu0 0.0
        %4320 = vmatprep.subr.mxu0 0.0
        %4321 = vmatpush2.msra.mxu0 0.0
        %4322 = vmatprep.subr.mxu0 0.0
        %4323 = vmatpush2.msra.mxu0 0.0
        %4324 = vmatprep.subr.mxu0 0.0
        %4325 = vmatpush2.msra.mxu0 0.0
        %4326 = vmatprep.subr.mxu0 0.0
        %4327 = vmatpush2.msra.mxu0 0.0
        %4328 = vmatprep.subr.mxu0 0.0
        %4329 = vmatpush2.msra.mxu0 0.0
        %4330 = vmatprep.subr.mxu0 0.0
        %4331 = vmatpush2.msra.mxu0 0.0
        %4332 = vmatprep.subr.mxu0 0.0
        %4333 = vmatpush2.msra.mxu0 0.0
        %4334 = vmatprep.subr.mxu0 0.0
        %4335 = vmatpush2.msra.mxu0 0.0
        %4336 = vmatprep.subr.mxu0 0.0
        %4337 = vmatpush2.msra.mxu0 0.0
        %4338 = vmatprep.mubr.f32.mxu0 0.0
        %4339 = vmatmul.mubr.f32.gmra.mxu0 %v4195
        %v4340 = vpop.f32.mrf.mxu0
        %v4341 = vadd.f32 0.0, %v4340
        %v4342 = vpop.f32.mrf.mxu0
        %4343 = vdwg.mxu0
        %v4344 = vadd.f32 %v4181, %v4270
        %v4345 = vadd.f32 %v4182, %v4272
        %v4346 = vadd.f32 %v4183, %v4341
        %s4347 = scalar_lea.vmem %s4, 12
        %v4348 = vld [vmem:[%s4347] sm:$0x3]
        %4349 = vrot.lane.b32.xlu0 %v3378, 92
        %v4350 = vpop.permute.xlu0 %4349
        %4351 = vrot.lane.b32.xlu0 %v3379, 92
        %v4352 = vpop.permute.xlu0 %4351
        %4353 = vrot.lane.b32.xlu0 %v3380, 92
        %v4354 = vpop.permute.xlu0 %4353
        %v4355 = vsel %vm1321, %v4350, %v4352
        %v4356 = vsel %vm1321, %v4352, %v4354
        %v4358 = vsel %vm330, %v4348, 0
        %v4360 = vsel %vm334, %v4355, 0
        %v4362 = vsel %vm334, %v4356, 0
        %v4364 = vsel %vm334, %v4354, 0
        %4366 = vmatprep.subr.mxu0 0.0
        %4367 = vmatpush1.msra.mxu0 0.0
        %4368 = vmatprep.subr.mxu0 0.0
        %4369 = vmatpush1.msra.mxu0 0.0
        %4370 = vmatprep.subr.mxu0 0.0
        %4371 = vmatpush1.msra.mxu0 0.0
        %4372 = vmatprep.subr.mxu0 0.0
        %4373 = vmatpush1.msra.mxu0 0.0
        %4374 = vmatprep.subr.mxu0 0.0
        %4375 = vmatpush1.msra.mxu0 0.0
        %4376 = vmatprep.subr.mxu0 0.0
        %4377 = vmatpush1.msra.mxu0 0.0
        %4378 = vmatprep.subr.mxu0 0.0
        %4379 = vmatpush1.msra.mxu0 0.0
        %4380 = vmatprep.subr.mxu0 0.0
        %4381 = vmatpush1.msra.mxu0 0.0
        %4382 = vmatprep.subr.mxu0 0.0
        %4383 = vmatpush1.msra.mxu0 0.0
        %4384 = vmatprep.subr.mxu0 0.0
        %4385 = vmatpush1.msra.mxu0 0.0
        %4386 = vmatprep.subr.mxu0 0.0
        %4387 = vmatpush1.msra.mxu0 0.0
        %4388 = vmatprep.subr.mxu0 0.0
        %4389 = vmatpush1.msra.mxu0 0.0
        %4390 = vmatprep.subr.mxu0 0.0
        %4391 = vmatpush1.msra.mxu0 0.0
        %4392 = vmatprep.subr.mxu0 0.0
        %4393 = vmatpush1.msra.mxu0 0.0
        %4394 = vmatprep.subr.mxu0 0.0
        %4395 = vmatpush1.msra.mxu0 0.0
        %4396 = vmatprep.subr.mxu0 %v4362
        %4397 = vmatpush1.msra.mxu0 %v4360
        %4398 = vmatprep.subr.mxu0 0.0
        %4399 = vmatpush2.msra.mxu0 0.0
        %4400 = vmatprep.subr.mxu0 0.0
        %4401 = vmatpush2.msra.mxu0 0.0
        %4402 = vmatprep.subr.mxu0 0.0
        %4403 = vmatpush2.msra.mxu0 0.0
        %4404 = vmatprep.subr.mxu0 0.0
        %4405 = vmatpush2.msra.mxu0 0.0
        %4406 = vmatprep.subr.mxu0 0.0
        %4407 = vmatpush2.msra.mxu0 0.0
        %4408 = vmatprep.subr.mxu0 0.0
        %4409 = vmatpush2.msra.mxu0 0.0
        %4410 = vmatprep.subr.mxu0 0.0
        %4411 = vmatpush2.msra.mxu0 0.0
        %4412 = vmatprep.subr.mxu0 0.0
        %4413 = vmatpush2.msra.mxu0 0.0
        %4414 = vmatprep.subr.mxu0 0.0
        %4415 = vmatpush2.msra.mxu0 0.0
        %4416 = vmatprep.subr.mxu0 0.0
        %4417 = vmatpush2.msra.mxu0 0.0
        %4418 = vmatprep.subr.mxu0 0.0
        %4419 = vmatpush2.msra.mxu0 0.0
        %4420 = vmatprep.subr.mxu0 0.0
        %4421 = vmatpush2.msra.mxu0 0.0
        %4422 = vmatprep.subr.mxu0 0.0
        %4423 = vmatpush2.msra.mxu0 0.0
        %4424 = vmatprep.subr.mxu0 0.0
        %4425 = vmatpush2.msra.mxu0 0.0
        %4426 = vmatprep.subr.mxu0 0.0
        %4427 = vmatpush2.msra.mxu0 0.0
        %4428 = vmatprep.subr.mxu0 0.0
        %4429 = vmatpush2.msra.mxu0 0.0
        %4430 = vmatprep.mubr.f32.mxu0 0.0
        %4431 = vmatmul.mubr.f32.gmra.mxu0 %v4358
        %v4432 = vpop.f32.mrf.mxu0
        %v4433 = vadd.f32 0.0, %v4432
        %v4434 = vpop.f32.mrf.mxu0
        %v4435 = vadd.f32 0.0, %v4434
        %4436 = vdwg.mxu0
        %4437 = vmatprep.subr.mxu0 0.0
        %4438 = vmatpush1.msra.mxu0 0.0
        %4439 = vmatprep.subr.mxu0 0.0
        %4440 = vmatpush1.msra.mxu0 0.0
        %4441 = vmatprep.subr.mxu0 0.0
        %4442 = vmatpush1.msra.mxu0 0.0
        %4443 = vmatprep.subr.mxu0 0.0
        %4444 = vmatpush1.msra.mxu0 0.0
        %4445 = vmatprep.subr.mxu0 0.0
        %4446 = vmatpush1.msra.mxu0 0.0
        %4447 = vmatprep.subr.mxu0 0.0
        %4448 = vmatpush1.msra.mxu0 0.0
        %4449 = vmatprep.subr.mxu0 0.0
        %4450 = vmatpush1.msra.mxu0 0.0
        %4451 = vmatprep.subr.mxu0 0.0
        %4452 = vmatpush1.msra.mxu0 0.0
        %4453 = vmatprep.subr.mxu0 0.0
        %4454 = vmatpush1.msra.mxu0 0.0
        %4455 = vmatprep.subr.mxu0 0.0
        %4456 = vmatpush1.msra.mxu0 0.0
        %4457 = vmatprep.subr.mxu0 0.0
        %4458 = vmatpush1.msra.mxu0 0.0
        %4459 = vmatprep.subr.mxu0 0.0
        %4460 = vmatpush1.msra.mxu0 0.0
        %4461 = vmatprep.subr.mxu0 0.0
        %4462 = vmatpush1.msra.mxu0 0.0
        %4463 = vmatprep.subr.mxu0 0.0
        %4464 = vmatpush1.msra.mxu0 0.0
        %4465 = vmatprep.subr.mxu0 0.0
        %4466 = vmatpush1.msra.mxu0 0.0
        %4467 = vmatprep.subr.mxu0 0.0
        %4468 = vmatpush1.msra.mxu0 %v4364
        %4469 = vmatprep.subr.mxu0 0.0
        %4470 = vmatpush2.msra.mxu0 0.0
        %4471 = vmatprep.subr.mxu0 0.0
        %4472 = vmatpush2.msra.mxu0 0.0
        %4473 = vmatprep.subr.mxu0 0.0
        %4474 = vmatpush2.msra.mxu0 0.0
        %4475 = vmatprep.subr.mxu0 0.0
        %4476 = vmatpush2.msra.mxu0 0.0
        %4477 = vmatprep.subr.mxu0 0.0
        %4478 = vmatpush2.msra.mxu0 0.0
        %4479 = vmatprep.subr.mxu0 0.0
        %4480 = vmatpush2.msra.mxu0 0.0
        %4481 = vmatprep.subr.mxu0 0.0
        %4482 = vmatpush2.msra.mxu0 0.0
        %4483 = vmatprep.subr.mxu0 0.0
        %4484 = vmatpush2.msra.mxu0 0.0
        %4485 = vmatprep.subr.mxu0 0.0
        %4486 = vmatpush2.msra.mxu0 0.0
        %4487 = vmatprep.subr.mxu0 0.0
        %4488 = vmatpush2.msra.mxu0 0.0
        %4489 = vmatprep.subr.mxu0 0.0
        %4490 = vmatpush2.msra.mxu0 0.0
        %4491 = vmatprep.subr.mxu0 0.0
        %4492 = vmatpush2.msra.mxu0 0.0
        %4493 = vmatprep.subr.mxu0 0.0
        %4494 = vmatpush2.msra.mxu0 0.0
        %4495 = vmatprep.subr.mxu0 0.0
        %4496 = vmatpush2.msra.mxu0 0.0
        %4497 = vmatprep.subr.mxu0 0.0
        %4498 = vmatpush2.msra.mxu0 0.0
        %4499 = vmatprep.subr.mxu0 0.0
        %4500 = vmatpush2.msra.mxu0 0.0
        %4501 = vmatprep.mubr.f32.mxu0 0.0
        %4502 = vmatmul.mubr.f32.gmra.mxu0 %v4358
        %v4503 = vpop.f32.mrf.mxu0
        %v4504 = vadd.f32 0.0, %v4503
        %v4505 = vpop.f32.mrf.mxu0
        %4506 = vdwg.mxu0
        %v4507 = vadd.f32 %v4344, %v4433
        %v4508 = vadd.f32 %v4345, %v4435
        %v4509 = vadd.f32 %v4346, %v4504
        %s4510 = scalar_lea.vmem %s4, 14
        %v4511 = vld [vmem:[%s4510] sm:$0x3]
        %4512 = vrot.lane.b32.xlu0 %v3378, 91
        %v4513 = vpop.permute.xlu0 %4512
        %4514 = vrot.lane.b32.xlu0 %v3379, 91
        %v4515 = vpop.permute.xlu0 %4514
        %4516 = vrot.lane.b32.xlu0 %v3380, 91
        %v4517 = vpop.permute.xlu0 %4516
        %v4518 = vsel %vm1490, %v4513, %v4515
        %v4519 = vsel %vm1490, %v4515, %v4517
        %v4521 = vsel %vm330, %v4511, 0
        %v4523 = vsel %vm334, %v4518, 0
        %v4525 = vsel %vm334, %v4519, 0
        %v4527 = vsel %vm334, %v4517, 0
        %4529 = vmatprep.subr.mxu0 0.0
        %4530 = vmatpush1.msra.mxu0 0.0
        %4531 = vmatprep.subr.mxu0 0.0
        %4532 = vmatpush1.msra.mxu0 0.0
        %4533 = vmatprep.subr.mxu0 0.0
        %4534 = vmatpush1.msra.mxu0 0.0
        %4535 = vmatprep.subr.mxu0 0.0
        %4536 = vmatpush1.msra.mxu0 0.0
        %4537 = vmatprep.subr.mxu0 0.0
        %4538 = vmatpush1.msra.mxu0 0.0
        %4539 = vmatprep.subr.mxu0 0.0
        %4540 = vmatpush1.msra.mxu0 0.0
        %4541 = vmatprep.subr.mxu0 0.0
        %4542 = vmatpush1.msra.mxu0 0.0
        %4543 = vmatprep.subr.mxu0 0.0
        %4544 = vmatpush1.msra.mxu0 0.0
        %4545 = vmatprep.subr.mxu0 0.0
        %4546 = vmatpush1.msra.mxu0 0.0
        %4547 = vmatprep.subr.mxu0 0.0
        %4548 = vmatpush1.msra.mxu0 0.0
        %4549 = vmatprep.subr.mxu0 0.0
        %4550 = vmatpush1.msra.mxu0 0.0
        %4551 = vmatprep.subr.mxu0 0.0
        %4552 = vmatpush1.msra.mxu0 0.0
        %4553 = vmatprep.subr.mxu0 0.0
        %4554 = vmatpush1.msra.mxu0 0.0
        %4555 = vmatprep.subr.mxu0 0.0
        %4556 = vmatpush1.msra.mxu0 0.0
        %4557 = vmatprep.subr.mxu0 0.0
        %4558 = vmatpush1.msra.mxu0 0.0
        %4559 = vmatprep.subr.mxu0 %v4525
        %4560 = vmatpush1.msra.mxu0 %v4523
        %4561 = vmatprep.subr.mxu0 0.0
        %4562 = vmatpush2.msra.mxu0 0.0
        %4563 = vmatprep.subr.mxu0 0.0
        %4564 = vmatpush2.msra.mxu0 0.0
        %4565 = vmatprep.subr.mxu0 0.0
        %4566 = vmatpush2.msra.mxu0 0.0
        %4567 = vmatprep.subr.mxu0 0.0
        %4568 = vmatpush2.msra.mxu0 0.0
        %4569 = vmatprep.subr.mxu0 0.0
        %4570 = vmatpush2.msra.mxu0 0.0
        %4571 = vmatprep.subr.mxu0 0.0
        %4572 = vmatpush2.msra.mxu0 0.0
        %4573 = vmatprep.subr.mxu0 0.0
        %4574 = vmatpush2.msra.mxu0 0.0
        %4575 = vmatprep.subr.mxu0 0.0
        %4576 = vmatpush2.msra.mxu0 0.0
        %4577 = vmatprep.subr.mxu0 0.0
        %4578 = vmatpush2.msra.mxu0 0.0
        %4579 = vmatprep.subr.mxu0 0.0
        %4580 = vmatpush2.msra.mxu0 0.0
        %4581 = vmatprep.subr.mxu0 0.0
        %4582 = vmatpush2.msra.mxu0 0.0
        %4583 = vmatprep.subr.mxu0 0.0
        %4584 = vmatpush2.msra.mxu0 0.0
        %4585 = vmatprep.subr.mxu0 0.0
        %4586 = vmatpush2.msra.mxu0 0.0
        %4587 = vmatprep.subr.mxu0 0.0
        %4588 = vmatpush2.msra.mxu0 0.0
        %4589 = vmatprep.subr.mxu0 0.0
        %4590 = vmatpush2.msra.mxu0 0.0
        %4591 = vmatprep.subr.mxu0 0.0
        %4592 = vmatpush2.msra.mxu0 0.0
        %4593 = vmatprep.mubr.f32.mxu0 0.0
        %4594 = vmatmul.mubr.f32.gmra.mxu0 %v4521
        %v4595 = vpop.f32.mrf.mxu0
        %v4596 = vadd.f32 0.0, %v4595
        %v4597 = vpop.f32.mrf.mxu0
        %v4598 = vadd.f32 0.0, %v4597
        %4599 = vdwg.mxu0
        %4600 = vmatprep.subr.mxu0 0.0
        %4601 = vmatpush1.msra.mxu0 0.0
        %4602 = vmatprep.subr.mxu0 0.0
        %4603 = vmatpush1.msra.mxu0 0.0
        %4604 = vmatprep.subr.mxu0 0.0
        %4605 = vmatpush1.msra.mxu0 0.0
        %4606 = vmatprep.subr.mxu0 0.0
        %4607 = vmatpush1.msra.mxu0 0.0
        %4608 = vmatprep.subr.mxu0 0.0
        %4609 = vmatpush1.msra.mxu0 0.0
        %4610 = vmatprep.subr.mxu0 0.0
        %4611 = vmatpush1.msra.mxu0 0.0
        %4612 = vmatprep.subr.mxu0 0.0
        %4613 = vmatpush1.msra.mxu0 0.0
        %4614 = vmatprep.subr.mxu0 0.0
        %4615 = vmatpush1.msra.mxu0 0.0
        %4616 = vmatprep.subr.mxu0 0.0
        %4617 = vmatpush1.msra.mxu0 0.0
        %4618 = vmatprep.subr.mxu0 0.0
        %4619 = vmatpush1.msra.mxu0 0.0
        %4620 = vmatprep.subr.mxu0 0.0
        %4621 = vmatpush1.msra.mxu0 0.0
        %4622 = vmatprep.subr.mxu0 0.0
        %4623 = vmatpush1.msra.mxu0 0.0
        %4624 = vmatprep.subr.mxu0 0.0
        %4625 = vmatpush1.msra.mxu0 0.0
        %4626 = vmatprep.subr.mxu0 0.0
        %4627 = vmatpush1.msra.mxu0 0.0
        %4628 = vmatprep.subr.mxu0 0.0
        %4629 = vmatpush1.msra.mxu0 0.0
        %4630 = vmatprep.subr.mxu0 0.0
        %4631 = vmatpush1.msra.mxu0 %v4527
        %4632 = vmatprep.subr.mxu0 0.0
        %4633 = vmatpush2.msra.mxu0 0.0
        %4634 = vmatprep.subr.mxu0 0.0
        %4635 = vmatpush2.msra.mxu0 0.0
        %4636 = vmatprep.subr.mxu0 0.0
        %4637 = vmatpush2.msra.mxu0 0.0
        %4638 = vmatprep.subr.mxu0 0.0
        %4639 = vmatpush2.msra.mxu0 0.0
        %4640 = vmatprep.subr.mxu0 0.0
        %4641 = vmatpush2.msra.mxu0 0.0
        %4642 = vmatprep.subr.mxu0 0.0
        %4643 = vmatpush2.msra.mxu0 0.0
        %4644 = vmatprep.subr.mxu0 0.0
        %4645 = vmatpush2.msra.mxu0 0.0
        %4646 = vmatprep.subr.mxu0 0.0
        %4647 = vmatpush2.msra.mxu0 0.0
        %4648 = vmatprep.subr.mxu0 0.0
        %4649 = vmatpush2.msra.mxu0 0.0
        %4650 = vmatprep.subr.mxu0 0.0
        %4651 = vmatpush2.msra.mxu0 0.0
        %4652 = vmatprep.subr.mxu0 0.0
        %4653 = vmatpush2.msra.mxu0 0.0
        %4654 = vmatprep.subr.mxu0 0.0
        %4655 = vmatpush2.msra.mxu0 0.0
        %4656 = vmatprep.subr.mxu0 0.0
        %4657 = vmatpush2.msra.mxu0 0.0
        %4658 = vmatprep.subr.mxu0 0.0
        %4659 = vmatpush2.msra.mxu0 0.0
        %4660 = vmatprep.subr.mxu0 0.0
        %4661 = vmatpush2.msra.mxu0 0.0
        %4662 = vmatprep.subr.mxu0 0.0
        %4663 = vmatpush2.msra.mxu0 0.0
        %4664 = vmatprep.mubr.f32.mxu0 0.0
        %4665 = vmatmul.mubr.f32.gmra.mxu0 %v4521
        %v4666 = vpop.f32.mrf.mxu0
        %v4667 = vadd.f32 0.0, %v4666
        %v4668 = vpop.f32.mrf.mxu0
        %4669 = vdwg.mxu0
        %v4670 = vadd.f32 %v4507, %v4596
        %v4671 = vadd.f32 %v4508, %v4598
        %v4672 = vadd.f32 %v4509, %v4667
        %s4673 = scalar_lea.vmem %s4, 16
        %v4674 = vld [vmem:[%s4673] sm:$0x3]
        %4675 = vrot.lane.b32.xlu0 %v3378, 90
        %v4676 = vpop.permute.xlu0 %4675
        %4677 = vrot.lane.b32.xlu0 %v3379, 90
        %v4678 = vpop.permute.xlu0 %4677
        %4679 = vrot.lane.b32.xlu0 %v3380, 90
        %v4680 = vpop.permute.xlu0 %4679
        %v4681 = vsel %vm1659, %v4676, %v4678
        %v4682 = vsel %vm1659, %v4678, %v4680
        %v4684 = vsel %vm330, %v4674, 0
        %v4686 = vsel %vm334, %v4681, 0
        %v4688 = vsel %vm334, %v4682, 0
        %v4690 = vsel %vm334, %v4680, 0
        %4692 = vmatprep.subr.mxu0 0.0
        %4693 = vmatpush1.msra.mxu0 0.0
        %4694 = vmatprep.subr.mxu0 0.0
        %4695 = vmatpush1.msra.mxu0 0.0
        %4696 = vmatprep.subr.mxu0 0.0
        %4697 = vmatpush1.msra.mxu0 0.0
        %4698 = vmatprep.subr.mxu0 0.0
        %4699 = vmatpush1.msra.mxu0 0.0
        %4700 = vmatprep.subr.mxu0 0.0
        %4701 = vmatpush1.msra.mxu0 0.0
        %4702 = vmatprep.subr.mxu0 0.0
        %4703 = vmatpush1.msra.mxu0 0.0
        %4704 = vmatprep.subr.mxu0 0.0
        %4705 = vmatpush1.msra.mxu0 0.0
        %4706 = vmatprep.subr.mxu0 0.0
        %4707 = vmatpush1.msra.mxu0 0.0
        %4708 = vmatprep.subr.mxu0 0.0
        %4709 = vmatpush1.msra.mxu0 0.0
        %4710 = vmatprep.subr.mxu0 0.0
        %4711 = vmatpush1.msra.mxu0 0.0
        %4712 = vmatprep.subr.mxu0 0.0
        %4713 = vmatpush1.msra.mxu0 0.0
        %4714 = vmatprep.subr.mxu0 0.0
        %4715 = vmatpush1.msra.mxu0 0.0
        %4716 = vmatprep.subr.mxu0 0.0
        %4717 = vmatpush1.msra.mxu0 0.0
        %4718 = vmatprep.subr.mxu0 0.0
        %4719 = vmatpush1.msra.mxu0 0.0
        %4720 = vmatprep.subr.mxu0 0.0
        %4721 = vmatpush1.msra.mxu0 0.0
        %4722 = vmatprep.subr.mxu0 %v4688
        %4723 = vmatpush1.msra.mxu0 %v4686
        %4724 = vmatprep.subr.mxu0 0.0
        %4725 = vmatpush2.msra.mxu0 0.0
        %4726 = vmatprep.subr.mxu0 0.0
        %4727 = vmatpush2.msra.mxu0 0.0
        %4728 = vmatprep.subr.mxu0 0.0
        %4729 = vmatpush2.msra.mxu0 0.0
        %4730 = vmatprep.subr.mxu0 0.0
        %4731 = vmatpush2.msra.mxu0 0.0
        %4732 = vmatprep.subr.mxu0 0.0
        %4733 = vmatpush2.msra.mxu0 0.0
        %4734 = vmatprep.subr.mxu0 0.0
        %4735 = vmatpush2.msra.mxu0 0.0
        %4736 = vmatprep.subr.mxu0 0.0
        %4737 = vmatpush2.msra.mxu0 0.0
        %4738 = vmatprep.subr.mxu0 0.0
        %4739 = vmatpush2.msra.mxu0 0.0
        %4740 = vmatprep.subr.mxu0 0.0
        %4741 = vmatpush2.msra.mxu0 0.0
        %4742 = vmatprep.subr.mxu0 0.0
        %4743 = vmatpush2.msra.mxu0 0.0
        %4744 = vmatprep.subr.mxu0 0.0
        %4745 = vmatpush2.msra.mxu0 0.0
        %4746 = vmatprep.subr.mxu0 0.0
        %4747 = vmatpush2.msra.mxu0 0.0
        %4748 = vmatprep.subr.mxu0 0.0
        %4749 = vmatpush2.msra.mxu0 0.0
        %4750 = vmatprep.subr.mxu0 0.0
        %4751 = vmatpush2.msra.mxu0 0.0
        %4752 = vmatprep.subr.mxu0 0.0
        %4753 = vmatpush2.msra.mxu0 0.0
        %4754 = vmatprep.subr.mxu0 0.0
        %4755 = vmatpush2.msra.mxu0 0.0
        %4756 = vmatprep.mubr.f32.mxu0 0.0
        %4757 = vmatmul.mubr.f32.gmra.mxu0 %v4684
        %v4758 = vpop.f32.mrf.mxu0
        %v4759 = vadd.f32 0.0, %v4758
        %v4760 = vpop.f32.mrf.mxu0
        %v4761 = vadd.f32 0.0, %v4760
        %4762 = vdwg.mxu0
        %4763 = vmatprep.subr.mxu0 0.0
        %4764 = vmatpush1.msra.mxu0 0.0
        %4765 = vmatprep.subr.mxu0 0.0
        %4766 = vmatpush1.msra.mxu0 0.0
        %4767 = vmatprep.subr.mxu0 0.0
        %4768 = vmatpush1.msra.mxu0 0.0
        %4769 = vmatprep.subr.mxu0 0.0
        %4770 = vmatpush1.msra.mxu0 0.0
        %4771 = vmatprep.subr.mxu0 0.0
        %4772 = vmatpush1.msra.mxu0 0.0
        %4773 = vmatprep.subr.mxu0 0.0
        %4774 = vmatpush1.msra.mxu0 0.0
        %4775 = vmatprep.subr.mxu0 0.0
        %4776 = vmatpush1.msra.mxu0 0.0
        %4777 = vmatprep.subr.mxu0 0.0
        %4778 = vmatpush1.msra.mxu0 0.0
        %4779 = vmatprep.subr.mxu0 0.0
        %4780 = vmatpush1.msra.mxu0 0.0
        %4781 = vmatprep.subr.mxu0 0.0
        %4782 = vmatpush1.msra.mxu0 0.0
        %4783 = vmatprep.subr.mxu0 0.0
        %4784 = vmatpush1.msra.mxu0 0.0
        %4785 = vmatprep.subr.mxu0 0.0
        %4786 = vmatpush1.msra.mxu0 0.0
        %4787 = vmatprep.subr.mxu0 0.0
        %4788 = vmatpush1.msra.mxu0 0.0
        %4789 = vmatprep.subr.mxu0 0.0
        %4790 = vmatpush1.msra.mxu0 0.0
        %4791 = vmatprep.subr.mxu0 0.0
        %4792 = vmatpush1.msra.mxu0 0.0
        %4793 = vmatprep.subr.mxu0 0.0
        %4794 = vmatpush1.msra.mxu0 %v4690
        %4795 = vmatprep.subr.mxu0 0.0
        %4796 = vmatpush2.msra.mxu0 0.0
        %4797 = vmatprep.subr.mxu0 0.0
        %4798 = vmatpush2.msra.mxu0 0.0
        %4799 = vmatprep.subr.mxu0 0.0
        %4800 = vmatpush2.msra.mxu0 0.0
        %4801 = vmatprep.subr.mxu0 0.0
        %4802 = vmatpush2.msra.mxu0 0.0
        %4803 = vmatprep.subr.mxu0 0.0
        %4804 = vmatpush2.msra.mxu0 0.0
        %4805 = vmatprep.subr.mxu0 0.0
        %4806 = vmatpush2.msra.mxu0 0.0
        %4807 = vmatprep.subr.mxu0 0.0
        %4808 = vmatpush2.msra.mxu0 0.0
        %4809 = vmatprep.subr.mxu0 0.0
        %4810 = vmatpush2.msra.mxu0 0.0
        %4811 = vmatprep.subr.mxu0 0.0
        %4812 = vmatpush2.msra.mxu0 0.0
        %4813 = vmatprep.subr.mxu0 0.0
        %4814 = vmatpush2.msra.mxu0 0.0
        %4815 = vmatprep.subr.mxu0 0.0
        %4816 = vmatpush2.msra.mxu0 0.0
        %4817 = vmatprep.subr.mxu0 0.0
        %4818 = vmatpush2.msra.mxu0 0.0
        %4819 = vmatprep.subr.mxu0 0.0
        %4820 = vmatpush2.msra.mxu0 0.0
        %4821 = vmatprep.subr.mxu0 0.0
        %4822 = vmatpush2.msra.mxu0 0.0
        %4823 = vmatprep.subr.mxu0 0.0
        %4824 = vmatpush2.msra.mxu0 0.0
        %4825 = vmatprep.subr.mxu0 0.0
        %4826 = vmatpush2.msra.mxu0 0.0
        %4827 = vmatprep.mubr.f32.mxu0 0.0
        %4828 = vmatmul.mubr.f32.gmra.mxu0 %v4684
        %v4829 = vpop.f32.mrf.mxu0
        %v4830 = vadd.f32 0.0, %v4829
        %v4831 = vpop.f32.mrf.mxu0
        %4832 = vdwg.mxu0
        %v4833 = vadd.f32 %v4670, %v4759
        %v4834 = vadd.f32 %v4671, %v4761
        %v4835 = vadd.f32 %v4672, %v4830
        %v4836 = vmul.f32 %v4833, %v1819
        %v4837 = vmul.f32 %v4834, %v1823
        %v4838 = vmul.f32 %v4835, %v1827
        %v4839 = vsel %vm1874, %v4836, 0.0
        %v4840 = vsel %vm1874, %v4837, 0.0
        %v4841 = vadd.f32 %v4839, %v4840
        %v4842 = vsel %vm3319, %v4838, 0.0
        %v4843 = vadd.f32 %v4841, %v4842
        %4844 = vadd.xlane.f32.xlu0 %v4843
        %v4845 = vpop.xlane.xlu0 %4844
        %v4846 = vmul.f32 %v4845, 0.00390625
        %v4847 = vsub.f32 %v4833, %v4846
        %v4848 = vsub.f32 %v4834, %v4846
        %v4849 = vsub.f32 %v4835, %v4846
        %v4850 = vmul.f32 %v4847, %v1819
        %v4851 = vmul.f32 %v4848, %v1823
        %v4852 = vmul.f32 %v4849, %v1827
        %v4853 = vmul.f32 %v4850, %v4850
        %v4854 = vmul.f32 %v4851, %v4851
        %v4855 = vmul.f32 %v4852, %v4852
        %v4856 = vsel %vm1874, %v4853, 0.0
        %v4857 = vsel %vm1874, %v4854, 0.0
        %v4858 = vadd.f32 %v4856, %v4857
        %v4859 = vsel %vm3319, %v4855, 0.0
        %v4860 = vadd.f32 %v4858, %v4859
        %4861 = vadd.xlane.f32.xlu0 %v4860
        %v4862 = vpop.xlane.xlu0 %4861
        %v4863 = vmul.f32 %v4862, 0.00390625
        %v4864 = vadd.f32 %v4863, 1e-05
        %v4865 = vrsqrt.pop %v4864
        %v4866 = vmul.f32 %v4850, %v4865
        %v4867 = vmul.f32 %v4851, %v4865
        %v4868 = vmul.f32 %v4852, %v4865
        %vm4869 = vcmp.gt.f32.partialorder %v4866, 0.0
        %vm4870 = vcmp.gt.f32.partialorder %v4867, 0.0
        %vm4871 = vcmp.gt.f32.partialorder %v4868, 0.0
        %v4872 = vmul.f32 %v4866, 0.2
        %v4873 = vmul.f32 %v4867, 0.2
        %v4874 = vmul.f32 %v4868, 0.2
        %v4875 = vsel %vm4869, %v4866, %v4872
        %v4876 = vsel %vm4870, %v4867, %v4873
        %v4877 = vsel %vm4871, %v4868, %v4874
        %v4881 = vrot.slane %v4875, 4
        %v4882 = vrot.slane %v4876, 4
        %v4883 = vrot.slane %v4877, 4
        %4884 = vrot.lane.b32.xlu0 %v4881, 19
        %v4885 = vpop.permute.xlu0 %4884
        %4886 = vrot.lane.b32.xlu0 %v4882, 19
        %v4887 = vpop.permute.xlu0 %4886
        %4888 = vrot.lane.b32.xlu0 %v4883, 19
        %v4889 = vpop.permute.xlu0 %4888
        %v4890 = vsel %vm305, %v4885, %v4887
        %v4891 = vsel %vm305, %v4887, %v4889
        %vm4895 = vcmask 1045660
        %4896 = vst.msk [vmem:[#allocation2] sm:$0x30] %vm4895, %v4885
        %4897 = vst [vmem:[#allocation2 + $0x8] sm:$0x30] %v4890
        %vm4898 = vcmask 414724
        %4899 = vst.msk [vmem:[#allocation2 + $0x10] sm:$0x30] %vm4898, %v4891
        %v4900 = vld [vmem:[#allocation2] sm:$0x3f]
        %v4901 = vld [vmem:[#allocation2 + $0x8] sm:$0x3f]
        %v4902 = vld [vmem:[#allocation2 + $0x10] sm:$0x3f]
        %v4903 = vld [vmem:[%s5] sm:$0x3]
        %s4904 = scalar_lea.vmem %s5, 2
        %v4905 = vld [vmem:[%s4904] sm:$0x3]
        %4909 = vrot.lane.b32.xlu0 %v4900, 127
        %v4910 = vpop.permute.xlu0 %4909
        %4911 = vrot.lane.b32.xlu0 %v4901, 127
        %v4912 = vpop.permute.xlu0 %4911
        %4913 = vrot.lane.b32.xlu0 %v4902, 127
        %v4914 = vpop.permute.xlu0 %4913
        %v4915 = vsel %vm327, %v4910, %v4912
        %v4916 = vsel %vm327, %v4912, %v4914
        %vm4917 = vcmask 48128
        %v4919 = vsel %vm4917, %v4905, 0
        %vm4921 = vcmask 1045504
        %v4922 = vsel %vm4921, %v4915, 0
        %v4924 = vsel %vm4921, %v4916, 0
        %v4926 = vsel %vm4921, %v4914, 0
        %4928 = vmatprep.subr.mxu0 0.0
        %4929 = vmatpush1.msra.mxu0 0.0
        %4930 = vmatprep.subr.mxu0 0.0
        %4931 = vmatpush1.msra.mxu0 0.0
        %4932 = vmatprep.subr.mxu0 0.0
        %4933 = vmatpush1.msra.mxu0 0.0
        %4934 = vmatprep.subr.mxu0 0.0
        %4935 = vmatpush1.msra.mxu0 0.0
        %4936 = vmatprep.subr.mxu0 0.0
        %4937 = vmatpush1.msra.mxu0 0.0
        %4938 = vmatprep.subr.mxu0 0.0
        %4939 = vmatpush1.msra.mxu0 0.0
        %4940 = vmatprep.subr.mxu0 0.0
        %4941 = vmatpush1.msra.mxu0 0.0
        %4942 = vmatprep.subr.mxu0 0.0
        %4943 = vmatpush1.msra.mxu0 0.0
        %4944 = vmatprep.subr.mxu0 0.0
        %4945 = vmatpush1.msra.mxu0 0.0
        %4946 = vmatprep.subr.mxu0 0.0
        %4947 = vmatpush1.msra.mxu0 0.0
        %4948 = vmatprep.subr.mxu0 0.0
        %4949 = vmatpush1.msra.mxu0 0.0
        %4950 = vmatprep.subr.mxu0 0.0
        %4951 = vmatpush1.msra.mxu0 0.0
        %4952 = vmatprep.subr.mxu0 0.0
        %4953 = vmatpush1.msra.mxu0 0.0
        %4954 = vmatprep.subr.mxu0 0.0
        %4955 = vmatpush1.msra.mxu0 0.0
        %4956 = vmatprep.subr.mxu0 0.0
        %4957 = vmatpush1.msra.mxu0 0.0
        %4958 = vmatprep.subr.mxu0 %v4924
        %4959 = vmatpush1.msra.mxu0 %v4922
        %4960 = vmatprep.subr.mxu0 0.0
        %4961 = vmatpush2.msra.mxu0 0.0
        %4962 = vmatprep.subr.mxu0 0.0
        %4963 = vmatpush2.msra.mxu0 0.0
        %4964 = vmatprep.subr.mxu0 0.0
        %4965 = vmatpush2.msra.mxu0 0.0
        %4966 = vmatprep.subr.mxu0 0.0
        %4967 = vmatpush2.msra.mxu0 0.0
        %4968 = vmatprep.subr.mxu0 0.0
        %4969 = vmatpush2.msra.mxu0 0.0
        %4970 = vmatprep.subr.mxu0 0.0
        %4971 = vmatpush2.msra.mxu0 0.0
        %4972 = vmatprep.subr.mxu0 0.0
        %4973 = vmatpush2.msra.mxu0 0.0
        %4974 = vmatprep.subr.mxu0 0.0
        %4975 = vmatpush2.msra.mxu0 0.0
        %4976 = vmatprep.subr.mxu0 0.0
        %4977 = vmatpush2.msra.mxu0 0.0
        %4978 = vmatprep.subr.mxu0 0.0
        %4979 = vmatpush2.msra.mxu0 0.0
        %4980 = vmatprep.subr.mxu0 0.0
        %4981 = vmatpush2.msra.mxu0 0.0
        %4982 = vmatprep.subr.mxu0 0.0
        %4983 = vmatpush2.msra.mxu0 0.0
        %4984 = vmatprep.subr.mxu0 0.0
        %4985 = vmatpush2.msra.mxu0 0.0
        %4986 = vmatprep.subr.mxu0 0.0
        %4987 = vmatpush2.msra.mxu0 0.0
        %4988 = vmatprep.subr.mxu0 0.0
        %4989 = vmatpush2.msra.mxu0 0.0
        %4990 = vmatprep.subr.mxu0 0.0
        %4991 = vmatpush2.msra.mxu0 0.0
        %4992 = vmatprep.mubr.f32.mxu0 0.0
        %4993 = vmatmul.mubr.f32.gmra.mxu0 %v4919
        %v4994 = vpop.f32.mrf.mxu0
        %v4995 = vadd.f32 0.0, %v4994
        %v4996 = vpop.f32.mrf.mxu0
        %v4997 = vadd.f32 0.0, %v4996
        %4998 = vdwg.mxu0
        %4999 = vmatprep.subr.mxu0 0.0
        %5000 = vmatpush1.msra.mxu0 0.0
        %5001 = vmatprep.subr.mxu0 0.0
        %5002 = vmatpush1.msra.mxu0 0.0
        %5003 = vmatprep.subr.mxu0 0.0
        %5004 = vmatpush1.msra.mxu0 0.0
        %5005 = vmatprep.subr.mxu0 0.0
        %5006 = vmatpush1.msra.mxu0 0.0
        %5007 = vmatprep.subr.mxu0 0.0
        %5008 = vmatpush1.msra.mxu0 0.0
        %5009 = vmatprep.subr.mxu0 0.0
        %5010 = vmatpush1.msra.mxu0 0.0
        %5011 = vmatprep.subr.mxu0 0.0
        %5012 = vmatpush1.msra.mxu0 0.0
        %5013 = vmatprep.subr.mxu0 0.0
        %5014 = vmatpush1.msra.mxu0 0.0
        %5015 = vmatprep.subr.mxu0 0.0
        %5016 = vmatpush1.msra.mxu0 0.0
        %5017 = vmatprep.subr.mxu0 0.0
        %5018 = vmatpush1.msra.mxu0 0.0
        %5019 = vmatprep.subr.mxu0 0.0
        %5020 = vmatpush1.msra.mxu0 0.0
        %5021 = vmatprep.subr.mxu0 0.0
        %5022 = vmatpush1.msra.mxu0 0.0
        %5023 = vmatprep.subr.mxu0 0.0
        %5024 = vmatpush1.msra.mxu0 0.0
        %5025 = vmatprep.subr.mxu0 0.0
        %5026 = vmatpush1.msra.mxu0 0.0
        %5027 = vmatprep.subr.mxu0 0.0
        %5028 = vmatpush1.msra.mxu0 0.0
        %5029 = vmatprep.subr.mxu0 0.0
        %5030 = vmatpush1.msra.mxu0 %v4926
        %5031 = vmatprep.subr.mxu0 0.0
        %5032 = vmatpush2.msra.mxu0 0.0
        %5033 = vmatprep.subr.mxu0 0.0
        %5034 = vmatpush2.msra.mxu0 0.0
        %5035 = vmatprep.subr.mxu0 0.0
        %5036 = vmatpush2.msra.mxu0 0.0
        %5037 = vmatprep.subr.mxu0 0.0
        %5038 = vmatpush2.msra.mxu0 0.0
        %5039 = vmatprep.subr.mxu0 0.0
        %5040 = vmatpush2.msra.mxu0 0.0
        %5041 = vmatprep.subr.mxu0 0.0
        %5042 = vmatpush2.msra.mxu0 0.0
        %5043 = vmatprep.subr.mxu0 0.0
        %5044 = vmatpush2.msra.mxu0 0.0
        %5045 = vmatprep.subr.mxu0 0.0
        %5046 = vmatpush2.msra.mxu0 0.0
        %5047 = vmatprep.subr.mxu0 0.0
        %5048 = vmatpush2.msra.mxu0 0.0
        %5049 = vmatprep.subr.mxu0 0.0
        %5050 = vmatpush2.msra.mxu0 0.0
        %5051 = vmatprep.subr.mxu0 0.0
        %5052 = vmatpush2.msra.mxu0 0.0
        %5053 = vmatprep.subr.mxu0 0.0
        %5054 = vmatpush2.msra.mxu0 0.0
        %5055 = vmatprep.subr.mxu0 0.0
        %5056 = vmatpush2.msra.mxu0 0.0
        %5057 = vmatprep.subr.mxu0 0.0
        %5058 = vmatpush2.msra.mxu0 0.0
        %5059 = vmatprep.subr.mxu0 0.0
        %5060 = vmatpush2.msra.mxu0 0.0
        %5061 = vmatprep.subr.mxu0 0.0
        %5062 = vmatpush2.msra.mxu0 0.0
        %5063 = vmatprep.mubr.f32.mxu0 0.0
        %5064 = vmatmul.mubr.f32.gmra.mxu0 %v4919
        %v5065 = vpop.f32.mrf.mxu0
        %v5066 = vadd.f32 0.0, %v5065
        %v5067 = vpop.f32.mrf.mxu0
        %5068 = vdwg.mxu0
        %v5070 = vsel %vm4917, %v4903, 0
        %v5072 = vsel %vm4921, %v4900, 0
        %v5074 = vsel %vm4921, %v4901, 0
        %v5076 = vsel %vm4921, %v4902, 0
        %5078 = vmatprep.subr.mxu0 0.0
        %5079 = vmatpush1.msra.mxu0 0.0
        %5080 = vmatprep.subr.mxu0 0.0
        %5081 = vmatpush1.msra.mxu0 0.0
        %5082 = vmatprep.subr.mxu0 0.0
        %5083 = vmatpush1.msra.mxu0 0.0
        %5084 = vmatprep.subr.mxu0 0.0
        %5085 = vmatpush1.msra.mxu0 0.0
        %5086 = vmatprep.subr.mxu0 0.0
        %5087 = vmatpush1.msra.mxu0 0.0
        %5088 = vmatprep.subr.mxu0 0.0
        %5089 = vmatpush1.msra.mxu0 0.0
        %5090 = vmatprep.subr.mxu0 0.0
        %5091 = vmatpush1.msra.mxu0 0.0
        %5092 = vmatprep.subr.mxu0 0.0
        %5093 = vmatpush1.msra.mxu0 0.0
        %5094 = vmatprep.subr.mxu0 0.0
        %5095 = vmatpush1.msra.mxu0 0.0
        %5096 = vmatprep.subr.mxu0 0.0
        %5097 = vmatpush1.msra.mxu0 0.0
        %5098 = vmatprep.subr.mxu0 0.0
        %5099 = vmatpush1.msra.mxu0 0.0
        %5100 = vmatprep.subr.mxu0 0.0
        %5101 = vmatpush1.msra.mxu0 0.0
        %5102 = vmatprep.subr.mxu0 0.0
        %5103 = vmatpush1.msra.mxu0 0.0
        %5104 = vmatprep.subr.mxu0 0.0
        %5105 = vmatpush1.msra.mxu0 0.0
        %5106 = vmatprep.subr.mxu0 0.0
        %5107 = vmatpush1.msra.mxu0 0.0
        %5108 = vmatprep.subr.mxu0 %v5074
        %5109 = vmatpush1.msra.mxu0 %v5072
        %5110 = vmatprep.subr.mxu0 0.0
        %5111 = vmatpush2.msra.mxu0 0.0
        %5112 = vmatprep.subr.mxu0 0.0
        %5113 = vmatpush2.msra.mxu0 0.0
        %5114 = vmatprep.subr.mxu0 0.0
        %5115 = vmatpush2.msra.mxu0 0.0
        %5116 = vmatprep.subr.mxu0 0.0
        %5117 = vmatpush2.msra.mxu0 0.0
        %5118 = vmatprep.subr.mxu0 0.0
        %5119 = vmatpush2.msra.mxu0 0.0
        %5120 = vmatprep.subr.mxu0 0.0
        %5121 = vmatpush2.msra.mxu0 0.0
        %5122 = vmatprep.subr.mxu0 0.0
        %5123 = vmatpush2.msra.mxu0 0.0
        %5124 = vmatprep.subr.mxu0 0.0
        %5125 = vmatpush2.msra.mxu0 0.0
        %5126 = vmatprep.subr.mxu0 0.0
        %5127 = vmatpush2.msra.mxu0 0.0
        %5128 = vmatprep.subr.mxu0 0.0
        %5129 = vmatpush2.msra.mxu0 0.0
        %5130 = vmatprep.subr.mxu0 0.0
        %5131 = vmatpush2.msra.mxu0 0.0
        %5132 = vmatprep.subr.mxu0 0.0
        %5133 = vmatpush2.msra.mxu0 0.0
        %5134 = vmatprep.subr.mxu0 0.0
        %5135 = vmatpush2.msra.mxu0 0.0
        %5136 = vmatprep.subr.mxu0 0.0
        %5137 = vmatpush2.msra.mxu0 0.0
        %5138 = vmatprep.subr.mxu0 0.0
        %5139 = vmatpush2.msra.mxu0 0.0
        %5140 = vmatprep.subr.mxu0 0.0
        %5141 = vmatpush2.msra.mxu0 0.0
        %5142 = vmatprep.mubr.f32.mxu0 0.0
        %5143 = vmatmul.mubr.f32.gmra.mxu0 %v5070
        %v5144 = vpop.f32.mrf.mxu0
        %v5145 = vadd.f32 %v4995, %v5144
        %v5146 = vpop.f32.mrf.mxu0
        %v5147 = vadd.f32 %v4997, %v5146
        %5148 = vdwg.mxu0
        %5149 = vmatprep.subr.mxu0 0.0
        %5150 = vmatpush1.msra.mxu0 0.0
        %5151 = vmatprep.subr.mxu0 0.0
        %5152 = vmatpush1.msra.mxu0 0.0
        %5153 = vmatprep.subr.mxu0 0.0
        %5154 = vmatpush1.msra.mxu0 0.0
        %5155 = vmatprep.subr.mxu0 0.0
        %5156 = vmatpush1.msra.mxu0 0.0
        %5157 = vmatprep.subr.mxu0 0.0
        %5158 = vmatpush1.msra.mxu0 0.0
        %5159 = vmatprep.subr.mxu0 0.0
        %5160 = vmatpush1.msra.mxu0 0.0
        %5161 = vmatprep.subr.mxu0 0.0
        %5162 = vmatpush1.msra.mxu0 0.0
        %5163 = vmatprep.subr.mxu0 0.0
        %5164 = vmatpush1.msra.mxu0 0.0
        %5165 = vmatprep.subr.mxu0 0.0
        %5166 = vmatpush1.msra.mxu0 0.0
        %5167 = vmatprep.subr.mxu0 0.0
        %5168 = vmatpush1.msra.mxu0 0.0
        %5169 = vmatprep.subr.mxu0 0.0
        %5170 = vmatpush1.msra.mxu0 0.0
        %5171 = vmatprep.subr.mxu0 0.0
        %5172 = vmatpush1.msra.mxu0 0.0
        %5173 = vmatprep.subr.mxu0 0.0
        %5174 = vmatpush1.msra.mxu0 0.0
        %5175 = vmatprep.subr.mxu0 0.0
        %5176 = vmatpush1.msra.mxu0 0.0
        %5177 = vmatprep.subr.mxu0 0.0
        %5178 = vmatpush1.msra.mxu0 0.0
        %5179 = vmatprep.subr.mxu0 0.0
        %5180 = vmatpush1.msra.mxu0 %v5076
        %5181 = vmatprep.subr.mxu0 0.0
        %5182 = vmatpush2.msra.mxu0 0.0
        %5183 = vmatprep.subr.mxu0 0.0
        %5184 = vmatpush2.msra.mxu0 0.0
        %5185 = vmatprep.subr.mxu0 0.0
        %5186 = vmatpush2.msra.mxu0 0.0
        %5187 = vmatprep.subr.mxu0 0.0
        %5188 = vmatpush2.msra.mxu0 0.0
        %5189 = vmatprep.subr.mxu0 0.0
        %5190 = vmatpush2.msra.mxu0 0.0
        %5191 = vmatprep.subr.mxu0 0.0
        %5192 = vmatpush2.msra.mxu0 0.0
        %5193 = vmatprep.subr.mxu0 0.0
        %5194 = vmatpush2.msra.mxu0 0.0
        %5195 = vmatprep.subr.mxu0 0.0
        %5196 = vmatpush2.msra.mxu0 0.0
        %5197 = vmatprep.subr.mxu0 0.0
        %5198 = vmatpush2.msra.mxu0 0.0
        %5199 = vmatprep.subr.mxu0 0.0
        %5200 = vmatpush2.msra.mxu0 0.0
        %5201 = vmatprep.subr.mxu0 0.0
        %5202 = vmatpush2.msra.mxu0 0.0
        %5203 = vmatprep.subr.mxu0 0.0
        %5204 = vmatpush2.msra.mxu0 0.0
        %5205 = vmatprep.subr.mxu0 0.0
        %5206 = vmatpush2.msra.mxu0 0.0
        %5207 = vmatprep.subr.mxu0 0.0
        %5208 = vmatpush2.msra.mxu0 0.0
        %5209 = vmatprep.subr.mxu0 0.0
        %5210 = vmatpush2.msra.mxu0 0.0
        %5211 = vmatprep.subr.mxu0 0.0
        %5212 = vmatpush2.msra.mxu0 0.0
        %5213 = vmatprep.mubr.f32.mxu0 0.0
        %5214 = vmatmul.mubr.f32.gmra.mxu0 %v5070
        %v5215 = vpop.f32.mrf.mxu0
        %v5216 = vadd.f32 %v5066, %v5215
        %v5217 = vpop.f32.mrf.mxu0
        %5218 = vdwg.mxu0
        %s5219 = scalar_lea.vmem %s5, 4
        %v5220 = vld [vmem:[%s5219] sm:$0x3]
        %5221 = vrot.lane.b32.xlu0 %v4900, 126
        %v5222 = vpop.permute.xlu0 %5221
        %5223 = vrot.lane.b32.xlu0 %v4901, 126
        %v5224 = vpop.permute.xlu0 %5223
        %5225 = vrot.lane.b32.xlu0 %v4902, 126
        %v5226 = vpop.permute.xlu0 %5225
        %v5227 = vsel %vm645, %v5222, %v5224
        %v5228 = vsel %vm645, %v5224, %v5226
        %v5230 = vsel %vm4917, %v5220, 0
        %v5232 = vsel %vm4921, %v5227, 0
        %v5234 = vsel %vm4921, %v5228, 0
        %v5236 = vsel %vm4921, %v5226, 0
        %5238 = vmatprep.subr.mxu0 0.0
        %5239 = vmatpush1.msra.mxu0 0.0
        %5240 = vmatprep.subr.mxu0 0.0
        %5241 = vmatpush1.msra.mxu0 0.0
        %5242 = vmatprep.subr.mxu0 0.0
        %5243 = vmatpush1.msra.mxu0 0.0
        %5244 = vmatprep.subr.mxu0 0.0
        %5245 = vmatpush1.msra.mxu0 0.0
        %5246 = vmatprep.subr.mxu0 0.0
        %5247 = vmatpush1.msra.mxu0 0.0
        %5248 = vmatprep.subr.mxu0 0.0
        %5249 = vmatpush1.msra.mxu0 0.0
        %5250 = vmatprep.subr.mxu0 0.0
        %5251 = vmatpush1.msra.mxu0 0.0
        %5252 = vmatprep.subr.mxu0 0.0
        %5253 = vmatpush1.msra.mxu0 0.0
        %5254 = vmatprep.subr.mxu0 0.0
        %5255 = vmatpush1.msra.mxu0 0.0
        %5256 = vmatprep.subr.mxu0 0.0
        %5257 = vmatpush1.msra.mxu0 0.0
        %5258 = vmatprep.subr.mxu0 0.0
        %5259 = vmatpush1.msra.mxu0 0.0
        %5260 = vmatprep.subr.mxu0 0.0
        %5261 = vmatpush1.msra.mxu0 0.0
        %5262 = vmatprep.subr.mxu0 0.0
        %5263 = vmatpush1.msra.mxu0 0.0
        %5264 = vmatprep.subr.mxu0 0.0
        %5265 = vmatpush1.msra.mxu0 0.0
        %5266 = vmatprep.subr.mxu0 0.0
        %5267 = vmatpush1.msra.mxu0 0.0
        %5268 = vmatprep.subr.mxu0 %v5234
        %5269 = vmatpush1.msra.mxu0 %v5232
        %5270 = vmatprep.subr.mxu0 0.0
        %5271 = vmatpush2.msra.mxu0 0.0
        %5272 = vmatprep.subr.mxu0 0.0
        %5273 = vmatpush2.msra.mxu0 0.0
        %5274 = vmatprep.subr.mxu0 0.0
        %5275 = vmatpush2.msra.mxu0 0.0
        %5276 = vmatprep.subr.mxu0 0.0
        %5277 = vmatpush2.msra.mxu0 0.0
        %5278 = vmatprep.subr.mxu0 0.0
        %5279 = vmatpush2.msra.mxu0 0.0
        %5280 = vmatprep.subr.mxu0 0.0
        %5281 = vmatpush2.msra.mxu0 0.0
        %5282 = vmatprep.subr.mxu0 0.0
        %5283 = vmatpush2.msra.mxu0 0.0
        %5284 = vmatprep.subr.mxu0 0.0
        %5285 = vmatpush2.msra.mxu0 0.0
        %5286 = vmatprep.subr.mxu0 0.0
        %5287 = vmatpush2.msra.mxu0 0.0
        %5288 = vmatprep.subr.mxu0 0.0
        %5289 = vmatpush2.msra.mxu0 0.0
        %5290 = vmatprep.subr.mxu0 0.0
        %5291 = vmatpush2.msra.mxu0 0.0
        %5292 = vmatprep.subr.mxu0 0.0
        %5293 = vmatpush2.msra.mxu0 0.0
        %5294 = vmatprep.subr.mxu0 0.0
        %5295 = vmatpush2.msra.mxu0 0.0
        %5296 = vmatprep.subr.mxu0 0.0
        %5297 = vmatpush2.msra.mxu0 0.0
        %5298 = vmatprep.subr.mxu0 0.0
        %5299 = vmatpush2.msra.mxu0 0.0
        %5300 = vmatprep.subr.mxu0 0.0
        %5301 = vmatpush2.msra.mxu0 0.0
        %5302 = vmatprep.mubr.f32.mxu0 0.0
        %5303 = vmatmul.mubr.f32.gmra.mxu0 %v5230
        %v5304 = vpop.f32.mrf.mxu0
        %v5305 = vadd.f32 0.0, %v5304
        %v5306 = vpop.f32.mrf.mxu0
        %v5307 = vadd.f32 0.0, %v5306
        %5308 = vdwg.mxu0
        %5309 = vmatprep.subr.mxu0 0.0
        %5310 = vmatpush1.msra.mxu0 0.0
        %5311 = vmatprep.subr.mxu0 0.0
        %5312 = vmatpush1.msra.mxu0 0.0
        %5313 = vmatprep.subr.mxu0 0.0
        %5314 = vmatpush1.msra.mxu0 0.0
        %5315 = vmatprep.subr.mxu0 0.0
        %5316 = vmatpush1.msra.mxu0 0.0
        %5317 = vmatprep.subr.mxu0 0.0
        %5318 = vmatpush1.msra.mxu0 0.0
        %5319 = vmatprep.subr.mxu0 0.0
        %5320 = vmatpush1.msra.mxu0 0.0
        %5321 = vmatprep.subr.mxu0 0.0
        %5322 = vmatpush1.msra.mxu0 0.0
        %5323 = vmatprep.subr.mxu0 0.0
        %5324 = vmatpush1.msra.mxu0 0.0
        %5325 = vmatprep.subr.mxu0 0.0
        %5326 = vmatpush1.msra.mxu0 0.0
        %5327 = vmatprep.subr.mxu0 0.0
        %5328 = vmatpush1.msra.mxu0 0.0
        %5329 = vmatprep.subr.mxu0 0.0
        %5330 = vmatpush1.msra.mxu0 0.0
        %5331 = vmatprep.subr.mxu0 0.0
        %5332 = vmatpush1.msra.mxu0 0.0
        %5333 = vmatprep.subr.mxu0 0.0
        %5334 = vmatpush1.msra.mxu0 0.0
        %5335 = vmatprep.subr.mxu0 0.0
        %5336 = vmatpush1.msra.mxu0 0.0
        %5337 = vmatprep.subr.mxu0 0.0
        %5338 = vmatpush1.msra.mxu0 0.0
        %5339 = vmatprep.subr.mxu0 0.0
        %5340 = vmatpush1.msra.mxu0 %v5236
        %5341 = vmatprep.subr.mxu0 0.0
        %5342 = vmatpush2.msra.mxu0 0.0
        %5343 = vmatprep.subr.mxu0 0.0
        %5344 = vmatpush2.msra.mxu0 0.0
        %5345 = vmatprep.subr.mxu0 0.0
        %5346 = vmatpush2.msra.mxu0 0.0
        %5347 = vmatprep.subr.mxu0 0.0
        %5348 = vmatpush2.msra.mxu0 0.0
        %5349 = vmatprep.subr.mxu0 0.0
        %5350 = vmatpush2.msra.mxu0 0.0
        %5351 = vmatprep.subr.mxu0 0.0
        %5352 = vmatpush2.msra.mxu0 0.0
        %5353 = vmatprep.subr.mxu0 0.0
        %5354 = vmatpush2.msra.mxu0 0.0
        %5355 = vmatprep.subr.mxu0 0.0
        %5356 = vmatpush2.msra.mxu0 0.0
        %5357 = vmatprep.subr.mxu0 0.0
        %5358 = vmatpush2.msra.mxu0 0.0
        %5359 = vmatprep.subr.mxu0 0.0
        %5360 = vmatpush2.msra.mxu0 0.0
        %5361 = vmatprep.subr.mxu0 0.0
        %5362 = vmatpush2.msra.mxu0 0.0
        %5363 = vmatprep.subr.mxu0 0.0
        %5364 = vmatpush2.msra.mxu0 0.0
        %5365 = vmatprep.subr.mxu0 0.0
        %5366 = vmatpush2.msra.mxu0 0.0
        %5367 = vmatprep.subr.mxu0 0.0
        %5368 = vmatpush2.msra.mxu0 0.0
        %5369 = vmatprep.subr.mxu0 0.0
        %5370 = vmatpush2.msra.mxu0 0.0
        %5371 = vmatprep.subr.mxu0 0.0
        %5372 = vmatpush2.msra.mxu0 0.0
        %5373 = vmatprep.mubr.f32.mxu0 0.0
        %5374 = vmatmul.mubr.f32.gmra.mxu0 %v5230
        %v5375 = vpop.f32.mrf.mxu0
        %v5376 = vadd.f32 0.0, %v5375
        %v5377 = vpop.f32.mrf.mxu0
        %5378 = vdwg.mxu0
        %v5379 = vadd.f32 %v5145, %v5305
        %v5380 = vadd.f32 %v5147, %v5307
        %v5381 = vadd.f32 %v5216, %v5376
        %s5382 = scalar_lea.vmem %s5, 6
        %v5383 = vld [vmem:[%s5382] sm:$0x3]
        %5384 = vrot.lane.b32.xlu0 %v4900, 110
        %v5385 = vpop.permute.xlu0 %5384
        %5386 = vrot.lane.b32.xlu0 %v4901, 110
        %v5387 = vpop.permute.xlu0 %5386
        %5388 = vrot.lane.b32.xlu0 %v4902, 110
        %v5389 = vpop.permute.xlu0 %5388
        %v5390 = vsel %vm814, %v5385, %v5387
        %v5391 = vsel %vm814, %v5387, %v5389
        %v5393 = vsel %vm4917, %v5383, 0
        %v5395 = vsel %vm4921, %v5390, 0
        %v5397 = vsel %vm4921, %v5391, 0
        %v5399 = vsel %vm4921, %v5389, 0
        %5401 = vmatprep.subr.mxu0 0.0
        %5402 = vmatpush1.msra.mxu0 0.0
        %5403 = vmatprep.subr.mxu0 0.0
        %5404 = vmatpush1.msra.mxu0 0.0
        %5405 = vmatprep.subr.mxu0 0.0
        %5406 = vmatpush1.msra.mxu0 0.0
        %5407 = vmatprep.subr.mxu0 0.0
        %5408 = vmatpush1.msra.mxu0 0.0
        %5409 = vmatprep.subr.mxu0 0.0
        %5410 = vmatpush1.msra.mxu0 0.0
        %5411 = vmatprep.subr.mxu0 0.0
        %5412 = vmatpush1.msra.mxu0 0.0
        %5413 = vmatprep.subr.mxu0 0.0
        %5414 = vmatpush1.msra.mxu0 0.0
        %5415 = vmatprep.subr.mxu0 0.0
        %5416 = vmatpush1.msra.mxu0 0.0
        %5417 = vmatprep.subr.mxu0 0.0
        %5418 = vmatpush1.msra.mxu0 0.0
        %5419 = vmatprep.subr.mxu0 0.0
        %5420 = vmatpush1.msra.mxu0 0.0
        %5421 = vmatprep.subr.mxu0 0.0
        %5422 = vmatpush1.msra.mxu0 0.0
        %5423 = vmatprep.subr.mxu0 0.0
        %5424 = vmatpush1.msra.mxu0 0.0
        %5425 = vmatprep.subr.mxu0 0.0
        %5426 = vmatpush1.msra.mxu0 0.0
        %5427 = vmatprep.subr.mxu0 0.0
        %5428 = vmatpush1.msra.mxu0 0.0
        %5429 = vmatprep.subr.mxu0 0.0
        %5430 = vmatpush1.msra.mxu0 0.0
        %5431 = vmatprep.subr.mxu0 %v5397
        %5432 = vmatpush1.msra.mxu0 %v5395
        %5433 = vmatprep.subr.mxu0 0.0
        %5434 = vmatpush2.msra.mxu0 0.0
        %5435 = vmatprep.subr.mxu0 0.0
        %5436 = vmatpush2.msra.mxu0 0.0
        %5437 = vmatprep.subr.mxu0 0.0
        %5438 = vmatpush2.msra.mxu0 0.0
        %5439 = vmatprep.subr.mxu0 0.0
        %5440 = vmatpush2.msra.mxu0 0.0
        %5441 = vmatprep.subr.mxu0 0.0
        %5442 = vmatpush2.msra.mxu0 0.0
        %5443 = vmatprep.subr.mxu0 0.0
        %5444 = vmatpush2.msra.mxu0 0.0
        %5445 = vmatprep.subr.mxu0 0.0
        %5446 = vmatpush2.msra.mxu0 0.0
        %5447 = vmatprep.subr.mxu0 0.0
        %5448 = vmatpush2.msra.mxu0 0.0
        %5449 = vmatprep.subr.mxu0 0.0
        %5450 = vmatpush2.msra.mxu0 0.0
        %5451 = vmatprep.subr.mxu0 0.0
        %5452 = vmatpush2.msra.mxu0 0.0
        %5453 = vmatprep.subr.mxu0 0.0
        %5454 = vmatpush2.msra.mxu0 0.0
        %5455 = vmatprep.subr.mxu0 0.0
        %5456 = vmatpush2.msra.mxu0 0.0
        %5457 = vmatprep.subr.mxu0 0.0
        %5458 = vmatpush2.msra.mxu0 0.0
        %5459 = vmatprep.subr.mxu0 0.0
        %5460 = vmatpush2.msra.mxu0 0.0
        %5461 = vmatprep.subr.mxu0 0.0
        %5462 = vmatpush2.msra.mxu0 0.0
        %5463 = vmatprep.subr.mxu0 0.0
        %5464 = vmatpush2.msra.mxu0 0.0
        %5465 = vmatprep.mubr.f32.mxu0 0.0
        %5466 = vmatmul.mubr.f32.gmra.mxu0 %v5393
        %v5467 = vpop.f32.mrf.mxu0
        %v5468 = vadd.f32 0.0, %v5467
        %v5469 = vpop.f32.mrf.mxu0
        %v5470 = vadd.f32 0.0, %v5469
        %5471 = vdwg.mxu0
        %5472 = vmatprep.subr.mxu0 0.0
        %5473 = vmatpush1.msra.mxu0 0.0
        %5474 = vmatprep.subr.mxu0 0.0
        %5475 = vmatpush1.msra.mxu0 0.0
        %5476 = vmatprep.subr.mxu0 0.0
        %5477 = vmatpush1.msra.mxu0 0.0
        %5478 = vmatprep.subr.mxu0 0.0
        %5479 = vmatpush1.msra.mxu0 0.0
        %5480 = vmatprep.subr.mxu0 0.0
        %5481 = vmatpush1.msra.mxu0 0.0
        %5482 = vmatprep.subr.mxu0 0.0
        %5483 = vmatpush1.msra.mxu0 0.0
        %5484 = vmatprep.subr.mxu0 0.0
        %5485 = vmatpush1.msra.mxu0 0.0
        %5486 = vmatprep.subr.mxu0 0.0
        %5487 = vmatpush1.msra.mxu0 0.0
        %5488 = vmatprep.subr.mxu0 0.0
        %5489 = vmatpush1.msra.mxu0 0.0
        %5490 = vmatprep.subr.mxu0 0.0
        %5491 = vmatpush1.msra.mxu0 0.0
        %5492 = vmatprep.subr.mxu0 0.0
        %5493 = vmatpush1.msra.mxu0 0.0
        %5494 = vmatprep.subr.mxu0 0.0
        %5495 = vmatpush1.msra.mxu0 0.0
        %5496 = vmatprep.subr.mxu0 0.0
        %5497 = vmatpush1.msra.mxu0 0.0
        %5498 = vmatprep.subr.mxu0 0.0
        %5499 = vmatpush1.msra.mxu0 0.0
        %5500 = vmatprep.subr.mxu0 0.0
        %5501 = vmatpush1.msra.mxu0 0.0
        %5502 = vmatprep.subr.mxu0 0.0
        %5503 = vmatpush1.msra.mxu0 %v5399
        %5504 = vmatprep.subr.mxu0 0.0
        %5505 = vmatpush2.msra.mxu0 0.0
        %5506 = vmatprep.subr.mxu0 0.0
        %5507 = vmatpush2.msra.mxu0 0.0
        %5508 = vmatprep.subr.mxu0 0.0
        %5509 = vmatpush2.msra.mxu0 0.0
        %5510 = vmatprep.subr.mxu0 0.0
        %5511 = vmatpush2.msra.mxu0 0.0
        %5512 = vmatprep.subr.mxu0 0.0
        %5513 = vmatpush2.msra.mxu0 0.0
        %5514 = vmatprep.subr.mxu0 0.0
        %5515 = vmatpush2.msra.mxu0 0.0
        %5516 = vmatprep.subr.mxu0 0.0
        %5517 = vmatpush2.msra.mxu0 0.0
        %5518 = vmatprep.subr.mxu0 0.0
        %5519 = vmatpush2.msra.mxu0 0.0
        %5520 = vmatprep.subr.mxu0 0.0
        %5521 = vmatpush2.msra.mxu0 0.0
        %5522 = vmatprep.subr.mxu0 0.0
        %5523 = vmatpush2.msra.mxu0 0.0
        %5524 = vmatprep.subr.mxu0 0.0
        %5525 = vmatpush2.msra.mxu0 0.0
        %5526 = vmatprep.subr.mxu0 0.0
        %5527 = vmatpush2.msra.mxu0 0.0
        %5528 = vmatprep.subr.mxu0 0.0
        %5529 = vmatpush2.msra.mxu0 0.0
        %5530 = vmatprep.subr.mxu0 0.0
        %5531 = vmatpush2.msra.mxu0 0.0
        %5532 = vmatprep.subr.mxu0 0.0
        %5533 = vmatpush2.msra.mxu0 0.0
        %5534 = vmatprep.subr.mxu0 0.0
        %5535 = vmatpush2.msra.mxu0 0.0
        %5536 = vmatprep.mubr.f32.mxu0 0.0
        %5537 = vmatmul.mubr.f32.gmra.mxu0 %v5393
        %v5538 = vpop.f32.mrf.mxu0
        %v5539 = vadd.f32 0.0, %v5538
        %v5540 = vpop.f32.mrf.mxu0
        %5541 = vdwg.mxu0
        %v5542 = vadd.f32 %v5379, %v5468
        %v5543 = vadd.f32 %v5380, %v5470
        %v5544 = vadd.f32 %v5381, %v5539
        %s5545 = scalar_lea.vmem %s5, 8
        %v5546 = vld [vmem:[%s5545] sm:$0x3]
        %5547 = vrot.lane.b32.xlu0 %v4900, 109
        %v5548 = vpop.permute.xlu0 %5547
        %5549 = vrot.lane.b32.xlu0 %v4901, 109
        %v5550 = vpop.permute.xlu0 %5549
        %5551 = vrot.lane.b32.xlu0 %v4902, 109
        %v5552 = vpop.permute.xlu0 %5551
        %v5553 = vsel %vm983, %v5548, %v5550
        %v5554 = vsel %vm983, %v5550, %v5552
        %v5556 = vsel %vm4917, %v5546, 0
        %v5558 = vsel %vm4921, %v5553, 0
        %v5560 = vsel %vm4921, %v5554, 0
        %v5562 = vsel %vm4921, %v5552, 0
        %5564 = vmatprep.subr.mxu0 0.0
        %5565 = vmatpush1.msra.mxu0 0.0
        %5566 = vmatprep.subr.mxu0 0.0
        %5567 = vmatpush1.msra.mxu0 0.0
        %5568 = vmatprep.subr.mxu0 0.0
        %5569 = vmatpush1.msra.mxu0 0.0
        %5570 = vmatprep.subr.mxu0 0.0
        %5571 = vmatpush1.msra.mxu0 0.0
        %5572 = vmatprep.subr.mxu0 0.0
        %5573 = vmatpush1.msra.mxu0 0.0
        %5574 = vmatprep.subr.mxu0 0.0
        %5575 = vmatpush1.msra.mxu0 0.0
        %5576 = vmatprep.subr.mxu0 0.0
        %5577 = vmatpush1.msra.mxu0 0.0
        %5578 = vmatprep.subr.mxu0 0.0
        %5579 = vmatpush1.msra.mxu0 0.0
        %5580 = vmatprep.subr.mxu0 0.0
        %5581 = vmatpush1.msra.mxu0 0.0
        %5582 = vmatprep.subr.mxu0 0.0
        %5583 = vmatpush1.msra.mxu0 0.0
        %5584 = vmatprep.subr.mxu0 0.0
        %5585 = vmatpush1.msra.mxu0 0.0
        %5586 = vmatprep.subr.mxu0 0.0
        %5587 = vmatpush1.msra.mxu0 0.0
        %5588 = vmatprep.subr.mxu0 0.0
        %5589 = vmatpush1.msra.mxu0 0.0
        %5590 = vmatprep.subr.mxu0 0.0
        %5591 = vmatpush1.msra.mxu0 0.0
        %5592 = vmatprep.subr.mxu0 0.0
        %5593 = vmatpush1.msra.mxu0 0.0
        %5594 = vmatprep.subr.mxu0 %v5560
        %5595 = vmatpush1.msra.mxu0 %v5558
        %5596 = vmatprep.subr.mxu0 0.0
        %5597 = vmatpush2.msra.mxu0 0.0
        %5598 = vmatprep.subr.mxu0 0.0
        %5599 = vmatpush2.msra.mxu0 0.0
        %5600 = vmatprep.subr.mxu0 0.0
        %5601 = vmatpush2.msra.mxu0 0.0
        %5602 = vmatprep.subr.mxu0 0.0
        %5603 = vmatpush2.msra.mxu0 0.0
        %5604 = vmatprep.subr.mxu0 0.0
        %5605 = vmatpush2.msra.mxu0 0.0
        %5606 = vmatprep.subr.mxu0 0.0
        %5607 = vmatpush2.msra.mxu0 0.0
        %5608 = vmatprep.subr.mxu0 0.0
        %5609 = vmatpush2.msra.mxu0 0.0
        %5610 = vmatprep.subr.mxu0 0.0
        %5611 = vmatpush2.msra.mxu0 0.0
        %5612 = vmatprep.subr.mxu0 0.0
        %5613 = vmatpush2.msra.mxu0 0.0
        %5614 = vmatprep.subr.mxu0 0.0
        %5615 = vmatpush2.msra.mxu0 0.0
        %5616 = vmatprep.subr.mxu0 0.0
        %5617 = vmatpush2.msra.mxu0 0.0
        %5618 = vmatprep.subr.mxu0 0.0
        %5619 = vmatpush2.msra.mxu0 0.0
        %5620 = vmatprep.subr.mxu0 0.0
        %5621 = vmatpush2.msra.mxu0 0.0
        %5622 = vmatprep.subr.mxu0 0.0
        %5623 = vmatpush2.msra.mxu0 0.0
        %5624 = vmatprep.subr.mxu0 0.0
        %5625 = vmatpush2.msra.mxu0 0.0
        %5626 = vmatprep.subr.mxu0 0.0
        %5627 = vmatpush2.msra.mxu0 0.0
        %5628 = vmatprep.mubr.f32.mxu0 0.0
        %5629 = vmatmul.mubr.f32.gmra.mxu0 %v5556
        %v5630 = vpop.f32.mrf.mxu0
        %v5631 = vadd.f32 0.0, %v5630
        %v5632 = vpop.f32.mrf.mxu0
        %v5633 = vadd.f32 0.0, %v5632
        %5634 = vdwg.mxu0
        %5635 = vmatprep.subr.mxu0 0.0
        %5636 = vmatpush1.msra.mxu0 0.0
        %5637 = vmatprep.subr.mxu0 0.0
        %5638 = vmatpush1.msra.mxu0 0.0
        %5639 = vmatprep.subr.mxu0 0.0
        %5640 = vmatpush1.msra.mxu0 0.0
        %5641 = vmatprep.subr.mxu0 0.0
        %5642 = vmatpush1.msra.mxu0 0.0
        %5643 = vmatprep.subr.mxu0 0.0
        %5644 = vmatpush1.msra.mxu0 0.0
        %5645 = vmatprep.subr.mxu0 0.0
        %5646 = vmatpush1.msra.mxu0 0.0
        %5647 = vmatprep.subr.mxu0 0.0
        %5648 = vmatpush1.msra.mxu0 0.0
        %5649 = vmatprep.subr.mxu0 0.0
        %5650 = vmatpush1.msra.mxu0 0.0
        %5651 = vmatprep.subr.mxu0 0.0
        %5652 = vmatpush1.msra.mxu0 0.0
        %5653 = vmatprep.subr.mxu0 0.0
        %5654 = vmatpush1.msra.mxu0 0.0
        %5655 = vmatprep.subr.mxu0 0.0
        %5656 = vmatpush1.msra.mxu0 0.0
        %5657 = vmatprep.subr.mxu0 0.0
        %5658 = vmatpush1.msra.mxu0 0.0
        %5659 = vmatprep.subr.mxu0 0.0
        %5660 = vmatpush1.msra.mxu0 0.0
        %5661 = vmatprep.subr.mxu0 0.0
        %5662 = vmatpush1.msra.mxu0 0.0
        %5663 = vmatprep.subr.mxu0 0.0
        %5664 = vmatpush1.msra.mxu0 0.0
        %5665 = vmatprep.subr.mxu0 0.0
        %5666 = vmatpush1.msra.mxu0 %v5562
        %5667 = vmatprep.subr.mxu0 0.0
        %5668 = vmatpush2.msra.mxu0 0.0
        %5669 = vmatprep.subr.mxu0 0.0
        %5670 = vmatpush2.msra.mxu0 0.0
        %5671 = vmatprep.subr.mxu0 0.0
        %5672 = vmatpush2.msra.mxu0 0.0
        %5673 = vmatprep.subr.mxu0 0.0
        %5674 = vmatpush2.msra.mxu0 0.0
        %5675 = vmatprep.subr.mxu0 0.0
        %5676 = vmatpush2.msra.mxu0 0.0
        %5677 = vmatprep.subr.mxu0 0.0
        %5678 = vmatpush2.msra.mxu0 0.0
        %5679 = vmatprep.subr.mxu0 0.0
        %5680 = vmatpush2.msra.mxu0 0.0
        %5681 = vmatprep.subr.mxu0 0.0
        %5682 = vmatpush2.msra.mxu0 0.0
        %5683 = vmatprep.subr.mxu0 0.0
        %5684 = vmatpush2.msra.mxu0 0.0
        %5685 = vmatprep.subr.mxu0 0.0
        %5686 = vmatpush2.msra.mxu0 0.0
        %5687 = vmatprep.subr.mxu0 0.0
        %5688 = vmatpush2.msra.mxu0 0.0
        %5689 = vmatprep.subr.mxu0 0.0
        %5690 = vmatpush2.msra.mxu0 0.0
        %5691 = vmatprep.subr.mxu0 0.0
        %5692 = vmatpush2.msra.mxu0 0.0
        %5693 = vmatprep.subr.mxu0 0.0
        %5694 = vmatpush2.msra.mxu0 0.0
        %5695 = vmatprep.subr.mxu0 0.0
        %5696 = vmatpush2.msra.mxu0 0.0
        %5697 = vmatprep.subr.mxu0 0.0
        %5698 = vmatpush2.msra.mxu0 0.0
        %5699 = vmatprep.mubr.f32.mxu0 0.0
        %5700 = vmatmul.mubr.f32.gmra.mxu0 %v5556
        %v5701 = vpop.f32.mrf.mxu0
        %v5702 = vadd.f32 0.0, %v5701
        %v5703 = vpop.f32.mrf.mxu0
        %5704 = vdwg.mxu0
        %v5705 = vadd.f32 %v5542, %v5631
        %v5706 = vadd.f32 %v5543, %v5633
        %v5707 = vadd.f32 %v5544, %v5702
        %s5708 = scalar_lea.vmem %s5, 10
        %v5709 = vld [vmem:[%s5708] sm:$0x3]
        %5710 = vrot.lane.b32.xlu0 %v4900, 108
        %v5711 = vpop.permute.xlu0 %5710
        %5712 = vrot.lane.b32.xlu0 %v4901, 108
        %v5713 = vpop.permute.xlu0 %5712
        %5714 = vrot.lane.b32.xlu0 %v4902, 108
        %v5715 = vpop.permute.xlu0 %5714
        %v5716 = vsel %vm1152, %v5711, %v5713
        %v5717 = vsel %vm1152, %v5713, %v5715
        %v5719 = vsel %vm4917, %v5709, 0
        %v5721 = vsel %vm4921, %v5716, 0
        %v5723 = vsel %vm4921, %v5717, 0
        %v5725 = vsel %vm4921, %v5715, 0
        %5727 = vmatprep.subr.mxu0 0.0
        %5728 = vmatpush1.msra.mxu0 0.0
        %5729 = vmatprep.subr.mxu0 0.0
        %5730 = vmatpush1.msra.mxu0 0.0
        %5731 = vmatprep.subr.mxu0 0.0
        %5732 = vmatpush1.msra.mxu0 0.0
        %5733 = vmatprep.subr.mxu0 0.0
        %5734 = vmatpush1.msra.mxu0 0.0
        %5735 = vmatprep.subr.mxu0 0.0
        %5736 = vmatpush1.msra.mxu0 0.0
        %5737 = vmatprep.subr.mxu0 0.0
        %5738 = vmatpush1.msra.mxu0 0.0
        %5739 = vmatprep.subr.mxu0 0.0
        %5740 = vmatpush1.msra.mxu0 0.0
        %5741 = vmatprep.subr.mxu0 0.0
        %5742 = vmatpush1.msra.mxu0 0.0
        %5743 = vmatprep.subr.mxu0 0.0
        %5744 = vmatpush1.msra.mxu0 0.0
        %5745 = vmatprep.subr.mxu0 0.0
        %5746 = vmatpush1.msra.mxu0 0.0
        %5747 = vmatprep.subr.mxu0 0.0
        %5748 = vmatpush1.msra.mxu0 0.0
        %5749 = vmatprep.subr.mxu0 0.0
        %5750 = vmatpush1.msra.mxu0 0.0
        %5751 = vmatprep.subr.mxu0 0.0
        %5752 = vmatpush1.msra.mxu0 0.0
        %5753 = vmatprep.subr.mxu0 0.0
        %5754 = vmatpush1.msra.mxu0 0.0
        %5755 = vmatprep.subr.mxu0 0.0
        %5756 = vmatpush1.msra.mxu0 0.0
        %5757 = vmatprep.subr.mxu0 %v5723
        %5758 = vmatpush1.msra.mxu0 %v5721
        %5759 = vmatprep.subr.mxu0 0.0
        %5760 = vmatpush2.msra.mxu0 0.0
        %5761 = vmatprep.subr.mxu0 0.0
        %5762 = vmatpush2.msra.mxu0 0.0
        %5763 = vmatprep.subr.mxu0 0.0
        %5764 = vmatpush2.msra.mxu0 0.0
        %5765 = vmatprep.subr.mxu0 0.0
        %5766 = vmatpush2.msra.mxu0 0.0
        %5767 = vmatprep.subr.mxu0 0.0
        %5768 = vmatpush2.msra.mxu0 0.0
        %5769 = vmatprep.subr.mxu0 0.0
        %5770 = vmatpush2.msra.mxu0 0.0
        %5771 = vmatprep.subr.mxu0 0.0
        %5772 = vmatpush2.msra.mxu0 0.0
        %5773 = vmatprep.subr.mxu0 0.0
        %5774 = vmatpush2.msra.mxu0 0.0
        %5775 = vmatprep.subr.mxu0 0.0
        %5776 = vmatpush2.msra.mxu0 0.0
        %5777 = vmatprep.subr.mxu0 0.0
        %5778 = vmatpush2.msra.mxu0 0.0
        %5779 = vmatprep.subr.mxu0 0.0
        %5780 = vmatpush2.msra.mxu0 0.0
        %5781 = vmatprep.subr.mxu0 0.0
        %5782 = vmatpush2.msra.mxu0 0.0
        %5783 = vmatprep.subr.mxu0 0.0
        %5784 = vmatpush2.msra.mxu0 0.0
        %5785 = vmatprep.subr.mxu0 0.0
        %5786 = vmatpush2.msra.mxu0 0.0
        %5787 = vmatprep.subr.mxu0 0.0
        %5788 = vmatpush2.msra.mxu0 0.0
        %5789 = vmatprep.subr.mxu0 0.0
        %5790 = vmatpush2.msra.mxu0 0.0
        %5791 = vmatprep.mubr.f32.mxu0 0.0
        %5792 = vmatmul.mubr.f32.gmra.mxu0 %v5719
        %v5793 = vpop.f32.mrf.mxu0
        %v5794 = vadd.f32 0.0, %v5793
        %v5795 = vpop.f32.mrf.mxu0
        %v5796 = vadd.f32 0.0, %v5795
        %5797 = vdwg.mxu0
        %5798 = vmatprep.subr.mxu0 0.0
        %5799 = vmatpush1.msra.mxu0 0.0
        %5800 = vmatprep.subr.mxu0 0.0
        %5801 = vmatpush1.msra.mxu0 0.0
        %5802 = vmatprep.subr.mxu0 0.0
        %5803 = vmatpush1.msra.mxu0 0.0
        %5804 = vmatprep.subr.mxu0 0.0
        %5805 = vmatpush1.msra.mxu0 0.0
        %5806 = vmatprep.subr.mxu0 0.0
        %5807 = vmatpush1.msra.mxu0 0.0
        %5808 = vmatprep.subr.mxu0 0.0
        %5809 = vmatpush1.msra.mxu0 0.0
        %5810 = vmatprep.subr.mxu0 0.0
        %5811 = vmatpush1.msra.mxu0 0.0
        %5812 = vmatprep.subr.mxu0 0.0
        %5813 = vmatpush1.msra.mxu0 0.0
        %5814 = vmatprep.subr.mxu0 0.0
        %5815 = vmatpush1.msra.mxu0 0.0
        %5816 = vmatprep.subr.mxu0 0.0
        %5817 = vmatpush1.msra.mxu0 0.0
        %5818 = vmatprep.subr.mxu0 0.0
        %5819 = vmatpush1.msra.mxu0 0.0
        %5820 = vmatprep.subr.mxu0 0.0
        %5821 = vmatpush1.msra.mxu0 0.0
        %5822 = vmatprep.subr.mxu0 0.0
        %5823 = vmatpush1.msra.mxu0 0.0
        %5824 = vmatprep.subr.mxu0 0.0
        %5825 = vmatpush1.msra.mxu0 0.0
        %5826 = vmatprep.subr.mxu0 0.0
        %5827 = vmatpush1.msra.mxu0 0.0
        %5828 = vmatprep.subr.mxu0 0.0
        %5829 = vmatpush1.msra.mxu0 %v5725
        %5830 = vmatprep.subr.mxu0 0.0
        %5831 = vmatpush2.msra.mxu0 0.0
        %5832 = vmatprep.subr.mxu0 0.0
        %5833 = vmatpush2.msra.mxu0 0.0
        %5834 = vmatprep.subr.mxu0 0.0
        %5835 = vmatpush2.msra.mxu0 0.0
        %5836 = vmatprep.subr.mxu0 0.0
        %5837 = vmatpush2.msra.mxu0 0.0
        %5838 = vmatprep.subr.mxu0 0.0
        %5839 = vmatpush2.msra.mxu0 0.0
        %5840 = vmatprep.subr.mxu0 0.0
        %5841 = vmatpush2.msra.mxu0 0.0
        %5842 = vmatprep.subr.mxu0 0.0
        %5843 = vmatpush2.msra.mxu0 0.0
        %5844 = vmatprep.subr.mxu0 0.0
        %5845 = vmatpush2.msra.mxu0 0.0
        %5846 = vmatprep.subr.mxu0 0.0
        %5847 = vmatpush2.msra.mxu0 0.0
        %5848 = vmatprep.subr.mxu0 0.0
        %5849 = vmatpush2.msra.mxu0 0.0
        %5850 = vmatprep.subr.mxu0 0.0
        %5851 = vmatpush2.msra.mxu0 0.0
        %5852 = vmatprep.subr.mxu0 0.0
        %5853 = vmatpush2.msra.mxu0 0.0
        %5854 = vmatprep.subr.mxu0 0.0
        %5855 = vmatpush2.msra.mxu0 0.0
        %5856 = vmatprep.subr.mxu0 0.0
        %5857 = vmatpush2.msra.mxu0 0.0
        %5858 = vmatprep.subr.mxu0 0.0
        %5859 = vmatpush2.msra.mxu0 0.0
        %5860 = vmatprep.subr.mxu0 0.0
        %5861 = vmatpush2.msra.mxu0 0.0
        %5862 = vmatprep.mubr.f32.mxu0 0.0
        %5863 = vmatmul.mubr.f32.gmra.mxu0 %v5719
        %v5864 = vpop.f32.mrf.mxu0
        %v5865 = vadd.f32 0.0, %v5864
        %v5866 = vpop.f32.mrf.mxu0
        %5867 = vdwg.mxu0
        %v5868 = vadd.f32 %v5705, %v5794
        %v5869 = vadd.f32 %v5706, %v5796
        %v5870 = vadd.f32 %v5707, %v5865
        %s5871 = scalar_lea.vmem %s5, 12
        %v5872 = vld [vmem:[%s5871] sm:$0x3]
        %5873 = vrot.lane.b32.xlu0 %v4900, 92
        %v5874 = vpop.permute.xlu0 %5873
        %5875 = vrot.lane.b32.xlu0 %v4901, 92
        %v5876 = vpop.permute.xlu0 %5875
        %5877 = vrot.lane.b32.xlu0 %v4902, 92
        %v5878 = vpop.permute.xlu0 %5877
        %v5879 = vsel %vm1321, %v5874, %v5876
        %v5880 = vsel %vm1321, %v5876, %v5878
        %v5882 = vsel %vm4917, %v5872, 0
        %v5884 = vsel %vm4921, %v5879, 0
        %v5886 = vsel %vm4921, %v5880, 0
        %v5888 = vsel %vm4921, %v5878, 0
        %5890 = vmatprep.subr.mxu0 0.0
        %5891 = vmatpush1.msra.mxu0 0.0
        %5892 = vmatprep.subr.mxu0 0.0
        %5893 = vmatpush1.msra.mxu0 0.0
        %5894 = vmatprep.subr.mxu0 0.0
        %5895 = vmatpush1.msra.mxu0 0.0
        %5896 = vmatprep.subr.mxu0 0.0
        %5897 = vmatpush1.msra.mxu0 0.0
        %5898 = vmatprep.subr.mxu0 0.0
        %5899 = vmatpush1.msra.mxu0 0.0
        %5900 = vmatprep.subr.mxu0 0.0
        %5901 = vmatpush1.msra.mxu0 0.0
        %5902 = vmatprep.subr.mxu0 0.0
        %5903 = vmatpush1.msra.mxu0 0.0
        %5904 = vmatprep.subr.mxu0 0.0
        %5905 = vmatpush1.msra.mxu0 0.0
        %5906 = vmatprep.subr.mxu0 0.0
        %5907 = vmatpush1.msra.mxu0 0.0
        %5908 = vmatprep.subr.mxu0 0.0
        %5909 = vmatpush1.msra.mxu0 0.0
        %5910 = vmatprep.subr.mxu0 0.0
        %5911 = vmatpush1.msra.mxu0 0.0
        %5912 = vmatprep.subr.mxu0 0.0
        %5913 = vmatpush1.msra.mxu0 0.0
        %5914 = vmatprep.subr.mxu0 0.0
        %5915 = vmatpush1.msra.mxu0 0.0
        %5916 = vmatprep.subr.mxu0 0.0
        %5917 = vmatpush1.msra.mxu0 0.0
        %5918 = vmatprep.subr.mxu0 0.0
        %5919 = vmatpush1.msra.mxu0 0.0
        %5920 = vmatprep.subr.mxu0 %v5886
        %5921 = vmatpush1.msra.mxu0 %v5884
        %5922 = vmatprep.subr.mxu0 0.0
        %5923 = vmatpush2.msra.mxu0 0.0
        %5924 = vmatprep.subr.mxu0 0.0
        %5925 = vmatpush2.msra.mxu0 0.0
        %5926 = vmatprep.subr.mxu0 0.0
        %5927 = vmatpush2.msra.mxu0 0.0
        %5928 = vmatprep.subr.mxu0 0.0
        %5929 = vmatpush2.msra.mxu0 0.0
        %5930 = vmatprep.subr.mxu0 0.0
        %5931 = vmatpush2.msra.mxu0 0.0
        %5932 = vmatprep.subr.mxu0 0.0
        %5933 = vmatpush2.msra.mxu0 0.0
        %5934 = vmatprep.subr.mxu0 0.0
        %5935 = vmatpush2.msra.mxu0 0.0
        %5936 = vmatprep.subr.mxu0 0.0
        %5937 = vmatpush2.msra.mxu0 0.0
        %5938 = vmatprep.subr.mxu0 0.0
        %5939 = vmatpush2.msra.mxu0 0.0
        %5940 = vmatprep.subr.mxu0 0.0
        %5941 = vmatpush2.msra.mxu0 0.0
        %5942 = vmatprep.subr.mxu0 0.0
        %5943 = vmatpush2.msra.mxu0 0.0
        %5944 = vmatprep.subr.mxu0 0.0
        %5945 = vmatpush2.msra.mxu0 0.0
        %5946 = vmatprep.subr.mxu0 0.0
        %5947 = vmatpush2.msra.mxu0 0.0
        %5948 = vmatprep.subr.mxu0 0.0
        %5949 = vmatpush2.msra.mxu0 0.0
        %5950 = vmatprep.subr.mxu0 0.0
        %5951 = vmatpush2.msra.mxu0 0.0
        %5952 = vmatprep.subr.mxu0 0.0
        %5953 = vmatpush2.msra.mxu0 0.0
        %5954 = vmatprep.mubr.f32.mxu0 0.0
        %5955 = vmatmul.mubr.f32.gmra.mxu0 %v5882
        %v5956 = vpop.f32.mrf.mxu0
        %v5957 = vadd.f32 0.0, %v5956
        %v5958 = vpop.f32.mrf.mxu0
        %v5959 = vadd.f32 0.0, %v5958
        %5960 = vdwg.mxu0
        %5961 = vmatprep.subr.mxu0 0.0
        %5962 = vmatpush1.msra.mxu0 0.0
        %5963 = vmatprep.subr.mxu0 0.0
        %5964 = vmatpush1.msra.mxu0 0.0
        %5965 = vmatprep.subr.mxu0 0.0
        %5966 = vmatpush1.msra.mxu0 0.0
        %5967 = vmatprep.subr.mxu0 0.0
        %5968 = vmatpush1.msra.mxu0 0.0
        %5969 = vmatprep.subr.mxu0 0.0
        %5970 = vmatpush1.msra.mxu0 0.0
        %5971 = vmatprep.subr.mxu0 0.0
        %5972 = vmatpush1.msra.mxu0 0.0
        %5973 = vmatprep.subr.mxu0 0.0
        %5974 = vmatpush1.msra.mxu0 0.0
        %5975 = vmatprep.subr.mxu0 0.0
        %5976 = vmatpush1.msra.mxu0 0.0
        %5977 = vmatprep.subr.mxu0 0.0
        %5978 = vmatpush1.msra.mxu0 0.0
        %5979 = vmatprep.subr.mxu0 0.0
        %5980 = vmatpush1.msra.mxu0 0.0
        %5981 = vmatprep.subr.mxu0 0.0
        %5982 = vmatpush1.msra.mxu0 0.0
        %5983 = vmatprep.subr.mxu0 0.0
        %5984 = vmatpush1.msra.mxu0 0.0
        %5985 = vmatprep.subr.mxu0 0.0
        %5986 = vmatpush1.msra.mxu0 0.0
        %5987 = vmatprep.subr.mxu0 0.0
        %5988 = vmatpush1.msra.mxu0 0.0
        %5989 = vmatprep.subr.mxu0 0.0
        %5990 = vmatpush1.msra.mxu0 0.0
        %5991 = vmatprep.subr.mxu0 0.0
        %5992 = vmatpush1.msra.mxu0 %v5888
        %5993 = vmatprep.subr.mxu0 0.0
        %5994 = vmatpush2.msra.mxu0 0.0
        %5995 = vmatprep.subr.mxu0 0.0
        %5996 = vmatpush2.msra.mxu0 0.0
        %5997 = vmatprep.subr.mxu0 0.0
        %5998 = vmatpush2.msra.mxu0 0.0
        %5999 = vmatprep.subr.mxu0 0.0
        %6000 = vmatpush2.msra.mxu0 0.0
        %6001 = vmatprep.subr.mxu0 0.0
        %6002 = vmatpush2.msra.mxu0 0.0
        %6003 = vmatprep.subr.mxu0 0.0
        %6004 = vmatpush2.msra.mxu0 0.0
        %6005 = vmatprep.subr.mxu0 0.0
        %6006 = vmatpush2.msra.mxu0 0.0
        %6007 = vmatprep.subr.mxu0 0.0
        %6008 = vmatpush2.msra.mxu0 0.0
        %6009 = vmatprep.subr.mxu0 0.0
        %6010 = vmatpush2.msra.mxu0 0.0
        %6011 = vmatprep.subr.mxu0 0.0
        %6012 = vmatpush2.msra.mxu0 0.0
        %6013 = vmatprep.subr.mxu0 0.0
        %6014 = vmatpush2.msra.mxu0 0.0
        %6015 = vmatprep.subr.mxu0 0.0
        %6016 = vmatpush2.msra.mxu0 0.0
        %6017 = vmatprep.subr.mxu0 0.0
        %6018 = vmatpush2.msra.mxu0 0.0
        %6019 = vmatprep.subr.mxu0 0.0
        %6020 = vmatpush2.msra.mxu0 0.0
        %6021 = vmatprep.subr.mxu0 0.0
        %6022 = vmatpush2.msra.mxu0 0.0
        %6023 = vmatprep.subr.mxu0 0.0
        %6024 = vmatpush2.msra.mxu0 0.0
        %6025 = vmatprep.mubr.f32.mxu0 0.0
        %6026 = vmatmul.mubr.f32.gmra.mxu0 %v5882
        %v6027 = vpop.f32.mrf.mxu0
        %v6028 = vadd.f32 0.0, %v6027
        %v6029 = vpop.f32.mrf.mxu0
        %6030 = vdwg.mxu0
        %v6031 = vadd.f32 %v5868, %v5957
        %v6032 = vadd.f32 %v5869, %v5959
        %v6033 = vadd.f32 %v5870, %v6028
        %s6034 = scalar_lea.vmem %s5, 14
        %v6035 = vld [vmem:[%s6034] sm:$0x3]
        %6036 = vrot.lane.b32.xlu0 %v4900, 91
        %v6037 = vpop.permute.xlu0 %6036
        %6038 = vrot.lane.b32.xlu0 %v4901, 91
        %v6039 = vpop.permute.xlu0 %6038
        %6040 = vrot.lane.b32.xlu0 %v4902, 91
        %v6041 = vpop.permute.xlu0 %6040
        %v6042 = vsel %vm1490, %v6037, %v6039
        %v6043 = vsel %vm1490, %v6039, %v6041
        %v6045 = vsel %vm4917, %v6035, 0
        %v6047 = vsel %vm4921, %v6042, 0
        %v6049 = vsel %vm4921, %v6043, 0
        %v6051 = vsel %vm4921, %v6041, 0
        %6053 = vmatprep.subr.mxu0 0.0
        %6054 = vmatpush1.msra.mxu0 0.0
        %6055 = vmatprep.subr.mxu0 0.0
        %6056 = vmatpush1.msra.mxu0 0.0
        %6057 = vmatprep.subr.mxu0 0.0
        %6058 = vmatpush1.msra.mxu0 0.0
        %6059 = vmatprep.subr.mxu0 0.0
        %6060 = vmatpush1.msra.mxu0 0.0
        %6061 = vmatprep.subr.mxu0 0.0
        %6062 = vmatpush1.msra.mxu0 0.0
        %6063 = vmatprep.subr.mxu0 0.0
        %6064 = vmatpush1.msra.mxu0 0.0
        %6065 = vmatprep.subr.mxu0 0.0
        %6066 = vmatpush1.msra.mxu0 0.0
        %6067 = vmatprep.subr.mxu0 0.0
        %6068 = vmatpush1.msra.mxu0 0.0
        %6069 = vmatprep.subr.mxu0 0.0
        %6070 = vmatpush1.msra.mxu0 0.0
        %6071 = vmatprep.subr.mxu0 0.0
        %6072 = vmatpush1.msra.mxu0 0.0
        %6073 = vmatprep.subr.mxu0 0.0
        %6074 = vmatpush1.msra.mxu0 0.0
        %6075 = vmatprep.subr.mxu0 0.0
        %6076 = vmatpush1.msra.mxu0 0.0
        %6077 = vmatprep.subr.mxu0 0.0
        %6078 = vmatpush1.msra.mxu0 0.0
        %6079 = vmatprep.subr.mxu0 0.0
        %6080 = vmatpush1.msra.mxu0 0.0
        %6081 = vmatprep.subr.mxu0 0.0
        %6082 = vmatpush1.msra.mxu0 0.0
        %6083 = vmatprep.subr.mxu0 %v6049
        %6084 = vmatpush1.msra.mxu0 %v6047
        %6085 = vmatprep.subr.mxu0 0.0
        %6086 = vmatpush2.msra.mxu0 0.0
        %6087 = vmatprep.subr.mxu0 0.0
        %6088 = vmatpush2.msra.mxu0 0.0
        %6089 = vmatprep.subr.mxu0 0.0
        %6090 = vmatpush2.msra.mxu0 0.0
        %6091 = vmatprep.subr.mxu0 0.0
        %6092 = vmatpush2.msra.mxu0 0.0
        %6093 = vmatprep.subr.mxu0 0.0
        %6094 = vmatpush2.msra.mxu0 0.0
        %6095 = vmatprep.subr.mxu0 0.0
        %6096 = vmatpush2.msra.mxu0 0.0
        %6097 = vmatprep.subr.mxu0 0.0
        %6098 = vmatpush2.msra.mxu0 0.0
        %6099 = vmatprep.subr.mxu0 0.0
        %6100 = vmatpush2.msra.mxu0 0.0
        %6101 = vmatprep.subr.mxu0 0.0
        %6102 = vmatpush2.msra.mxu0 0.0
        %6103 = vmatprep.subr.mxu0 0.0
        %6104 = vmatpush2.msra.mxu0 0.0
        %6105 = vmatprep.subr.mxu0 0.0
        %6106 = vmatpush2.msra.mxu0 0.0
        %6107 = vmatprep.subr.mxu0 0.0
        %6108 = vmatpush2.msra.mxu0 0.0
        %6109 = vmatprep.subr.mxu0 0.0
        %6110 = vmatpush2.msra.mxu0 0.0
        %6111 = vmatprep.subr.mxu0 0.0
        %6112 = vmatpush2.msra.mxu0 0.0
        %6113 = vmatprep.subr.mxu0 0.0
        %6114 = vmatpush2.msra.mxu0 0.0
        %6115 = vmatprep.subr.mxu0 0.0
        %6116 = vmatpush2.msra.mxu0 0.0
        %6117 = vmatprep.mubr.f32.mxu0 0.0
        %6118 = vmatmul.mubr.f32.gmra.mxu0 %v6045
        %v6119 = vpop.f32.mrf.mxu0
        %v6120 = vadd.f32 0.0, %v6119
        %v6121 = vpop.f32.mrf.mxu0
        %v6122 = vadd.f32 0.0, %v6121
        %6123 = vdwg.mxu0
        %6124 = vmatprep.subr.mxu0 0.0
        %6125 = vmatpush1.msra.mxu0 0.0
        %6126 = vmatprep.subr.mxu0 0.0
        %6127 = vmatpush1.msra.mxu0 0.0
        %6128 = vmatprep.subr.mxu0 0.0
        %6129 = vmatpush1.msra.mxu0 0.0
        %6130 = vmatprep.subr.mxu0 0.0
        %6131 = vmatpush1.msra.mxu0 0.0
        %6132 = vmatprep.subr.mxu0 0.0
        %6133 = vmatpush1.msra.mxu0 0.0
        %6134 = vmatprep.subr.mxu0 0.0
        %6135 = vmatpush1.msra.mxu0 0.0
        %6136 = vmatprep.subr.mxu0 0.0
        %6137 = vmatpush1.msra.mxu0 0.0
        %6138 = vmatprep.subr.mxu0 0.0
        %6139 = vmatpush1.msra.mxu0 0.0
        %6140 = vmatprep.subr.mxu0 0.0
        %6141 = vmatpush1.msra.mxu0 0.0
        %6142 = vmatprep.subr.mxu0 0.0
        %6143 = vmatpush1.msra.mxu0 0.0
        %6144 = vmatprep.subr.mxu0 0.0
        %6145 = vmatpush1.msra.mxu0 0.0
        %6146 = vmatprep.subr.mxu0 0.0
        %6147 = vmatpush1.msra.mxu0 0.0
        %6148 = vmatprep.subr.mxu0 0.0
        %6149 = vmatpush1.msra.mxu0 0.0
        %6150 = vmatprep.subr.mxu0 0.0
        %6151 = vmatpush1.msra.mxu0 0.0
        %6152 = vmatprep.subr.mxu0 0.0
        %6153 = vmatpush1.msra.mxu0 0.0
        %6154 = vmatprep.subr.mxu0 0.0
        %6155 = vmatpush1.msra.mxu0 %v6051
        %6156 = vmatprep.subr.mxu0 0.0
        %6157 = vmatpush2.msra.mxu0 0.0
        %6158 = vmatprep.subr.mxu0 0.0
        %6159 = vmatpush2.msra.mxu0 0.0
        %6160 = vmatprep.subr.mxu0 0.0
        %6161 = vmatpush2.msra.mxu0 0.0
        %6162 = vmatprep.subr.mxu0 0.0
        %6163 = vmatpush2.msra.mxu0 0.0
        %6164 = vmatprep.subr.mxu0 0.0
        %6165 = vmatpush2.msra.mxu0 0.0
        %6166 = vmatprep.subr.mxu0 0.0
        %6167 = vmatpush2.msra.mxu0 0.0
        %6168 = vmatprep.subr.mxu0 0.0
        %6169 = vmatpush2.msra.mxu0 0.0
        %6170 = vmatprep.subr.mxu0 0.0
        %6171 = vmatpush2.msra.mxu0 0.0
        %6172 = vmatprep.subr.mxu0 0.0
        %6173 = vmatpush2.msra.mxu0 0.0
        %6174 = vmatprep.subr.mxu0 0.0
        %6175 = vmatpush2.msra.mxu0 0.0
        %6176 = vmatprep.subr.mxu0 0.0
        %6177 = vmatpush2.msra.mxu0 0.0
        %6178 = vmatprep.subr.mxu0 0.0
        %6179 = vmatpush2.msra.mxu0 0.0
        %6180 = vmatprep.subr.mxu0 0.0
        %6181 = vmatpush2.msra.mxu0 0.0
        %6182 = vmatprep.subr.mxu0 0.0
        %6183 = vmatpush2.msra.mxu0 0.0
        %6184 = vmatprep.subr.mxu0 0.0
        %6185 = vmatpush2.msra.mxu0 0.0
        %6186 = vmatprep.subr.mxu0 0.0
        %6187 = vmatpush2.msra.mxu0 0.0
        %6188 = vmatprep.mubr.f32.mxu0 0.0
        %6189 = vmatmul.mubr.f32.gmra.mxu0 %v6045
        %v6190 = vpop.f32.mrf.mxu0
        %v6191 = vadd.f32 0.0, %v6190
        %v6192 = vpop.f32.mrf.mxu0
        %6193 = vdwg.mxu0
        %v6194 = vadd.f32 %v6031, %v6120
        %v6195 = vadd.f32 %v6032, %v6122
        %v6196 = vadd.f32 %v6033, %v6191
        %s6197 = scalar_lea.vmem %s5, 16
        %v6198 = vld [vmem:[%s6197] sm:$0x3]
        %6199 = vrot.lane.b32.xlu0 %v4900, 90
        %v6200 = vpop.permute.xlu0 %6199
        %6201 = vrot.lane.b32.xlu0 %v4901, 90
        %v6202 = vpop.permute.xlu0 %6201
        %6203 = vrot.lane.b32.xlu0 %v4902, 90
        %v6204 = vpop.permute.xlu0 %6203
        %v6205 = vsel %vm1659, %v6200, %v6202
        %v6206 = vsel %vm1659, %v6202, %v6204
        %v6208 = vsel %vm4917, %v6198, 0
        %v6210 = vsel %vm4921, %v6205, 0
        %v6212 = vsel %vm4921, %v6206, 0
        %v6214 = vsel %vm4921, %v6204, 0
        %6216 = vmatprep.subr.mxu0 0.0
        %6217 = vmatpush1.msra.mxu0 0.0
        %6218 = vmatprep.subr.mxu0 0.0
        %6219 = vmatpush1.msra.mxu0 0.0
        %6220 = vmatprep.subr.mxu0 0.0
        %6221 = vmatpush1.msra.mxu0 0.0
        %6222 = vmatprep.subr.mxu0 0.0
        %6223 = vmatpush1.msra.mxu0 0.0
        %6224 = vmatprep.subr.mxu0 0.0
        %6225 = vmatpush1.msra.mxu0 0.0
        %6226 = vmatprep.subr.mxu0 0.0
        %6227 = vmatpush1.msra.mxu0 0.0
        %6228 = vmatprep.subr.mxu0 0.0
        %6229 = vmatpush1.msra.mxu0 0.0
        %6230 = vmatprep.subr.mxu0 0.0
        %6231 = vmatpush1.msra.mxu0 0.0
        %6232 = vmatprep.subr.mxu0 0.0
        %6233 = vmatpush1.msra.mxu0 0.0
        %6234 = vmatprep.subr.mxu0 0.0
        %6235 = vmatpush1.msra.mxu0 0.0
        %6236 = vmatprep.subr.mxu0 0.0
        %6237 = vmatpush1.msra.mxu0 0.0
        %6238 = vmatprep.subr.mxu0 0.0
        %6239 = vmatpush1.msra.mxu0 0.0
        %6240 = vmatprep.subr.mxu0 0.0
        %6241 = vmatpush1.msra.mxu0 0.0
        %6242 = vmatprep.subr.mxu0 0.0
        %6243 = vmatpush1.msra.mxu0 0.0
        %6244 = vmatprep.subr.mxu0 0.0
        %6245 = vmatpush1.msra.mxu0 0.0
        %6246 = vmatprep.subr.mxu0 %v6212
        %6247 = vmatpush1.msra.mxu0 %v6210
        %6248 = vmatprep.subr.mxu0 0.0
        %6249 = vmatpush2.msra.mxu0 0.0
        %6250 = vmatprep.subr.mxu0 0.0
        %6251 = vmatpush2.msra.mxu0 0.0
        %6252 = vmatprep.subr.mxu0 0.0
        %6253 = vmatpush2.msra.mxu0 0.0
        %6254 = vmatprep.subr.mxu0 0.0
        %6255 = vmatpush2.msra.mxu0 0.0
        %6256 = vmatprep.subr.mxu0 0.0
        %6257 = vmatpush2.msra.mxu0 0.0
        %6258 = vmatprep.subr.mxu0 0.0
        %6259 = vmatpush2.msra.mxu0 0.0
        %6260 = vmatprep.subr.mxu0 0.0
        %6261 = vmatpush2.msra.mxu0 0.0
        %6262 = vmatprep.subr.mxu0 0.0
        %6263 = vmatpush2.msra.mxu0 0.0
        %6264 = vmatprep.subr.mxu0 0.0
        %6265 = vmatpush2.msra.mxu0 0.0
        %6266 = vmatprep.subr.mxu0 0.0
        %6267 = vmatpush2.msra.mxu0 0.0
        %6268 = vmatprep.subr.mxu0 0.0
        %6269 = vmatpush2.msra.mxu0 0.0
        %6270 = vmatprep.subr.mxu0 0.0
        %6271 = vmatpush2.msra.mxu0 0.0
        %6272 = vmatprep.subr.mxu0 0.0
        %6273 = vmatpush2.msra.mxu0 0.0
        %6274 = vmatprep.subr.mxu0 0.0
        %6275 = vmatpush2.msra.mxu0 0.0
        %6276 = vmatprep.subr.mxu0 0.0
        %6277 = vmatpush2.msra.mxu0 0.0
        %6278 = vmatprep.subr.mxu0 0.0
        %6279 = vmatpush2.msra.mxu0 0.0
        %6280 = vmatprep.mubr.f32.mxu0 0.0
        %6281 = vmatmul.mubr.f32.gmra.mxu0 %v6208
        %v6282 = vpop.f32.mrf.mxu0
        %v6283 = vadd.f32 0.0, %v6282
        %v6284 = vpop.f32.mrf.mxu0
        %v6285 = vadd.f32 0.0, %v6284
        %6286 = vdwg.mxu0
        %6287 = vmatprep.subr.mxu0 0.0
        %6288 = vmatpush1.msra.mxu0 0.0
        %6289 = vmatprep.subr.mxu0 0.0
        %6290 = vmatpush1.msra.mxu0 0.0
        %6291 = vmatprep.subr.mxu0 0.0
        %6292 = vmatpush1.msra.mxu0 0.0
        %6293 = vmatprep.subr.mxu0 0.0
        %6294 = vmatpush1.msra.mxu0 0.0
        %6295 = vmatprep.subr.mxu0 0.0
        %6296 = vmatpush1.msra.mxu0 0.0
        %6297 = vmatprep.subr.mxu0 0.0
        %6298 = vmatpush1.msra.mxu0 0.0
        %6299 = vmatprep.subr.mxu0 0.0
        %6300 = vmatpush1.msra.mxu0 0.0
        %6301 = vmatprep.subr.mxu0 0.0
        %6302 = vmatpush1.msra.mxu0 0.0
        %6303 = vmatprep.subr.mxu0 0.0
        %6304 = vmatpush1.msra.mxu0 0.0
        %6305 = vmatprep.subr.mxu0 0.0
        %6306 = vmatpush1.msra.mxu0 0.0
        %6307 = vmatprep.subr.mxu0 0.0
        %6308 = vmatpush1.msra.mxu0 0.0
        %6309 = vmatprep.subr.mxu0 0.0
        %6310 = vmatpush1.msra.mxu0 0.0
        %6311 = vmatprep.subr.mxu0 0.0
        %6312 = vmatpush1.msra.mxu0 0.0
        %6313 = vmatprep.subr.mxu0 0.0
        %6314 = vmatpush1.msra.mxu0 0.0
        %6315 = vmatprep.subr.mxu0 0.0
        %6316 = vmatpush1.msra.mxu0 0.0
        %6317 = vmatprep.subr.mxu0 0.0
        %6318 = vmatpush1.msra.mxu0 %v6214
        %6319 = vmatprep.subr.mxu0 0.0
        %6320 = vmatpush2.msra.mxu0 0.0
        %6321 = vmatprep.subr.mxu0 0.0
        %6322 = vmatpush2.msra.mxu0 0.0
        %6323 = vmatprep.subr.mxu0 0.0
        %6324 = vmatpush2.msra.mxu0 0.0
        %6325 = vmatprep.subr.mxu0 0.0
        %6326 = vmatpush2.msra.mxu0 0.0
        %6327 = vmatprep.subr.mxu0 0.0
        %6328 = vmatpush2.msra.mxu0 0.0
        %6329 = vmatprep.subr.mxu0 0.0
        %6330 = vmatpush2.msra.mxu0 0.0
        %6331 = vmatprep.subr.mxu0 0.0
        %6332 = vmatpush2.msra.mxu0 0.0
        %6333 = vmatprep.subr.mxu0 0.0
        %6334 = vmatpush2.msra.mxu0 0.0
        %6335 = vmatprep.subr.mxu0 0.0
        %6336 = vmatpush2.msra.mxu0 0.0
        %6337 = vmatprep.subr.mxu0 0.0
        %6338 = vmatpush2.msra.mxu0 0.0
        %6339 = vmatprep.subr.mxu0 0.0
        %6340 = vmatpush2.msra.mxu0 0.0
        %6341 = vmatprep.subr.mxu0 0.0
        %6342 = vmatpush2.msra.mxu0 0.0
        %6343 = vmatprep.subr.mxu0 0.0
        %6344 = vmatpush2.msra.mxu0 0.0
        %6345 = vmatprep.subr.mxu0 0.0
        %6346 = vmatpush2.msra.mxu0 0.0
        %6347 = vmatprep.subr.mxu0 0.0
        %6348 = vmatpush2.msra.mxu0 0.0
        %6349 = vmatprep.subr.mxu0 0.0
        %6350 = vmatpush2.msra.mxu0 0.0
        %6351 = vmatprep.mubr.f32.mxu0 0.0
        %6352 = vmatmul.mubr.f32.gmra.mxu0 %v6208
        %v6353 = vpop.f32.mrf.mxu0
        %v6354 = vadd.f32 0.0, %v6353
        %v6355 = vpop.f32.mrf.mxu0
        %6356 = vdwg.mxu0
        %v6357 = vadd.f32 %v6194, %v6283
        %v6358 = vadd.f32 %v6195, %v6285
        %v6359 = vadd.f32 %v6196, %v6354
        %v6360 = vmul.f32 %v6357, %v1819
        %v6361 = vmul.f32 %v6358, %v1823
        %v6362 = vmul.f32 %v6359, %v1827
        %v6363 = vsel %vm1874, %v6360, 0.0
        %v6364 = vsel %vm1874, %v6361, 0.0
        %v6365 = vadd.f32 %v6363, %v6364
        %v6366 = vsel %vm3319, %v6362, 0.0
        %v6367 = vadd.f32 %v6365, %v6366
        %6368 = vadd.xlane.f32.xlu0 %v6367
        %v6369 = vpop.xlane.xlu0 %6368
        %v6370 = vmul.f32 %v6369, 0.00390625
        %v6371 = vsub.f32 %v6357, %v6370
        %v6372 = vsub.f32 %v6358, %v6370
        %v6373 = vsub.f32 %v6359, %v6370
        %v6374 = vmul.f32 %v6371, %v1819
        %v6375 = vmul.f32 %v6372, %v1823
        %v6376 = vmul.f32 %v6373, %v1827
        %v6377 = vmul.f32 %v6374, %v6374
        %v6378 = vmul.f32 %v6375, %v6375
        %v6379 = vmul.f32 %v6376, %v6376
        %v6380 = vsel %vm1874, %v6377, 0.0
        %v6381 = vsel %vm1874, %v6378, 0.0
        %v6382 = vadd.f32 %v6380, %v6381
        %v6383 = vsel %vm3319, %v6379, 0.0
        %v6384 = vadd.f32 %v6382, %v6383
        %6385 = vadd.xlane.f32.xlu0 %v6384
        %v6386 = vpop.xlane.xlu0 %6385
        %v6387 = vmul.f32 %v6386, 0.00390625
        %v6388 = vadd.f32 %v6387, 1e-05
        %v6389 = vrsqrt.pop %v6388
        %v6390 = vmul.f32 %v6374, %v6389
        %v6391 = vmul.f32 %v6375, %v6389
        %v6392 = vmul.f32 %v6376, %v6389
        %vm6393 = vcmp.gt.f32.partialorder %v6390, 0.0
        %vm6394 = vcmp.gt.f32.partialorder %v6391, 0.0
        %vm6395 = vcmp.gt.f32.partialorder %v6392, 0.0
        %v6396 = vmul.f32 %v6390, 0.2
        %v6397 = vmul.f32 %v6391, 0.2
        %v6398 = vmul.f32 %v6392, 0.2
        %v6399 = vsel %vm6393, %v6390, %v6396
        %v6400 = vsel %vm6394, %v6391, %v6397
        %v6401 = vsel %vm6395, %v6392, %v6398
        %v6405 = vrot.slane %v6399, 2
        %v6406 = vrot.slane %v6400, 2
        %v6407 = vrot.slane %v6401, 2
        %6408 = vrot.lane.b32.xlu0 %v6405, 19
        %v6409 = vpop.permute.xlu0 %6408
        %6410 = vrot.lane.b32.xlu0 %v6406, 19
        %v6411 = vpop.permute.xlu0 %6410
        %6412 = vrot.lane.b32.xlu0 %v6407, 19
        %v6413 = vpop.permute.xlu0 %6412
        %v6414 = vsel %vm305, %v6409, %v6411
        %v6415 = vsel %vm305, %v6411, %v6413
        %vm6419 = vcmask 1047710
        %6420 = vst.msk [vmem:[#allocation2] sm:$0xc0] %vm6419, %v6409
        %6421 = vst [vmem:[#allocation2 + $0x8] sm:$0xc0] %v6414
        %vm6422 = vcmask 416774
        %6423 = vst.msk [vmem:[#allocation2 + $0x10] sm:$0xc0] %vm6422, %v6415
        %v6424 = vld [vmem:[#allocation2] sm:$0xff]
        %v6425 = vld [vmem:[#allocation2 + $0x8] sm:$0xff]
        %v6426 = vld [vmem:[#allocation2 + $0x10] sm:$0xff]
        %v6427 = vld [vmem:[%s6] sm:$0x3]
        %s6428 = scalar_lea.vmem %s6, 2
        %v6429 = vld [vmem:[%s6428] sm:$0x3]
        %6433 = vrot.lane.b32.xlu0 %v6424, 127
        %v6434 = vpop.permute.xlu0 %6433
        %6435 = vrot.lane.b32.xlu0 %v6425, 127
        %v6436 = vpop.permute.xlu0 %6435
        %6437 = vrot.lane.b32.xlu0 %v6426, 127
        %v6438 = vpop.permute.xlu0 %6437
        %v6439 = vsel %vm327, %v6434, %v6436
        %v6440 = vsel %vm327, %v6436, %v6438
        %vm6444 = vcmask 64512
        %v6446 = vsel %vm6444, %v6429, 0
        %6448 = vmatprep.subr.mxu0 0.0
        %6449 = vmatpush1.msra.mxu0 0.0
        %6450 = vmatprep.subr.mxu0 0.0
        %6451 = vmatpush1.msra.mxu0 0.0
        %6452 = vmatprep.subr.mxu0 0.0
        %6453 = vmatpush1.msra.mxu0 0.0
        %6454 = vmatprep.subr.mxu0 0.0
        %6455 = vmatpush1.msra.mxu0 0.0
        %6456 = vmatprep.subr.mxu0 0.0
        %6457 = vmatpush1.msra.mxu0 0.0
        %6458 = vmatprep.subr.mxu0 0.0
        %6459 = vmatpush1.msra.mxu0 0.0
        %6460 = vmatprep.subr.mxu0 0.0
        %6461 = vmatpush1.msra.mxu0 0.0
        %6462 = vmatprep.subr.mxu0 0.0
        %6463 = vmatpush1.msra.mxu0 0.0
        %6464 = vmatprep.subr.mxu0 0.0
        %6465 = vmatpush1.msra.mxu0 0.0
        %6466 = vmatprep.subr.mxu0 0.0
        %6467 = vmatpush1.msra.mxu0 0.0
        %6468 = vmatprep.subr.mxu0 0.0
        %6469 = vmatpush1.msra.mxu0 0.0
        %6470 = vmatprep.subr.mxu0 0.0
        %6471 = vmatpush1.msra.mxu0 0.0
        %6472 = vmatprep.subr.mxu0 0.0
        %6473 = vmatpush1.msra.mxu0 0.0
        %6474 = vmatprep.subr.mxu0 0.0
        %6475 = vmatpush1.msra.mxu0 0.0
        %6476 = vmatprep.subr.mxu0 0.0
        %6477 = vmatpush1.msra.mxu0 0.0
        %6478 = vmatprep.subr.mxu0 %v6440
        %6479 = vmatpush1.msra.mxu0 %v6439
        %6480 = vmatprep.subr.mxu0 0.0
        %6481 = vmatpush2.msra.mxu0 0.0
        %6482 = vmatprep.subr.mxu0 0.0
        %6483 = vmatpush2.msra.mxu0 0.0
        %6484 = vmatprep.subr.mxu0 0.0
        %6485 = vmatpush2.msra.mxu0 0.0
        %6486 = vmatprep.subr.mxu0 0.0
        %6487 = vmatpush2.msra.mxu0 0.0
        %6488 = vmatprep.subr.mxu0 0.0
        %6489 = vmatpush2.msra.mxu0 0.0
        %6490 = vmatprep.subr.mxu0 0.0
        %6491 = vmatpush2.msra.mxu0 0.0
        %6492 = vmatprep.subr.mxu0 0.0
        %6493 = vmatpush2.msra.mxu0 0.0
        %6494 = vmatprep.subr.mxu0 0.0
        %6495 = vmatpush2.msra.mxu0 0.0
        %6496 = vmatprep.subr.mxu0 0.0
        %6497 = vmatpush2.msra.mxu0 0.0
        %6498 = vmatprep.subr.mxu0 0.0
        %6499 = vmatpush2.msra.mxu0 0.0
        %6500 = vmatprep.subr.mxu0 0.0
        %6501 = vmatpush2.msra.mxu0 0.0
        %6502 = vmatprep.subr.mxu0 0.0
        %6503 = vmatpush2.msra.mxu0 0.0
        %6504 = vmatprep.subr.mxu0 0.0
        %6505 = vmatpush2.msra.mxu0 0.0
        %6506 = vmatprep.subr.mxu0 0.0
        %6507 = vmatpush2.msra.mxu0 0.0
        %6508 = vmatprep.subr.mxu0 0.0
        %6509 = vmatpush2.msra.mxu0 0.0
        %6510 = vmatprep.subr.mxu0 0.0
        %6511 = vmatpush2.msra.mxu0 0.0
        %6512 = vmatprep.mubr.f32.mxu0 0.0
        %6513 = vmatmul.mubr.f32.gmra.mxu0 %v6446
        %v6514 = vpop.f32.mrf.mxu0
        %v6515 = vadd.f32 0.0, %v6514
        %v6516 = vpop.f32.mrf.mxu0
        %v6517 = vadd.f32 0.0, %v6516
        %6518 = vdwg.mxu0
        %6519 = vmatprep.subr.mxu0 0.0
        %6520 = vmatpush1.msra.mxu0 0.0
        %6521 = vmatprep.subr.mxu0 0.0
        %6522 = vmatpush1.msra.mxu0 0.0
        %6523 = vmatprep.subr.mxu0 0.0
        %6524 = vmatpush1.msra.mxu0 0.0
        %6525 = vmatprep.subr.mxu0 0.0
        %6526 = vmatpush1.msra.mxu0 0.0
        %6527 = vmatprep.subr.mxu0 0.0
        %6528 = vmatpush1.msra.mxu0 0.0
        %6529 = vmatprep.subr.mxu0 0.0
        %6530 = vmatpush1.msra.mxu0 0.0
        %6531 = vmatprep.subr.mxu0 0.0
        %6532 = vmatpush1.msra.mxu0 0.0
        %6533 = vmatprep.subr.mxu0 0.0
        %6534 = vmatpush1.msra.mxu0 0.0
        %6535 = vmatprep.subr.mxu0 0.0
        %6536 = vmatpush1.msra.mxu0 0.0
        %6537 = vmatprep.subr.mxu0 0.0
        %6538 = vmatpush1.msra.mxu0 0.0
        %6539 = vmatprep.subr.mxu0 0.0
        %6540 = vmatpush1.msra.mxu0 0.0
        %6541 = vmatprep.subr.mxu0 0.0
        %6542 = vmatpush1.msra.mxu0 0.0
        %6543 = vmatprep.subr.mxu0 0.0
        %6544 = vmatpush1.msra.mxu0 0.0
        %6545 = vmatprep.subr.mxu0 0.0
        %6546 = vmatpush1.msra.mxu0 0.0
        %6547 = vmatprep.subr.mxu0 0.0
        %6548 = vmatpush1.msra.mxu0 0.0
        %6549 = vmatprep.subr.mxu0 0.0
        %6550 = vmatpush1.msra.mxu0 %v6438
        %6551 = vmatprep.subr.mxu0 0.0
        %6552 = vmatpush2.msra.mxu0 0.0
        %6553 = vmatprep.subr.mxu0 0.0
        %6554 = vmatpush2.msra.mxu0 0.0
        %6555 = vmatprep.subr.mxu0 0.0
        %6556 = vmatpush2.msra.mxu0 0.0
        %6557 = vmatprep.subr.mxu0 0.0
        %6558 = vmatpush2.msra.mxu0 0.0
        %6559 = vmatprep.subr.mxu0 0.0
        %6560 = vmatpush2.msra.mxu0 0.0
        %6561 = vmatprep.subr.mxu0 0.0
        %6562 = vmatpush2.msra.mxu0 0.0
        %6563 = vmatprep.subr.mxu0 0.0
        %6564 = vmatpush2.msra.mxu0 0.0
        %6565 = vmatprep.subr.mxu0 0.0
        %6566 = vmatpush2.msra.mxu0 0.0
        %6567 = vmatprep.subr.mxu0 0.0
        %6568 = vmatpush2.msra.mxu0 0.0
        %6569 = vmatprep.subr.mxu0 0.0
        %6570 = vmatpush2.msra.mxu0 0.0
        %6571 = vmatprep.subr.mxu0 0.0
        %6572 = vmatpush2.msra.mxu0 0.0
        %6573 = vmatprep.subr.mxu0 0.0
        %6574 = vmatpush2.msra.mxu0 0.0
        %6575 = vmatprep.subr.mxu0 0.0
        %6576 = vmatpush2.msra.mxu0 0.0
        %6577 = vmatprep.subr.mxu0 0.0
        %6578 = vmatpush2.msra.mxu0 0.0
        %6579 = vmatprep.subr.mxu0 0.0
        %6580 = vmatpush2.msra.mxu0 0.0
        %6581 = vmatprep.subr.mxu0 0.0
        %6582 = vmatpush2.msra.mxu0 0.0
        %6583 = vmatprep.mubr.f32.mxu0 0.0
        %6584 = vmatmul.mubr.f32.gmra.mxu0 %v6446
        %v6585 = vpop.f32.mrf.mxu0
        %v6586 = vadd.f32 0.0, %v6585
        %v6587 = vpop.f32.mrf.mxu0
        %6588 = vdwg.mxu0
        %v6590 = vsel %vm6444, %v6427, 0
        %6592 = vmatprep.subr.mxu0 0.0
        %6593 = vmatpush1.msra.mxu0 0.0
        %6594 = vmatprep.subr.mxu0 0.0
        %6595 = vmatpush1.msra.mxu0 0.0
        %6596 = vmatprep.subr.mxu0 0.0
        %6597 = vmatpush1.msra.mxu0 0.0
        %6598 = vmatprep.subr.mxu0 0.0
        %6599 = vmatpush1.msra.mxu0 0.0
        %6600 = vmatprep.subr.mxu0 0.0
        %6601 = vmatpush1.msra.mxu0 0.0
        %6602 = vmatprep.subr.mxu0 0.0
        %6603 = vmatpush1.msra.mxu0 0.0
        %6604 = vmatprep.subr.mxu0 0.0
        %6605 = vmatpush1.msra.mxu0 0.0
        %6606 = vmatprep.subr.mxu0 0.0
        %6607 = vmatpush1.msra.mxu0 0.0
        %6608 = vmatprep.subr.mxu0 0.0
        %6609 = vmatpush1.msra.mxu0 0.0
        %6610 = vmatprep.subr.mxu0 0.0
        %6611 = vmatpush1.msra.mxu0 0.0
        %6612 = vmatprep.subr.mxu0 0.0
        %6613 = vmatpush1.msra.mxu0 0.0
        %6614 = vmatprep.subr.mxu0 0.0
        %6615 = vmatpush1.msra.mxu0 0.0
        %6616 = vmatprep.subr.mxu0 0.0
        %6617 = vmatpush1.msra.mxu0 0.0
        %6618 = vmatprep.subr.mxu0 0.0
        %6619 = vmatpush1.msra.mxu0 0.0
        %6620 = vmatprep.subr.mxu0 0.0
        %6621 = vmatpush1.msra.mxu0 0.0
        %6622 = vmatprep.subr.mxu0 %v6425
        %6623 = vmatpush1.msra.mxu0 %v6424
        %6624 = vmatprep.subr.mxu0 0.0
        %6625 = vmatpush2.msra.mxu0 0.0
        %6626 = vmatprep.subr.mxu0 0.0
        %6627 = vmatpush2.msra.mxu0 0.0
        %6628 = vmatprep.subr.mxu0 0.0
        %6629 = vmatpush2.msra.mxu0 0.0
        %6630 = vmatprep.subr.mxu0 0.0
        %6631 = vmatpush2.msra.mxu0 0.0
        %6632 = vmatprep.subr.mxu0 0.0
        %6633 = vmatpush2.msra.mxu0 0.0
        %6634 = vmatprep.subr.mxu0 0.0
        %6635 = vmatpush2.msra.mxu0 0.0
        %6636 = vmatprep.subr.mxu0 0.0
        %6637 = vmatpush2.msra.mxu0 0.0
        %6638 = vmatprep.subr.mxu0 0.0
        %6639 = vmatpush2.msra.mxu0 0.0
        %6640 = vmatprep.subr.mxu0 0.0
        %6641 = vmatpush2.msra.mxu0 0.0
        %6642 = vmatprep.subr.mxu0 0.0
        %6643 = vmatpush2.msra.mxu0 0.0
        %6644 = vmatprep.subr.mxu0 0.0
        %6645 = vmatpush2.msra.mxu0 0.0
        %6646 = vmatprep.subr.mxu0 0.0
        %6647 = vmatpush2.msra.mxu0 0.0
        %6648 = vmatprep.subr.mxu0 0.0
        %6649 = vmatpush2.msra.mxu0 0.0
        %6650 = vmatprep.subr.mxu0 0.0
        %6651 = vmatpush2.msra.mxu0 0.0
        %6652 = vmatprep.subr.mxu0 0.0
        %6653 = vmatpush2.msra.mxu0 0.0
        %6654 = vmatprep.subr.mxu0 0.0
        %6655 = vmatpush2.msra.mxu0 0.0
        %6656 = vmatprep.mubr.f32.mxu0 0.0
        %6657 = vmatmul.mubr.f32.gmra.mxu0 %v6590
        %v6658 = vpop.f32.mrf.mxu0
        %v6659 = vadd.f32 %v6515, %v6658
        %v6660 = vpop.f32.mrf.mxu0
        %v6661 = vadd.f32 %v6517, %v6660
        %6662 = vdwg.mxu0
        %6663 = vmatprep.subr.mxu0 0.0
        %6664 = vmatpush1.msra.mxu0 0.0
        %6665 = vmatprep.subr.mxu0 0.0
        %6666 = vmatpush1.msra.mxu0 0.0
        %6667 = vmatprep.subr.mxu0 0.0
        %6668 = vmatpush1.msra.mxu0 0.0
        %6669 = vmatprep.subr.mxu0 0.0
        %6670 = vmatpush1.msra.mxu0 0.0
        %6671 = vmatprep.subr.mxu0 0.0
        %6672 = vmatpush1.msra.mxu0 0.0
        %6673 = vmatprep.subr.mxu0 0.0
        %6674 = vmatpush1.msra.mxu0 0.0
        %6675 = vmatprep.subr.mxu0 0.0
        %6676 = vmatpush1.msra.mxu0 0.0
        %6677 = vmatprep.subr.mxu0 0.0
        %6678 = vmatpush1.msra.mxu0 0.0
        %6679 = vmatprep.subr.mxu0 0.0
        %6680 = vmatpush1.msra.mxu0 0.0
        %6681 = vmatprep.subr.mxu0 0.0
        %6682 = vmatpush1.msra.mxu0 0.0
        %6683 = vmatprep.subr.mxu0 0.0
        %6684 = vmatpush1.msra.mxu0 0.0
        %6685 = vmatprep.subr.mxu0 0.0
        %6686 = vmatpush1.msra.mxu0 0.0
        %6687 = vmatprep.subr.mxu0 0.0
        %6688 = vmatpush1.msra.mxu0 0.0
        %6689 = vmatprep.subr.mxu0 0.0
        %6690 = vmatpush1.msra.mxu0 0.0
        %6691 = vmatprep.subr.mxu0 0.0
        %6692 = vmatpush1.msra.mxu0 0.0
        %6693 = vmatprep.subr.mxu0 0.0
        %6694 = vmatpush1.msra.mxu0 %v6426
        %6695 = vmatprep.subr.mxu0 0.0
        %6696 = vmatpush2.msra.mxu0 0.0
        %6697 = vmatprep.subr.mxu0 0.0
        %6698 = vmatpush2.msra.mxu0 0.0
        %6699 = vmatprep.subr.mxu0 0.0
        %6700 = vmatpush2.msra.mxu0 0.0
        %6701 = vmatprep.subr.mxu0 0.0
        %6702 = vmatpush2.msra.mxu0 0.0
        %6703 = vmatprep.subr.mxu0 0.0
        %6704 = vmatpush2.msra.mxu0 0.0
        %6705 = vmatprep.subr.mxu0 0.0
        %6706 = vmatpush2.msra.mxu0 0.0
        %6707 = vmatprep.subr.mxu0 0.0
        %6708 = vmatpush2.msra.mxu0 0.0
        %6709 = vmatprep.subr.mxu0 0.0
        %6710 = vmatpush2.msra.mxu0 0.0
        %6711 = vmatprep.subr.mxu0 0.0
        %6712 = vmatpush2.msra.mxu0 0.0
        %6713 = vmatprep.subr.mxu0 0.0
        %6714 = vmatpush2.msra.mxu0 0.0
        %6715 = vmatprep.subr.mxu0 0.0
        %6716 = vmatpush2.msra.mxu0 0.0
        %6717 = vmatprep.subr.mxu0 0.0
        %6718 = vmatpush2.msra.mxu0 0.0
        %6719 = vmatprep.subr.mxu0 0.0
        %6720 = vmatpush2.msra.mxu0 0.0
        %6721 = vmatprep.subr.mxu0 0.0
        %6722 = vmatpush2.msra.mxu0 0.0
        %6723 = vmatprep.subr.mxu0 0.0
        %6724 = vmatpush2.msra.mxu0 0.0
        %6725 = vmatprep.subr.mxu0 0.0
        %6726 = vmatpush2.msra.mxu0 0.0
        %6727 = vmatprep.mubr.f32.mxu0 0.0
        %6728 = vmatmul.mubr.f32.gmra.mxu0 %v6590
        %v6729 = vpop.f32.mrf.mxu0
        %v6730 = vadd.f32 %v6586, %v6729
        %v6731 = vpop.f32.mrf.mxu0
        %6732 = vdwg.mxu0
        %s6733 = scalar_lea.vmem %s6, 4
        %v6734 = vld [vmem:[%s6733] sm:$0x3]
        %6735 = vrot.lane.b32.xlu0 %v6424, 126
        %v6736 = vpop.permute.xlu0 %6735
        %6737 = vrot.lane.b32.xlu0 %v6425, 126
        %v6738 = vpop.permute.xlu0 %6737
        %6739 = vrot.lane.b32.xlu0 %v6426, 126
        %v6740 = vpop.permute.xlu0 %6739
        %v6741 = vsel %vm645, %v6736, %v6738
        %v6742 = vsel %vm645, %v6738, %v6740
        %v6747 = vsel %vm6444, %v6734, 0
        %6749 = vmatprep.subr.mxu0 0.0
        %6750 = vmatpush1.msra.mxu0 0.0
        %6751 = vmatprep.subr.mxu0 0.0
        %6752 = vmatpush1.msra.mxu0 0.0
        %6753 = vmatprep.subr.mxu0 0.0
        %6754 = vmatpush1.msra.mxu0 0.0
        %6755 = vmatprep.subr.mxu0 0.0
        %6756 = vmatpush1.msra.mxu0 0.0
        %6757 = vmatprep.subr.mxu0 0.0
        %6758 = vmatpush1.msra.mxu0 0.0
        %6759 = vmatprep.subr.mxu0 0.0
        %6760 = vmatpush1.msra.mxu0 0.0
        %6761 = vmatprep.subr.mxu0 0.0
        %6762 = vmatpush1.msra.mxu0 0.0
        %6763 = vmatprep.subr.mxu0 0.0
        %6764 = vmatpush1.msra.mxu0 0.0
        %6765 = vmatprep.subr.mxu0 0.0
        %6766 = vmatpush1.msra.mxu0 0.0
        %6767 = vmatprep.subr.mxu0 0.0
        %6768 = vmatpush1.msra.mxu0 0.0
        %6769 = vmatprep.subr.mxu0 0.0
        %6770 = vmatpush1.msra.mxu0 0.0
        %6771 = vmatprep.subr.mxu0 0.0
        %6772 = vmatpush1.msra.mxu0 0.0
        %6773 = vmatprep.subr.mxu0 0.0
        %6774 = vmatpush1.msra.mxu0 0.0
        %6775 = vmatprep.subr.mxu0 0.0
        %6776 = vmatpush1.msra.mxu0 0.0
        %6777 = vmatprep.subr.mxu0 0.0
        %6778 = vmatpush1.msra.mxu0 0.0
        %6779 = vmatprep.subr.mxu0 %v6742
        %6780 = vmatpush1.msra.mxu0 %v6741
        %6781 = vmatprep.subr.mxu0 0.0
        %6782 = vmatpush2.msra.mxu0 0.0
        %6783 = vmatprep.subr.mxu0 0.0
        %6784 = vmatpush2.msra.mxu0 0.0
        %6785 = vmatprep.subr.mxu0 0.0
        %6786 = vmatpush2.msra.mxu0 0.0
        %6787 = vmatprep.subr.mxu0 0.0
        %6788 = vmatpush2.msra.mxu0 0.0
        %6789 = vmatprep.subr.mxu0 0.0
        %6790 = vmatpush2.msra.mxu0 0.0
        %6791 = vmatprep.subr.mxu0 0.0
        %6792 = vmatpush2.msra.mxu0 0.0
        %6793 = vmatprep.subr.mxu0 0.0
        %6794 = vmatpush2.msra.mxu0 0.0
        %6795 = vmatprep.subr.mxu0 0.0
        %6796 = vmatpush2.msra.mxu0 0.0
        %6797 = vmatprep.subr.mxu0 0.0
        %6798 = vmatpush2.msra.mxu0 0.0
        %6799 = vmatprep.subr.mxu0 0.0
        %6800 = vmatpush2.msra.mxu0 0.0
        %6801 = vmatprep.subr.mxu0 0.0
        %6802 = vmatpush2.msra.mxu0 0.0
        %6803 = vmatprep.subr.mxu0 0.0
        %6804 = vmatpush2.msra.mxu0 0.0
        %6805 = vmatprep.subr.mxu0 0.0
        %6806 = vmatpush2.msra.mxu0 0.0
        %6807 = vmatprep.subr.mxu0 0.0
        %6808 = vmatpush2.msra.mxu0 0.0
        %6809 = vmatprep.subr.mxu0 0.0
        %6810 = vmatpush2.msra.mxu0 0.0
        %6811 = vmatprep.subr.mxu0 0.0
        %6812 = vmatpush2.msra.mxu0 0.0
        %6813 = vmatprep.mubr.f32.mxu0 0.0
        %6814 = vmatmul.mubr.f32.gmra.mxu0 %v6747
        %v6815 = vpop.f32.mrf.mxu0
        %v6816 = vadd.f32 0.0, %v6815
        %v6817 = vpop.f32.mrf.mxu0
        %v6818 = vadd.f32 0.0, %v6817
        %6819 = vdwg.mxu0
        %6820 = vmatprep.subr.mxu0 0.0
        %6821 = vmatpush1.msra.mxu0 0.0
        %6822 = vmatprep.subr.mxu0 0.0
        %6823 = vmatpush1.msra.mxu0 0.0
        %6824 = vmatprep.subr.mxu0 0.0
        %6825 = vmatpush1.msra.mxu0 0.0
        %6826 = vmatprep.subr.mxu0 0.0
        %6827 = vmatpush1.msra.mxu0 0.0
        %6828 = vmatprep.subr.mxu0 0.0
        %6829 = vmatpush1.msra.mxu0 0.0
        %6830 = vmatprep.subr.mxu0 0.0
        %6831 = vmatpush1.msra.mxu0 0.0
        %6832 = vmatprep.subr.mxu0 0.0
        %6833 = vmatpush1.msra.mxu0 0.0
        %6834 = vmatprep.subr.mxu0 0.0
        %6835 = vmatpush1.msra.mxu0 0.0
        %6836 = vmatprep.subr.mxu0 0.0
        %6837 = vmatpush1.msra.mxu0 0.0
        %6838 = vmatprep.subr.mxu0 0.0
        %6839 = vmatpush1.msra.mxu0 0.0
        %6840 = vmatprep.subr.mxu0 0.0
        %6841 = vmatpush1.msra.mxu0 0.0
        %6842 = vmatprep.subr.mxu0 0.0
        %6843 = vmatpush1.msra.mxu0 0.0
        %6844 = vmatprep.subr.mxu0 0.0
        %6845 = vmatpush1.msra.mxu0 0.0
        %6846 = vmatprep.subr.mxu0 0.0
        %6847 = vmatpush1.msra.mxu0 0.0
        %6848 = vmatprep.subr.mxu0 0.0
        %6849 = vmatpush1.msra.mxu0 0.0
        %6850 = vmatprep.subr.mxu0 0.0
        %6851 = vmatpush1.msra.mxu0 %v6740
        %6852 = vmatprep.subr.mxu0 0.0
        %6853 = vmatpush2.msra.mxu0 0.0
        %6854 = vmatprep.subr.mxu0 0.0
        %6855 = vmatpush2.msra.mxu0 0.0
        %6856 = vmatprep.subr.mxu0 0.0
        %6857 = vmatpush2.msra.mxu0 0.0
        %6858 = vmatprep.subr.mxu0 0.0
        %6859 = vmatpush2.msra.mxu0 0.0
        %6860 = vmatprep.subr.mxu0 0.0
        %6861 = vmatpush2.msra.mxu0 0.0
        %6862 = vmatprep.subr.mxu0 0.0
        %6863 = vmatpush2.msra.mxu0 0.0
        %6864 = vmatprep.subr.mxu0 0.0
        %6865 = vmatpush2.msra.mxu0 0.0
        %6866 = vmatprep.subr.mxu0 0.0
        %6867 = vmatpush2.msra.mxu0 0.0
        %6868 = vmatprep.subr.mxu0 0.0
        %6869 = vmatpush2.msra.mxu0 0.0
        %6870 = vmatprep.subr.mxu0 0.0
        %6871 = vmatpush2.msra.mxu0 0.0
        %6872 = vmatprep.subr.mxu0 0.0
        %6873 = vmatpush2.msra.mxu0 0.0
        %6874 = vmatprep.subr.mxu0 0.0
        %6875 = vmatpush2.msra.mxu0 0.0
        %6876 = vmatprep.subr.mxu0 0.0
        %6877 = vmatpush2.msra.mxu0 0.0
        %6878 = vmatprep.subr.mxu0 0.0
        %6879 = vmatpush2.msra.mxu0 0.0
        %6880 = vmatprep.subr.mxu0 0.0
        %6881 = vmatpush2.msra.mxu0 0.0
        %6882 = vmatprep.subr.mxu0 0.0
        %6883 = vmatpush2.msra.mxu0 0.0
        %6884 = vmatprep.mubr.f32.mxu0 0.0
        %6885 = vmatmul.mubr.f32.gmra.mxu0 %v6747
        %v6886 = vpop.f32.mrf.mxu0
        %v6887 = vadd.f32 0.0, %v6886
        %v6888 = vpop.f32.mrf.mxu0
        %6889 = vdwg.mxu0
        %v6890 = vadd.f32 %v6659, %v6816
        %v6891 = vadd.f32 %v6661, %v6818
        %v6892 = vadd.f32 %v6730, %v6887
        %s6893 = scalar_lea.vmem %s6, 6
        %v6894 = vld [vmem:[%s6893] sm:$0x3]
        %6895 = vrot.lane.b32.xlu0 %v6424, 110
        %v6896 = vpop.permute.xlu0 %6895
        %6897 = vrot.lane.b32.xlu0 %v6425, 110
        %v6898 = vpop.permute.xlu0 %6897
        %6899 = vrot.lane.b32.xlu0 %v6426, 110
        %v6900 = vpop.permute.xlu0 %6899
        %v6901 = vsel %vm814, %v6896, %v6898
        %v6902 = vsel %vm814, %v6898, %v6900
        %v6907 = vsel %vm6444, %v6894, 0
        %6909 = vmatprep.subr.mxu0 0.0
        %6910 = vmatpush1.msra.mxu0 0.0
        %6911 = vmatprep.subr.mxu0 0.0
        %6912 = vmatpush1.msra.mxu0 0.0
        %6913 = vmatprep.subr.mxu0 0.0
        %6914 = vmatpush1.msra.mxu0 0.0
        %6915 = vmatprep.subr.mxu0 0.0
        %6916 = vmatpush1.msra.mxu0 0.0
        %6917 = vmatprep.subr.mxu0 0.0
        %6918 = vmatpush1.msra.mxu0 0.0
        %6919 = vmatprep.subr.mxu0 0.0
        %6920 = vmatpush1.msra.mxu0 0.0
        %6921 = vmatprep.subr.mxu0 0.0
        %6922 = vmatpush1.msra.mxu0 0.0
        %6923 = vmatprep.subr.mxu0 0.0
        %6924 = vmatpush1.msra.mxu0 0.0
        %6925 = vmatprep.subr.mxu0 0.0
        %6926 = vmatpush1.msra.mxu0 0.0
        %6927 = vmatprep.subr.mxu0 0.0
        %6928 = vmatpush1.msra.mxu0 0.0
        %6929 = vmatprep.subr.mxu0 0.0
        %6930 = vmatpush1.msra.mxu0 0.0
        %6931 = vmatprep.subr.mxu0 0.0
        %6932 = vmatpush1.msra.mxu0 0.0
        %6933 = vmatprep.subr.mxu0 0.0
        %6934 = vmatpush1.msra.mxu0 0.0
        %6935 = vmatprep.subr.mxu0 0.0
        %6936 = vmatpush1.msra.mxu0 0.0
        %6937 = vmatprep.subr.mxu0 0.0
        %6938 = vmatpush1.msra.mxu0 0.0
        %6939 = vmatprep.subr.mxu0 %v6902
        %6940 = vmatpush1.msra.mxu0 %v6901
        %6941 = vmatprep.subr.mxu0 0.0
        %6942 = vmatpush2.msra.mxu0 0.0
        %6943 = vmatprep.subr.mxu0 0.0
        %6944 = vmatpush2.msra.mxu0 0.0
        %6945 = vmatprep.subr.mxu0 0.0
        %6946 = vmatpush2.msra.mxu0 0.0
        %6947 = vmatprep.subr.mxu0 0.0
        %6948 = vmatpush2.msra.mxu0 0.0
        %6949 = vmatprep.subr.mxu0 0.0
        %6950 = vmatpush2.msra.mxu0 0.0
        %6951 = vmatprep.subr.mxu0 0.0
        %6952 = vmatpush2.msra.mxu0 0.0
        %6953 = vmatprep.subr.mxu0 0.0
        %6954 = vmatpush2.msra.mxu0 0.0
        %6955 = vmatprep.subr.mxu0 0.0
        %6956 = vmatpush2.msra.mxu0 0.0
        %6957 = vmatprep.subr.mxu0 0.0
        %6958 = vmatpush2.msra.mxu0 0.0
        %6959 = vmatprep.subr.mxu0 0.0
        %6960 = vmatpush2.msra.mxu0 0.0
        %6961 = vmatprep.subr.mxu0 0.0
        %6962 = vmatpush2.msra.mxu0 0.0
        %6963 = vmatprep.subr.mxu0 0.0
        %6964 = vmatpush2.msra.mxu0 0.0
        %6965 = vmatprep.subr.mxu0 0.0
        %6966 = vmatpush2.msra.mxu0 0.0
        %6967 = vmatprep.subr.mxu0 0.0
        %6968 = vmatpush2.msra.mxu0 0.0
        %6969 = vmatprep.subr.mxu0 0.0
        %6970 = vmatpush2.msra.mxu0 0.0
        %6971 = vmatprep.subr.mxu0 0.0
        %6972 = vmatpush2.msra.mxu0 0.0
        %6973 = vmatprep.mubr.f32.mxu0 0.0
        %6974 = vmatmul.mubr.f32.gmra.mxu0 %v6907
        %v6975 = vpop.f32.mrf.mxu0
        %v6976 = vadd.f32 0.0, %v6975
        %v6977 = vpop.f32.mrf.mxu0
        %v6978 = vadd.f32 0.0, %v6977
        %6979 = vdwg.mxu0
        %6980 = vmatprep.subr.mxu0 0.0
        %6981 = vmatpush1.msra.mxu0 0.0
        %6982 = vmatprep.subr.mxu0 0.0
        %6983 = vmatpush1.msra.mxu0 0.0
        %6984 = vmatprep.subr.mxu0 0.0
        %6985 = vmatpush1.msra.mxu0 0.0
        %6986 = vmatprep.subr.mxu0 0.0
        %6987 = vmatpush1.msra.mxu0 0.0
        %6988 = vmatprep.subr.mxu0 0.0
        %6989 = vmatpush1.msra.mxu0 0.0
        %6990 = vmatprep.subr.mxu0 0.0
        %6991 = vmatpush1.msra.mxu0 0.0
        %6992 = vmatprep.subr.mxu0 0.0
        %6993 = vmatpush1.msra.mxu0 0.0
        %6994 = vmatprep.subr.mxu0 0.0
        %6995 = vmatpush1.msra.mxu0 0.0
        %6996 = vmatprep.subr.mxu0 0.0
        %6997 = vmatpush1.msra.mxu0 0.0
        %6998 = vmatprep.subr.mxu0 0.0
        %6999 = vmatpush1.msra.mxu0 0.0
        %7000 = vmatprep.subr.mxu0 0.0
        %7001 = vmatpush1.msra.mxu0 0.0
        %7002 = vmatprep.subr.mxu0 0.0
        %7003 = vmatpush1.msra.mxu0 0.0
        %7004 = vmatprep.subr.mxu0 0.0
        %7005 = vmatpush1.msra.mxu0 0.0
        %7006 = vmatprep.subr.mxu0 0.0
        %7007 = vmatpush1.msra.mxu0 0.0
        %7008 = vmatprep.subr.mxu0 0.0
        %7009 = vmatpush1.msra.mxu0 0.0
        %7010 = vmatprep.subr.mxu0 0.0
        %7011 = vmatpush1.msra.mxu0 %v6900
        %7012 = vmatprep.subr.mxu0 0.0
        %7013 = vmatpush2.msra.mxu0 0.0
        %7014 = vmatprep.subr.mxu0 0.0
        %7015 = vmatpush2.msra.mxu0 0.0
        %7016 = vmatprep.subr.mxu0 0.0
        %7017 = vmatpush2.msra.mxu0 0.0
        %7018 = vmatprep.subr.mxu0 0.0
        %7019 = vmatpush2.msra.mxu0 0.0
        %7020 = vmatprep.subr.mxu0 0.0
        %7021 = vmatpush2.msra.mxu0 0.0
        %7022 = vmatprep.subr.mxu0 0.0
        %7023 = vmatpush2.msra.mxu0 0.0
        %7024 = vmatprep.subr.mxu0 0.0
        %7025 = vmatpush2.msra.mxu0 0.0
        %7026 = vmatprep.subr.mxu0 0.0
        %7027 = vmatpush2.msra.mxu0 0.0
        %7028 = vmatprep.subr.mxu0 0.0
        %7029 = vmatpush2.msra.mxu0 0.0
        %7030 = vmatprep.subr.mxu0 0.0
        %7031 = vmatpush2.msra.mxu0 0.0
        %7032 = vmatprep.subr.mxu0 0.0
        %7033 = vmatpush2.msra.mxu0 0.0
        %7034 = vmatprep.subr.mxu0 0.0
        %7035 = vmatpush2.msra.mxu0 0.0
        %7036 = vmatprep.subr.mxu0 0.0
        %7037 = vmatpush2.msra.mxu0 0.0
        %7038 = vmatprep.subr.mxu0 0.0
        %7039 = vmatpush2.msra.mxu0 0.0
        %7040 = vmatprep.subr.mxu0 0.0
        %7041 = vmatpush2.msra.mxu0 0.0
        %7042 = vmatprep.subr.mxu0 0.0
        %7043 = vmatpush2.msra.mxu0 0.0
        %7044 = vmatprep.mubr.f32.mxu0 0.0
        %7045 = vmatmul.mubr.f32.gmra.mxu0 %v6907
        %v7046 = vpop.f32.mrf.mxu0
        %v7047 = vadd.f32 0.0, %v7046
        %v7048 = vpop.f32.mrf.mxu0
        %7049 = vdwg.mxu0
        %v7050 = vadd.f32 %v6890, %v6976
        %v7051 = vadd.f32 %v6891, %v6978
        %v7052 = vadd.f32 %v6892, %v7047
        %s7053 = scalar_lea.vmem %s6, 8
        %v7054 = vld [vmem:[%s7053] sm:$0x3]
        %7055 = vrot.lane.b32.xlu0 %v6424, 109
        %v7056 = vpop.permute.xlu0 %7055
        %7057 = vrot.lane.b32.xlu0 %v6425, 109
        %v7058 = vpop.permute.xlu0 %7057
        %7059 = vrot.lane.b32.xlu0 %v6426, 109
        %v7060 = vpop.permute.xlu0 %7059
        %v7061 = vsel %vm983, %v7056, %v7058
        %v7062 = vsel %vm983, %v7058, %v7060
        %v7067 = vsel %vm6444, %v7054, 0
        %7069 = vmatprep.subr.mxu0 0.0
        %7070 = vmatpush1.msra.mxu0 0.0
        %7071 = vmatprep.subr.mxu0 0.0
        %7072 = vmatpush1.msra.mxu0 0.0
        %7073 = vmatprep.subr.mxu0 0.0
        %7074 = vmatpush1.msra.mxu0 0.0
        %7075 = vmatprep.subr.mxu0 0.0
        %7076 = vmatpush1.msra.mxu0 0.0
        %7077 = vmatprep.subr.mxu0 0.0
        %7078 = vmatpush1.msra.mxu0 0.0
        %7079 = vmatprep.subr.mxu0 0.0
        %7080 = vmatpush1.msra.mxu0 0.0
        %7081 = vmatprep.subr.mxu0 0.0
        %7082 = vmatpush1.msra.mxu0 0.0
        %7083 = vmatprep.subr.mxu0 0.0
        %7084 = vmatpush1.msra.mxu0 0.0
        %7085 = vmatprep.subr.mxu0 0.0
        %7086 = vmatpush1.msra.mxu0 0.0
        %7087 = vmatprep.subr.mxu0 0.0
        %7088 = vmatpush1.msra.mxu0 0.0
        %7089 = vmatprep.subr.mxu0 0.0
        %7090 = vmatpush1.msra.mxu0 0.0
        %7091 = vmatprep.subr.mxu0 0.0
        %7092 = vmatpush1.msra.mxu0 0.0
        %7093 = vmatprep.subr.mxu0 0.0
        %7094 = vmatpush1.msra.mxu0 0.0
        %7095 = vmatprep.subr.mxu0 0.0
        %7096 = vmatpush1.msra.mxu0 0.0
        %7097 = vmatprep.subr.mxu0 0.0
        %7098 = vmatpush1.msra.mxu0 0.0
        %7099 = vmatprep.subr.mxu0 %v7062
        %7100 = vmatpush1.msra.mxu0 %v7061
        %7101 = vmatprep.subr.mxu0 0.0
        %7102 = vmatpush2.msra.mxu0 0.0
        %7103 = vmatprep.subr.mxu0 0.0
        %7104 = vmatpush2.msra.mxu0 0.0
        %7105 = vmatprep.subr.mxu0 0.0
        %7106 = vmatpush2.msra.mxu0 0.0
        %7107 = vmatprep.subr.mxu0 0.0
        %7108 = vmatpush2.msra.mxu0 0.0
        %7109 = vmatprep.subr.mxu0 0.0
        %7110 = vmatpush2.msra.mxu0 0.0
        %7111 = vmatprep.subr.mxu0 0.0
        %7112 = vmatpush2.msra.mxu0 0.0
        %7113 = vmatprep.subr.mxu0 0.0
        %7114 = vmatpush2.msra.mxu0 0.0
        %7115 = vmatprep.subr.mxu0 0.0
        %7116 = vmatpush2.msra.mxu0 0.0
        %7117 = vmatprep.subr.mxu0 0.0
        %7118 = vmatpush2.msra.mxu0 0.0
        %7119 = vmatprep.subr.mxu0 0.0
        %7120 = vmatpush2.msra.mxu0 0.0
        %7121 = vmatprep.subr.mxu0 0.0
        %7122 = vmatpush2.msra.mxu0 0.0
        %7123 = vmatprep.subr.mxu0 0.0
        %7124 = vmatpush2.msra.mxu0 0.0
        %7125 = vmatprep.subr.mxu0 0.0
        %7126 = vmatpush2.msra.mxu0 0.0
        %7127 = vmatprep.subr.mxu0 0.0
        %7128 = vmatpush2.msra.mxu0 0.0
        %7129 = vmatprep.subr.mxu0 0.0
        %7130 = vmatpush2.msra.mxu0 0.0
        %7131 = vmatprep.subr.mxu0 0.0
        %7132 = vmatpush2.msra.mxu0 0.0
        %7133 = vmatprep.mubr.f32.mxu0 0.0
        %7134 = vmatmul.mubr.f32.gmra.mxu0 %v7067
        %v7135 = vpop.f32.mrf.mxu0
        %v7136 = vadd.f32 0.0, %v7135
        %v7137 = vpop.f32.mrf.mxu0
        %v7138 = vadd.f32 0.0, %v7137
        %7139 = vdwg.mxu0
        %7140 = vmatprep.subr.mxu0 0.0
        %7141 = vmatpush1.msra.mxu0 0.0
        %7142 = vmatprep.subr.mxu0 0.0
        %7143 = vmatpush1.msra.mxu0 0.0
        %7144 = vmatprep.subr.mxu0 0.0
        %7145 = vmatpush1.msra.mxu0 0.0
        %7146 = vmatprep.subr.mxu0 0.0
        %7147 = vmatpush1.msra.mxu0 0.0
        %7148 = vmatprep.subr.mxu0 0.0
        %7149 = vmatpush1.msra.mxu0 0.0
        %7150 = vmatprep.subr.mxu0 0.0
        %7151 = vmatpush1.msra.mxu0 0.0
        %7152 = vmatprep.subr.mxu0 0.0
        %7153 = vmatpush1.msra.mxu0 0.0
        %7154 = vmatprep.subr.mxu0 0.0
        %7155 = vmatpush1.msra.mxu0 0.0
        %7156 = vmatprep.subr.mxu0 0.0
        %7157 = vmatpush1.msra.mxu0 0.0
        %7158 = vmatprep.subr.mxu0 0.0
        %7159 = vmatpush1.msra.mxu0 0.0
        %7160 = vmatprep.subr.mxu0 0.0
        %7161 = vmatpush1.msra.mxu0 0.0
        %7162 = vmatprep.subr.mxu0 0.0
        %7163 = vmatpush1.msra.mxu0 0.0
        %7164 = vmatprep.subr.mxu0 0.0
        %7165 = vmatpush1.msra.mxu0 0.0
        %7166 = vmatprep.subr.mxu0 0.0
        %7167 = vmatpush1.msra.mxu0 0.0
        %7168 = vmatprep.subr.mxu0 0.0
        %7169 = vmatpush1.msra.mxu0 0.0
        %7170 = vmatprep.subr.mxu0 0.0
        %7171 = vmatpush1.msra.mxu0 %v7060
        %7172 = vmatprep.subr.mxu0 0.0
        %7173 = vmatpush2.msra.mxu0 0.0
        %7174 = vmatprep.subr.mxu0 0.0
        %7175 = vmatpush2.msra.mxu0 0.0
        %7176 = vmatprep.subr.mxu0 0.0
        %7177 = vmatpush2.msra.mxu0 0.0
        %7178 = vmatprep.subr.mxu0 0.0
        %7179 = vmatpush2.msra.mxu0 0.0
        %7180 = vmatprep.subr.mxu0 0.0
        %7181 = vmatpush2.msra.mxu0 0.0
        %7182 = vmatprep.subr.mxu0 0.0
        %7183 = vmatpush2.msra.mxu0 0.0
        %7184 = vmatprep.subr.mxu0 0.0
        %7185 = vmatpush2.msra.mxu0 0.0
        %7186 = vmatprep.subr.mxu0 0.0
        %7187 = vmatpush2.msra.mxu0 0.0
        %7188 = vmatprep.subr.mxu0 0.0
        %7189 = vmatpush2.msra.mxu0 0.0
        %7190 = vmatprep.subr.mxu0 0.0
        %7191 = vmatpush2.msra.mxu0 0.0
        %7192 = vmatprep.subr.mxu0 0.0
        %7193 = vmatpush2.msra.mxu0 0.0
        %7194 = vmatprep.subr.mxu0 0.0
        %7195 = vmatpush2.msra.mxu0 0.0
        %7196 = vmatprep.subr.mxu0 0.0
        %7197 = vmatpush2.msra.mxu0 0.0
        %7198 = vmatprep.subr.mxu0 0.0
        %7199 = vmatpush2.msra.mxu0 0.0
        %7200 = vmatprep.subr.mxu0 0.0
        %7201 = vmatpush2.msra.mxu0 0.0
        %7202 = vmatprep.subr.mxu0 0.0
        %7203 = vmatpush2.msra.mxu0 0.0
        %7204 = vmatprep.mubr.f32.mxu0 0.0
        %7205 = vmatmul.mubr.f32.gmra.mxu0 %v7067
        %v7206 = vpop.f32.mrf.mxu0
        %v7207 = vadd.f32 0.0, %v7206
        %v7208 = vpop.f32.mrf.mxu0
        %7209 = vdwg.mxu0
        %v7210 = vadd.f32 %v7050, %v7136
        %v7211 = vadd.f32 %v7051, %v7138
        %v7212 = vadd.f32 %v7052, %v7207
        %s7213 = scalar_lea.vmem %s6, 10
        %v7214 = vld [vmem:[%s7213] sm:$0x3]
        %7215 = vrot.lane.b32.xlu0 %v6424, 108
        %v7216 = vpop.permute.xlu0 %7215
        %7217 = vrot.lane.b32.xlu0 %v6425, 108
        %v7218 = vpop.permute.xlu0 %7217
        %7219 = vrot.lane.b32.xlu0 %v6426, 108
        %v7220 = vpop.permute.xlu0 %7219
        %v7221 = vsel %vm1152, %v7216, %v7218
        %v7222 = vsel %vm1152, %v7218, %v7220
        %v7227 = vsel %vm6444, %v7214, 0
        %7229 = vmatprep.subr.mxu0 0.0
        %7230 = vmatpush1.msra.mxu0 0.0
        %7231 = vmatprep.subr.mxu0 0.0
        %7232 = vmatpush1.msra.mxu0 0.0
        %7233 = vmatprep.subr.mxu0 0.0
        %7234 = vmatpush1.msra.mxu0 0.0
        %7235 = vmatprep.subr.mxu0 0.0
        %7236 = vmatpush1.msra.mxu0 0.0
        %7237 = vmatprep.subr.mxu0 0.0
        %7238 = vmatpush1.msra.mxu0 0.0
        %7239 = vmatprep.subr.mxu0 0.0
        %7240 = vmatpush1.msra.mxu0 0.0
        %7241 = vmatprep.subr.mxu0 0.0
        %7242 = vmatpush1.msra.mxu0 0.0
        %7243 = vmatprep.subr.mxu0 0.0
        %7244 = vmatpush1.msra.mxu0 0.0
        %7245 = vmatprep.subr.mxu0 0.0
        %7246 = vmatpush1.msra.mxu0 0.0
        %7247 = vmatprep.subr.mxu0 0.0
        %7248 = vmatpush1.msra.mxu0 0.0
        %7249 = vmatprep.subr.mxu0 0.0
        %7250 = vmatpush1.msra.mxu0 0.0
        %7251 = vmatprep.subr.mxu0 0.0
        %7252 = vmatpush1.msra.mxu0 0.0
        %7253 = vmatprep.subr.mxu0 0.0
        %7254 = vmatpush1.msra.mxu0 0.0
        %7255 = vmatprep.subr.mxu0 0.0
        %7256 = vmatpush1.msra.mxu0 0.0
        %7257 = vmatprep.subr.mxu0 0.0
        %7258 = vmatpush1.msra.mxu0 0.0
        %7259 = vmatprep.subr.mxu0 %v7222
        %7260 = vmatpush1.msra.mxu0 %v7221
        %7261 = vmatprep.subr.mxu0 0.0
        %7262 = vmatpush2.msra.mxu0 0.0
        %7263 = vmatprep.subr.mxu0 0.0
        %7264 = vmatpush2.msra.mxu0 0.0
        %7265 = vmatprep.subr.mxu0 0.0
        %7266 = vmatpush2.msra.mxu0 0.0
        %7267 = vmatprep.subr.mxu0 0.0
        %7268 = vmatpush2.msra.mxu0 0.0
        %7269 = vmatprep.subr.mxu0 0.0
        %7270 = vmatpush2.msra.mxu0 0.0
        %7271 = vmatprep.subr.mxu0 0.0
        %7272 = vmatpush2.msra.mxu0 0.0
        %7273 = vmatprep.subr.mxu0 0.0
        %7274 = vmatpush2.msra.mxu0 0.0
        %7275 = vmatprep.subr.mxu0 0.0
        %7276 = vmatpush2.msra.mxu0 0.0
        %7277 = vmatprep.subr.mxu0 0.0
        %7278 = vmatpush2.msra.mxu0 0.0
        %7279 = vmatprep.subr.mxu0 0.0
        %7280 = vmatpush2.msra.mxu0 0.0
        %7281 = vmatprep.subr.mxu0 0.0
        %7282 = vmatpush2.msra.mxu0 0.0
        %7283 = vmatprep.subr.mxu0 0.0
        %7284 = vmatpush2.msra.mxu0 0.0
        %7285 = vmatprep.subr.mxu0 0.0
        %7286 = vmatpush2.msra.mxu0 0.0
        %7287 = vmatprep.subr.mxu0 0.0
        %7288 = vmatpush2.msra.mxu0 0.0
        %7289 = vmatprep.subr.mxu0 0.0
        %7290 = vmatpush2.msra.mxu0 0.0
        %7291 = vmatprep.subr.mxu0 0.0
        %7292 = vmatpush2.msra.mxu0 0.0
        %7293 = vmatprep.mubr.f32.mxu0 0.0
        %7294 = vmatmul.mubr.f32.gmra.mxu0 %v7227
        %v7295 = vpop.f32.mrf.mxu0
        %v7296 = vadd.f32 0.0, %v7295
        %v7297 = vpop.f32.mrf.mxu0
        %v7298 = vadd.f32 0.0, %v7297
        %7299 = vdwg.mxu0
        %7300 = vmatprep.subr.mxu0 0.0
        %7301 = vmatpush1.msra.mxu0 0.0
        %7302 = vmatprep.subr.mxu0 0.0
        %7303 = vmatpush1.msra.mxu0 0.0
        %7304 = vmatprep.subr.mxu0 0.0
        %7305 = vmatpush1.msra.mxu0 0.0
        %7306 = vmatprep.subr.mxu0 0.0
        %7307 = vmatpush1.msra.mxu0 0.0
        %7308 = vmatprep.subr.mxu0 0.0
        %7309 = vmatpush1.msra.mxu0 0.0
        %7310 = vmatprep.subr.mxu0 0.0
        %7311 = vmatpush1.msra.mxu0 0.0
        %7312 = vmatprep.subr.mxu0 0.0
        %7313 = vmatpush1.msra.mxu0 0.0
        %7314 = vmatprep.subr.mxu0 0.0
        %7315 = vmatpush1.msra.mxu0 0.0
        %7316 = vmatprep.subr.mxu0 0.0
        %7317 = vmatpush1.msra.mxu0 0.0
        %7318 = vmatprep.subr.mxu0 0.0
        %7319 = vmatpush1.msra.mxu0 0.0
        %7320 = vmatprep.subr.mxu0 0.0
        %7321 = vmatpush1.msra.mxu0 0.0
        %7322 = vmatprep.subr.mxu0 0.0
        %7323 = vmatpush1.msra.mxu0 0.0
        %7324 = vmatprep.subr.mxu0 0.0
        %7325 = vmatpush1.msra.mxu0 0.0
        %7326 = vmatprep.subr.mxu0 0.0
        %7327 = vmatpush1.msra.mxu0 0.0
        %7328 = vmatprep.subr.mxu0 0.0
        %7329 = vmatpush1.msra.mxu0 0.0
        %7330 = vmatprep.subr.mxu0 0.0
        %7331 = vmatpush1.msra.mxu0 %v7220
        %7332 = vmatprep.subr.mxu0 0.0
        %7333 = vmatpush2.msra.mxu0 0.0
        %7334 = vmatprep.subr.mxu0 0.0
        %7335 = vmatpush2.msra.mxu0 0.0
        %7336 = vmatprep.subr.mxu0 0.0
        %7337 = vmatpush2.msra.mxu0 0.0
        %7338 = vmatprep.subr.mxu0 0.0
        %7339 = vmatpush2.msra.mxu0 0.0
        %7340 = vmatprep.subr.mxu0 0.0
        %7341 = vmatpush2.msra.mxu0 0.0
        %7342 = vmatprep.subr.mxu0 0.0
        %7343 = vmatpush2.msra.mxu0 0.0
        %7344 = vmatprep.subr.mxu0 0.0
        %7345 = vmatpush2.msra.mxu0 0.0
        %7346 = vmatprep.subr.mxu0 0.0
        %7347 = vmatpush2.msra.mxu0 0.0
        %7348 = vmatprep.subr.mxu0 0.0
        %7349 = vmatpush2.msra.mxu0 0.0
        %7350 = vmatprep.subr.mxu0 0.0
        %7351 = vmatpush2.msra.mxu0 0.0
        %7352 = vmatprep.subr.mxu0 0.0
        %7353 = vmatpush2.msra.mxu0 0.0
        %7354 = vmatprep.subr.mxu0 0.0
        %7355 = vmatpush2.msra.mxu0 0.0
        %7356 = vmatprep.subr.mxu0 0.0
        %7357 = vmatpush2.msra.mxu0 0.0
        %7358 = vmatprep.subr.mxu0 0.0
        %7359 = vmatpush2.msra.mxu0 0.0
        %7360 = vmatprep.subr.mxu0 0.0
        %7361 = vmatpush2.msra.mxu0 0.0
        %7362 = vmatprep.subr.mxu0 0.0
        %7363 = vmatpush2.msra.mxu0 0.0
        %7364 = vmatprep.mubr.f32.mxu0 0.0
        %7365 = vmatmul.mubr.f32.gmra.mxu0 %v7227
        %v7366 = vpop.f32.mrf.mxu0
        %v7367 = vadd.f32 0.0, %v7366
        %v7368 = vpop.f32.mrf.mxu0
        %7369 = vdwg.mxu0
        %v7370 = vadd.f32 %v7210, %v7296
        %v7371 = vadd.f32 %v7211, %v7298
        %v7372 = vadd.f32 %v7212, %v7367
        %s7373 = scalar_lea.vmem %s6, 12
        %v7374 = vld [vmem:[%s7373] sm:$0x3]
        %7375 = vrot.lane.b32.xlu0 %v6424, 92
        %v7376 = vpop.permute.xlu0 %7375
        %7377 = vrot.lane.b32.xlu0 %v6425, 92
        %v7378 = vpop.permute.xlu0 %7377
        %7379 = vrot.lane.b32.xlu0 %v6426, 92
        %v7380 = vpop.permute.xlu0 %7379
        %v7381 = vsel %vm1321, %v7376, %v7378
        %v7382 = vsel %vm1321, %v7378, %v7380
        %v7387 = vsel %vm6444, %v7374, 0
        %7389 = vmatprep.subr.mxu0 0.0
        %7390 = vmatpush1.msra.mxu0 0.0
        %7391 = vmatprep.subr.mxu0 0.0
        %7392 = vmatpush1.msra.mxu0 0.0
        %7393 = vmatprep.subr.mxu0 0.0
        %7394 = vmatpush1.msra.mxu0 0.0
        %7395 = vmatprep.subr.mxu0 0.0
        %7396 = vmatpush1.msra.mxu0 0.0
        %7397 = vmatprep.subr.mxu0 0.0
        %7398 = vmatpush1.msra.mxu0 0.0
        %7399 = vmatprep.subr.mxu0 0.0
        %7400 = vmatpush1.msra.mxu0 0.0
        %7401 = vmatprep.subr.mxu0 0.0
        %7402 = vmatpush1.msra.mxu0 0.0
        %7403 = vmatprep.subr.mxu0 0.0
        %7404 = vmatpush1.msra.mxu0 0.0
        %7405 = vmatprep.subr.mxu0 0.0
        %7406 = vmatpush1.msra.mxu0 0.0
        %7407 = vmatprep.subr.mxu0 0.0
        %7408 = vmatpush1.msra.mxu0 0.0
        %7409 = vmatprep.subr.mxu0 0.0
        %7410 = vmatpush1.msra.mxu0 0.0
        %7411 = vmatprep.subr.mxu0 0.0
        %7412 = vmatpush1.msra.mxu0 0.0
        %7413 = vmatprep.subr.mxu0 0.0
        %7414 = vmatpush1.msra.mxu0 0.0
        %7415 = vmatprep.subr.mxu0 0.0
        %7416 = vmatpush1.msra.mxu0 0.0
        %7417 = vmatprep.subr.mxu0 0.0
        %7418 = vmatpush1.msra.mxu0 0.0
        %7419 = vmatprep.subr.mxu0 %v7382
        %7420 = vmatpush1.msra.mxu0 %v7381
        %7421 = vmatprep.subr.mxu0 0.0
        %7422 = vmatpush2.msra.mxu0 0.0
        %7423 = vmatprep.subr.mxu0 0.0
        %7424 = vmatpush2.msra.mxu0 0.0
        %7425 = vmatprep.subr.mxu0 0.0
        %7426 = vmatpush2.msra.mxu0 0.0
        %7427 = vmatprep.subr.mxu0 0.0
        %7428 = vmatpush2.msra.mxu0 0.0
        %7429 = vmatprep.subr.mxu0 0.0
        %7430 = vmatpush2.msra.mxu0 0.0
        %7431 = vmatprep.subr.mxu0 0.0
        %7432 = vmatpush2.msra.mxu0 0.0
        %7433 = vmatprep.subr.mxu0 0.0
        %7434 = vmatpush2.msra.mxu0 0.0
        %7435 = vmatprep.subr.mxu0 0.0
        %7436 = vmatpush2.msra.mxu0 0.0
        %7437 = vmatprep.subr.mxu0 0.0
        %7438 = vmatpush2.msra.mxu0 0.0
        %7439 = vmatprep.subr.mxu0 0.0
        %7440 = vmatpush2.msra.mxu0 0.0
        %7441 = vmatprep.subr.mxu0 0.0
        %7442 = vmatpush2.msra.mxu0 0.0
        %7443 = vmatprep.subr.mxu0 0.0
        %7444 = vmatpush2.msra.mxu0 0.0
        %7445 = vmatprep.subr.mxu0 0.0
        %7446 = vmatpush2.msra.mxu0 0.0
        %7447 = vmatprep.subr.mxu0 0.0
        %7448 = vmatpush2.msra.mxu0 0.0
        %7449 = vmatprep.subr.mxu0 0.0
        %7450 = vmatpush2.msra.mxu0 0.0
        %7451 = vmatprep.subr.mxu0 0.0
        %7452 = vmatpush2.msra.mxu0 0.0
        %7453 = vmatprep.mubr.f32.mxu0 0.0
        %7454 = vmatmul.mubr.f32.gmra.mxu0 %v7387
        %v7455 = vpop.f32.mrf.mxu0
        %v7456 = vadd.f32 0.0, %v7455
        %v7457 = vpop.f32.mrf.mxu0
        %v7458 = vadd.f32 0.0, %v7457
        %7459 = vdwg.mxu0
        %7460 = vmatprep.subr.mxu0 0.0
        %7461 = vmatpush1.msra.mxu0 0.0
        %7462 = vmatprep.subr.mxu0 0.0
        %7463 = vmatpush1.msra.mxu0 0.0
        %7464 = vmatprep.subr.mxu0 0.0
        %7465 = vmatpush1.msra.mxu0 0.0
        %7466 = vmatprep.subr.mxu0 0.0
        %7467 = vmatpush1.msra.mxu0 0.0
        %7468 = vmatprep.subr.mxu0 0.0
        %7469 = vmatpush1.msra.mxu0 0.0
        %7470 = vmatprep.subr.mxu0 0.0
        %7471 = vmatpush1.msra.mxu0 0.0
        %7472 = vmatprep.subr.mxu0 0.0
        %7473 = vmatpush1.msra.mxu0 0.0
        %7474 = vmatprep.subr.mxu0 0.0
        %7475 = vmatpush1.msra.mxu0 0.0
        %7476 = vmatprep.subr.mxu0 0.0
        %7477 = vmatpush1.msra.mxu0 0.0
        %7478 = vmatprep.subr.mxu0 0.0
        %7479 = vmatpush1.msra.mxu0 0.0
        %7480 = vmatprep.subr.mxu0 0.0
        %7481 = vmatpush1.msra.mxu0 0.0
        %7482 = vmatprep.subr.mxu0 0.0
        %7483 = vmatpush1.msra.mxu0 0.0
        %7484 = vmatprep.subr.mxu0 0.0
        %7485 = vmatpush1.msra.mxu0 0.0
        %7486 = vmatprep.subr.mxu0 0.0
        %7487 = vmatpush1.msra.mxu0 0.0
        %7488 = vmatprep.subr.mxu0 0.0
        %7489 = vmatpush1.msra.mxu0 0.0
        %7490 = vmatprep.subr.mxu0 0.0
        %7491 = vmatpush1.msra.mxu0 %v7380
        %7492 = vmatprep.subr.mxu0 0.0
        %7493 = vmatpush2.msra.mxu0 0.0
        %7494 = vmatprep.subr.mxu0 0.0
        %7495 = vmatpush2.msra.mxu0 0.0
        %7496 = vmatprep.subr.mxu0 0.0
        %7497 = vmatpush2.msra.mxu0 0.0
        %7498 = vmatprep.subr.mxu0 0.0
        %7499 = vmatpush2.msra.mxu0 0.0
        %7500 = vmatprep.subr.mxu0 0.0
        %7501 = vmatpush2.msra.mxu0 0.0
        %7502 = vmatprep.subr.mxu0 0.0
        %7503 = vmatpush2.msra.mxu0 0.0
        %7504 = vmatprep.subr.mxu0 0.0
        %7505 = vmatpush2.msra.mxu0 0.0
        %7506 = vmatprep.subr.mxu0 0.0
        %7507 = vmatpush2.msra.mxu0 0.0
        %7508 = vmatprep.subr.mxu0 0.0
        %7509 = vmatpush2.msra.mxu0 0.0
        %7510 = vmatprep.subr.mxu0 0.0
        %7511 = vmatpush2.msra.mxu0 0.0
        %7512 = vmatprep.subr.mxu0 0.0
        %7513 = vmatpush2.msra.mxu0 0.0
        %7514 = vmatprep.subr.mxu0 0.0
        %7515 = vmatpush2.msra.mxu0 0.0
        %7516 = vmatprep.subr.mxu0 0.0
        %7517 = vmatpush2.msra.mxu0 0.0
        %7518 = vmatprep.subr.mxu0 0.0
        %7519 = vmatpush2.msra.mxu0 0.0
        %7520 = vmatprep.subr.mxu0 0.0
        %7521 = vmatpush2.msra.mxu0 0.0
        %7522 = vmatprep.subr.mxu0 0.0
        %7523 = vmatpush2.msra.mxu0 0.0
        %7524 = vmatprep.mubr.f32.mxu0 0.0
        %7525 = vmatmul.mubr.f32.gmra.mxu0 %v7387
        %v7526 = vpop.f32.mrf.mxu0
        %v7527 = vadd.f32 0.0, %v7526
        %v7528 = vpop.f32.mrf.mxu0
        %7529 = vdwg.mxu0
        %v7530 = vadd.f32 %v7370, %v7456
        %v7531 = vadd.f32 %v7371, %v7458
        %v7532 = vadd.f32 %v7372, %v7527
        %s7533 = scalar_lea.vmem %s6, 14
        %v7534 = vld [vmem:[%s7533] sm:$0x3]
        %7535 = vrot.lane.b32.xlu0 %v6424, 91
        %v7536 = vpop.permute.xlu0 %7535
        %7537 = vrot.lane.b32.xlu0 %v6425, 91
        %v7538 = vpop.permute.xlu0 %7537
        %7539 = vrot.lane.b32.xlu0 %v6426, 91
        %v7540 = vpop.permute.xlu0 %7539
        %v7541 = vsel %vm1490, %v7536, %v7538
        %v7542 = vsel %vm1490, %v7538, %v7540
        %v7547 = vsel %vm6444, %v7534, 0
        %7549 = vmatprep.subr.mxu0 0.0
        %7550 = vmatpush1.msra.mxu0 0.0
        %7551 = vmatprep.subr.mxu0 0.0
        %7552 = vmatpush1.msra.mxu0 0.0
        %7553 = vmatprep.subr.mxu0 0.0
        %7554 = vmatpush1.msra.mxu0 0.0
        %7555 = vmatprep.subr.mxu0 0.0
        %7556 = vmatpush1.msra.mxu0 0.0
        %7557 = vmatprep.subr.mxu0 0.0
        %7558 = vmatpush1.msra.mxu0 0.0
        %7559 = vmatprep.subr.mxu0 0.0
        %7560 = vmatpush1.msra.mxu0 0.0
        %7561 = vmatprep.subr.mxu0 0.0
        %7562 = vmatpush1.msra.mxu0 0.0
        %7563 = vmatprep.subr.mxu0 0.0
        %7564 = vmatpush1.msra.mxu0 0.0
        %7565 = vmatprep.subr.mxu0 0.0
        %7566 = vmatpush1.msra.mxu0 0.0
        %7567 = vmatprep.subr.mxu0 0.0
        %7568 = vmatpush1.msra.mxu0 0.0
        %7569 = vmatprep.subr.mxu0 0.0
        %7570 = vmatpush1.msra.mxu0 0.0
        %7571 = vmatprep.subr.mxu0 0.0
        %7572 = vmatpush1.msra.mxu0 0.0
        %7573 = vmatprep.subr.mxu0 0.0
        %7574 = vmatpush1.msra.mxu0 0.0
        %7575 = vmatprep.subr.mxu0 0.0
        %7576 = vmatpush1.msra.mxu0 0.0
        %7577 = vmatprep.subr.mxu0 0.0
        %7578 = vmatpush1.msra.mxu0 0.0
        %7579 = vmatprep.subr.mxu0 %v7542
        %7580 = vmatpush1.msra.mxu0 %v7541
        %7581 = vmatprep.subr.mxu0 0.0
        %7582 = vmatpush2.msra.mxu0 0.0
        %7583 = vmatprep.subr.mxu0 0.0
        %7584 = vmatpush2.msra.mxu0 0.0
        %7585 = vmatprep.subr.mxu0 0.0
        %7586 = vmatpush2.msra.mxu0 0.0
        %7587 = vmatprep.subr.mxu0 0.0
        %7588 = vmatpush2.msra.mxu0 0.0
        %7589 = vmatprep.subr.mxu0 0.0
        %7590 = vmatpush2.msra.mxu0 0.0
        %7591 = vmatprep.subr.mxu0 0.0
        %7592 = vmatpush2.msra.mxu0 0.0
        %7593 = vmatprep.subr.mxu0 0.0
        %7594 = vmatpush2.msra.mxu0 0.0
        %7595 = vmatprep.subr.mxu0 0.0
        %7596 = vmatpush2.msra.mxu0 0.0
        %7597 = vmatprep.subr.mxu0 0.0
        %7598 = vmatpush2.msra.mxu0 0.0
        %7599 = vmatprep.subr.mxu0 0.0
        %7600 = vmatpush2.msra.mxu0 0.0
        %7601 = vmatprep.subr.mxu0 0.0
        %7602 = vmatpush2.msra.mxu0 0.0
        %7603 = vmatprep.subr.mxu0 0.0
        %7604 = vmatpush2.msra.mxu0 0.0
        %7605 = vmatprep.subr.mxu0 0.0
        %7606 = vmatpush2.msra.mxu0 0.0
        %7607 = vmatprep.subr.mxu0 0.0
        %7608 = vmatpush2.msra.mxu0 0.0
        %7609 = vmatprep.subr.mxu0 0.0
        %7610 = vmatpush2.msra.mxu0 0.0
        %7611 = vmatprep.subr.mxu0 0.0
        %7612 = vmatpush2.msra.mxu0 0.0
        %7613 = vmatprep.mubr.f32.mxu0 0.0
        %7614 = vmatmul.mubr.f32.gmra.mxu0 %v7547
        %v7615 = vpop.f32.mrf.mxu0
        %v7616 = vadd.f32 0.0, %v7615
        %v7617 = vpop.f32.mrf.mxu0
        %v7618 = vadd.f32 0.0, %v7617
        %7619 = vdwg.mxu0
        %7620 = vmatprep.subr.mxu0 0.0
        %7621 = vmatpush1.msra.mxu0 0.0
        %7622 = vmatprep.subr.mxu0 0.0
        %7623 = vmatpush1.msra.mxu0 0.0
        %7624 = vmatprep.subr.mxu0 0.0
        %7625 = vmatpush1.msra.mxu0 0.0
        %7626 = vmatprep.subr.mxu0 0.0
        %7627 = vmatpush1.msra.mxu0 0.0
        %7628 = vmatprep.subr.mxu0 0.0
        %7629 = vmatpush1.msra.mxu0 0.0
        %7630 = vmatprep.subr.mxu0 0.0
        %7631 = vmatpush1.msra.mxu0 0.0
        %7632 = vmatprep.subr.mxu0 0.0
        %7633 = vmatpush1.msra.mxu0 0.0
        %7634 = vmatprep.subr.mxu0 0.0
        %7635 = vmatpush1.msra.mxu0 0.0
        %7636 = vmatprep.subr.mxu0 0.0
        %7637 = vmatpush1.msra.mxu0 0.0
        %7638 = vmatprep.subr.mxu0 0.0
        %7639 = vmatpush1.msra.mxu0 0.0
        %7640 = vmatprep.subr.mxu0 0.0
        %7641 = vmatpush1.msra.mxu0 0.0
        %7642 = vmatprep.subr.mxu0 0.0
        %7643 = vmatpush1.msra.mxu0 0.0
        %7644 = vmatprep.subr.mxu0 0.0
        %7645 = vmatpush1.msra.mxu0 0.0
        %7646 = vmatprep.subr.mxu0 0.0
        %7647 = vmatpush1.msra.mxu0 0.0
        %7648 = vmatprep.subr.mxu0 0.0
        %7649 = vmatpush1.msra.mxu0 0.0
        %7650 = vmatprep.subr.mxu0 0.0
        %7651 = vmatpush1.msra.mxu0 %v7540
        %7652 = vmatprep.subr.mxu0 0.0
        %7653 = vmatpush2.msra.mxu0 0.0
        %7654 = vmatprep.subr.mxu0 0.0
        %7655 = vmatpush2.msra.mxu0 0.0
        %7656 = vmatprep.subr.mxu0 0.0
        %7657 = vmatpush2.msra.mxu0 0.0
        %7658 = vmatprep.subr.mxu0 0.0
        %7659 = vmatpush2.msra.mxu0 0.0
        %7660 = vmatprep.subr.mxu0 0.0
        %7661 = vmatpush2.msra.mxu0 0.0
        %7662 = vmatprep.subr.mxu0 0.0
        %7663 = vmatpush2.msra.mxu0 0.0
        %7664 = vmatprep.subr.mxu0 0.0
        %7665 = vmatpush2.msra.mxu0 0.0
        %7666 = vmatprep.subr.mxu0 0.0
        %7667 = vmatpush2.msra.mxu0 0.0
        %7668 = vmatprep.subr.mxu0 0.0
        %7669 = vmatpush2.msra.mxu0 0.0
        %7670 = vmatprep.subr.mxu0 0.0
        %7671 = vmatpush2.msra.mxu0 0.0
        %7672 = vmatprep.subr.mxu0 0.0
        %7673 = vmatpush2.msra.mxu0 0.0
        %7674 = vmatprep.subr.mxu0 0.0
        %7675 = vmatpush2.msra.mxu0 0.0
        %7676 = vmatprep.subr.mxu0 0.0
        %7677 = vmatpush2.msra.mxu0 0.0
        %7678 = vmatprep.subr.mxu0 0.0
        %7679 = vmatpush2.msra.mxu0 0.0
        %7680 = vmatprep.subr.mxu0 0.0
        %7681 = vmatpush2.msra.mxu0 0.0
        %7682 = vmatprep.subr.mxu0 0.0
        %7683 = vmatpush2.msra.mxu0 0.0
        %7684 = vmatprep.mubr.f32.mxu0 0.0
        %7685 = vmatmul.mubr.f32.gmra.mxu0 %v7547
        %v7686 = vpop.f32.mrf.mxu0
        %v7687 = vadd.f32 0.0, %v7686
        %v7688 = vpop.f32.mrf.mxu0
        %7689 = vdwg.mxu0
        %v7690 = vadd.f32 %v7530, %v7616
        %v7691 = vadd.f32 %v7531, %v7618
        %v7692 = vadd.f32 %v7532, %v7687
        %s7693 = scalar_lea.vmem %s6, 16
        %v7694 = vld [vmem:[%s7693] sm:$0x3]
        %7695 = vrot.lane.b32.xlu0 %v6424, 90
        %v7696 = vpop.permute.xlu0 %7695
        %7697 = vrot.lane.b32.xlu0 %v6425, 90
        %v7698 = vpop.permute.xlu0 %7697
        %7699 = vrot.lane.b32.xlu0 %v6426, 90
        %v7700 = vpop.permute.xlu0 %7699
        %v7701 = vsel %vm1659, %v7696, %v7698
        %v7702 = vsel %vm1659, %v7698, %v7700
        %v7707 = vsel %vm6444, %v7694, 0
        %7709 = vmatprep.subr.mxu0 0.0
        %7710 = vmatpush1.msra.mxu0 0.0
        %7711 = vmatprep.subr.mxu0 0.0
        %7712 = vmatpush1.msra.mxu0 0.0
        %7713 = vmatprep.subr.mxu0 0.0
        %7714 = vmatpush1.msra.mxu0 0.0
        %7715 = vmatprep.subr.mxu0 0.0
        %7716 = vmatpush1.msra.mxu0 0.0
        %7717 = vmatprep.subr.mxu0 0.0
        %7718 = vmatpush1.msra.mxu0 0.0
        %7719 = vmatprep.subr.mxu0 0.0
        %7720 = vmatpush1.msra.mxu0 0.0
        %7721 = vmatprep.subr.mxu0 0.0
        %7722 = vmatpush1.msra.mxu0 0.0
        %7723 = vmatprep.subr.mxu0 0.0
        %7724 = vmatpush1.msra.mxu0 0.0
        %7725 = vmatprep.subr.mxu0 0.0
        %7726 = vmatpush1.msra.mxu0 0.0
        %7727 = vmatprep.subr.mxu0 0.0
        %7728 = vmatpush1.msra.mxu0 0.0
        %7729 = vmatprep.subr.mxu0 0.0
        %7730 = vmatpush1.msra.mxu0 0.0
        %7731 = vmatprep.subr.mxu0 0.0
        %7732 = vmatpush1.msra.mxu0 0.0
        %7733 = vmatprep.subr.mxu0 0.0
        %7734 = vmatpush1.msra.mxu0 0.0
        %7735 = vmatprep.subr.mxu0 0.0
        %7736 = vmatpush1.msra.mxu0 0.0
        %7737 = vmatprep.subr.mxu0 0.0
        %7738 = vmatpush1.msra.mxu0 0.0
        %7739 = vmatprep.subr.mxu0 %v7702
        %7740 = vmatpush1.msra.mxu0 %v7701
        %7741 = vmatprep.subr.mxu0 0.0
        %7742 = vmatpush2.msra.mxu0 0.0
        %7743 = vmatprep.subr.mxu0 0.0
        %7744 = vmatpush2.msra.mxu0 0.0
        %7745 = vmatprep.subr.mxu0 0.0
        %7746 = vmatpush2.msra.mxu0 0.0
        %7747 = vmatprep.subr.mxu0 0.0
        %7748 = vmatpush2.msra.mxu0 0.0
        %7749 = vmatprep.subr.mxu0 0.0
        %7750 = vmatpush2.msra.mxu0 0.0
        %7751 = vmatprep.subr.mxu0 0.0
        %7752 = vmatpush2.msra.mxu0 0.0
        %7753 = vmatprep.subr.mxu0 0.0
        %7754 = vmatpush2.msra.mxu0 0.0
        %7755 = vmatprep.subr.mxu0 0.0
        %7756 = vmatpush2.msra.mxu0 0.0
        %7757 = vmatprep.subr.mxu0 0.0
        %7758 = vmatpush2.msra.mxu0 0.0
        %7759 = vmatprep.subr.mxu0 0.0
        %7760 = vmatpush2.msra.mxu0 0.0
        %7761 = vmatprep.subr.mxu0 0.0
        %7762 = vmatpush2.msra.mxu0 0.0
        %7763 = vmatprep.subr.mxu0 0.0
        %7764 = vmatpush2.msra.mxu0 0.0
        %7765 = vmatprep.subr.mxu0 0.0
        %7766 = vmatpush2.msra.mxu0 0.0
        %7767 = vmatprep.subr.mxu0 0.0
        %7768 = vmatpush2.msra.mxu0 0.0
        %7769 = vmatprep.subr.mxu0 0.0
        %7770 = vmatpush2.msra.mxu0 0.0
        %7771 = vmatprep.subr.mxu0 0.0
        %7772 = vmatpush2.msra.mxu0 0.0
        %7773 = vmatprep.mubr.f32.mxu0 0.0
        %7774 = vmatmul.mubr.f32.gmra.mxu0 %v7707
        %v7775 = vpop.f32.mrf.mxu0
        %v7776 = vadd.f32 0.0, %v7775
        %v7777 = vpop.f32.mrf.mxu0
        %v7778 = vadd.f32 0.0, %v7777
        %7779 = vdwg.mxu0
        %7780 = vmatprep.subr.mxu0 0.0
        %7781 = vmatpush1.msra.mxu0 0.0
        %7782 = vmatprep.subr.mxu0 0.0
        %7783 = vmatpush1.msra.mxu0 0.0
        %7784 = vmatprep.subr.mxu0 0.0
        %7785 = vmatpush1.msra.mxu0 0.0
        %7786 = vmatprep.subr.mxu0 0.0
        %7787 = vmatpush1.msra.mxu0 0.0
        %7788 = vmatprep.subr.mxu0 0.0
        %7789 = vmatpush1.msra.mxu0 0.0
        %7790 = vmatprep.subr.mxu0 0.0
        %7791 = vmatpush1.msra.mxu0 0.0
        %7792 = vmatprep.subr.mxu0 0.0
        %7793 = vmatpush1.msra.mxu0 0.0
        %7794 = vmatprep.subr.mxu0 0.0
        %7795 = vmatpush1.msra.mxu0 0.0
        %7796 = vmatprep.subr.mxu0 0.0
        %7797 = vmatpush1.msra.mxu0 0.0
        %7798 = vmatprep.subr.mxu0 0.0
        %7799 = vmatpush1.msra.mxu0 0.0
        %7800 = vmatprep.subr.mxu0 0.0
        %7801 = vmatpush1.msra.mxu0 0.0
        %7802 = vmatprep.subr.mxu0 0.0
        %7803 = vmatpush1.msra.mxu0 0.0
        %7804 = vmatprep.subr.mxu0 0.0
        %7805 = vmatpush1.msra.mxu0 0.0
        %7806 = vmatprep.subr.mxu0 0.0
        %7807 = vmatpush1.msra.mxu0 0.0
        %7808 = vmatprep.subr.mxu0 0.0
        %7809 = vmatpush1.msra.mxu0 0.0
        %7810 = vmatprep.subr.mxu0 0.0
        %7811 = vmatpush1.msra.mxu0 %v7700
        %7812 = vmatprep.subr.mxu0 0.0
        %7813 = vmatpush2.msra.mxu0 0.0
        %7814 = vmatprep.subr.mxu0 0.0
        %7815 = vmatpush2.msra.mxu0 0.0
        %7816 = vmatprep.subr.mxu0 0.0
        %7817 = vmatpush2.msra.mxu0 0.0
        %7818 = vmatprep.subr.mxu0 0.0
        %7819 = vmatpush2.msra.mxu0 0.0
        %7820 = vmatprep.subr.mxu0 0.0
        %7821 = vmatpush2.msra.mxu0 0.0
        %7822 = vmatprep.subr.mxu0 0.0
        %7823 = vmatpush2.msra.mxu0 0.0
        %7824 = vmatprep.subr.mxu0 0.0
        %7825 = vmatpush2.msra.mxu0 0.0
        %7826 = vmatprep.subr.mxu0 0.0
        %7827 = vmatpush2.msra.mxu0 0.0
        %7828 = vmatprep.subr.mxu0 0.0
        %7829 = vmatpush2.msra.mxu0 0.0
        %7830 = vmatprep.subr.mxu0 0.0
        %7831 = vmatpush2.msra.mxu0 0.0
        %7832 = vmatprep.subr.mxu0 0.0
        %7833 = vmatpush2.msra.mxu0 0.0
        %7834 = vmatprep.subr.mxu0 0.0
        %7835 = vmatpush2.msra.mxu0 0.0
        %7836 = vmatprep.subr.mxu0 0.0
        %7837 = vmatpush2.msra.mxu0 0.0
        %7838 = vmatprep.subr.mxu0 0.0
        %7839 = vmatpush2.msra.mxu0 0.0
        %7840 = vmatprep.subr.mxu0 0.0
        %7841 = vmatpush2.msra.mxu0 0.0
        %7842 = vmatprep.subr.mxu0 0.0
        %7843 = vmatpush2.msra.mxu0 0.0
        %7844 = vmatprep.mubr.f32.mxu0 0.0
        %7845 = vmatmul.mubr.f32.gmra.mxu0 %v7707
        %v7846 = vpop.f32.mrf.mxu0
        %v7847 = vadd.f32 0.0, %v7846
        %v7848 = vpop.f32.mrf.mxu0
        %7849 = vdwg.mxu0
        %v7850 = vadd.f32 %v7690, %v7776
        %v7851 = vadd.f32 %v7691, %v7778
        %v7852 = vadd.f32 %v7692, %v7847
        %v7853 = vmul.f32 %v7850, %v1819
        %v7854 = vmul.f32 %v7851, %v1823
        %v7855 = vmul.f32 %v7852, %v1827
        %v7856 = vsel %vm1874, %v7853, 0.0
        %v7857 = vsel %vm1874, %v7854, 0.0
        %v7858 = vadd.f32 %v7856, %v7857
        %v7859 = vsel %vm3319, %v7855, 0.0
        %v7860 = vadd.f32 %v7858, %v7859
        %7861 = vadd.xlane.f32.xlu0 %v7860
        %v7862 = vpop.xlane.xlu0 %7861
        %v7863 = vmul.f32 %v7862, 0.00390625
        %v7864 = vsub.f32 %v7850, %v7863
        %v7865 = vsub.f32 %v7851, %v7863
        %v7866 = vsub.f32 %v7852, %v7863
        %v7867 = vmul.f32 %v7864, %v1819
        %v7868 = vmul.f32 %v7865, %v1823
        %v7869 = vmul.f32 %v7866, %v1827
        %v7870 = vmul.f32 %v7867, %v7867
        %v7871 = vmul.f32 %v7868, %v7868
        %v7872 = vmul.f32 %v7869, %v7869
        %v7873 = vsel %vm1874, %v7870, 0.0
        %v7874 = vsel %vm1874, %v7871, 0.0
        %v7875 = vadd.f32 %v7873, %v7874
        %v7876 = vsel %vm3319, %v7872, 0.0
        %v7877 = vadd.f32 %v7875, %v7876
        %7878 = vadd.xlane.f32.xlu0 %v7877
        %v7879 = vpop.xlane.xlu0 %7878
        %v7880 = vmul.f32 %v7879, 0.00390625
        %v7881 = vadd.f32 %v7880, 1e-05
        %v7882 = vrsqrt.pop %v7881
        %v7883 = vmul.f32 %v7867, %v7882
        %v7884 = vmul.f32 %v7868, %v7882
        %v7885 = vmul.f32 %v7869, %v7882
        %vm7886 = vcmp.gt.f32.partialorder %v7883, 0.0
        %vm7887 = vcmp.gt.f32.partialorder %v7884, 0.0
        %vm7888 = vcmp.gt.f32.partialorder %v7885, 0.0
        %v7889 = vmul.f32 %v7883, 0.2
        %v7890 = vmul.f32 %v7884, 0.2
        %v7891 = vmul.f32 %v7885, 0.2
        %v7892 = vsel %vm7886, %v7883, %v7889
        %v7893 = vsel %vm7887, %v7884, %v7890
        %v7894 = vsel %vm7888, %v7885, %v7891
        %7898 = vrot.lane.b32.xlu0 %v7892, 19
        %v7899 = vpop.permute.xlu0 %7898
        %7900 = vrot.lane.b32.xlu0 %v7893, 19
        %v7901 = vpop.permute.xlu0 %7900
        %7902 = vrot.lane.b32.xlu0 %v7894, 19
        %v7903 = vpop.permute.xlu0 %7902
        %v7904 = vsel %vm305, %v7899, %v7901
        %v7905 = vsel %vm305, %v7901, %v7903
        %7909 = vst.msk [vmem:[#allocation2 + $0x18] sm:$0x3] %vm1848, %v7899
        %7910 = vst [vmem:[#allocation2 + $0x20] sm:$0x3] %v7904
        %7911 = vst.msk [vmem:[#allocation2 + $0x28] sm:$0x3] %vm1851, %v7905
        %v7912 = vld [vmem:[#allocation2] sm:$0xff]
        %v7913 = vld [vmem:[#allocation2 + $0x8] sm:$0xff]
        %v7914 = vld [vmem:[#allocation2 + $0x10] sm:$0xff]
        %v7915 = vld [vmem:[#allocation2 + $0x18] sm:$0x3]
        %v7916 = vld [vmem:[#allocation2 + $0x20] sm:$0x3]
        %v7917 = vld [vmem:[#allocation2 + $0x28] sm:$0x3]
        %v7918 = vld [vmem:[%s7] sm:$0xf]
        %s7919 = scalar_lea.vmem %s7, 4
        %v7920 = vld [vmem:[%s7919] sm:$0xf]
        %7927 = vrot.lane.b32.xlu0 %v7912, 127
        %v7928 = vpop.permute.xlu0 %7927
        %7929 = vrot.lane.b32.xlu0 %v7913, 127
        %v7930 = vpop.permute.xlu0 %7929
        %7931 = vrot.lane.b32.xlu0 %v7914, 127
        %v7932 = vpop.permute.xlu0 %7931
        %7933 = vrot.lane.b32.xlu0 %v7915, 127
        %v7934 = vpop.permute.xlu0 %7933
        %7935 = vrot.lane.b32.xlu0 %v7916, 127
        %v7936 = vpop.permute.xlu0 %7935
        %7937 = vrot.lane.b32.xlu0 %v7917, 127
        %v7938 = vpop.permute.xlu0 %7937
        %v7939 = vsel %vm327, %v7928, %v7930
        %v7940 = vsel %vm327, %v7930, %v7932
        %v7941 = vsel %vm327, %v7934, %v7936
        %v7942 = vsel %vm327, %v7936, %v7938
        %vm7946 = vcmask 80896
        %v7948 = vsel %vm7946, %v7920, 0
        %v7950 = vsel %vm1874, %v7941, 0
        %v7952 = vsel %vm1874, %v7942, 0
        %v7954 = vsel %vm1874, %v7938, 0
        %7956 = vmatprep.subr.mxu0 0.0
        %7957 = vmatpush1.msra.mxu0 0.0
        %7958 = vmatprep.subr.mxu0 0.0
        %7959 = vmatpush1.msra.mxu0 0.0
        %7960 = vmatprep.subr.mxu0 0.0
        %7961 = vmatpush1.msra.mxu0 0.0
        %7962 = vmatprep.subr.mxu0 0.0
        %7963 = vmatpush1.msra.mxu0 0.0
        %7964 = vmatprep.subr.mxu0 0.0
        %7965 = vmatpush1.msra.mxu0 0.0
        %7966 = vmatprep.subr.mxu0 0.0
        %7967 = vmatpush1.msra.mxu0 0.0
        %7968 = vmatprep.subr.mxu0 0.0
        %7969 = vmatpush1.msra.mxu0 0.0
        %7970 = vmatprep.subr.mxu0 0.0
        %7971 = vmatpush1.msra.mxu0 0.0
        %7972 = vmatprep.subr.mxu0 0.0
        %7973 = vmatpush1.msra.mxu0 0.0
        %7974 = vmatprep.subr.mxu0 0.0
        %7975 = vmatpush1.msra.mxu0 0.0
        %7976 = vmatprep.subr.mxu0 0.0
        %7977 = vmatpush1.msra.mxu0 0.0
        %7978 = vmatprep.subr.mxu0 0.0
        %7979 = vmatpush1.msra.mxu0 0.0
        %7980 = vmatprep.subr.mxu0 0.0
        %7981 = vmatpush1.msra.mxu0 0.0
        %7982 = vmatprep.subr.mxu0 0.0
        %7983 = vmatpush1.msra.mxu0 0.0
        %7984 = vmatprep.subr.mxu0 %v7952
        %7985 = vmatpush1.msra.mxu0 %v7950
        %7986 = vmatprep.subr.mxu0 %v7940
        %7987 = vmatpush1.msra.mxu0 %v7939
        %7988 = vmatprep.subr.mxu0 0.0
        %7989 = vmatpush2.msra.mxu0 0.0
        %7990 = vmatprep.subr.mxu0 0.0
        %7991 = vmatpush2.msra.mxu0 0.0
        %7992 = vmatprep.subr.mxu0 0.0
        %7993 = vmatpush2.msra.mxu0 0.0
        %7994 = vmatprep.subr.mxu0 0.0
        %7995 = vmatpush2.msra.mxu0 0.0
        %7996 = vmatprep.subr.mxu0 0.0
        %7997 = vmatpush2.msra.mxu0 0.0
        %7998 = vmatprep.subr.mxu0 0.0
        %7999 = vmatpush2.msra.mxu0 0.0
        %8000 = vmatprep.subr.mxu0 0.0
        %8001 = vmatpush2.msra.mxu0 0.0
        %8002 = vmatprep.subr.mxu0 0.0
        %8003 = vmatpush2.msra.mxu0 0.0
        %8004 = vmatprep.subr.mxu0 0.0
        %8005 = vmatpush2.msra.mxu0 0.0
        %8006 = vmatprep.subr.mxu0 0.0
        %8007 = vmatpush2.msra.mxu0 0.0
        %8008 = vmatprep.subr.mxu0 0.0
        %8009 = vmatpush2.msra.mxu0 0.0
        %8010 = vmatprep.subr.mxu0 0.0
        %8011 = vmatpush2.msra.mxu0 0.0
        %8012 = vmatprep.subr.mxu0 0.0
        %8013 = vmatpush2.msra.mxu0 0.0
        %8014 = vmatprep.subr.mxu0 0.0
        %8015 = vmatpush2.msra.mxu0 0.0
        %8016 = vmatprep.subr.mxu0 0.0
        %8017 = vmatpush2.msra.mxu0 0.0
        %8018 = vmatprep.subr.mxu0 0.0
        %8019 = vmatpush2.msra.mxu0 0.0
        %8020 = vmatprep.mubr.f32.mxu0 0.0
        %8021 = vmatmul.mubr.f32.gmra.mxu0 %v7948
        %v8022 = vpop.f32.mrf.mxu0
        %v8023 = vadd.f32 0.0, %v8022
        %v8024 = vpop.f32.mrf.mxu0
        %v8025 = vadd.f32 0.0, %v8024
        %8026 = vdwg.mxu0
        %8027 = vmatprep.subr.mxu0 0.0
        %8028 = vmatpush1.msra.mxu0 0.0
        %8029 = vmatprep.subr.mxu0 0.0
        %8030 = vmatpush1.msra.mxu0 0.0
        %8031 = vmatprep.subr.mxu0 0.0
        %8032 = vmatpush1.msra.mxu0 0.0
        %8033 = vmatprep.subr.mxu0 0.0
        %8034 = vmatpush1.msra.mxu0 0.0
        %8035 = vmatprep.subr.mxu0 0.0
        %8036 = vmatpush1.msra.mxu0 0.0
        %8037 = vmatprep.subr.mxu0 0.0
        %8038 = vmatpush1.msra.mxu0 0.0
        %8039 = vmatprep.subr.mxu0 0.0
        %8040 = vmatpush1.msra.mxu0 0.0
        %8041 = vmatprep.subr.mxu0 0.0
        %8042 = vmatpush1.msra.mxu0 0.0
        %8043 = vmatprep.subr.mxu0 0.0
        %8044 = vmatpush1.msra.mxu0 0.0
        %8045 = vmatprep.subr.mxu0 0.0
        %8046 = vmatpush1.msra.mxu0 0.0
        %8047 = vmatprep.subr.mxu0 0.0
        %8048 = vmatpush1.msra.mxu0 0.0
        %8049 = vmatprep.subr.mxu0 0.0
        %8050 = vmatpush1.msra.mxu0 0.0
        %8051 = vmatprep.subr.mxu0 0.0
        %8052 = vmatpush1.msra.mxu0 0.0
        %8053 = vmatprep.subr.mxu0 0.0
        %8054 = vmatpush1.msra.mxu0 0.0
        %8055 = vmatprep.subr.mxu0 0.0
        %8056 = vmatpush1.msra.mxu0 %v7954
        %8057 = vmatprep.subr.mxu0 0.0
        %8058 = vmatpush1.msra.mxu0 %v7932
        %8059 = vmatprep.subr.mxu0 0.0
        %8060 = vmatpush2.msra.mxu0 0.0
        %8061 = vmatprep.subr.mxu0 0.0
        %8062 = vmatpush2.msra.mxu0 0.0
        %8063 = vmatprep.subr.mxu0 0.0
        %8064 = vmatpush2.msra.mxu0 0.0
        %8065 = vmatprep.subr.mxu0 0.0
        %8066 = vmatpush2.msra.mxu0 0.0
        %8067 = vmatprep.subr.mxu0 0.0
        %8068 = vmatpush2.msra.mxu0 0.0
        %8069 = vmatprep.subr.mxu0 0.0
        %8070 = vmatpush2.msra.mxu0 0.0
        %8071 = vmatprep.subr.mxu0 0.0
        %8072 = vmatpush2.msra.mxu0 0.0
        %8073 = vmatprep.subr.mxu0 0.0
        %8074 = vmatpush2.msra.mxu0 0.0
        %8075 = vmatprep.subr.mxu0 0.0
        %8076 = vmatpush2.msra.mxu0 0.0
        %8077 = vmatprep.subr.mxu0 0.0
        %8078 = vmatpush2.msra.mxu0 0.0
        %8079 = vmatprep.subr.mxu0 0.0
        %8080 = vmatpush2.msra.mxu0 0.0
        %8081 = vmatprep.subr.mxu0 0.0
        %8082 = vmatpush2.msra.mxu0 0.0
        %8083 = vmatprep.subr.mxu0 0.0
        %8084 = vmatpush2.msra.mxu0 0.0
        %8085 = vmatprep.subr.mxu0 0.0
        %8086 = vmatpush2.msra.mxu0 0.0
        %8087 = vmatprep.subr.mxu0 0.0
        %8088 = vmatpush2.msra.mxu0 0.0
        %8089 = vmatprep.subr.mxu0 0.0
        %8090 = vmatpush2.msra.mxu0 0.0
        %8091 = vmatprep.mubr.f32.mxu0 0.0
        %8092 = vmatmul.mubr.f32.gmra.mxu0 %v7948
        %v8093 = vpop.f32.mrf.mxu0
        %v8094 = vadd.f32 0.0, %v8093
        %v8095 = vpop.f32.mrf.mxu0
        %8096 = vdwg.mxu0
        %v8098 = vsel %vm7946, %v7918, 0
        %v8100 = vsel %vm1874, %v7915, 0
        %v8102 = vsel %vm1874, %v7916, 0
        %v8104 = vsel %vm1874, %v7917, 0
        %8106 = vmatprep.subr.mxu0 0.0
        %8107 = vmatpush1.msra.mxu0 0.0
        %8108 = vmatprep.subr.mxu0 0.0
        %8109 = vmatpush1.msra.mxu0 0.0
        %8110 = vmatprep.subr.mxu0 0.0
        %8111 = vmatpush1.msra.mxu0 0.0
        %8112 = vmatprep.subr.mxu0 0.0
        %8113 = vmatpush1.msra.mxu0 0.0
        %8114 = vmatprep.subr.mxu0 0.0
        %8115 = vmatpush1.msra.mxu0 0.0
        %8116 = vmatprep.subr.mxu0 0.0
        %8117 = vmatpush1.msra.mxu0 0.0
        %8118 = vmatprep.subr.mxu0 0.0
        %8119 = vmatpush1.msra.mxu0 0.0
        %8120 = vmatprep.subr.mxu0 0.0
        %8121 = vmatpush1.msra.mxu0 0.0
        %8122 = vmatprep.subr.mxu0 0.0
        %8123 = vmatpush1.msra.mxu0 0.0
        %8124 = vmatprep.subr.mxu0 0.0
        %8125 = vmatpush1.msra.mxu0 0.0
        %8126 = vmatprep.subr.mxu0 0.0
        %8127 = vmatpush1.msra.mxu0 0.0
        %8128 = vmatprep.subr.mxu0 0.0
        %8129 = vmatpush1.msra.mxu0 0.0
        %8130 = vmatprep.subr.mxu0 0.0
        %8131 = vmatpush1.msra.mxu0 0.0
        %8132 = vmatprep.subr.mxu0 0.0
        %8133 = vmatpush1.msra.mxu0 0.0
        %8134 = vmatprep.subr.mxu0 %v8102
        %8135 = vmatpush1.msra.mxu0 %v8100
        %8136 = vmatprep.subr.mxu0 %v7913
        %8137 = vmatpush1.msra.mxu0 %v7912
        %8138 = vmatprep.subr.mxu0 0.0
        %8139 = vmatpush2.msra.mxu0 0.0
        %8140 = vmatprep.subr.mxu0 0.0
        %8141 = vmatpush2.msra.mxu0 0.0
        %8142 = vmatprep.subr.mxu0 0.0
        %8143 = vmatpush2.msra.mxu0 0.0
        %8144 = vmatprep.subr.mxu0 0.0
        %8145 = vmatpush2.msra.mxu0 0.0
        %8146 = vmatprep.subr.mxu0 0.0
        %8147 = vmatpush2.msra.mxu0 0.0
        %8148 = vmatprep.subr.mxu0 0.0
        %8149 = vmatpush2.msra.mxu0 0.0
        %8150 = vmatprep.subr.mxu0 0.0
        %8151 = vmatpush2.msra.mxu0 0.0
        %8152 = vmatprep.subr.mxu0 0.0
        %8153 = vmatpush2.msra.mxu0 0.0
        %8154 = vmatprep.subr.mxu0 0.0
        %8155 = vmatpush2.msra.mxu0 0.0
        %8156 = vmatprep.subr.mxu0 0.0
        %8157 = vmatpush2.msra.mxu0 0.0
        %8158 = vmatprep.subr.mxu0 0.0
        %8159 = vmatpush2.msra.mxu0 0.0
        %8160 = vmatprep.subr.mxu0 0.0
        %8161 = vmatpush2.msra.mxu0 0.0
        %8162 = vmatprep.subr.mxu0 0.0
        %8163 = vmatpush2.msra.mxu0 0.0
        %8164 = vmatprep.subr.mxu0 0.0
        %8165 = vmatpush2.msra.mxu0 0.0
        %8166 = vmatprep.subr.mxu0 0.0
        %8167 = vmatpush2.msra.mxu0 0.0
        %8168 = vmatprep.subr.mxu0 0.0
        %8169 = vmatpush2.msra.mxu0 0.0
        %8170 = vmatprep.mubr.f32.mxu0 0.0
        %8171 = vmatmul.mubr.f32.gmra.mxu0 %v8098
        %v8172 = vpop.f32.mrf.mxu0
        %v8173 = vadd.f32 %v8023, %v8172
        %v8174 = vpop.f32.mrf.mxu0
        %v8175 = vadd.f32 %v8025, %v8174
        %8176 = vdwg.mxu0
        %8177 = vmatprep.subr.mxu0 0.0
        %8178 = vmatpush1.msra.mxu0 0.0
        %8179 = vmatprep.subr.mxu0 0.0
        %8180 = vmatpush1.msra.mxu0 0.0
        %8181 = vmatprep.subr.mxu0 0.0
        %8182 = vmatpush1.msra.mxu0 0.0
        %8183 = vmatprep.subr.mxu0 0.0
        %8184 = vmatpush1.msra.mxu0 0.0
        %8185 = vmatprep.subr.mxu0 0.0
        %8186 = vmatpush1.msra.mxu0 0.0
        %8187 = vmatprep.subr.mxu0 0.0
        %8188 = vmatpush1.msra.mxu0 0.0
        %8189 = vmatprep.subr.mxu0 0.0
        %8190 = vmatpush1.msra.mxu0 0.0
        %8191 = vmatprep.subr.mxu0 0.0
        %8192 = vmatpush1.msra.mxu0 0.0
        %8193 = vmatprep.subr.mxu0 0.0
        %8194 = vmatpush1.msra.mxu0 0.0
        %8195 = vmatprep.subr.mxu0 0.0
        %8196 = vmatpush1.msra.mxu0 0.0
        %8197 = vmatprep.subr.mxu0 0.0
        %8198 = vmatpush1.msra.mxu0 0.0
        %8199 = vmatprep.subr.mxu0 0.0
        %8200 = vmatpush1.msra.mxu0 0.0
        %8201 = vmatprep.subr.mxu0 0.0
        %8202 = vmatpush1.msra.mxu0 0.0
        %8203 = vmatprep.subr.mxu0 0.0
        %8204 = vmatpush1.msra.mxu0 0.0
        %8205 = vmatprep.subr.mxu0 0.0
        %8206 = vmatpush1.msra.mxu0 %v8104
        %8207 = vmatprep.subr.mxu0 0.0
        %8208 = vmatpush1.msra.mxu0 %v7914
        %8209 = vmatprep.subr.mxu0 0.0
        %8210 = vmatpush2.msra.mxu0 0.0
        %8211 = vmatprep.subr.mxu0 0.0
        %8212 = vmatpush2.msra.mxu0 0.0
        %8213 = vmatprep.subr.mxu0 0.0
        %8214 = vmatpush2.msra.mxu0 0.0
        %8215 = vmatprep.subr.mxu0 0.0
        %8216 = vmatpush2.msra.mxu0 0.0
        %8217 = vmatprep.subr.mxu0 0.0
        %8218 = vmatpush2.msra.mxu0 0.0
        %8219 = vmatprep.subr.mxu0 0.0
        %8220 = vmatpush2.msra.mxu0 0.0
        %8221 = vmatprep.subr.mxu0 0.0
        %8222 = vmatpush2.msra.mxu0 0.0
        %8223 = vmatprep.subr.mxu0 0.0
        %8224 = vmatpush2.msra.mxu0 0.0
        %8225 = vmatprep.subr.mxu0 0.0
        %8226 = vmatpush2.msra.mxu0 0.0
        %8227 = vmatprep.subr.mxu0 0.0
        %8228 = vmatpush2.msra.mxu0 0.0
        %8229 = vmatprep.subr.mxu0 0.0
        %8230 = vmatpush2.msra.mxu0 0.0
        %8231 = vmatprep.subr.mxu0 0.0
        %8232 = vmatpush2.msra.mxu0 0.0
        %8233 = vmatprep.subr.mxu0 0.0
        %8234 = vmatpush2.msra.mxu0 0.0
        %8235 = vmatprep.subr.mxu0 0.0
        %8236 = vmatpush2.msra.mxu0 0.0
        %8237 = vmatprep.subr.mxu0 0.0
        %8238 = vmatpush2.msra.mxu0 0.0
        %8239 = vmatprep.subr.mxu0 0.0
        %8240 = vmatpush2.msra.mxu0 0.0
        %8241 = vmatprep.mubr.f32.mxu0 0.0
        %8242 = vmatmul.mubr.f32.gmra.mxu0 %v8098
        %v8243 = vpop.f32.mrf.mxu0
        %v8244 = vadd.f32 %v8094, %v8243
        %v8245 = vpop.f32.mrf.mxu0
        %8246 = vdwg.mxu0
        %s8247 = scalar_lea.vmem %s7, 8
        %v8248 = vld [vmem:[%s8247] sm:$0xf]
        %8249 = vrot.lane.b32.xlu0 %v7912, 126
        %v8250 = vpop.permute.xlu0 %8249
        %8251 = vrot.lane.b32.xlu0 %v7913, 126
        %v8252 = vpop.permute.xlu0 %8251
        %8253 = vrot.lane.b32.xlu0 %v7914, 126
        %v8254 = vpop.permute.xlu0 %8253
        %8255 = vrot.lane.b32.xlu0 %v7915, 126
        %v8256 = vpop.permute.xlu0 %8255
        %8257 = vrot.lane.b32.xlu0 %v7916, 126
        %v8258 = vpop.permute.xlu0 %8257
        %8259 = vrot.lane.b32.xlu0 %v7917, 126
        %v8260 = vpop.permute.xlu0 %8259
        %v8261 = vsel %vm645, %v8250, %v8252
        %v8262 = vsel %vm645, %v8252, %v8254
        %v8263 = vsel %vm645, %v8256, %v8258
        %v8264 = vsel %vm645, %v8258, %v8260
        %v8269 = vsel %vm7946, %v8248, 0
        %v8271 = vsel %vm1874, %v8263, 0
        %v8273 = vsel %vm1874, %v8264, 0
        %v8275 = vsel %vm1874, %v8260, 0
        %8277 = vmatprep.subr.mxu0 0.0
        %8278 = vmatpush1.msra.mxu0 0.0
        %8279 = vmatprep.subr.mxu0 0.0
        %8280 = vmatpush1.msra.mxu0 0.0
        %8281 = vmatprep.subr.mxu0 0.0
        %8282 = vmatpush1.msra.mxu0 0.0
        %8283 = vmatprep.subr.mxu0 0.0
        %8284 = vmatpush1.msra.mxu0 0.0
        %8285 = vmatprep.subr.mxu0 0.0
        %8286 = vmatpush1.msra.mxu0 0.0
        %8287 = vmatprep.subr.mxu0 0.0
        %8288 = vmatpush1.msra.mxu0 0.0
        %8289 = vmatprep.subr.mxu0 0.0
        %8290 = vmatpush1.msra.mxu0 0.0
        %8291 = vmatprep.subr.mxu0 0.0
        %8292 = vmatpush1.msra.mxu0 0.0
        %8293 = vmatprep.subr.mxu0 0.0
        %8294 = vmatpush1.msra.mxu0 0.0
        %8295 = vmatprep.subr.mxu0 0.0
        %8296 = vmatpush1.msra.mxu0 0.0
        %8297 = vmatprep.subr.mxu0 0.0
        %8298 = vmatpush1.msra.mxu0 0.0
        %8299 = vmatprep.subr.mxu0 0.0
        %8300 = vmatpush1.msra.mxu0 0.0
        %8301 = vmatprep.subr.mxu0 0.0
        %8302 = vmatpush1.msra.mxu0 0.0
        %8303 = vmatprep.subr.mxu0 0.0
        %8304 = vmatpush1.msra.mxu0 0.0
        %8305 = vmatprep.subr.mxu0 %v8273
        %8306 = vmatpush1.msra.mxu0 %v8271
        %8307 = vmatprep.subr.mxu0 %v8262
        %8308 = vmatpush1.msra.mxu0 %v8261
        %8309 = vmatprep.subr.mxu0 0.0
        %8310 = vmatpush2.msra.mxu0 0.0
        %8311 = vmatprep.subr.mxu0 0.0
        %8312 = vmatpush2.msra.mxu0 0.0
        %8313 = vmatprep.subr.mxu0 0.0
        %8314 = vmatpush2.msra.mxu0 0.0
        %8315 = vmatprep.subr.mxu0 0.0
        %8316 = vmatpush2.msra.mxu0 0.0
        %8317 = vmatprep.subr.mxu0 0.0
        %8318 = vmatpush2.msra.mxu0 0.0
        %8319 = vmatprep.subr.mxu0 0.0
        %8320 = vmatpush2.msra.mxu0 0.0
        %8321 = vmatprep.subr.mxu0 0.0
        %8322 = vmatpush2.msra.mxu0 0.0
        %8323 = vmatprep.subr.mxu0 0.0
        %8324 = vmatpush2.msra.mxu0 0.0
        %8325 = vmatprep.subr.mxu0 0.0
        %8326 = vmatpush2.msra.mxu0 0.0
        %8327 = vmatprep.subr.mxu0 0.0
        %8328 = vmatpush2.msra.mxu0 0.0
        %8329 = vmatprep.subr.mxu0 0.0
        %8330 = vmatpush2.msra.mxu0 0.0
        %8331 = vmatprep.subr.mxu0 0.0
        %8332 = vmatpush2.msra.mxu0 0.0
        %8333 = vmatprep.subr.mxu0 0.0
        %8334 = vmatpush2.msra.mxu0 0.0
        %8335 = vmatprep.subr.mxu0 0.0
        %8336 = vmatpush2.msra.mxu0 0.0
        %8337 = vmatprep.subr.mxu0 0.0
        %8338 = vmatpush2.msra.mxu0 0.0
        %8339 = vmatprep.subr.mxu0 0.0
        %8340 = vmatpush2.msra.mxu0 0.0
        %8341 = vmatprep.mubr.f32.mxu0 0.0
        %8342 = vmatmul.mubr.f32.gmra.mxu0 %v8269
        %v8343 = vpop.f32.mrf.mxu0
        %v8344 = vadd.f32 0.0, %v8343
        %v8345 = vpop.f32.mrf.mxu0
        %v8346 = vadd.f32 0.0, %v8345
        %8347 = vdwg.mxu0
        %8348 = vmatprep.subr.mxu0 0.0
        %8349 = vmatpush1.msra.mxu0 0.0
        %8350 = vmatprep.subr.mxu0 0.0
        %8351 = vmatpush1.msra.mxu0 0.0
        %8352 = vmatprep.subr.mxu0 0.0
        %8353 = vmatpush1.msra.mxu0 0.0
        %8354 = vmatprep.subr.mxu0 0.0
        %8355 = vmatpush1.msra.mxu0 0.0
        %8356 = vmatprep.subr.mxu0 0.0
        %8357 = vmatpush1.msra.mxu0 0.0
        %8358 = vmatprep.subr.mxu0 0.0
        %8359 = vmatpush1.msra.mxu0 0.0
        %8360 = vmatprep.subr.mxu0 0.0
        %8361 = vmatpush1.msra.mxu0 0.0
        %8362 = vmatprep.subr.mxu0 0.0
        %8363 = vmatpush1.msra.mxu0 0.0
        %8364 = vmatprep.subr.mxu0 0.0
        %8365 = vmatpush1.msra.mxu0 0.0
        %8366 = vmatprep.subr.mxu0 0.0
        %8367 = vmatpush1.msra.mxu0 0.0
        %8368 = vmatprep.subr.mxu0 0.0
        %8369 = vmatpush1.msra.mxu0 0.0
        %8370 = vmatprep.subr.mxu0 0.0
        %8371 = vmatpush1.msra.mxu0 0.0
        %8372 = vmatprep.subr.mxu0 0.0
        %8373 = vmatpush1.msra.mxu0 0.0
        %8374 = vmatprep.subr.mxu0 0.0
        %8375 = vmatpush1.msra.mxu0 0.0
        %8376 = vmatprep.subr.mxu0 0.0
        %8377 = vmatpush1.msra.mxu0 %v8275
        %8378 = vmatprep.subr.mxu0 0.0
        %8379 = vmatpush1.msra.mxu0 %v8254
        %8380 = vmatprep.subr.mxu0 0.0
        %8381 = vmatpush2.msra.mxu0 0.0
        %8382 = vmatprep.subr.mxu0 0.0
        %8383 = vmatpush2.msra.mxu0 0.0
        %8384 = vmatprep.subr.mxu0 0.0
        %8385 = vmatpush2.msra.mxu0 0.0
        %8386 = vmatprep.subr.mxu0 0.0
        %8387 = vmatpush2.msra.mxu0 0.0
        %8388 = vmatprep.subr.mxu0 0.0
        %8389 = vmatpush2.msra.mxu0 0.0
        %8390 = vmatprep.subr.mxu0 0.0
        %8391 = vmatpush2.msra.mxu0 0.0
        %8392 = vmatprep.subr.mxu0 0.0
        %8393 = vmatpush2.msra.mxu0 0.0
        %8394 = vmatprep.subr.mxu0 0.0
        %8395 = vmatpush2.msra.mxu0 0.0
        %8396 = vmatprep.subr.mxu0 0.0
        %8397 = vmatpush2.msra.mxu0 0.0
        %8398 = vmatprep.subr.mxu0 0.0
        %8399 = vmatpush2.msra.mxu0 0.0
        %8400 = vmatprep.subr.mxu0 0.0
        %8401 = vmatpush2.msra.mxu0 0.0
        %8402 = vmatprep.subr.mxu0 0.0
        %8403 = vmatpush2.msra.mxu0 0.0
        %8404 = vmatprep.subr.mxu0 0.0
        %8405 = vmatpush2.msra.mxu0 0.0
        %8406 = vmatprep.subr.mxu0 0.0
        %8407 = vmatpush2.msra.mxu0 0.0
        %8408 = vmatprep.subr.mxu0 0.0
        %8409 = vmatpush2.msra.mxu0 0.0
        %8410 = vmatprep.subr.mxu0 0.0
        %8411 = vmatpush2.msra.mxu0 0.0
        %8412 = vmatprep.mubr.f32.mxu0 0.0
        %8413 = vmatmul.mubr.f32.gmra.mxu0 %v8269
        %v8414 = vpop.f32.mrf.mxu0
        %v8415 = vadd.f32 0.0, %v8414
        %v8416 = vpop.f32.mrf.mxu0
        %8417 = vdwg.mxu0
        %v8418 = vadd.f32 %v8173, %v8344
        %v8419 = vadd.f32 %v8175, %v8346
        %v8420 = vadd.f32 %v8244, %v8415
        %s8421 = scalar_lea.vmem %s7, 12
        %v8422 = vld [vmem:[%s8421] sm:$0xf]
        %8423 = vrot.lane.b32.xlu0 %v7912, 110
        %v8424 = vpop.permute.xlu0 %8423
        %8425 = vrot.lane.b32.xlu0 %v7913, 110
        %v8426 = vpop.permute.xlu0 %8425
        %8427 = vrot.lane.b32.xlu0 %v7914, 110
        %v8428 = vpop.permute.xlu0 %8427
        %8429 = vrot.lane.b32.xlu0 %v7915, 110
        %v8430 = vpop.permute.xlu0 %8429
        %8431 = vrot.lane.b32.xlu0 %v7916, 110
        %v8432 = vpop.permute.xlu0 %8431
        %8433 = vrot.lane.b32.xlu0 %v7917, 110
        %v8434 = vpop.permute.xlu0 %8433
        %v8435 = vsel %vm814, %v8424, %v8426
        %v8436 = vsel %vm814, %v8426, %v8428
        %v8437 = vsel %vm814, %v8430, %v8432
        %v8438 = vsel %vm814, %v8432, %v8434
        %v8443 = vsel %vm7946, %v8422, 0
        %v8445 = vsel %vm1874, %v8437, 0
        %v8447 = vsel %vm1874, %v8438, 0
        %v8449 = vsel %vm1874, %v8434, 0
        %8451 = vmatprep.subr.mxu0 0.0
        %8452 = vmatpush1.msra.mxu0 0.0
        %8453 = vmatprep.subr.mxu0 0.0
        %8454 = vmatpush1.msra.mxu0 0.0
        %8455 = vmatprep.subr.mxu0 0.0
        %8456 = vmatpush1.msra.mxu0 0.0
        %8457 = vmatprep.subr.mxu0 0.0
        %8458 = vmatpush1.msra.mxu0 0.0
        %8459 = vmatprep.subr.mxu0 0.0
        %8460 = vmatpush1.msra.mxu0 0.0
        %8461 = vmatprep.subr.mxu0 0.0
        %8462 = vmatpush1.msra.mxu0 0.0
        %8463 = vmatprep.subr.mxu0 0.0
        %8464 = vmatpush1.msra.mxu0 0.0
        %8465 = vmatprep.subr.mxu0 0.0
        %8466 = vmatpush1.msra.mxu0 0.0
        %8467 = vmatprep.subr.mxu0 0.0
        %8468 = vmatpush1.msra.mxu0 0.0
        %8469 = vmatprep.subr.mxu0 0.0
        %8470 = vmatpush1.msra.mxu0 0.0
        %8471 = vmatprep.subr.mxu0 0.0
        %8472 = vmatpush1.msra.mxu0 0.0
        %8473 = vmatprep.subr.mxu0 0.0
        %8474 = vmatpush1.msra.mxu0 0.0
        %8475 = vmatprep.subr.mxu0 0.0
        %8476 = vmatpush1.msra.mxu0 0.0
        %8477 = vmatprep.subr.mxu0 0.0
        %8478 = vmatpush1.msra.mxu0 0.0
        %8479 = vmatprep.subr.mxu0 %v8447
        %8480 = vmatpush1.msra.mxu0 %v8445
        %8481 = vmatprep.subr.mxu0 %v8436
        %8482 = vmatpush1.msra.mxu0 %v8435
        %8483 = vmatprep.subr.mxu0 0.0
        %8484 = vmatpush2.msra.mxu0 0.0
        %8485 = vmatprep.subr.mxu0 0.0
        %8486 = vmatpush2.msra.mxu0 0.0
        %8487 = vmatprep.subr.mxu0 0.0
        %8488 = vmatpush2.msra.mxu0 0.0
        %8489 = vmatprep.subr.mxu0 0.0
        %8490 = vmatpush2.msra.mxu0 0.0
        %8491 = vmatprep.subr.mxu0 0.0
        %8492 = vmatpush2.msra.mxu0 0.0
        %8493 = vmatprep.subr.mxu0 0.0
        %8494 = vmatpush2.msra.mxu0 0.0
        %8495 = vmatprep.subr.mxu0 0.0
        %8496 = vmatpush2.msra.mxu0 0.0
        %8497 = vmatprep.subr.mxu0 0.0
        %8498 = vmatpush2.msra.mxu0 0.0
        %8499 = vmatprep.subr.mxu0 0.0
        %8500 = vmatpush2.msra.mxu0 0.0
        %8501 = vmatprep.subr.mxu0 0.0
        %8502 = vmatpush2.msra.mxu0 0.0
        %8503 = vmatprep.subr.mxu0 0.0
        %8504 = vmatpush2.msra.mxu0 0.0
        %8505 = vmatprep.subr.mxu0 0.0
        %8506 = vmatpush2.msra.mxu0 0.0
        %8507 = vmatprep.subr.mxu0 0.0
        %8508 = vmatpush2.msra.mxu0 0.0
        %8509 = vmatprep.subr.mxu0 0.0
        %8510 = vmatpush2.msra.mxu0 0.0
        %8511 = vmatprep.subr.mxu0 0.0
        %8512 = vmatpush2.msra.mxu0 0.0
        %8513 = vmatprep.subr.mxu0 0.0
        %8514 = vmatpush2.msra.mxu0 0.0
        %8515 = vmatprep.mubr.f32.mxu0 0.0
        %8516 = vmatmul.mubr.f32.gmra.mxu0 %v8443
        %v8517 = vpop.f32.mrf.mxu0
        %v8518 = vadd.f32 0.0, %v8517
        %v8519 = vpop.f32.mrf.mxu0
        %v8520 = vadd.f32 0.0, %v8519
        %8521 = vdwg.mxu0
        %8522 = vmatprep.subr.mxu0 0.0
        %8523 = vmatpush1.msra.mxu0 0.0
        %8524 = vmatprep.subr.mxu0 0.0
        %8525 = vmatpush1.msra.mxu0 0.0
        %8526 = vmatprep.subr.mxu0 0.0
        %8527 = vmatpush1.msra.mxu0 0.0
        %8528 = vmatprep.subr.mxu0 0.0
        %8529 = vmatpush1.msra.mxu0 0.0
        %8530 = vmatprep.subr.mxu0 0.0
        %8531 = vmatpush1.msra.mxu0 0.0
        %8532 = vmatprep.subr.mxu0 0.0
        %8533 = vmatpush1.msra.mxu0 0.0
        %8534 = vmatprep.subr.mxu0 0.0
        %8535 = vmatpush1.msra.mxu0 0.0
        %8536 = vmatprep.subr.mxu0 0.0
        %8537 = vmatpush1.msra.mxu0 0.0
        %8538 = vmatprep.subr.mxu0 0.0
        %8539 = vmatpush1.msra.mxu0 0.0
        %8540 = vmatprep.subr.mxu0 0.0
        %8541 = vmatpush1.msra.mxu0 0.0
        %8542 = vmatprep.subr.mxu0 0.0
        %8543 = vmatpush1.msra.mxu0 0.0
        %8544 = vmatprep.subr.mxu0 0.0
        %8545 = vmatpush1.msra.mxu0 0.0
        %8546 = vmatprep.subr.mxu0 0.0
        %8547 = vmatpush1.msra.mxu0 0.0
        %8548 = vmatprep.subr.mxu0 0.0
        %8549 = vmatpush1.msra.mxu0 0.0
        %8550 = vmatprep.subr.mxu0 0.0
        %8551 = vmatpush1.msra.mxu0 %v8449
        %8552 = vmatprep.subr.mxu0 0.0
        %8553 = vmatpush1.msra.mxu0 %v8428
        %8554 = vmatprep.subr.mxu0 0.0
        %8555 = vmatpush2.msra.mxu0 0.0
        %8556 = vmatprep.subr.mxu0 0.0
        %8557 = vmatpush2.msra.mxu0 0.0
        %8558 = vmatprep.subr.mxu0 0.0
        %8559 = vmatpush2.msra.mxu0 0.0
        %8560 = vmatprep.subr.mxu0 0.0
        %8561 = vmatpush2.msra.mxu0 0.0
        %8562 = vmatprep.subr.mxu0 0.0
        %8563 = vmatpush2.msra.mxu0 0.0
        %8564 = vmatprep.subr.mxu0 0.0
        %8565 = vmatpush2.msra.mxu0 0.0
        %8566 = vmatprep.subr.mxu0 0.0
        %8567 = vmatpush2.msra.mxu0 0.0
        %8568 = vmatprep.subr.mxu0 0.0
        %8569 = vmatpush2.msra.mxu0 0.0
        %8570 = vmatprep.subr.mxu0 0.0
        %8571 = vmatpush2.msra.mxu0 0.0
        %8572 = vmatprep.subr.mxu0 0.0
        %8573 = vmatpush2.msra.mxu0 0.0
        %8574 = vmatprep.subr.mxu0 0.0
        %8575 = vmatpush2.msra.mxu0 0.0
        %8576 = vmatprep.subr.mxu0 0.0
        %8577 = vmatpush2.msra.mxu0 0.0
        %8578 = vmatprep.subr.mxu0 0.0
        %8579 = vmatpush2.msra.mxu0 0.0
        %8580 = vmatprep.subr.mxu0 0.0
        %8581 = vmatpush2.msra.mxu0 0.0
        %8582 = vmatprep.subr.mxu0 0.0
        %8583 = vmatpush2.msra.mxu0 0.0
        %8584 = vmatprep.subr.mxu0 0.0
        %8585 = vmatpush2.msra.mxu0 0.0
        %8586 = vmatprep.mubr.f32.mxu0 0.0
        %8587 = vmatmul.mubr.f32.gmra.mxu0 %v8443
        %v8588 = vpop.f32.mrf.mxu0
        %v8589 = vadd.f32 0.0, %v8588
        %v8590 = vpop.f32.mrf.mxu0
        %8591 = vdwg.mxu0
        %v8592 = vadd.f32 %v8418, %v8518
        %v8593 = vadd.f32 %v8419, %v8520
        %v8594 = vadd.f32 %v8420, %v8589
        %s8595 = scalar_lea.vmem %s7, 16
        %v8596 = vld [vmem:[%s8595] sm:$0xf]
        %8597 = vrot.lane.b32.xlu0 %v7912, 109
        %v8598 = vpop.permute.xlu0 %8597
        %8599 = vrot.lane.b32.xlu0 %v7913, 109
        %v8600 = vpop.permute.xlu0 %8599
        %8601 = vrot.lane.b32.xlu0 %v7914, 109
        %v8602 = vpop.permute.xlu0 %8601
        %8603 = vrot.lane.b32.xlu0 %v7915, 109
        %v8604 = vpop.permute.xlu0 %8603
        %8605 = vrot.lane.b32.xlu0 %v7916, 109
        %v8606 = vpop.permute.xlu0 %8605
        %8607 = vrot.lane.b32.xlu0 %v7917, 109
        %v8608 = vpop.permute.xlu0 %8607
        %v8609 = vsel %vm983, %v8598, %v8600
        %v8610 = vsel %vm983, %v8600, %v8602
        %v8611 = vsel %vm983, %v8604, %v8606
        %v8612 = vsel %vm983, %v8606, %v8608
        %v8617 = vsel %vm7946, %v8596, 0
        %v8619 = vsel %vm1874, %v8611, 0
        %v8621 = vsel %vm1874, %v8612, 0
        %v8623 = vsel %vm1874, %v8608, 0
        %8625 = vmatprep.subr.mxu0 0.0
        %8626 = vmatpush1.msra.mxu0 0.0
        %8627 = vmatprep.subr.mxu0 0.0
        %8628 = vmatpush1.msra.mxu0 0.0
        %8629 = vmatprep.subr.mxu0 0.0
        %8630 = vmatpush1.msra.mxu0 0.0
        %8631 = vmatprep.subr.mxu0 0.0
        %8632 = vmatpush1.msra.mxu0 0.0
        %8633 = vmatprep.subr.mxu0 0.0
        %8634 = vmatpush1.msra.mxu0 0.0
        %8635 = vmatprep.subr.mxu0 0.0
        %8636 = vmatpush1.msra.mxu0 0.0
        %8637 = vmatprep.subr.mxu0 0.0
        %8638 = vmatpush1.msra.mxu0 0.0
        %8639 = vmatprep.subr.mxu0 0.0
        %8640 = vmatpush1.msra.mxu0 0.0
        %8641 = vmatprep.subr.mxu0 0.0
        %8642 = vmatpush1.msra.mxu0 0.0
        %8643 = vmatprep.subr.mxu0 0.0
        %8644 = vmatpush1.msra.mxu0 0.0
        %8645 = vmatprep.subr.mxu0 0.0
        %8646 = vmatpush1.msra.mxu0 0.0
        %8647 = vmatprep.subr.mxu0 0.0
        %8648 = vmatpush1.msra.mxu0 0.0
        %8649 = vmatprep.subr.mxu0 0.0
        %8650 = vmatpush1.msra.mxu0 0.0
        %8651 = vmatprep.subr.mxu0 0.0
        %8652 = vmatpush1.msra.mxu0 0.0
        %8653 = vmatprep.subr.mxu0 %v8621
        %8654 = vmatpush1.msra.mxu0 %v8619
        %8655 = vmatprep.subr.mxu0 %v8610
        %8656 = vmatpush1.msra.mxu0 %v8609
        %8657 = vmatprep.subr.mxu0 0.0
        %8658 = vmatpush2.msra.mxu0 0.0
        %8659 = vmatprep.subr.mxu0 0.0
        %8660 = vmatpush2.msra.mxu0 0.0
        %8661 = vmatprep.subr.mxu0 0.0
        %8662 = vmatpush2.msra.mxu0 0.0
        %8663 = vmatprep.subr.mxu0 0.0
        %8664 = vmatpush2.msra.mxu0 0.0
        %8665 = vmatprep.subr.mxu0 0.0
        %8666 = vmatpush2.msra.mxu0 0.0
        %8667 = vmatprep.subr.mxu0 0.0
        %8668 = vmatpush2.msra.mxu0 0.0
        %8669 = vmatprep.subr.mxu0 0.0
        %8670 = vmatpush2.msra.mxu0 0.0
        %8671 = vmatprep.subr.mxu0 0.0
        %8672 = vmatpush2.msra.mxu0 0.0
        %8673 = vmatprep.subr.mxu0 0.0
        %8674 = vmatpush2.msra.mxu0 0.0
        %8675 = vmatprep.subr.mxu0 0.0
        %8676 = vmatpush2.msra.mxu0 0.0
        %8677 = vmatprep.subr.mxu0 0.0
        %8678 = vmatpush2.msra.mxu0 0.0
        %8679 = vmatprep.subr.mxu0 0.0
        %8680 = vmatpush2.msra.mxu0 0.0
        %8681 = vmatprep.subr.mxu0 0.0
        %8682 = vmatpush2.msra.mxu0 0.0
        %8683 = vmatprep.subr.mxu0 0.0
        %8684 = vmatpush2.msra.mxu0 0.0
        %8685 = vmatprep.subr.mxu0 0.0
        %8686 = vmatpush2.msra.mxu0 0.0
        %8687 = vmatprep.subr.mxu0 0.0
        %8688 = vmatpush2.msra.mxu0 0.0
        %8689 = vmatprep.mubr.f32.mxu0 0.0
        %8690 = vmatmul.mubr.f32.gmra.mxu0 %v8617
        %v8691 = vpop.f32.mrf.mxu0
        %v8692 = vadd.f32 0.0, %v8691
        %v8693 = vpop.f32.mrf.mxu0
        %v8694 = vadd.f32 0.0, %v8693
        %8695 = vdwg.mxu0
        %8696 = vmatprep.subr.mxu0 0.0
        %8697 = vmatpush1.msra.mxu0 0.0
        %8698 = vmatprep.subr.mxu0 0.0
        %8699 = vmatpush1.msra.mxu0 0.0
        %8700 = vmatprep.subr.mxu0 0.0
        %8701 = vmatpush1.msra.mxu0 0.0
        %8702 = vmatprep.subr.mxu0 0.0
        %8703 = vmatpush1.msra.mxu0 0.0
        %8704 = vmatprep.subr.mxu0 0.0
        %8705 = vmatpush1.msra.mxu0 0.0
        %8706 = vmatprep.subr.mxu0 0.0
        %8707 = vmatpush1.msra.mxu0 0.0
        %8708 = vmatprep.subr.mxu0 0.0
        %8709 = vmatpush1.msra.mxu0 0.0
        %8710 = vmatprep.subr.mxu0 0.0
        %8711 = vmatpush1.msra.mxu0 0.0
        %8712 = vmatprep.subr.mxu0 0.0
        %8713 = vmatpush1.msra.mxu0 0.0
        %8714 = vmatprep.subr.mxu0 0.0
        %8715 = vmatpush1.msra.mxu0 0.0
        %8716 = vmatprep.subr.mxu0 0.0
        %8717 = vmatpush1.msra.mxu0 0.0
        %8718 = vmatprep.subr.mxu0 0.0
        %8719 = vmatpush1.msra.mxu0 0.0
        %8720 = vmatprep.subr.mxu0 0.0
        %8721 = vmatpush1.msra.mxu0 0.0
        %8722 = vmatprep.subr.mxu0 0.0
        %8723 = vmatpush1.msra.mxu0 0.0
        %8724 = vmatprep.subr.mxu0 0.0
        %8725 = vmatpush1.msra.mxu0 %v8623
        %8726 = vmatprep.subr.mxu0 0.0
        %8727 = vmatpush1.msra.mxu0 %v8602
        %8728 = vmatprep.subr.mxu0 0.0
        %8729 = vmatpush2.msra.mxu0 0.0
        %8730 = vmatprep.subr.mxu0 0.0
        %8731 = vmatpush2.msra.mxu0 0.0
        %8732 = vmatprep.subr.mxu0 0.0
        %8733 = vmatpush2.msra.mxu0 0.0
        %8734 = vmatprep.subr.mxu0 0.0
        %8735 = vmatpush2.msra.mxu0 0.0
        %8736 = vmatprep.subr.mxu0 0.0
        %8737 = vmatpush2.msra.mxu0 0.0
        %8738 = vmatprep.subr.mxu0 0.0
        %8739 = vmatpush2.msra.mxu0 0.0
        %8740 = vmatprep.subr.mxu0 0.0
        %8741 = vmatpush2.msra.mxu0 0.0
        %8742 = vmatprep.subr.mxu0 0.0
        %8743 = vmatpush2.msra.mxu0 0.0
        %8744 = vmatprep.subr.mxu0 0.0
        %8745 = vmatpush2.msra.mxu0 0.0
        %8746 = vmatprep.subr.mxu0 0.0
        %8747 = vmatpush2.msra.mxu0 0.0
        %8748 = vmatprep.subr.mxu0 0.0
        %8749 = vmatpush2.msra.mxu0 0.0
        %8750 = vmatprep.subr.mxu0 0.0
        %8751 = vmatpush2.msra.mxu0 0.0
        %8752 = vmatprep.subr.mxu0 0.0
        %8753 = vmatpush2.msra.mxu0 0.0
        %8754 = vmatprep.subr.mxu0 0.0
        %8755 = vmatpush2.msra.mxu0 0.0
        %8756 = vmatprep.subr.mxu0 0.0
        %8757 = vmatpush2.msra.mxu0 0.0
        %8758 = vmatprep.subr.mxu0 0.0
        %8759 = vmatpush2.msra.mxu0 0.0
        %8760 = vmatprep.mubr.f32.mxu0 0.0
        %8761 = vmatmul.mubr.f32.gmra.mxu0 %v8617
        %v8762 = vpop.f32.mrf.mxu0
        %v8763 = vadd.f32 0.0, %v8762
        %v8764 = vpop.f32.mrf.mxu0
        %8765 = vdwg.mxu0
        %v8766 = vadd.f32 %v8592, %v8692
        %v8767 = vadd.f32 %v8593, %v8694
        %v8768 = vadd.f32 %v8594, %v8763
        %s8769 = scalar_lea.vmem %s7, 20
        %v8770 = vld [vmem:[%s8769] sm:$0xf]
        %8771 = vrot.lane.b32.xlu0 %v7912, 108
        %v8772 = vpop.permute.xlu0 %8771
        %8773 = vrot.lane.b32.xlu0 %v7913, 108
        %v8774 = vpop.permute.xlu0 %8773
        %8775 = vrot.lane.b32.xlu0 %v7914, 108
        %v8776 = vpop.permute.xlu0 %8775
        %8777 = vrot.lane.b32.xlu0 %v7915, 108
        %v8778 = vpop.permute.xlu0 %8777
        %8779 = vrot.lane.b32.xlu0 %v7916, 108
        %v8780 = vpop.permute.xlu0 %8779
        %8781 = vrot.lane.b32.xlu0 %v7917, 108
        %v8782 = vpop.permute.xlu0 %8781
        %v8783 = vsel %vm1152, %v8772, %v8774
        %v8784 = vsel %vm1152, %v8774, %v8776
        %v8785 = vsel %vm1152, %v8778, %v8780
        %v8786 = vsel %vm1152, %v8780, %v8782
        %v8791 = vsel %vm7946, %v8770, 0
        %v8793 = vsel %vm1874, %v8785, 0
        %v8795 = vsel %vm1874, %v8786, 0
        %v8797 = vsel %vm1874, %v8782, 0
        %8799 = vmatprep.subr.mxu0 0.0
        %8800 = vmatpush1.msra.mxu0 0.0
        %8801 = vmatprep.subr.mxu0 0.0
        %8802 = vmatpush1.msra.mxu0 0.0
        %8803 = vmatprep.subr.mxu0 0.0
        %8804 = vmatpush1.msra.mxu0 0.0
        %8805 = vmatprep.subr.mxu0 0.0
        %8806 = vmatpush1.msra.mxu0 0.0
        %8807 = vmatprep.subr.mxu0 0.0
        %8808 = vmatpush1.msra.mxu0 0.0
        %8809 = vmatprep.subr.mxu0 0.0
        %8810 = vmatpush1.msra.mxu0 0.0
        %8811 = vmatprep.subr.mxu0 0.0
        %8812 = vmatpush1.msra.mxu0 0.0
        %8813 = vmatprep.subr.mxu0 0.0
        %8814 = vmatpush1.msra.mxu0 0.0
        %8815 = vmatprep.subr.mxu0 0.0
        %8816 = vmatpush1.msra.mxu0 0.0
        %8817 = vmatprep.subr.mxu0 0.0
        %8818 = vmatpush1.msra.mxu0 0.0
        %8819 = vmatprep.subr.mxu0 0.0
        %8820 = vmatpush1.msra.mxu0 0.0
        %8821 = vmatprep.subr.mxu0 0.0
        %8822 = vmatpush1.msra.mxu0 0.0
        %8823 = vmatprep.subr.mxu0 0.0
        %8824 = vmatpush1.msra.mxu0 0.0
        %8825 = vmatprep.subr.mxu0 0.0
        %8826 = vmatpush1.msra.mxu0 0.0
        %8827 = vmatprep.subr.mxu0 %v8795
        %8828 = vmatpush1.msra.mxu0 %v8793
        %8829 = vmatprep.subr.mxu0 %v8784
        %8830 = vmatpush1.msra.mxu0 %v8783
        %8831 = vmatprep.subr.mxu0 0.0
        %8832 = vmatpush2.msra.mxu0 0.0
        %8833 = vmatprep.subr.mxu0 0.0
        %8834 = vmatpush2.msra.mxu0 0.0
        %8835 = vmatprep.subr.mxu0 0.0
        %8836 = vmatpush2.msra.mxu0 0.0
        %8837 = vmatprep.subr.mxu0 0.0
        %8838 = vmatpush2.msra.mxu0 0.0
        %8839 = vmatprep.subr.mxu0 0.0
        %8840 = vmatpush2.msra.mxu0 0.0
        %8841 = vmatprep.subr.mxu0 0.0
        %8842 = vmatpush2.msra.mxu0 0.0
        %8843 = vmatprep.subr.mxu0 0.0
        %8844 = vmatpush2.msra.mxu0 0.0
        %8845 = vmatprep.subr.mxu0 0.0
        %8846 = vmatpush2.msra.mxu0 0.0
        %8847 = vmatprep.subr.mxu0 0.0
        %8848 = vmatpush2.msra.mxu0 0.0
        %8849 = vmatprep.subr.mxu0 0.0
        %8850 = vmatpush2.msra.mxu0 0.0
        %8851 = vmatprep.subr.mxu0 0.0
        %8852 = vmatpush2.msra.mxu0 0.0
        %8853 = vmatprep.subr.mxu0 0.0
        %8854 = vmatpush2.msra.mxu0 0.0
        %8855 = vmatprep.subr.mxu0 0.0
        %8856 = vmatpush2.msra.mxu0 0.0
        %8857 = vmatprep.subr.mxu0 0.0
        %8858 = vmatpush2.msra.mxu0 0.0
        %8859 = vmatprep.subr.mxu0 0.0
        %8860 = vmatpush2.msra.mxu0 0.0
        %8861 = vmatprep.subr.mxu0 0.0
        %8862 = vmatpush2.msra.mxu0 0.0
        %8863 = vmatprep.mubr.f32.mxu0 0.0
        %8864 = vmatmul.mubr.f32.gmra.mxu0 %v8791
        %v8865 = vpop.f32.mrf.mxu0
        %v8866 = vadd.f32 0.0, %v8865
        %v8867 = vpop.f32.mrf.mxu0
        %v8868 = vadd.f32 0.0, %v8867
        %8869 = vdwg.mxu0
        %8870 = vmatprep.subr.mxu0 0.0
        %8871 = vmatpush1.msra.mxu0 0.0
        %8872 = vmatprep.subr.mxu0 0.0
        %8873 = vmatpush1.msra.mxu0 0.0
        %8874 = vmatprep.subr.mxu0 0.0
        %8875 = vmatpush1.msra.mxu0 0.0
        %8876 = vmatprep.subr.mxu0 0.0
        %8877 = vmatpush1.msra.mxu0 0.0
        %8878 = vmatprep.subr.mxu0 0.0
        %8879 = vmatpush1.msra.mxu0 0.0
        %8880 = vmatprep.subr.mxu0 0.0
        %8881 = vmatpush1.msra.mxu0 0.0
        %8882 = vmatprep.subr.mxu0 0.0
        %8883 = vmatpush1.msra.mxu0 0.0
        %8884 = vmatprep.subr.mxu0 0.0
        %8885 = vmatpush1.msra.mxu0 0.0
        %8886 = vmatprep.subr.mxu0 0.0
        %8887 = vmatpush1.msra.mxu0 0.0
        %8888 = vmatprep.subr.mxu0 0.0
        %8889 = vmatpush1.msra.mxu0 0.0
        %8890 = vmatprep.subr.mxu0 0.0
        %8891 = vmatpush1.msra.mxu0 0.0
        %8892 = vmatprep.subr.mxu0 0.0
        %8893 = vmatpush1.msra.mxu0 0.0
        %8894 = vmatprep.subr.mxu0 0.0
        %8895 = vmatpush1.msra.mxu0 0.0
        %8896 = vmatprep.subr.mxu0 0.0
        %8897 = vmatpush1.msra.mxu0 0.0
        %8898 = vmatprep.subr.mxu0 0.0
        %8899 = vmatpush1.msra.mxu0 %v8797
        %8900 = vmatprep.subr.mxu0 0.0
        %8901 = vmatpush1.msra.mxu0 %v8776
        %8902 = vmatprep.subr.mxu0 0.0
        %8903 = vmatpush2.msra.mxu0 0.0
        %8904 = vmatprep.subr.mxu0 0.0
        %8905 = vmatpush2.msra.mxu0 0.0
        %8906 = vmatprep.subr.mxu0 0.0
        %8907 = vmatpush2.msra.mxu0 0.0
        %8908 = vmatprep.subr.mxu0 0.0
        %8909 = vmatpush2.msra.mxu0 0.0
        %8910 = vmatprep.subr.mxu0 0.0
        %8911 = vmatpush2.msra.mxu0 0.0
        %8912 = vmatprep.subr.mxu0 0.0
        %8913 = vmatpush2.msra.mxu0 0.0
        %8914 = vmatprep.subr.mxu0 0.0
        %8915 = vmatpush2.msra.mxu0 0.0
        %8916 = vmatprep.subr.mxu0 0.0
        %8917 = vmatpush2.msra.mxu0 0.0
        %8918 = vmatprep.subr.mxu0 0.0
        %8919 = vmatpush2.msra.mxu0 0.0
        %8920 = vmatprep.subr.mxu0 0.0
        %8921 = vmatpush2.msra.mxu0 0.0
        %8922 = vmatprep.subr.mxu0 0.0
        %8923 = vmatpush2.msra.mxu0 0.0
        %8924 = vmatprep.subr.mxu0 0.0
        %8925 = vmatpush2.msra.mxu0 0.0
        %8926 = vmatprep.subr.mxu0 0.0
        %8927 = vmatpush2.msra.mxu0 0.0
        %8928 = vmatprep.subr.mxu0 0.0
        %8929 = vmatpush2.msra.mxu0 0.0
        %8930 = vmatprep.subr.mxu0 0.0
        %8931 = vmatpush2.msra.mxu0 0.0
        %8932 = vmatprep.subr.mxu0 0.0
        %8933 = vmatpush2.msra.mxu0 0.0
        %8934 = vmatprep.mubr.f32.mxu0 0.0
        %8935 = vmatmul.mubr.f32.gmra.mxu0 %v8791
        %v8936 = vpop.f32.mrf.mxu0
        %v8937 = vadd.f32 0.0, %v8936
        %v8938 = vpop.f32.mrf.mxu0
        %8939 = vdwg.mxu0
        %v8940 = vadd.f32 %v8766, %v8866
        %v8941 = vadd.f32 %v8767, %v8868
        %v8942 = vadd.f32 %v8768, %v8937
        %s8943 = scalar_lea.vmem %s7, 24
        %v8944 = vld [vmem:[%s8943] sm:$0xf]
        %8945 = vrot.lane.b32.xlu0 %v7912, 92
        %v8946 = vpop.permute.xlu0 %8945
        %8947 = vrot.lane.b32.xlu0 %v7913, 92
        %v8948 = vpop.permute.xlu0 %8947
        %8949 = vrot.lane.b32.xlu0 %v7914, 92
        %v8950 = vpop.permute.xlu0 %8949
        %8951 = vrot.lane.b32.xlu0 %v7915, 92
        %v8952 = vpop.permute.xlu0 %8951
        %8953 = vrot.lane.b32.xlu0 %v7916, 92
        %v8954 = vpop.permute.xlu0 %8953
        %8955 = vrot.lane.b32.xlu0 %v7917, 92
        %v8956 = vpop.permute.xlu0 %8955
        %v8957 = vsel %vm1321, %v8946, %v8948
        %v8958 = vsel %vm1321, %v8948, %v8950
        %v8959 = vsel %vm1321, %v8952, %v8954
        %v8960 = vsel %vm1321, %v8954, %v8956
        %v8965 = vsel %vm7946, %v8944, 0
        %v8967 = vsel %vm1874, %v8959, 0
        %v8969 = vsel %vm1874, %v8960, 0
        %v8971 = vsel %vm1874, %v8956, 0
        %8973 = vmatprep.subr.mxu0 0.0
        %8974 = vmatpush1.msra.mxu0 0.0
        %8975 = vmatprep.subr.mxu0 0.0
        %8976 = vmatpush1.msra.mxu0 0.0
        %8977 = vmatprep.subr.mxu0 0.0
        %8978 = vmatpush1.msra.mxu0 0.0
        %8979 = vmatprep.subr.mxu0 0.0
        %8980 = vmatpush1.msra.mxu0 0.0
        %8981 = vmatprep.subr.mxu0 0.0
        %8982 = vmatpush1.msra.mxu0 0.0
        %8983 = vmatprep.subr.mxu0 0.0
        %8984 = vmatpush1.msra.mxu0 0.0
        %8985 = vmatprep.subr.mxu0 0.0
        %8986 = vmatpush1.msra.mxu0 0.0
        %8987 = vmatprep.subr.mxu0 0.0
        %8988 = vmatpush1.msra.mxu0 0.0
        %8989 = vmatprep.subr.mxu0 0.0
        %8990 = vmatpush1.msra.mxu0 0.0
        %8991 = vmatprep.subr.mxu0 0.0
        %8992 = vmatpush1.msra.mxu0 0.0
        %8993 = vmatprep.subr.mxu0 0.0
        %8994 = vmatpush1.msra.mxu0 0.0
        %8995 = vmatprep.subr.mxu0 0.0
        %8996 = vmatpush1.msra.mxu0 0.0
        %8997 = vmatprep.subr.mxu0 0.0
        %8998 = vmatpush1.msra.mxu0 0.0
        %8999 = vmatprep.subr.mxu0 0.0
        %9000 = vmatpush1.msra.mxu0 0.0
        %9001 = vmatprep.subr.mxu0 %v8969
        %9002 = vmatpush1.msra.mxu0 %v8967
        %9003 = vmatprep.subr.mxu0 %v8958
        %9004 = vmatpush1.msra.mxu0 %v8957
        %9005 = vmatprep.subr.mxu0 0.0
        %9006 = vmatpush2.msra.mxu0 0.0
        %9007 = vmatprep.subr.mxu0 0.0
        %9008 = vmatpush2.msra.mxu0 0.0
        %9009 = vmatprep.subr.mxu0 0.0
        %9010 = vmatpush2.msra.mxu0 0.0
        %9011 = vmatprep.subr.mxu0 0.0
        %9012 = vmatpush2.msra.mxu0 0.0
        %9013 = vmatprep.subr.mxu0 0.0
        %9014 = vmatpush2.msra.mxu0 0.0
        %9015 = vmatprep.subr.mxu0 0.0
        %9016 = vmatpush2.msra.mxu0 0.0
        %9017 = vmatprep.subr.mxu0 0.0
        %9018 = vmatpush2.msra.mxu0 0.0
        %9019 = vmatprep.subr.mxu0 0.0
        %9020 = vmatpush2.msra.mxu0 0.0
        %9021 = vmatprep.subr.mxu0 0.0
        %9022 = vmatpush2.msra.mxu0 0.0
        %9023 = vmatprep.subr.mxu0 0.0
        %9024 = vmatpush2.msra.mxu0 0.0
        %9025 = vmatprep.subr.mxu0 0.0
        %9026 = vmatpush2.msra.mxu0 0.0
        %9027 = vmatprep.subr.mxu0 0.0
        %9028 = vmatpush2.msra.mxu0 0.0
        %9029 = vmatprep.subr.mxu0 0.0
        %9030 = vmatpush2.msra.mxu0 0.0
        %9031 = vmatprep.subr.mxu0 0.0
        %9032 = vmatpush2.msra.mxu0 0.0
        %9033 = vmatprep.subr.mxu0 0.0
        %9034 = vmatpush2.msra.mxu0 0.0
        %9035 = vmatprep.subr.mxu0 0.0
        %9036 = vmatpush2.msra.mxu0 0.0
        %9037 = vmatprep.mubr.f32.mxu0 0.0
        %9038 = vmatmul.mubr.f32.gmra.mxu0 %v8965
        %v9039 = vpop.f32.mrf.mxu0
        %v9040 = vadd.f32 0.0, %v9039
        %v9041 = vpop.f32.mrf.mxu0
        %v9042 = vadd.f32 0.0, %v9041
        %9043 = vdwg.mxu0
        %9044 = vmatprep.subr.mxu0 0.0
        %9045 = vmatpush1.msra.mxu0 0.0
        %9046 = vmatprep.subr.mxu0 0.0
        %9047 = vmatpush1.msra.mxu0 0.0
        %9048 = vmatprep.subr.mxu0 0.0
        %9049 = vmatpush1.msra.mxu0 0.0
        %9050 = vmatprep.subr.mxu0 0.0
        %9051 = vmatpush1.msra.mxu0 0.0
        %9052 = vmatprep.subr.mxu0 0.0
        %9053 = vmatpush1.msra.mxu0 0.0
        %9054 = vmatprep.subr.mxu0 0.0
        %9055 = vmatpush1.msra.mxu0 0.0
        %9056 = vmatprep.subr.mxu0 0.0
        %9057 = vmatpush1.msra.mxu0 0.0
        %9058 = vmatprep.subr.mxu0 0.0
        %9059 = vmatpush1.msra.mxu0 0.0
        %9060 = vmatprep.subr.mxu0 0.0
        %9061 = vmatpush1.msra.mxu0 0.0
        %9062 = vmatprep.subr.mxu0 0.0
        %9063 = vmatpush1.msra.mxu0 0.0
        %9064 = vmatprep.subr.mxu0 0.0
        %9065 = vmatpush1.msra.mxu0 0.0
        %9066 = vmatprep.subr.mxu0 0.0
        %9067 = vmatpush1.msra.mxu0 0.0
        %9068 = vmatprep.subr.mxu0 0.0
        %9069 = vmatpush1.msra.mxu0 0.0
        %9070 = vmatprep.subr.mxu0 0.0
        %9071 = vmatpush1.msra.mxu0 0.0
        %9072 = vmatprep.subr.mxu0 0.0
        %9073 = vmatpush1.msra.mxu0 %v8971
        %9074 = vmatprep.subr.mxu0 0.0
        %9075 = vmatpush1.msra.mxu0 %v8950
        %9076 = vmatprep.subr.mxu0 0.0
        %9077 = vmatpush2.msra.mxu0 0.0
        %9078 = vmatprep.subr.mxu0 0.0
        %9079 = vmatpush2.msra.mxu0 0.0
        %9080 = vmatprep.subr.mxu0 0.0
        %9081 = vmatpush2.msra.mxu0 0.0
        %9082 = vmatprep.subr.mxu0 0.0
        %9083 = vmatpush2.msra.mxu0 0.0
        %9084 = vmatprep.subr.mxu0 0.0
        %9085 = vmatpush2.msra.mxu0 0.0
        %9086 = vmatprep.subr.mxu0 0.0
        %9087 = vmatpush2.msra.mxu0 0.0
        %9088 = vmatprep.subr.mxu0 0.0
        %9089 = vmatpush2.msra.mxu0 0.0
        %9090 = vmatprep.subr.mxu0 0.0
        %9091 = vmatpush2.msra.mxu0 0.0
        %9092 = vmatprep.subr.mxu0 0.0
        %9093 = vmatpush2.msra.mxu0 0.0
        %9094 = vmatprep.subr.mxu0 0.0
        %9095 = vmatpush2.msra.mxu0 0.0
        %9096 = vmatprep.subr.mxu0 0.0
        %9097 = vmatpush2.msra.mxu0 0.0
        %9098 = vmatprep.subr.mxu0 0.0
        %9099 = vmatpush2.msra.mxu0 0.0
        %9100 = vmatprep.subr.mxu0 0.0
        %9101 = vmatpush2.msra.mxu0 0.0
        %9102 = vmatprep.subr.mxu0 0.0
        %9103 = vmatpush2.msra.mxu0 0.0
        %9104 = vmatprep.subr.mxu0 0.0
        %9105 = vmatpush2.msra.mxu0 0.0
        %9106 = vmatprep.subr.mxu0 0.0
        %9107 = vmatpush2.msra.mxu0 0.0
        %9108 = vmatprep.mubr.f32.mxu0 0.0
        %9109 = vmatmul.mubr.f32.gmra.mxu0 %v8965
        %v9110 = vpop.f32.mrf.mxu0
        %v9111 = vadd.f32 0.0, %v9110
        %v9112 = vpop.f32.mrf.mxu0
        %9113 = vdwg.mxu0
        %v9114 = vadd.f32 %v8940, %v9040
        %v9115 = vadd.f32 %v8941, %v9042
        %v9116 = vadd.f32 %v8942, %v9111
        %s9117 = scalar_lea.vmem %s7, 28
        %v9118 = vld [vmem:[%s9117] sm:$0xf]
        %9119 = vrot.lane.b32.xlu0 %v7912, 91
        %v9120 = vpop.permute.xlu0 %9119
        %9121 = vrot.lane.b32.xlu0 %v7913, 91
        %v9122 = vpop.permute.xlu0 %9121
        %9123 = vrot.lane.b32.xlu0 %v7914, 91
        %v9124 = vpop.permute.xlu0 %9123
        %9125 = vrot.lane.b32.xlu0 %v7915, 91
        %v9126 = vpop.permute.xlu0 %9125
        %9127 = vrot.lane.b32.xlu0 %v7916, 91
        %v9128 = vpop.permute.xlu0 %9127
        %9129 = vrot.lane.b32.xlu0 %v7917, 91
        %v9130 = vpop.permute.xlu0 %9129
        %v9131 = vsel %vm1490, %v9120, %v9122
        %v9132 = vsel %vm1490, %v9122, %v9124
        %v9133 = vsel %vm1490, %v9126, %v9128
        %v9134 = vsel %vm1490, %v9128, %v9130
        %v9139 = vsel %vm7946, %v9118, 0
        %v9141 = vsel %vm1874, %v9133, 0
        %v9143 = vsel %vm1874, %v9134, 0
        %v9145 = vsel %vm1874, %v9130, 0
        %9147 = vmatprep.subr.mxu0 0.0
        %9148 = vmatpush1.msra.mxu0 0.0
        %9149 = vmatprep.subr.mxu0 0.0
        %9150 = vmatpush1.msra.mxu0 0.0
        %9151 = vmatprep.subr.mxu0 0.0
        %9152 = vmatpush1.msra.mxu0 0.0
        %9153 = vmatprep.subr.mxu0 0.0
        %9154 = vmatpush1.msra.mxu0 0.0
        %9155 = vmatprep.subr.mxu0 0.0
        %9156 = vmatpush1.msra.mxu0 0.0
        %9157 = vmatprep.subr.mxu0 0.0
        %9158 = vmatpush1.msra.mxu0 0.0
        %9159 = vmatprep.subr.mxu0 0.0
        %9160 = vmatpush1.msra.mxu0 0.0
        %9161 = vmatprep.subr.mxu0 0.0
        %9162 = vmatpush1.msra.mxu0 0.0
        %9163 = vmatprep.subr.mxu0 0.0
        %9164 = vmatpush1.msra.mxu0 0.0
        %9165 = vmatprep.subr.mxu0 0.0
        %9166 = vmatpush1.msra.mxu0 0.0
        %9167 = vmatprep.subr.mxu0 0.0
        %9168 = vmatpush1.msra.mxu0 0.0
        %9169 = vmatprep.subr.mxu0 0.0
        %9170 = vmatpush1.msra.mxu0 0.0
        %9171 = vmatprep.subr.mxu0 0.0
        %9172 = vmatpush1.msra.mxu0 0.0
        %9173 = vmatprep.subr.mxu0 0.0
        %9174 = vmatpush1.msra.mxu0 0.0
        %9175 = vmatprep.subr.mxu0 %v9143
        %9176 = vmatpush1.msra.mxu0 %v9141
        %9177 = vmatprep.subr.mxu0 %v9132
        %9178 = vmatpush1.msra.mxu0 %v9131
        %9179 = vmatprep.subr.mxu0 0.0
        %9180 = vmatpush2.msra.mxu0 0.0
        %9181 = vmatprep.subr.mxu0 0.0
        %9182 = vmatpush2.msra.mxu0 0.0
        %9183 = vmatprep.subr.mxu0 0.0
        %9184 = vmatpush2.msra.mxu0 0.0
        %9185 = vmatprep.subr.mxu0 0.0
        %9186 = vmatpush2.msra.mxu0 0.0
        %9187 = vmatprep.subr.mxu0 0.0
        %9188 = vmatpush2.msra.mxu0 0.0
        %9189 = vmatprep.subr.mxu0 0.0
        %9190 = vmatpush2.msra.mxu0 0.0
        %9191 = vmatprep.subr.mxu0 0.0
        %9192 = vmatpush2.msra.mxu0 0.0
        %9193 = vmatprep.subr.mxu0 0.0
        %9194 = vmatpush2.msra.mxu0 0.0
        %9195 = vmatprep.subr.mxu0 0.0
        %9196 = vmatpush2.msra.mxu0 0.0
        %9197 = vmatprep.subr.mxu0 0.0
        %9198 = vmatpush2.msra.mxu0 0.0
        %9199 = vmatprep.subr.mxu0 0.0
        %9200 = vmatpush2.msra.mxu0 0.0
        %9201 = vmatprep.subr.mxu0 0.0
        %9202 = vmatpush2.msra.mxu0 0.0
        %9203 = vmatprep.subr.mxu0 0.0
        %9204 = vmatpush2.msra.mxu0 0.0
        %9205 = vmatprep.subr.mxu0 0.0
        %9206 = vmatpush2.msra.mxu0 0.0
        %9207 = vmatprep.subr.mxu0 0.0
        %9208 = vmatpush2.msra.mxu0 0.0
        %9209 = vmatprep.subr.mxu0 0.0
        %9210 = vmatpush2.msra.mxu0 0.0
        %9211 = vmatprep.mubr.f32.mxu0 0.0
        %9212 = vmatmul.mubr.f32.gmra.mxu0 %v9139
        %v9213 = vpop.f32.mrf.mxu0
        %v9214 = vadd.f32 0.0, %v9213
        %v9215 = vpop.f32.mrf.mxu0
        %v9216 = vadd.f32 0.0, %v9215
        %9217 = vdwg.mxu0
        %9218 = vmatprep.subr.mxu0 0.0
        %9219 = vmatpush1.msra.mxu0 0.0
        %9220 = vmatprep.subr.mxu0 0.0
        %9221 = vmatpush1.msra.mxu0 0.0
        %9222 = vmatprep.subr.mxu0 0.0
        %9223 = vmatpush1.msra.mxu0 0.0
        %9224 = vmatprep.subr.mxu0 0.0
        %9225 = vmatpush1.msra.mxu0 0.0
        %9226 = vmatprep.subr.mxu0 0.0
        %9227 = vmatpush1.msra.mxu0 0.0
        %9228 = vmatprep.subr.mxu0 0.0
        %9229 = vmatpush1.msra.mxu0 0.0
        %9230 = vmatprep.subr.mxu0 0.0
        %9231 = vmatpush1.msra.mxu0 0.0
        %9232 = vmatprep.subr.mxu0 0.0
        %9233 = vmatpush1.msra.mxu0 0.0
        %9234 = vmatprep.subr.mxu0 0.0
        %9235 = vmatpush1.msra.mxu0 0.0
        %9236 = vmatprep.subr.mxu0 0.0
        %9237 = vmatpush1.msra.mxu0 0.0
        %9238 = vmatprep.subr.mxu0 0.0
        %9239 = vmatpush1.msra.mxu0 0.0
        %9240 = vmatprep.subr.mxu0 0.0
        %9241 = vmatpush1.msra.mxu0 0.0
        %9242 = vmatprep.subr.mxu0 0.0
        %9243 = vmatpush1.msra.mxu0 0.0
        %9244 = vmatprep.subr.mxu0 0.0
        %9245 = vmatpush1.msra.mxu0 0.0
        %9246 = vmatprep.subr.mxu0 0.0
        %9247 = vmatpush1.msra.mxu0 %v9145
        %9248 = vmatprep.subr.mxu0 0.0
        %9249 = vmatpush1.msra.mxu0 %v9124
        %9250 = vmatprep.subr.mxu0 0.0
        %9251 = vmatpush2.msra.mxu0 0.0
        %9252 = vmatprep.subr.mxu0 0.0
        %9253 = vmatpush2.msra.mxu0 0.0
        %9254 = vmatprep.subr.mxu0 0.0
        %9255 = vmatpush2.msra.mxu0 0.0
        %9256 = vmatprep.subr.mxu0 0.0
        %9257 = vmatpush2.msra.mxu0 0.0
        %9258 = vmatprep.subr.mxu0 0.0
        %9259 = vmatpush2.msra.mxu0 0.0
        %9260 = vmatprep.subr.mxu0 0.0
        %9261 = vmatpush2.msra.mxu0 0.0
        %9262 = vmatprep.subr.mxu0 0.0
        %9263 = vmatpush2.msra.mxu0 0.0
        %9264 = vmatprep.subr.mxu0 0.0
        %9265 = vmatpush2.msra.mxu0 0.0
        %9266 = vmatprep.subr.mxu0 0.0
        %9267 = vmatpush2.msra.mxu0 0.0
        %9268 = vmatprep.subr.mxu0 0.0
        %9269 = vmatpush2.msra.mxu0 0.0
        %9270 = vmatprep.subr.mxu0 0.0
        %9271 = vmatpush2.msra.mxu0 0.0
        %9272 = vmatprep.subr.mxu0 0.0
        %9273 = vmatpush2.msra.mxu0 0.0
        %9274 = vmatprep.subr.mxu0 0.0
        %9275 = vmatpush2.msra.mxu0 0.0
        %9276 = vmatprep.subr.mxu0 0.0
        %9277 = vmatpush2.msra.mxu0 0.0
        %9278 = vmatprep.subr.mxu0 0.0
        %9279 = vmatpush2.msra.mxu0 0.0
        %9280 = vmatprep.subr.mxu0 0.0
        %9281 = vmatpush2.msra.mxu0 0.0
        %9282 = vmatprep.mubr.f32.mxu0 0.0
        %9283 = vmatmul.mubr.f32.gmra.mxu0 %v9139
        %v9284 = vpop.f32.mrf.mxu0
        %v9285 = vadd.f32 0.0, %v9284
        %v9286 = vpop.f32.mrf.mxu0
        %9287 = vdwg.mxu0
        %v9288 = vadd.f32 %v9114, %v9214
        %v9289 = vadd.f32 %v9115, %v9216
        %v9290 = vadd.f32 %v9116, %v9285
        %s9291 = scalar_lea.vmem %s7, 32
        %v9292 = vld [vmem:[%s9291] sm:$0xf]
        %9293 = vrot.lane.b32.xlu0 %v7912, 90
        %v9294 = vpop.permute.xlu0 %9293
        %9295 = vrot.lane.b32.xlu0 %v7913, 90
        %v9296 = vpop.permute.xlu0 %9295
        %9297 = vrot.lane.b32.xlu0 %v7914, 90
        %v9298 = vpop.permute.xlu0 %9297
        %9299 = vrot.lane.b32.xlu0 %v7915, 90
        %v9300 = vpop.permute.xlu0 %9299
        %9301 = vrot.lane.b32.xlu0 %v7916, 90
        %v9302 = vpop.permute.xlu0 %9301
        %9303 = vrot.lane.b32.xlu0 %v7917, 90
        %v9304 = vpop.permute.xlu0 %9303
        %v9305 = vsel %vm1659, %v9294, %v9296
        %v9306 = vsel %vm1659, %v9296, %v9298
        %v9307 = vsel %vm1659, %v9300, %v9302
        %v9308 = vsel %vm1659, %v9302, %v9304
        %v9313 = vsel %vm7946, %v9292, 0
        %v9315 = vsel %vm1874, %v9307, 0
        %v9317 = vsel %vm1874, %v9308, 0
        %v9319 = vsel %vm1874, %v9304, 0
        %9321 = vmatprep.subr.mxu0 0.0
        %9322 = vmatpush1.msra.mxu0 0.0
        %9323 = vmatprep.subr.mxu0 0.0
        %9324 = vmatpush1.msra.mxu0 0.0
        %9325 = vmatprep.subr.mxu0 0.0
        %9326 = vmatpush1.msra.mxu0 0.0
        %9327 = vmatprep.subr.mxu0 0.0
        %9328 = vmatpush1.msra.mxu0 0.0
        %9329 = vmatprep.subr.mxu0 0.0
        %9330 = vmatpush1.msra.mxu0 0.0
        %9331 = vmatprep.subr.mxu0 0.0
        %9332 = vmatpush1.msra.mxu0 0.0
        %9333 = vmatprep.subr.mxu0 0.0
        %9334 = vmatpush1.msra.mxu0 0.0
        %9335 = vmatprep.subr.mxu0 0.0
        %9336 = vmatpush1.msra.mxu0 0.0
        %9337 = vmatprep.subr.mxu0 0.0
        %9338 = vmatpush1.msra.mxu0 0.0
        %9339 = vmatprep.subr.mxu0 0.0
        %9340 = vmatpush1.msra.mxu0 0.0
        %9341 = vmatprep.subr.mxu0 0.0
        %9342 = vmatpush1.msra.mxu0 0.0
        %9343 = vmatprep.subr.mxu0 0.0
        %9344 = vmatpush1.msra.mxu0 0.0
        %9345 = vmatprep.subr.mxu0 0.0
        %9346 = vmatpush1.msra.mxu0 0.0
        %9347 = vmatprep.subr.mxu0 0.0
        %9348 = vmatpush1.msra.mxu0 0.0
        %9349 = vmatprep.subr.mxu0 %v9317
        %9350 = vmatpush1.msra.mxu0 %v9315
        %9351 = vmatprep.subr.mxu0 %v9306
        %9352 = vmatpush1.msra.mxu0 %v9305
        %9353 = vmatprep.subr.mxu0 0.0
        %9354 = vmatpush2.msra.mxu0 0.0
        %9355 = vmatprep.subr.mxu0 0.0
        %9356 = vmatpush2.msra.mxu0 0.0
        %9357 = vmatprep.subr.mxu0 0.0
        %9358 = vmatpush2.msra.mxu0 0.0
        %9359 = vmatprep.subr.mxu0 0.0
        %9360 = vmatpush2.msra.mxu0 0.0
        %9361 = vmatprep.subr.mxu0 0.0
        %9362 = vmatpush2.msra.mxu0 0.0
        %9363 = vmatprep.subr.mxu0 0.0
        %9364 = vmatpush2.msra.mxu0 0.0
        %9365 = vmatprep.subr.mxu0 0.0
        %9366 = vmatpush2.msra.mxu0 0.0
        %9367 = vmatprep.subr.mxu0 0.0
        %9368 = vmatpush2.msra.mxu0 0.0
        %9369 = vmatprep.subr.mxu0 0.0
        %9370 = vmatpush2.msra.mxu0 0.0
        %9371 = vmatprep.subr.mxu0 0.0
        %9372 = vmatpush2.msra.mxu0 0.0
        %9373 = vmatprep.subr.mxu0 0.0
        %9374 = vmatpush2.msra.mxu0 0.0
        %9375 = vmatprep.subr.mxu0 0.0
        %9376 = vmatpush2.msra.mxu0 0.0
        %9377 = vmatprep.subr.mxu0 0.0
        %9378 = vmatpush2.msra.mxu0 0.0
        %9379 = vmatprep.subr.mxu0 0.0
        %9380 = vmatpush2.msra.mxu0 0.0
        %9381 = vmatprep.subr.mxu0 0.0
        %9382 = vmatpush2.msra.mxu0 0.0
        %9383 = vmatprep.subr.mxu0 0.0
        %9384 = vmatpush2.msra.mxu0 0.0
        %9385 = vmatprep.mubr.f32.mxu0 0.0
        %9386 = vmatmul.mubr.f32.gmra.mxu0 %v9313
        %v9387 = vpop.f32.mrf.mxu0
        %v9388 = vadd.f32 0.0, %v9387
        %v9389 = vpop.f32.mrf.mxu0
        %v9390 = vadd.f32 0.0, %v9389
        %9391 = vdwg.mxu0
        %9392 = vmatprep.subr.mxu0 0.0
        %9393 = vmatpush1.msra.mxu0 0.0
        %9394 = vmatprep.subr.mxu0 0.0
        %9395 = vmatpush1.msra.mxu0 0.0
        %9396 = vmatprep.subr.mxu0 0.0
        %9397 = vmatpush1.msra.mxu0 0.0
        %9398 = vmatprep.subr.mxu0 0.0
        %9399 = vmatpush1.msra.mxu0 0.0
        %9400 = vmatprep.subr.mxu0 0.0
        %9401 = vmatpush1.msra.mxu0 0.0
        %9402 = vmatprep.subr.mxu0 0.0
        %9403 = vmatpush1.msra.mxu0 0.0
        %9404 = vmatprep.subr.mxu0 0.0
        %9405 = vmatpush1.msra.mxu0 0.0
        %9406 = vmatprep.subr.mxu0 0.0
        %9407 = vmatpush1.msra.mxu0 0.0
        %9408 = vmatprep.subr.mxu0 0.0
        %9409 = vmatpush1.msra.mxu0 0.0
        %9410 = vmatprep.subr.mxu0 0.0
        %9411 = vmatpush1.msra.mxu0 0.0
        %9412 = vmatprep.subr.mxu0 0.0
        %9413 = vmatpush1.msra.mxu0 0.0
        %9414 = vmatprep.subr.mxu0 0.0
        %9415 = vmatpush1.msra.mxu0 0.0
        %9416 = vmatprep.subr.mxu0 0.0
        %9417 = vmatpush1.msra.mxu0 0.0
        %9418 = vmatprep.subr.mxu0 0.0
        %9419 = vmatpush1.msra.mxu0 0.0
        %9420 = vmatprep.subr.mxu0 0.0
        %9421 = vmatpush1.msra.mxu0 %v9319
        %9422 = vmatprep.subr.mxu0 0.0
        %9423 = vmatpush1.msra.mxu0 %v9298
        %9424 = vmatprep.subr.mxu0 0.0
        %9425 = vmatpush2.msra.mxu0 0.0
        %9426 = vmatprep.subr.mxu0 0.0
        %9427 = vmatpush2.msra.mxu0 0.0
        %9428 = vmatprep.subr.mxu0 0.0
        %9429 = vmatpush2.msra.mxu0 0.0
        %9430 = vmatprep.subr.mxu0 0.0
        %9431 = vmatpush2.msra.mxu0 0.0
        %9432 = vmatprep.subr.mxu0 0.0
        %9433 = vmatpush2.msra.mxu0 0.0
        %9434 = vmatprep.subr.mxu0 0.0
        %9435 = vmatpush2.msra.mxu0 0.0
        %9436 = vmatprep.subr.mxu0 0.0
        %9437 = vmatpush2.msra.mxu0 0.0
        %9438 = vmatprep.subr.mxu0 0.0
        %9439 = vmatpush2.msra.mxu0 0.0
        %9440 = vmatprep.subr.mxu0 0.0
        %9441 = vmatpush2.msra.mxu0 0.0
        %9442 = vmatprep.subr.mxu0 0.0
        %9443 = vmatpush2.msra.mxu0 0.0
        %9444 = vmatprep.subr.mxu0 0.0
        %9445 = vmatpush2.msra.mxu0 0.0
        %9446 = vmatprep.subr.mxu0 0.0
        %9447 = vmatpush2.msra.mxu0 0.0
        %9448 = vmatprep.subr.mxu0 0.0
        %9449 = vmatpush2.msra.mxu0 0.0
        %9450 = vmatprep.subr.mxu0 0.0
        %9451 = vmatpush2.msra.mxu0 0.0
        %9452 = vmatprep.subr.mxu0 0.0
        %9453 = vmatpush2.msra.mxu0 0.0
        %9454 = vmatprep.subr.mxu0 0.0
        %9455 = vmatpush2.msra.mxu0 0.0
        %9456 = vmatprep.mubr.f32.mxu0 0.0
        %9457 = vmatmul.mubr.f32.gmra.mxu0 %v9313
        %v9458 = vpop.f32.mrf.mxu0
        %v9459 = vadd.f32 0.0, %v9458
        %v9460 = vpop.f32.mrf.mxu0
        %9461 = vdwg.mxu0
        %v9462 = vadd.f32 %v9288, %v9388
        %v9463 = vadd.f32 %v9289, %v9390
        %v9464 = vadd.f32 %v9290, %v9459
        %v9467 = vcombine.low %v9462, %v9463
        %9469 = vst [vmem:[%s298] sm:$0xff] %v9467
        %vm9470 = vcmask 257024
        %9471 = vst.msk [vmem:[%s298 + $0x8] sm:$0xf] %vm9470, %v9464
        %s9472 = sand.u32 %s203, 1
        %s9473 = scalar_lea.sflag [#allocation4], %s9472
        %s9474 = sand.u32 %s203, 1
        %s9475 = smul.addr %s9474, 12
        %s9476 = scalar_lea.vmem [#allocation3], %s9475
        // Predicated region
        $region53: #{tpu_custom_call.1} parent=51 // pred_check
          %p9477 = pneg %p213
        $region54: #{tpu_custom_call.1} parent=51 // pred_check_branch
          %9479 = sbr.rel (%p9477) target = $region56
        $region55: #{tpu_custom_call.1} parent=51 // pred_region
          %s9481 = ssub.s32 192, 192
          %9482 = vsyncadd %s9473, %s9481
          %s9483 = smul.addr %s22, 3
          %s9484 = smul.addr %s9483, 64
          %s9485 = scalar_lea.hbm %s8, %s9484
          %s9487 = sshll.u32 %s9476, 4
          %s9488 = int_to_ptr.vmem [resolvable:$true] %s9487
          %9490 = dma.vmem_to_hbm [thread:$0]  %s9488, 192, %s9485, %s9473
        $region56: #{tpu_custom_call.1} parent=51 // pred_fallthru
          _
      $region52: #{tpu_custom_call.1} parent=5 // pred_fallthru
        _
      %p9491 = scmp.le.s32.totalorder 2, %s17
      // Predicated region
      $region57: #{tpu_custom_call.1} parent=5 // pred_check
        %p9492 = pneg %p9491
      $region58: #{tpu_custom_call.1} parent=5 // pred_check_branch
        %9494 = sbr.rel (%p9492) target = $region60
      $region59: #{tpu_custom_call.1} parent=5 // pred_region
        %s9495 = ssub.s32 %s17, 2
        // Predicated region
        $region61: #{tpu_custom_call.1} parent=59 // pred_check
          %p9496 = pneg %p219
        $region62: #{tpu_custom_call.1} parent=59 // pred_check_branch
          %9498 = sbr.rel (%p9496) target = $region64
        $region63: #{tpu_custom_call.1} parent=59 // pred_region
          %s9499 = sand.u32 %s204, 1
          %s9500 = scalar_lea.sflag [#allocation4], %s9499
          %s9501 = sand.u32 %s204, 1
          %s9502 = smul.addr %s9501, 12
          %s9503 = scalar_lea.vmem [#allocation3], %s9502
          %9504 = dma.done %s9500, 192
        $region64: #{tpu_custom_call.1} parent=59 // pred_fallthru
          _
      $region60: #{tpu_custom_call.1} parent=5 // pred_fallthru
        _
    $region6: #{tpu_custom_call.1} parent=1 // loop_footer
      %s21 = sadd.s32 1, %s17
    $region7: #{tpu_custom_call.1} parent=1 // loop_footer_branch
      %16 = sbr.rel target = $region3
    $region8: #{tpu_custom_call.1} parent=1 // loop_exit
      _
    %9505 = vsyncpa [#allocation4], 1
    %s9506 = scalar_lea.sflag [#allocation4], 1
    %9507 = vsyncpa %s9506, 1

</llo_original>
